<compile_context>
chip_gen: v6e
topology: v6e:2x2x1
jax: 0.10.0
libtpu: 0.0.40
codegen_flags: <defaults>
</compile_context>

<pallas_src>
import numpy as np
import jax
import jax.numpy as jnp
from jax import lax
from jax.experimental import pallas as pl
from jax.experimental.pallas import tpu as pltpu


# ----------------------------------------------------------------------------
# Fused conv1 -> relu -> conv2 -> relu -> 2x2 maxpool kernel (one image / step)
# ----------------------------------------------------------------------------
def _conv_fused_kernel(p1_ref, w1_ref, b1_ref, w2_ref, b2_ref, s_ref, o_ref,
                       p2_ref):
    # p1_ref: (1, 676, 9) conv1 im2col patches, rows ordered (h, w) over 26x26
    # w1_ref: (9, 32), b1_ref: (1, 32)   -- conv1 weight/bias (tap-major rows)
    # w2_ref: (288, 64), b2_ref: (1, 64) -- conv2 weight/bias ((kh,kw,cin) rows)
    # s_ref : (144, 595) one-hot pool-anchor selection (even-p rows then odd-p)
    # o_ref : (1, 72, 128) bf16 pooled features (lane-dense)
    # p2_ref: (622, 288) f32 VMEM scratch holding the conv2 patch matrix

    # conv1 + bias + ReLU  -> (676, 32), rows r1 = h*26 + w
    o1 = jnp.dot(p1_ref[0], w1_ref[...], preferred_element_type=jnp.float32)
    o1 = jnp.maximum(o1 + b1_ref[...], 0.0)

    # Build the conv2 patch matrix in VMEM from 9 shifted row-slices of o1.
    # Extended output row r = h'*26 + w' (h'<24); valid conv2 outputs are w'<24,
    # the other rows are garbage that never reaches the pool selection below.
    offs = (0, 1, 2, 26, 27, 28, 52, 53, 54)            # dh*26 + dw
    for k, off in enumerate(offs):
        p2_ref[:, k * 32:(k + 1) * 32] = o1[off:off + 622, :]

    # conv2 as one long MXU stream: (622, 288) x (288, 64)
    acc = jnp.dot(p2_ref[...], w2_ref[...], preferred_element_type=jnp.float32)

    # 2x2 max-pool: window max over the 4 taps (pool before bias+ReLU is exact:
    # bias is per-channel constant, ReLU is monotone).
    m = jnp.maximum(jnp.maximum(acc[0:595], acc[1:596]),
                    jnp.maximum(acc[26:621], acc[27:622]))       # (595, 64)

    # Compact the 144 window anchors (rows 52*h2 + 2*w2) with a one-hot matmul;
    # S's rows are ordered even-p first, odd-p second so the two halves are
    # contiguous slices below (no strided row gathers inside the kernel).
    pooled = jnp.dot(s_ref[...], m, preferred_element_type=jnp.float32)
    pooled = jnp.maximum(pooled + b2_ref[...], 0.0)              # (144, 64)

    # Lane-dense (72, 128) bf16 store; row-major bytes == (144, 64) row-major,
    # i.e. feature flat index = (h2*12 + w2)*64 + c.
    o_ref[0, :, 0:64] = pooled[0:72].astype(o_ref.dtype)
    o_ref[0, :, 64:128] = pooled[72:144].astype(o_ref.dtype)


def conv_fused(p1, w1m, b1r, w2m, b2r, sel):
    """p1: (N, 676, 9) f32 -> pooled features (N, 72, 128) bf16."""
    N = p1.shape[0]
    return pl.pallas_call(
        _conv_fused_kernel,
        out_shape=jax.ShapeDtypeStruct((N, 72, 128), jnp.bfloat16),
        grid_spec=pltpu.PrefetchScalarGridSpec(
            num_scalar_prefetch=0,
            grid=(N,),
            in_specs=[
                pl.BlockSpec((1, 676, 9), lambda n: (n, 0, 0)),
                pl.BlockSpec((9, 32), lambda n: (0, 0)),
                pl.BlockSpec((1, 32), lambda n: (0, 0)),
                pl.BlockSpec((288, 64), lambda n: (0, 0)),
                pl.BlockSpec((1, 64), lambda n: (0, 0)),
                pl.BlockSpec((144, 595), lambda n: (0, 0)),
            ],
            out_specs=pl.BlockSpec((1, 72, 128), lambda n: (n, 0, 0)),
            scratch_shapes=[pltpu.VMEM((622, 288), jnp.float32)],
        ),
        compiler_params=pltpu.CompilerParams(dimension_semantics=("parallel",)),
    )(p1, w1m, b1r, w2m, b2r, sel)


# ----------------------------------------------------------------------------
# Head kernel: fc1 (K-tiled, bf16 weight stream) + ReLU + fc2 + log_softmax
# ----------------------------------------------------------------------------
def _head_kernel(x_ref, w1_ref, b1_ref, w2_ref, b2_ref, o_ref, acc_ref):
    k = pl.program_id(0)

    @pl.when(k == 0)
    def _():
        acc_ref[...] = jnp.zeros_like(acc_ref)

    # bf16 x bf16 -> f32 accumulate (MXU), K tile of 2304
    acc_ref[...] += jnp.dot(x_ref[...], w1_ref[...],
                            preferred_element_type=jnp.float32)

    @pl.when(k == pl.num_programs(0) - 1)
    def _():
        h = jnp.maximum(acc_ref[...] + b1_ref[...], 0.0)          # fc1 + ReLU
        logits = jnp.dot(h, w2_ref[...],
                         preferred_element_type=jnp.float32) + b2_ref[...]
        mx = jnp.max(logits, axis=-1, keepdims=True)
        lse = mx + jnp.log(jnp.sum(jnp.exp(logits - mx), axis=-1, keepdims=True))
        o_ref[...] = logits - lse                                  # log_softmax


def head(x, w1t_bf16, b1_row, w2t, b2_row, *, kb=2304):
    N, K = x.shape
    H = w1t_bf16.shape[1]
    O = w2t.shape[1]
    kt = K // kb
    return pl.pallas_call(
        _head_kernel,
        out_shape=jax.ShapeDtypeStruct((N, O), jnp.float32),
        grid_spec=pltpu.PrefetchScalarGridSpec(
            num_scalar_prefetch=0,
            grid=(kt,),
            in_specs=[
                pl.BlockSpec((N, kb), lambda k: (0, k)),
                pl.BlockSpec((kb, H), lambda k: (k, 0)),
                pl.BlockSpec((1, H), lambda k: (0, 0)),
                pl.BlockSpec((H, O), lambda k: (0, 0)),
                pl.BlockSpec((1, O), lambda k: (0, 0)),
            ],
            out_specs=pl.BlockSpec((N, O), lambda k: (0, 0)),
            scratch_shapes=[pltpu.VMEM((N, H), jnp.float32)],
        ),
        compiler_params=pltpu.CompilerParams(dimension_semantics=("arbitrary",)),
    )(x, w1t_bf16, b1_row, w2t, b2_row)


# ----------------------------------------------------------------------------
# Weight preparation (runs ONCE, outside jit)
# ----------------------------------------------------------------------------
def prepare_params(params):
    (w1, b1, w2, b2, fc1_w, fc1_b, fc2_w, fc2_b) = params
    # conv weights -> (kh, kw, cin) x cout matmul layout
    w1m = w1.transpose(2, 3, 1, 0).reshape(9, 32)
    w2m = w2.transpose(2, 3, 1, 0).reshape(288, 64)
    # fc1 columns are (c, h, w) in PyTorch flatten order; permute to (h, w, c)
    # to match the pooled feature layout, transpose, quantize to bf16.
    fc1_wt = fc1_w.reshape(128, 64, 12, 12).transpose(0, 2, 3, 1).reshape(128, 9216).T
    fc1_wt_bf16 = fc1_wt.astype(jnp.bfloat16)
    # One-hot pool-anchor selection matrix: row i -> conv2 "extended" row
    # 52*h2 + 2*w2 of the window-max array, with even spatial indices p = 2i for
    # i < 72 and odd p = 2(i-72)+1 for i >= 72 (so the kernel's two lane halves
    # are contiguous slices).  Built once on the host.
    sel = np.zeros((144, 595), np.float32)
    for i in range(144):
        p = 2 * i if i < 72 else 2 * (i - 72) + 1
        h2, w2_ = divmod(p, 12)
        sel[i, 52 * h2 + 2 * w2_] = 1.0
    return (w1m, b1.reshape(1, 32), w2m, b2.reshape(1, 64), jnp.asarray(sel),
            fc1_wt_bf16, fc1_b.reshape(1, 128), fc2_w.T, fc2_b.reshape(1, 10))


# ----------------------------------------------------------------------------
# Forward pass (XLA glue = 24 KiB/img conv1 im2col only; all conv/pool/fc work
# is inside the Pallas kernels; conv2 activations never touch HBM)
# ----------------------------------------------------------------------------
def net_forward(x, rp):
    (w1m, b1r, w2m, b2r, sel, fc1_wt_bf16, fc1_br, fc2_wt, fc2_br) = rp
    N = x.shape[0]

    # conv1 im2col (single input channel): (N, 676, 9), rows ordered (h, w)
    x2 = x[:, 0]                                                    # (N, 28, 28)
    wins1 = [x2[:, i:i + 26, j:j + 26] for i in range(3) for j in range(3)]
    p1 = jnp.stack(wins1, axis=-1).reshape(N, 676, 9)

    feats = conv_fused(p1, w1m, b1r, w2m, b2r, sel)                 # (N, 72, 128) bf16
    feats = feats.reshape(N, 9216)                                  # free reshape

    # dropout1 / dropout2: identity (eval mode)
    return head(feats, fc1_wt_bf16, fc1_br, fc2_wt, fc2_br)


# ----------------------------------------------------------------------------
# Pure-JAX f32 reference (original module semantics)
# ----------------------------------------------------------------------------
def net_reference(x, params):
    (w1, b1, w2, b2, fc1_w, fc1_b, fc2_w, fc2_b) = params
    dn = ('NCHW', 'OIHW', 'NCHW')
    hp = lax.Precision.HIGHEST
    y = lax.conv_general_dilated(x, w1, (1, 1), 'VALID', dimension_numbers=dn,
                                 precision=hp)
    y = jax.nn.relu(y + b1[None, :, None, None])
    y = lax.conv_general_dilated(y, w2, (1, 1), 'VALID', dimension_numbers=dn,
                                 precision=hp)
    y = jax.nn.relu(y + b2[None, :, None, None])
    y = y.reshape(y.shape[0], 64, 12, 2, 12, 2).max(axis=(3, 5))
    y = y.reshape(y.shape[0], -1)
    y = jax.nn.relu(jnp.dot(y, fc1_w.T, precision=hp) + fc1_b)
    y = jnp.dot(y, fc2_w.T, precision=hp) + fc2_b
    return jax.nn.log_softmax(y, axis=-1)


# ----------------------------------------------------------------------------
# Main
# ----------------------------------------------------------------------------
def _uniform(key, shape, fan_in):
    bound = 1.0 / np.sqrt(fan_in)
    return jax.random.uniform(key, shape, jnp.float32, -bound, bound)


if __name__ == "__main__":
    key = jax.random.PRNGKey(0)
    ks = jax.random.split(key, 9)

    # Deterministic parameter init (PyTorch-default-style uniform ranges).
    w1 = _uniform(ks[0], (32, 1, 3, 3), 1 * 9)
    b1 = _uniform(ks[1], (32,), 1 * 9)
    w2 = _uniform(ks[2], (64, 32, 3, 3), 32 * 9)
    b2 = _uniform(ks[3], (64,), 32 * 9)
    fc1_w = _uniform(ks[4], (128, 9216), 9216)
    fc1_b = _uniform(ks[5], (128,), 9216)
    fc2_w = _uniform(ks[6], (10, 128), 128)
    fc2_b = _uniform(ks[7], (10,), 128)
    params = (w1, b1, w2, b2, fc1_w, fc1_b, fc2_w, fc2_b)

    # fc1 expects 9216 = 64 * 12 * 12 features => input images are 1x28x28.
    x = jax.random.normal(ks[8], (2, 1, 28, 28), jnp.float32)

    # One-time weight prep (layout permutations, bf16 fc1 weight, pool-selection
    # matrix) outside jit so the quantization / packing isn't paid at run time.
    run_params = jax.tree_util.tree_map(jax.block_until_ready, prepare_params(params))

    out = jax.jit(net_forward)(x, run_params)
    out = jax.block_until_ready(out)
    assert out.shape == (2, 10) and out.dtype == jnp.float32

    ref = jax.block_until_ready(net_reference(x, params))
    # Tolerance: pooled activations and the fc1 weight are bf16 (rel err ~2^-9)
    # over a K=9216 reduction -> expected log-prob deviation ~1e-3; conv path is f32.
    max_diff = float(jnp.max(jnp.abs(out - ref)))
    assert max_diff < 1e-2, f"mismatch vs reference: {max_diff}"

    print("KERNEL_OK")
</pallas_src>

<mosaic_0001>
module attributes {stable_mosaic.version = 11 : i64} {
  func.func @_head_kernel(%arg0: i32, %arg1: memref<2x2304xbf16, #tpu.memory_space<vmem>>, %arg2: memref<2304x128xbf16, #tpu.memory_space<vmem>>, %arg3: memref<1x128xf32, #tpu.memory_space<vmem>>, %arg4: memref<128x10xf32, #tpu.memory_space<vmem>>, %arg5: memref<1x10xf32, #tpu.memory_space<vmem>>, %arg6: memref<2x10xf32, #tpu.memory_space<vmem>>, %arg7: memref<2x128xf32, #tpu.memory_space<vmem>>) attributes {dimension_semantics = [#tpu.dimension_semantics<arbitrary>], iteration_bounds = array<i64: 4>, scalar_prefetch = 0 : i64, scratch_operands = 1 : i64, tpu.core_type = #tpu.core_type<tc>, window_params = [{transform_indices = @transform_0, window_bounds = array<i64: 2, 2304>}, {transform_indices = @transform_1, window_bounds = array<i64: 2304, 128>}, {pipeline_mode = #tpu.pipeline_mode<synchronous>, transform_indices = @transform_2, window_bounds = array<i64: 1, 128>}, {pipeline_mode = #tpu.pipeline_mode<synchronous>, transform_indices = @transform_3, window_bounds = array<i64: 128, 10>}, {pipeline_mode = #tpu.pipeline_mode<synchronous>, transform_indices = @transform_4, window_bounds = array<i64: 1, 10>}, {pipeline_mode = #tpu.pipeline_mode<synchronous>, transform_indices = @transform_5, window_bounds = array<i64: 2, 10>}]} {
    %c0_i32 = arith.constant 0 : i32
    %0 = arith.cmpi eq, %arg0, %c0_i32 : i32
    %1 = arith.extui %0 : i1 to i32
    %c0_i32_0 = arith.constant 0 : i32
    %2 = arith.cmpi ne, %1, %c0_i32_0 : i32
    scf.if %2 {
      %cst_9 = arith.constant 0.000000e+00 : f32
      %12 = vector.broadcast %cst_9 : f32 to vector<2x128xf32>
      %c0_10 = arith.constant 0 : index
      %c0_11 = arith.constant 0 : index
      %13 = vector.load %arg7[%c0_10, %c0_11] : memref<2x128xf32, #tpu.memory_space<vmem>>, vector<2x128xf32>
      tpu.vector_store %arg7[%c0_10, %c0_11], %12 {strides = array<i32>} : memref<2x128xf32, #tpu.memory_space<vmem>>, vector<2x128xf32>,
    } else {
    }
    %c0 = arith.constant 0 : index
    %c0_1 = arith.constant 0 : index
    %3 = vector.load %arg7[%c0, %c0_1] : memref<2x128xf32, #tpu.memory_space<vmem>>, vector<2x128xf32>
    %c0_2 = arith.constant 0 : index
    %c0_3 = arith.constant 0 : index
    %4 = vector.load %arg1[%c0_2, %c0_3] : memref<2x2304xbf16, #tpu.memory_space<vmem>>, vector<2x2304xbf16>
    %c0_4 = arith.constant 0 : index
    %c0_5 = arith.constant 0 : index
    %5 = vector.load %arg2[%c0_4, %c0_5] : memref<2304x128xbf16, #tpu.memory_space<vmem>>, vector<2304x128xbf16>
    %cst = arith.constant dense<0.000000e+00> : vector<2x128xf32>
    %6 = tpu.matmul %4, %5, %cst {dimension_numbers = #tpu.dot_dimension_numbers<[1], [0], [0], [1], [0, 0, 1, 1], [], []>} : vector<2x2304xbf16>, vector<2304x128xbf16>, vector<2x128xf32> -> vector<2x128xf32>
    %7 = arith.addf %3, %6 : vector<2x128xf32>
    %c0_6 = arith.constant 0 : index
    %c0_7 = arith.constant 0 : index
    %8 = vector.load %arg7[%c0_6, %c0_7] : memref<2x128xf32, #tpu.memory_space<vmem>>, vector<2x128xf32>
    tpu.vector_store %arg7[%c0_6, %c0_7], %7 {strides = array<i32>} : memref<2x128xf32, #tpu.memory_space<vmem>>, vector<2x128xf32>,
    %c3_i32 = arith.constant 3 : i32
    %9 = arith.cmpi eq, %arg0, %c3_i32 : i32
    %10 = arith.extui %9 : i1 to i32
    %c0_i32_8 = arith.constant 0 : i32
    %11 = arith.cmpi ne, %10, %c0_i32_8 : i32
    scf.if %11 {
      %c0_9 = arith.constant 0 : index
      %c0_10 = arith.constant 0 : index
      %12 = vector.load %arg7[%c0_9, %c0_10] : memref<2x128xf32, #tpu.memory_space<vmem>>, vector<2x128xf32>
      %c0_11 = arith.constant 0 : index
      %c0_12 = arith.constant 0 : index
      %13 = vector.load %arg3[%c0_11, %c0_12] : memref<1x128xf32, #tpu.memory_space<vmem>>, vector<1x128xf32>
      %14 = vector.broadcast %13 : vector<1x128xf32> to vector<2x128xf32>
      %15 = arith.addf %12, %14 : vector<2x128xf32>
      %cst_13 = arith.constant 0.000000e+00 : f32
      %16 = vector.broadcast %cst_13 : f32 to vector<2x128xf32>
      %17 = arith.maximumf %15, %16 : vector<2x128xf32>
      %c0_14 = arith.constant 0 : index
      %c0_15 = arith.constant 0 : index
      %18 = vector.load %arg4[%c0_14, %c0_15] : memref<128x10xf32, #tpu.memory_space<vmem>>, vector<128x10xf32>
      %cst_16 = arith.constant dense<0.000000e+00> : vector<2x10xf32>
      %19 = tpu.matmul %17, %18, %cst_16 {dimension_numbers = #tpu.dot_dimension_numbers<[1], [0], [0], [1], [0, 0, 1, 1], [], []>} : vector<2x128xf32>, vector<128x10xf32>, vector<2x10xf32> -> vector<2x10xf32>
      %c0_17 = arith.constant 0 : index
      %c0_18 = arith.constant 0 : index
      %20 = vector.load %arg5[%c0_17, %c0_18] : memref<1x10xf32, #tpu.memory_space<vmem>>, vector<1x10xf32>
      %21 = vector.broadcast %20 : vector<1x10xf32> to vector<2x10xf32>
      %22 = arith.addf %19, %21 : vector<2x10xf32>
      %cst_19 = arith.constant dense<0xFF800000> : vector<2xf32>
      %23 = vector.multi_reduction <maximumf>, %22, %cst_19 [1] : vector<2x10xf32> to vector<2xf32>
      %24 = vector.shape_cast %23 : vector<2xf32> to vector<2x1xf32>
      %25 = vector.broadcast %24 : vector<2x1xf32> to vector<2x10xf32>
      %26 = arith.subf %22, %25 : vector<2x10xf32>
      %27 = math.exp %26 : vector<2x10xf32>
      %cst_20 = arith.constant dense<0.000000e+00> : vector<2xf32>
      %28 = vector.multi_reduction <add>, %27, %cst_20 [1] : vector<2x10xf32> to vector<2xf32>
      %29 = vector.shape_cast %28 : vector<2xf32> to vector<2x1xf32>
      %30 = math.log %29 : vector<2x1xf32>
      %31 = arith.addf %24, %30 : vector<2x1xf32>
      %32 = vector.broadcast %31 : vector<2x1xf32> to vector<2x10xf32>
      %33 = arith.subf %22, %32 : vector<2x10xf32>
      %c0_21 = arith.constant 0 : index
      %c0_22 = arith.constant 0 : index
      %34 = vector.load %arg6[%c0_21, %c0_22] : memref<2x10xf32, #tpu.memory_space<vmem>>, vector<2x10xf32>
      tpu.vector_store %arg6[%c0_21, %c0_22], %33 {strides = array<i32>} : memref<2x10xf32, #tpu.memory_space<vmem>>, vector<2x10xf32>,
    } else {
    }
    return
  }
  func.func @transform_0(%arg0: i32) -> (i32, i32) {
    %c0_i32 = arith.constant 0 : i32
    %c0_i32_0 = arith.constant 0 : i32
    return %c0_i32, %arg0 : i32, i32
  }
  func.func @transform_1(%arg0: i32) -> (i32, i32) {
    %c0_i32 = arith.constant 0 : i32
    %c0_i32_0 = arith.constant 0 : i32
    return %arg0, %c0_i32 : i32, i32
  }
  func.func @transform_2(%arg0: i32) -> (i32, i32) {
    %c0_i32 = arith.constant 0 : i32
    %c0_i32_0 = arith.constant 0 : i32
    %c0_i32_1 = arith.constant 0 : i32
    return %c0_i32, %c0_i32_0 : i32, i32
  }
  func.func @transform_3(%arg0: i32) -> (i32, i32) {
    %c0_i32 = arith.constant 0 : i32
    %c0_i32_0 = arith.constant 0 : i32
    %c0_i32_1 = arith.constant 0 : i32
    return %c0_i32, %c0_i32_0 : i32, i32
  }
  func.func @transform_4(%arg0: i32) -> (i32, i32) {
    %c0_i32 = arith.constant 0 : i32
    %c0_i32_0 = arith.constant 0 : i32
    %c0_i32_1 = arith.constant 0 : i32
    return %c0_i32, %c0_i32_0 : i32, i32
  }
  func.func @transform_5(%arg0: i32) -> (i32, i32) {
    %c0_i32 = arith.constant 0 : i32
    %c0_i32_0 = arith.constant 0 : i32
    %c0_i32_1 = arith.constant 0 : i32
    return %c0_i32, %c0_i32_0 : i32, i32
  }
}

module attributes {stable_mosaic.version = 11 : i64} {
  func.func @_conv_fused_kernel(%arg0: i32, %arg1: memref<1x676x9xf32, #tpu.memory_space<vmem>>, %arg2: memref<9x32xf32, #tpu.memory_space<vmem>>, %arg3: memref<1x32xf32, #tpu.memory_space<vmem>>, %arg4: memref<288x64xf32, #tpu.memory_space<vmem>>, %arg5: memref<1x64xf32, #tpu.memory_space<vmem>>, %arg6: memref<144x595xf32, #tpu.memory_space<vmem>>, %arg7: memref<1x72x128xbf16, #tpu.memory_space<vmem>>, %arg8: memref<622x288xf32, #tpu.memory_space<vmem>>) attributes {dimension_semantics = [#tpu.dimension_semantics<parallel>], iteration_bounds = array<i64: 2>, scalar_prefetch = 0 : i64, scratch_operands = 1 : i64, tpu.core_type = #tpu.core_type<tc>, window_params = [{transform_indices = @transform_0, window_bounds = array<i64: 1, 676, 9>}, {pipeline_mode = #tpu.pipeline_mode<synchronous>, transform_indices = @transform_1, window_bounds = array<i64: 9, 32>}, {pipeline_mode = #tpu.pipeline_mode<synchronous>, transform_indices = @transform_2, window_bounds = array<i64: 1, 32>}, {pipeline_mode = #tpu.pipeline_mode<synchronous>, transform_indices = @transform_3, window_bounds = array<i64: 288, 64>}, {pipeline_mode = #tpu.pipeline_mode<synchronous>, transform_indices = @transform_4, window_bounds = array<i64: 1, 64>}, {pipeline_mode = #tpu.pipeline_mode<synchronous>, transform_indices = @transform_5, window_bounds = array<i64: 144, 595>}, {transform_indices = @transform_6, window_bounds = array<i64: 1, 72, 128>}]} {
    %c0 = arith.constant 0 : index
    %c0_0 = arith.constant 0 : index
    %c0_1 = arith.constant 0 : index
    %0 = vector.load %arg1[%c0, %c0_0, %c0_1] : memref<1x676x9xf32, #tpu.memory_space<vmem>>, vector<1x676x9xf32>
    %1 = vector.shape_cast %0 : vector<1x676x9xf32> to vector<676x9xf32>
    %c0_2 = arith.constant 0 : index
    %c0_3 = arith.constant 0 : index
    %2 = vector.load %arg2[%c0_2, %c0_3] : memref<9x32xf32, #tpu.memory_space<vmem>>, vector<9x32xf32>
    %cst = arith.constant dense<0.000000e+00> : vector<676x32xf32>
    %3 = tpu.matmul %1, %2, %cst {dimension_numbers = #tpu.dot_dimension_numbers<[1], [0], [0], [1], [0, 0, 1, 1], [], []>} : vector<676x9xf32>, vector<9x32xf32>, vector<676x32xf32> -> vector<676x32xf32>
    %c0_4 = arith.constant 0 : index
    %c0_5 = arith.constant 0 : index
    %4 = vector.load %arg3[%c0_4, %c0_5] : memref<1x32xf32, #tpu.memory_space<vmem>>, vector<1x32xf32>
    %5 = vector.broadcast %4 : vector<1x32xf32> to vector<676x32xf32>
    %6 = arith.addf %3, %5 : vector<676x32xf32>
    %cst_6 = arith.constant 0.000000e+00 : f32
    %7 = vector.broadcast %cst_6 : f32 to vector<676x32xf32>
    %8 = arith.maximumf %6, %7 : vector<676x32xf32>
    %9 = vector.extract_strided_slice %8 {offsets = [0, 0], sizes = [622, 32], strides = [1, 1]} : vector<676x32xf32> to vector<622x32xf32>
    %c0_7 = arith.constant 0 : index
    %c0_8 = arith.constant 0 : index
    %10 = vector.load %arg8[%c0_7, %c0_8] : memref<622x288xf32, #tpu.memory_space<vmem>>, vector<622x32xf32>
    tpu.vector_store %arg8[%c0_7, %c0_8], %9 {strides = array<i32>} : memref<622x288xf32, #tpu.memory_space<vmem>>, vector<622x32xf32>,
    %11 = vector.extract_strided_slice %8 {offsets = [1, 0], sizes = [622, 32], strides = [1, 1]} : vector<676x32xf32> to vector<622x32xf32>
    %c0_9 = arith.constant 0 : index
    %c32 = arith.constant 32 : index
    %12 = vector.load %arg8[%c0_9, %c32] : memref<622x288xf32, #tpu.memory_space<vmem>>, vector<622x32xf32>
    tpu.vector_store %arg8[%c0_9, %c32], %11 {strides = array<i32>} : memref<622x288xf32, #tpu.memory_space<vmem>>, vector<622x32xf32>,
    %13 = vector.extract_strided_slice %8 {offsets = [2, 0], sizes = [622, 32], strides = [1, 1]} : vector<676x32xf32> to vector<622x32xf32>
    %c0_10 = arith.constant 0 : index
    %c64 = arith.constant 64 : index
    %14 = vector.load %arg8[%c0_10, %c64] : memref<622x288xf32, #tpu.memory_space<vmem>>, vector<622x32xf32>
    tpu.vector_store %arg8[%c0_10, %c64], %13 {strides = array<i32>} : memref<622x288xf32, #tpu.memory_space<vmem>>, vector<622x32xf32>,
    %15 = vector.extract_strided_slice %8 {offsets = [26, 0], sizes = [622, 32], strides = [1, 1]} : vector<676x32xf32> to vector<622x32xf32>
    %c0_11 = arith.constant 0 : index
    %c96 = arith.constant 96 : index
    %16 = vector.load %arg8[%c0_11, %c96] : memref<622x288xf32, #tpu.memory_space<vmem>>, vector<622x32xf32>
    tpu.vector_store %arg8[%c0_11, %c96], %15 {strides = array<i32>} : memref<622x288xf32, #tpu.memory_space<vmem>>, vector<622x32xf32>,
    %17 = vector.extract_strided_slice %8 {offsets = [27, 0], sizes = [622, 32], strides = [1, 1]} : vector<676x32xf32> to vector<622x32xf32>
    %c0_12 = arith.constant 0 : index
    %c128 = arith.constant 128 : index
    %18 = vector.load %arg8[%c0_12, %c128] : memref<622x288xf32, #tpu.memory_space<vmem>>, vector<622x32xf32>
    tpu.vector_store %arg8[%c0_12, %c128], %17 {strides = array<i32>} : memref<622x288xf32, #tpu.memory_space<vmem>>, vector<622x32xf32>,
    %19 = vector.extract_strided_slice %8 {offsets = [28, 0], sizes = [622, 32], strides = [1, 1]} : vector<676x32xf32> to vector<622x32xf32>
    %c0_13 = arith.constant 0 : index
    %c160 = arith.constant 160 : index
    %20 = vector.load %arg8[%c0_13, %c160] : memref<622x288xf32, #tpu.memory_space<vmem>>, vector<622x32xf32>
    tpu.vector_store %arg8[%c0_13, %c160], %19 {strides = array<i32>} : memref<622x288xf32, #tpu.memory_space<vmem>>, vector<622x32xf32>,
    %21 = vector.extract_strided_slice %8 {offsets = [52, 0], sizes = [622, 32], strides = [1, 1]} : vector<676x32xf32> to vector<622x32xf32>
    %c0_14 = arith.constant 0 : index
    %c192 = arith.constant 192 : index
    %22 = vector.load %arg8[%c0_14, %c192] : memref<622x288xf32, #tpu.memory_space<vmem>>, vector<622x32xf32>
    tpu.vector_store %arg8[%c0_14, %c192], %21 {strides = array<i32>} : memref<622x288xf32, #tpu.memory_space<vmem>>, vector<622x32xf32>,
    %23 = vector.extract_strided_slice %8 {offsets = [53, 0], sizes = [622, 32], strides = [1, 1]} : vector<676x32xf32> to vector<622x32xf32>
    %c0_15 = arith.constant 0 : index
    %c224 = arith.constant 224 : index
    %24 = vector.load %arg8[%c0_15, %c224] : memref<622x288xf32, #tpu.memory_space<vmem>>, vector<622x32xf32>
    tpu.vector_store %arg8[%c0_15, %c224], %23 {strides = array<i32>} : memref<622x288xf32, #tpu.memory_space<vmem>>, vector<622x32xf32>,
    %25 = vector.extract_strided_slice %8 {offsets = [54, 0], sizes = [622, 32], strides = [1, 1]} : vector<676x32xf32> to vector<622x32xf32>
    %c0_16 = arith.constant 0 : index
    %c256 = arith.constant 256 : index
    %26 = vector.load %arg8[%c0_16, %c256] : memref<622x288xf32, #tpu.memory_space<vmem>>, vector<622x32xf32>
    tpu.vector_store %arg8[%c0_16, %c256], %25 {strides = array<i32>} : memref<622x288xf32, #tpu.memory_space<vmem>>, vector<622x32xf32>,
    %c0_17 = arith.constant 0 : index
    %c0_18 = arith.constant 0 : index
    %27 = vector.load %arg8[%c0_17, %c0_18] : memref<622x288xf32, #tpu.memory_space<vmem>>, vector<622x288xf32>
    %c0_19 = arith.constant 0 : index
    %c0_20 = arith.constant 0 : index
    %28 = vector.load %arg4[%c0_19, %c0_20] : memref<288x64xf32, #tpu.memory_space<vmem>>, vector<288x64xf32>
    %cst_21 = arith.constant dense<0.000000e+00> : vector<622x64xf32>
    %29 = tpu.matmul %27, %28, %cst_21 {dimension_numbers = #tpu.dot_dimension_numbers<[1], [0], [0], [1], [0, 0, 1, 1], [], []>} : vector<622x288xf32>, vector<288x64xf32>, vector<622x64xf32> -> vector<622x64xf32>
    %30 = vector.extract_strided_slice %29 {offsets = [0, 0], sizes = [595, 64], strides = [1, 1]} : vector<622x64xf32> to vector<595x64xf32>
    %31 = vector.extract_strided_slice %29 {offsets = [1, 0], sizes = [595, 64], strides = [1, 1]} : vector<622x64xf32> to vector<595x64xf32>
    %32 = arith.maximumf %30, %31 : vector<595x64xf32>
    %33 = vector.extract_strided_slice %29 {offsets = [26, 0], sizes = [595, 64], strides = [1, 1]} : vector<622x64xf32> to vector<595x64xf32>
    %34 = vector.extract_strided_slice %29 {offsets = [27, 0], sizes = [595, 64], strides = [1, 1]} : vector<622x64xf32> to vector<595x64xf32>
    %35 = arith.maximumf %33, %34 : vector<595x64xf32>
    %36 = arith.maximumf %32, %35 : vector<595x64xf32>
    %c0_22 = arith.constant 0 : index
    %c0_23 = arith.constant 0 : index
    %37 = vector.load %arg6[%c0_22, %c0_23] : memref<144x595xf32, #tpu.memory_space<vmem>>, vector<144x595xf32>
    %cst_24 = arith.constant dense<0.000000e+00> : vector<144x64xf32>
    %38 = tpu.matmul %37, %36, %cst_24 {dimension_numbers = #tpu.dot_dimension_numbers<[1], [0], [0], [1], [0, 0, 1, 1], [], []>} : vector<144x595xf32>, vector<595x64xf32>, vector<144x64xf32> -> vector<144x64xf32>
    %c0_25 = arith.constant 0 : index
    %c0_26 = arith.constant 0 : index
    %39 = vector.load %arg5[%c0_25, %c0_26] : memref<1x64xf32, #tpu.memory_space<vmem>>, vector<1x64xf32>
    %40 = vector.broadcast %39 : vector<1x64xf32> to vector<144x64xf32>
    %41 = arith.addf %38, %40 : vector<144x64xf32>
    %cst_27 = arith.constant 0.000000e+00 : f32
    %42 = vector.broadcast %cst_27 : f32 to vector<144x64xf32>
    %43 = arith.maximumf %41, %42 : vector<144x64xf32>
    %44 = vector.extract_strided_slice %43 {offsets = [0, 0], sizes = [72, 64], strides = [1, 1]} : vector<144x64xf32> to vector<72x64xf32>
    %45 = arith.truncf %44 : vector<72x64xf32> to vector<72x64xbf16>
    %c0_28 = arith.constant 0 : index
    %c0_29 = arith.constant 0 : index
    %c0_30 = arith.constant 0 : index
    %46 = vector.load %arg7[%c0_28, %c0_29, %c0_30] : memref<1x72x128xbf16, #tpu.memory_space<vmem>>, vector<1x72x64xbf16>
    %47 = vector.shape_cast %46 : vector<1x72x64xbf16> to vector<72x64xbf16>
    %48 = vector.shape_cast %45 : vector<72x64xbf16> to vector<1x72x64xbf16>
    tpu.vector_store %arg7[%c0_28, %c0_29, %c0_30], %48 {strides = array<i32>} : memref<1x72x128xbf16, #tpu.memory_space<vmem>>, vector<1x72x64xbf16>,
    %49 = vector.extract_strided_slice %43 {offsets = [72, 0], sizes = [72, 64], strides = [1, 1]} : vector<144x64xf32> to vector<72x64xf32>
    %50 = arith.truncf %49 : vector<72x64xf32> to vector<72x64xbf16>
    %c0_31 = arith.constant 0 : index
    %c0_32 = arith.constant 0 : index
    %c64_33 = arith.constant 64 : index
    %51 = vector.load %arg7[%c0_31, %c0_32, %c64_33] : memref<1x72x128xbf16, #tpu.memory_space<vmem>>, vector<1x72x64xbf16>
    %52 = vector.shape_cast %51 : vector<1x72x64xbf16> to vector<72x64xbf16>
    %53 = vector.shape_cast %50 : vector<72x64xbf16> to vector<1x72x64xbf16>
    tpu.vector_store %arg7[%c0_31, %c0_32, %c64_33], %53 {strides = array<i32>} : memref<1x72x128xbf16, #tpu.memory_space<vmem>>, vector<1x72x64xbf16>,
    return
  }
  func.func @transform_0(%arg0: i32) -> (i32, i32, i32) {
    %c0_i32 = arith.constant 0 : i32
    %c0_i32_0 = arith.constant 0 : i32
    %c0_i32_1 = arith.constant 0 : i32
    return %arg0, %c0_i32, %c0_i32_0 : i32, i32, i32
  }
  func.func @transform_1(%arg0: i32) -> (i32, i32) {
    %c0_i32 = arith.constant 0 : i32
    %c0_i32_0 = arith.constant 0 : i32
    %c0_i32_1 = arith.constant 0 : i32
    return %c0_i32, %c0_i32_0 : i32, i32
  }
  func.func @transform_2(%arg0: i32) -> (i32, i32) {
    %c0_i32 = arith.constant 0 : i32
    %c0_i32_0 = arith.constant 0 : i32
    %c0_i32_1 = arith.constant 0 : i32
    return %c0_i32, %c0_i32_0 : i32, i32
  }
  func.func @transform_3(%arg0: i32) -> (i32, i32) {
    %c0_i32 = arith.constant 0 : i32
    %c0_i32_0 = arith.constant 0 : i32
    %c0_i32_1 = arith.constant 0 : i32
    return %c0_i32, %c0_i32_0 : i32, i32
  }
  func.func @transform_4(%arg0: i32) -> (i32, i32) {
    %c0_i32 = arith.constant 0 : i32
    %c0_i32_0 = arith.constant 0 : i32
    %c0_i32_1 = arith.constant 0 : i32
    return %c0_i32, %c0_i32_0 : i32, i32
  }
  func.func @transform_5(%arg0: i32) -> (i32, i32) {
    %c0_i32 = arith.constant 0 : i32
    %c0_i32_0 = arith.constant 0 : i32
    %c0_i32_1 = arith.constant 0 : i32
    return %c0_i32, %c0_i32_0 : i32, i32
  }
  func.func @transform_6(%arg0: i32) -> (i32, i32, i32) {
    %c0_i32 = arith.constant 0 : i32
    %c0_i32_0 = arith.constant 0 : i32
    %c0_i32_1 = arith.constant 0 : i32
    return %arg0, %c0_i32, %c0_i32_0 : i32, i32, i32
  }
}

</mosaic_0001>

<llo_original>
// kernel: net_forward.3
$region0: #{net_forward.3}
  #allocation0 [shape = 'u32[]', space=smem, size = 0x4, offset = 0x4, fixed_abs, tag = 'smem constant byte address 0x4 - core index']
  #allocation1 [shape = 'u32[144,128]{1,0:T(1,128)}', space=vmem, size = 0x12000, scoped, tag = 'internal scratch']
  #allocation2 [shape = 'f32[2,128]{1,0:T(2,128)}', space=vmem, size = 0x400, scoped, tag = 'scratch operand']
  %s0 = inlined_call_operand.vmem [shape: bf16[2,9216], index: 0, kind: input, shape index: {}]
  %s1 = inlined_call_operand.vmem [shape: bf16[9216,128], index: 1, kind: input, shape index: {}]
  %s2 = inlined_call_operand.vmem [shape: f32[1,128], index: 2, kind: input, shape index: {}]
  %s3 = inlined_call_operand.vmem [shape: f32[128,10], index: 3, kind: input, shape index: {}]
  %s4 = inlined_call_operand.vmem [shape: f32[1,10], index: 4, kind: input, shape index: {}]
  %s5 = inlined_call_operand.hbm [shape: f32[2,10], index: 5, kind: output, shape index: {}]
  %s6 = sld [smem:[#allocation0]]
  $region61: #{net_forward.3} parent=0
    _
  %s8 = ssub.s32 1, %s6
  %s9 = scalar_select 0, %s8, %s6
  $region1: #{net_forward.3} parent=0
    #allocation3 [shape = 'u8[1024]{0}', space=vmem, size = 0x400, scoped, tag = 'output window, operand 0, single buffered']
    #allocation4 [shape = 's32[2]{0}', space=sflag, size = 0x8, scoped, tag = 'scoped memory for net_forward.3']
    %10 = vsyncpa [#allocation4], 0
    loop: start=0, step=1, limit=6
    $region2: #{net_forward.3} parent=1 // loop_pre_header
      _
    $region3: #{net_forward.3} parent=1 // loop_header
      %s12 = sphi 0, %s16
      %p13 = scmp.ge.s32.totalorder %s12, 6
      %s22 = sphi 0, %s24
      %s25 = sphi 0, %s22
      %s26 = sphi 0, %s25
      %s42 = sphi 0, %s26
      %s48 = sphi 0, %s50
      %s51 = sphi 0, %s48
      %s52 = sphi 0, %s51
      %s68 = sphi 0, %s52
      %s72 = sphi 0, %s72
      %s74 = sphi 0, %s72
      %s75 = sphi 0, %s74
      %s89 = sphi 0, %s75
      %s93 = sphi 0, %s93
      %s95 = sphi 0, %s93
      %s96 = sphi 0, %s95
      %s110 = sphi 0, %s96
      %s114 = sphi 0, %s114
      %s116 = sphi 0, %s114
      %s117 = sphi 0, %s116
      %s131 = sphi 0, %s117
      %s135 = sphi 0, %s135
      %s137 = sphi 0, %s135
      %s138 = sphi 0, %s137
      %s152 = sphi 0, %s138
    $region4: #{net_forward.3} parent=1 // loop_header_branch
      %15 = sbr.rel (%p13) target = $region8
    $region5: #{net_forward.3} parent=1 // loop_body
      %s17 = ssub.s32 %s12, 1
      %s18 = ssub.s32 %s12, 2
      %s19 = sadd.s32 %s12, 1
      %s20 = ssub.s32 %s12, %s19
      %p21 = scmp.eq.s32.totalorder %s20, 0
      %s23 = sadd.s32 %s22, 1
      %s24 = scalar_select %p21, %s22, %s23
      %p27 = pneg %p21
      %p28 = scmp.eq.s32.totalorder %s12, 3
      %p29 = por %p27, %p28
      %p30 = scmp.ne.s32.totalorder %s22, %s25
      %p31 = scmp.eq.s32.totalorder %s12, 0
      %p32 = por %p30, %p31
      %p33 = scmp.ne.s32.totalorder %s22, %s25
      %p34 = scmp.eq.s32.totalorder %s17, 3
      %p35 = por %p33, %p34
      %p36 = scmp.ne.s32.totalorder %s25, %s26
      %p37 = scmp.eq.s32.totalorder %s17, 0
      %p38 = por %p36, %p37
      %p39 = scmp.ne.s32.totalorder %s25, %s26
      %p40 = scmp.eq.s32.totalorder %s18, 3
      %p41 = por %p39, %p40
      %p43 = scmp.ne.s32.totalorder %s26, %s42
      %p44 = scmp.eq.s32.totalorder %s18, 0
      %p45 = por %p43, %p44
      %s46 = ssub.s32 %s12, %s19
      %p47 = scmp.eq.s32.totalorder %s46, 0
      %s49 = sadd.s32 %s48, 1
      %s50 = scalar_select %p47, %s48, %s49
      %p53 = pneg %p47
      %p54 = scmp.eq.s32.totalorder %s12, 3
      %p55 = por %p53, %p54
      %p56 = scmp.ne.s32.totalorder %s48, %s51
      %p57 = scmp.eq.s32.totalorder %s12, 0
      %p58 = por %p56, %p57
      %p59 = scmp.ne.s32.totalorder %s48, %s51
      %p60 = scmp.eq.s32.totalorder %s17, 3
      %p61 = por %p59, %p60
      %p62 = scmp.ne.s32.totalorder %s51, %s52
      %p63 = scmp.eq.s32.totalorder %s17, 0
      %p64 = por %p62, %p63
      %p65 = scmp.ne.s32.totalorder %s51, %s52
      %p66 = scmp.eq.s32.totalorder %s18, 3
      %p67 = por %p65, %p66
      %p69 = scmp.ne.s32.totalorder %s52, %s68
      %p70 = scmp.eq.s32.totalorder %s18, 0
      %p71 = por %p69, %p70
      %s73 = sadd.s32 %s72, 1
      %p76 = scmp.eq.s32.totalorder %s12, 3
      %p77 = scmp.ne.s32.totalorder %s72, %s74
      %p78 = scmp.eq.s32.totalorder %s12, 0
      %p79 = por %p77, %p78
      %p80 = scmp.ne.s32.totalorder %s72, %s74
      %p81 = scmp.eq.s32.totalorder %s17, 3
      %p82 = por %p80, %p81
      %p83 = scmp.ne.s32.totalorder %s74, %s75
      %p84 = scmp.eq.s32.totalorder %s17, 0
      %p85 = por %p83, %p84
      %p86 = scmp.ne.s32.totalorder %s74, %s75
      %p87 = scmp.eq.s32.totalorder %s18, 3
      %p88 = por %p86, %p87
      %p90 = scmp.ne.s32.totalorder %s75, %s89
      %p91 = scmp.eq.s32.totalorder %s18, 0
      %p92 = por %p90, %p91
      %s94 = sadd.s32 %s93, 1
      %p97 = scmp.eq.s32.totalorder %s12, 3
      %p98 = scmp.ne.s32.totalorder %s93, %s95
      %p99 = scmp.eq.s32.totalorder %s12, 0
      %p100 = por %p98, %p99
      %p101 = scmp.ne.s32.totalorder %s93, %s95
      %p102 = scmp.eq.s32.totalorder %s17, 3
      %p103 = por %p101, %p102
      %p104 = scmp.ne.s32.totalorder %s95, %s96
      %p105 = scmp.eq.s32.totalorder %s17, 0
      %p106 = por %p104, %p105
      %p107 = scmp.ne.s32.totalorder %s95, %s96
      %p108 = scmp.eq.s32.totalorder %s18, 3
      %p109 = por %p107, %p108
      %p111 = scmp.ne.s32.totalorder %s96, %s110
      %p112 = scmp.eq.s32.totalorder %s18, 0
      %p113 = por %p111, %p112
      %s115 = sadd.s32 %s114, 1
      %p118 = scmp.eq.s32.totalorder %s12, 3
      %p119 = scmp.ne.s32.totalorder %s114, %s116
      %p120 = scmp.eq.s32.totalorder %s12, 0
      %p121 = por %p119, %p120
      %p122 = scmp.ne.s32.totalorder %s114, %s116
      %p123 = scmp.eq.s32.totalorder %s17, 3
      %p124 = por %p122, %p123
      %p125 = scmp.ne.s32.totalorder %s116, %s117
      %p126 = scmp.eq.s32.totalorder %s17, 0
      %p127 = por %p125, %p126
      %p128 = scmp.ne.s32.totalorder %s116, %s117
      %p129 = scmp.eq.s32.totalorder %s18, 3
      %p130 = por %p128, %p129
      %p132 = scmp.ne.s32.totalorder %s117, %s131
      %p133 = scmp.eq.s32.totalorder %s18, 0
      %p134 = por %p132, %p133
      %s136 = sadd.s32 %s135, 1
      %p139 = scmp.eq.s32.totalorder %s12, 3
      %p140 = scmp.ne.s32.totalorder %s135, %s137
      %p141 = scmp.eq.s32.totalorder %s12, 0
      %p142 = por %p140, %p141
      %p143 = scmp.ne.s32.totalorder %s135, %s137
      %p144 = scmp.eq.s32.totalorder %s17, 3
      %p145 = por %p143, %p144
      %p146 = scmp.ne.s32.totalorder %s137, %s138
      %p147 = scmp.eq.s32.totalorder %s17, 0
      %p148 = por %p146, %p147
      %p149 = scmp.ne.s32.totalorder %s137, %s138
      %p150 = scmp.eq.s32.totalorder %s18, 3
      %p151 = por %p149, %p150
      %p153 = scmp.ne.s32.totalorder %s138, %s152
      %p154 = scmp.eq.s32.totalorder %s18, 0
      %p155 = por %p153, %p154
      %p156 = scmp.le.s32.totalorder 1, %s12
      %p157 = scmp.lt.s32.totalorder %s12, 5
      %p158 = pnand %p156, %p157
      %p159 = pneg %p158
      // Predicated region
      $region9: #{net_forward.3} parent=5 // pred_check
        _
      $region10: #{net_forward.3} parent=5 // pred_check_branch
        %161 = sbr.rel (%p158) target = $region12
      $region11: #{net_forward.3} parent=5 // pred_region
        %s162 = ssub.s32 %s12, 1
        // Predicated region
        $region13: #{net_forward.3} parent=11 // pred_check
          %p163 = pneg %p85
        $region14: #{net_forward.3} parent=11 // pred_check_branch
          %165 = sbr.rel (%p163) target = $region16
        $region15: #{net_forward.3} parent=11 // pred_region
          _
        $region16: #{net_forward.3} parent=11 // pred_fallthru
          _
        // Predicated region
        $region17: #{net_forward.3} parent=11 // pred_check
          %p166 = pneg %p106
        $region18: #{net_forward.3} parent=11 // pred_check_branch
          %168 = sbr.rel (%p166) target = $region20
        $region19: #{net_forward.3} parent=11 // pred_region
          _
        $region20: #{net_forward.3} parent=11 // pred_fallthru
          _
        // Predicated region
        $region21: #{net_forward.3} parent=11 // pred_check
          %p169 = pneg %p127
        $region22: #{net_forward.3} parent=11 // pred_check_branch
          %171 = sbr.rel (%p169) target = $region24
        $region23: #{net_forward.3} parent=11 // pred_region
          _
        $region24: #{net_forward.3} parent=11 // pred_fallthru
          _
      $region12: #{net_forward.3} parent=5 // pred_fallthru
        _
      %p172 = scmp.lt.s32.totalorder %s12, 4
      // Predicated region
      $region25: #{net_forward.3} parent=5 // pred_check
        %p173 = pneg %p172
      $region26: #{net_forward.3} parent=5 // pred_check_branch
        %175 = sbr.rel (%p173) target = $region28
      $region27: #{net_forward.3} parent=5 // pred_region
        // Predicated region
        $region29: #{net_forward.3} parent=27 // pred_check
          %p176 = pneg %p32
        $region30: #{net_forward.3} parent=27 // pred_check_branch
          %178 = sbr.rel (%p176) target = $region32
        $region31: #{net_forward.3} parent=27 // pred_region
          %s179 = smul.u32 18, %s12
          %p180 = scmp.lt.s32.totalorder %s179, 71
          %s181 = scalar_select %p180, %s179, 71
          %s182 = scalar_lea.vmem %s0, %s181
          %s183 = smul.u32 18, %s12
        $region32: #{net_forward.3} parent=27 // pred_fallthru
          _
        // Predicated region
        $region33: #{net_forward.3} parent=27 // pred_check
          %p184 = pneg %p58
        $region34: #{net_forward.3} parent=27 // pred_check_branch
          %186 = sbr.rel (%p184) target = $region36
        $region35: #{net_forward.3} parent=27 // pred_region
          %s187 = smul.u32 288, %s12
          %p188 = scmp.lt.s32.totalorder %s187, 1151
          %s189 = scalar_select %p188, %s187, 1151
          %s190 = smul.addr %s189, 4
          %s191 = scalar_lea.vmem %s1, %s190
          %s192 = smul.u32 288, %s12
        $region36: #{net_forward.3} parent=27 // pred_fallthru
          _
      $region28: #{net_forward.3} parent=5 // pred_fallthru
        _
      %p193 = scmp.le.s32.totalorder 1, %s12
      %p194 = scmp.lt.s32.totalorder %s12, 5
      %p195 = pnand %p193, %p194
      %p196 = pneg %p195
      // Predicated region
      $region37: #{net_forward.3} parent=5 // pred_check
        _
      $region38: #{net_forward.3} parent=5 // pred_check_branch
        %198 = sbr.rel (%p195) target = $region40
      $region39: #{net_forward.3} parent=5 // pred_region
        %s199 = ssub.s32 %s12, 1
        %s200 = smul.u32 18, %s17
        %p201 = scmp.lt.s32.totalorder %s200, 71
        %s202 = scalar_select %p201, %s200, 71
        %s203 = scalar_lea.vmem %s0, %s202
        %p204 = pneg %p38
        %p205 = pneg %p35
        %s206 = smul.u32 288, %s17
        %p207 = scmp.lt.s32.totalorder %s206, 1151
        %s208 = scalar_select %p207, %s206, 1151
        %s209 = smul.addr %s208, 4
        %s210 = scalar_lea.vmem %s1, %s209
        %p211 = pneg %p64
        %p212 = pneg %p61
        %p213 = pneg %p85
        %p214 = pneg %p82
        %p215 = pneg %p106
        %p216 = pneg %p103
        %p217 = pneg %p127
        %p218 = pneg %p124
        %p219 = pneg %p148
        %p220 = pneg %p145
        %s221 = smul.u32 18, %s17
        %p222 = scmp.lt.s32.totalorder %s221, 71
        %s223 = scalar_select %p222, %s221, 71
        %s224 = scalar_lea.vmem %s0, %s223
        %s225 = smul.u32 18, %s17
        %s226 = smul.u32 288, %s17
        %p227 = scmp.lt.s32.totalorder %s226, 1151
        %s228 = scalar_select %p227, %s226, 1151
        %s229 = smul.addr %s228, 4
        %s230 = scalar_lea.vmem %s1, %s229
        %s231 = smul.u32 288, %s17
        %p233 = scmp.eq.s32.totalorder %s17, 0
        // Predicated region
        $region41: #{net_forward.3} parent=39 // pred_check
          %p234 = pneg %p233
        $region42: #{net_forward.3} parent=39 // pred_check_branch
          %236 = sbr.rel (%p234) target = $region44
        $region43: #{net_forward.3} parent=39 // pred_region
          %237 = vst [vmem:[#allocation2] sm:$0x3] 0.0
        $region44: #{net_forward.3} parent=39 // pred_fallthru
          _
        %v238 = vld [vmem:[#allocation2] sm:$0x3]
        %v239 = vld [vmem:[%s224] sm:$0xff]
        %v240 = vld [vmem:[%s224 + $0x8] sm:$0xff]
        %v241 = vld [vmem:[%s224 + $0x10] sm:$0x3]
        %v242 = vld [vmem:[%s230] sm:$0xf]
        %v243 = vld [vmem:[%s230 + $0x4] sm:$0xf]
        %v244 = vld [vmem:[%s230 + $0x8] sm:$0xf]
        %v245 = vld [vmem:[%s230 + $0xc] sm:$0xf]
        %v246 = vld [vmem:[%s230 + $0x10] sm:$0xf]
        %v247 = vld [vmem:[%s230 + $0x14] sm:$0xf]
        %v248 = vld [vmem:[%s230 + $0x18] sm:$0xf]
        %v249 = vld [vmem:[%s230 + $0x1c] sm:$0xf]
        %v250 = vld [vmem:[%s230 + $0x20] sm:$0xf]
        %v251 = vld [vmem:[%s230 + $0x24] sm:$0xf]
        %v252 = vld [vmem:[%s230 + $0x28] sm:$0xf]
        %v253 = vld [vmem:[%s230 + $0x2c] sm:$0xf]
        %v254 = vld [vmem:[%s230 + $0x30] sm:$0xf]
        %v255 = vld [vmem:[%s230 + $0x34] sm:$0xf]
        %v256 = vld [vmem:[%s230 + $0x38] sm:$0xf]
        %v257 = vld [vmem:[%s230 + $0x3c] sm:$0xf]
        %v258 = vld [vmem:[%s230 + $0x40] sm:$0xf]
        %v259 = vld [vmem:[%s230 + $0x44] sm:$0xf]
        %v260 = vld [vmem:[%s230 + $0x48] sm:$0xf]
        %v261 = vld [vmem:[%s230 + $0x4c] sm:$0xf]
        %v262 = vld [vmem:[%s230 + $0x50] sm:$0xf]
        %v263 = vld [vmem:[%s230 + $0x54] sm:$0xf]
        %v264 = vld [vmem:[%s230 + $0x58] sm:$0xf]
        %v265 = vld [vmem:[%s230 + $0x5c] sm:$0xf]
        %v266 = vld [vmem:[%s230 + $0x60] sm:$0xf]
        %v267 = vld [vmem:[%s230 + $0x64] sm:$0xf]
        %v268 = vld [vmem:[%s230 + $0x68] sm:$0xf]
        %v269 = vld [vmem:[%s230 + $0x6c] sm:$0xf]
        %v270 = vld [vmem:[%s230 + $0x70] sm:$0xf]
        %v271 = vld [vmem:[%s230 + $0x74] sm:$0xf]
        %v272 = vld [vmem:[%s230 + $0x78] sm:$0xf]
        %v273 = vld [vmem:[%s230 + $0x7c] sm:$0xf]
        %v274 = vld [vmem:[%s230 + $0x80] sm:$0xf]
        %v275 = vld [vmem:[%s230 + $0x84] sm:$0xf]
        %v276 = vld [vmem:[%s230 + $0x88] sm:$0xf]
        %v277 = vld [vmem:[%s230 + $0x8c] sm:$0xf]
        %v278 = vld [vmem:[%s230 + $0x90] sm:$0xf]
        %v279 = vld [vmem:[%s230 + $0x94] sm:$0xf]
        %v280 = vld [vmem:[%s230 + $0x98] sm:$0xf]
        %v281 = vld [vmem:[%s230 + $0x9c] sm:$0xf]
        %v282 = vld [vmem:[%s230 + $0xa0] sm:$0xf]
        %v283 = vld [vmem:[%s230 + $0xa4] sm:$0xf]
        %v284 = vld [vmem:[%s230 + $0xa8] sm:$0xf]
        %v285 = vld [vmem:[%s230 + $0xac] sm:$0xf]
        %v286 = vld [vmem:[%s230 + $0xb0] sm:$0xf]
        %v287 = vld [vmem:[%s230 + $0xb4] sm:$0xf]
        %v288 = vld [vmem:[%s230 + $0xb8] sm:$0xf]
        %v289 = vld [vmem:[%s230 + $0xbc] sm:$0xf]
        %v290 = vld [vmem:[%s230 + $0xc0] sm:$0xf]
        %v291 = vld [vmem:[%s230 + $0xc4] sm:$0xf]
        %v292 = vld [vmem:[%s230 + $0xc8] sm:$0xf]
        %v293 = vld [vmem:[%s230 + $0xcc] sm:$0xf]
        %v294 = vld [vmem:[%s230 + $0xd0] sm:$0xf]
        %v295 = vld [vmem:[%s230 + $0xd4] sm:$0xf]
        %v296 = vld [vmem:[%s230 + $0xd8] sm:$0xf]
        %v297 = vld [vmem:[%s230 + $0xdc] sm:$0xf]
        %v298 = vld [vmem:[%s230 + $0xe0] sm:$0xf]
        %v299 = vld [vmem:[%s230 + $0xe4] sm:$0xf]
        %v300 = vld [vmem:[%s230 + $0xe8] sm:$0xf]
        %v301 = vld [vmem:[%s230 + $0xec] sm:$0xf]
        %v302 = vld [vmem:[%s230 + $0xf0] sm:$0xf]
        %v303 = vld [vmem:[%s230 + $0xf4] sm:$0xf]
        %v304 = vld [vmem:[%s230 + $0xf8] sm:$0xf]
        %v305 = vld [vmem:[%s230 + $0xfc] sm:$0xf]
        %v306 = vld [vmem:[%s230 + $0x100] sm:$0xf]
        %v307 = vld [vmem:[%s230 + $0x104] sm:$0xf]
        %v308 = vld [vmem:[%s230 + $0x108] sm:$0xf]
        %v309 = vld [vmem:[%s230 + $0x10c] sm:$0xf]
        %v310 = vld [vmem:[%s230 + $0x110] sm:$0xf]
        %v311 = vld [vmem:[%s230 + $0x114] sm:$0xf]
        %v312 = vld [vmem:[%s230 + $0x118] sm:$0xf]
        %v313 = vld [vmem:[%s230 + $0x11c] sm:$0xf]
        %v314 = vld [vmem:[%s230 + $0x120] sm:$0xf]
        %v315 = vld [vmem:[%s230 + $0x124] sm:$0xf]
        %v316 = vld [vmem:[%s230 + $0x128] sm:$0xf]
        %v317 = vld [vmem:[%s230 + $0x12c] sm:$0xf]
        %v318 = vld [vmem:[%s230 + $0x130] sm:$0xf]
        %v319 = vld [vmem:[%s230 + $0x134] sm:$0xf]
        %v320 = vld [vmem:[%s230 + $0x138] sm:$0xf]
        %v321 = vld [vmem:[%s230 + $0x13c] sm:$0xf]
        %v322 = vld [vmem:[%s230 + $0x140] sm:$0xf]
        %v323 = vld [vmem:[%s230 + $0x144] sm:$0xf]
        %v324 = vld [vmem:[%s230 + $0x148] sm:$0xf]
        %v325 = vld [vmem:[%s230 + $0x14c] sm:$0xf]
        %v326 = vld [vmem:[%s230 + $0x150] sm:$0xf]
        %v327 = vld [vmem:[%s230 + $0x154] sm:$0xf]
        %v328 = vld [vmem:[%s230 + $0x158] sm:$0xf]
        %v329 = vld [vmem:[%s230 + $0x15c] sm:$0xf]
        %v330 = vld [vmem:[%s230 + $0x160] sm:$0xf]
        %v331 = vld [vmem:[%s230 + $0x164] sm:$0xf]
        %v332 = vld [vmem:[%s230 + $0x168] sm:$0xf]
        %v333 = vld [vmem:[%s230 + $0x16c] sm:$0xf]
        %v334 = vld [vmem:[%s230 + $0x170] sm:$0xf]
        %v335 = vld [vmem:[%s230 + $0x174] sm:$0xf]
        %v336 = vld [vmem:[%s230 + $0x178] sm:$0xf]
        %v337 = vld [vmem:[%s230 + $0x17c] sm:$0xf]
        %v338 = vld [vmem:[%s230 + $0x180] sm:$0xf]
        %v339 = vld [vmem:[%s230 + $0x184] sm:$0xf]
        %v340 = vld [vmem:[%s230 + $0x188] sm:$0xf]
        %v341 = vld [vmem:[%s230 + $0x18c] sm:$0xf]
        %v342 = vld [vmem:[%s230 + $0x190] sm:$0xf]
        %v343 = vld [vmem:[%s230 + $0x194] sm:$0xf]
        %v344 = vld [vmem:[%s230 + $0x198] sm:$0xf]
        %v345 = vld [vmem:[%s230 + $0x19c] sm:$0xf]
        %v346 = vld [vmem:[%s230 + $0x1a0] sm:$0xf]
        %v347 = vld [vmem:[%s230 + $0x1a4] sm:$0xf]
        %v348 = vld [vmem:[%s230 + $0x1a8] sm:$0xf]
        %v349 = vld [vmem:[%s230 + $0x1ac] sm:$0xf]
        %v350 = vld [vmem:[%s230 + $0x1b0] sm:$0xf]
        %v351 = vld [vmem:[%s230 + $0x1b4] sm:$0xf]
        %v352 = vld [vmem:[%s230 + $0x1b8] sm:$0xf]
        %v353 = vld [vmem:[%s230 + $0x1bc] sm:$0xf]
        %v354 = vld [vmem:[%s230 + $0x1c0] sm:$0xf]
        %v355 = vld [vmem:[%s230 + $0x1c4] sm:$0xf]
        %v356 = vld [vmem:[%s230 + $0x1c8] sm:$0xf]
        %v357 = vld [vmem:[%s230 + $0x1cc] sm:$0xf]
        %v358 = vld [vmem:[%s230 + $0x1d0] sm:$0xf]
        %v359 = vld [vmem:[%s230 + $0x1d4] sm:$0xf]
        %v360 = vld [vmem:[%s230 + $0x1d8] sm:$0xf]
        %v361 = vld [vmem:[%s230 + $0x1dc] sm:$0xf]
        %v362 = vld [vmem:[%s230 + $0x1e0] sm:$0xf]
        %v363 = vld [vmem:[%s230 + $0x1e4] sm:$0xf]
        %v364 = vld [vmem:[%s230 + $0x1e8] sm:$0xf]
        %v365 = vld [vmem:[%s230 + $0x1ec] sm:$0xf]
        %v366 = vld [vmem:[%s230 + $0x1f0] sm:$0xf]
        %v367 = vld [vmem:[%s230 + $0x1f4] sm:$0xf]
        %v368 = vld [vmem:[%s230 + $0x1f8] sm:$0xf]
        %v369 = vld [vmem:[%s230 + $0x1fc] sm:$0xf]
        %v370 = vld [vmem:[%s230 + $0x200] sm:$0xf]
        %v371 = vld [vmem:[%s230 + $0x204] sm:$0xf]
        %v372 = vld [vmem:[%s230 + $0x208] sm:$0xf]
        %v373 = vld [vmem:[%s230 + $0x20c] sm:$0xf]
        %v374 = vld [vmem:[%s230 + $0x210] sm:$0xf]
        %v375 = vld [vmem:[%s230 + $0x214] sm:$0xf]
        %v376 = vld [vmem:[%s230 + $0x218] sm:$0xf]
        %v377 = vld [vmem:[%s230 + $0x21c] sm:$0xf]
        %v378 = vld [vmem:[%s230 + $0x220] sm:$0xf]
        %v379 = vld [vmem:[%s230 + $0x224] sm:$0xf]
        %v380 = vld [vmem:[%s230 + $0x228] sm:$0xf]
        %v381 = vld [vmem:[%s230 + $0x22c] sm:$0xf]
        %v382 = vld [vmem:[%s230 + $0x230] sm:$0xf]
        %v383 = vld [vmem:[%s230 + $0x234] sm:$0xf]
        %v384 = vld [vmem:[%s230 + $0x238] sm:$0xf]
        %v385 = vld [vmem:[%s230 + $0x23c] sm:$0xf]
        %v386 = vld [vmem:[%s230 + $0x240] sm:$0xf]
        %v387 = vld [vmem:[%s230 + $0x244] sm:$0xf]
        %v388 = vld [vmem:[%s230 + $0x248] sm:$0xf]
        %v389 = vld [vmem:[%s230 + $0x24c] sm:$0xf]
        %v390 = vld [vmem:[%s230 + $0x250] sm:$0xf]
        %v391 = vld [vmem:[%s230 + $0x254] sm:$0xf]
        %v392 = vld [vmem:[%s230 + $0x258] sm:$0xf]
        %v393 = vld [vmem:[%s230 + $0x25c] sm:$0xf]
        %v394 = vld [vmem:[%s230 + $0x260] sm:$0xf]
        %v395 = vld [vmem:[%s230 + $0x264] sm:$0xf]
        %v396 = vld [vmem:[%s230 + $0x268] sm:$0xf]
        %v397 = vld [vmem:[%s230 + $0x26c] sm:$0xf]
        %v398 = vld [vmem:[%s230 + $0x270] sm:$0xf]
        %v399 = vld [vmem:[%s230 + $0x274] sm:$0xf]
        %v400 = vld [vmem:[%s230 + $0x278] sm:$0xf]
        %v401 = vld [vmem:[%s230 + $0x27c] sm:$0xf]
        %v402 = vld [vmem:[%s230 + $0x280] sm:$0xf]
        %v403 = vld [vmem:[%s230 + $0x284] sm:$0xf]
        %v404 = vld [vmem:[%s230 + $0x288] sm:$0xf]
        %v405 = vld [vmem:[%s230 + $0x28c] sm:$0xf]
        %v406 = vld [vmem:[%s230 + $0x290] sm:$0xf]
        %v407 = vld [vmem:[%s230 + $0x294] sm:$0xf]
        %v408 = vld [vmem:[%s230 + $0x298] sm:$0xf]
        %v409 = vld [vmem:[%s230 + $0x29c] sm:$0xf]
        %v410 = vld [vmem:[%s230 + $0x2a0] sm:$0xf]
        %v411 = vld [vmem:[%s230 + $0x2a4] sm:$0xf]
        %v412 = vld [vmem:[%s230 + $0x2a8] sm:$0xf]
        %v413 = vld [vmem:[%s230 + $0x2ac] sm:$0xf]
        %v414 = vld [vmem:[%s230 + $0x2b0] sm:$0xf]
        %v415 = vld [vmem:[%s230 + $0x2b4] sm:$0xf]
        %v416 = vld [vmem:[%s230 + $0x2b8] sm:$0xf]
        %v417 = vld [vmem:[%s230 + $0x2bc] sm:$0xf]
        %v418 = vld [vmem:[%s230 + $0x2c0] sm:$0xf]
        %v419 = vld [vmem:[%s230 + $0x2c4] sm:$0xf]
        %v420 = vld [vmem:[%s230 + $0x2c8] sm:$0xf]
        %v421 = vld [vmem:[%s230 + $0x2cc] sm:$0xf]
        %v422 = vld [vmem:[%s230 + $0x2d0] sm:$0xf]
        %v423 = vld [vmem:[%s230 + $0x2d4] sm:$0xf]
        %v424 = vld [vmem:[%s230 + $0x2d8] sm:$0xf]
        %v425 = vld [vmem:[%s230 + $0x2dc] sm:$0xf]
        %v426 = vld [vmem:[%s230 + $0x2e0] sm:$0xf]
        %v427 = vld [vmem:[%s230 + $0x2e4] sm:$0xf]
        %v428 = vld [vmem:[%s230 + $0x2e8] sm:$0xf]
        %v429 = vld [vmem:[%s230 + $0x2ec] sm:$0xf]
        %v430 = vld [vmem:[%s230 + $0x2f0] sm:$0xf]
        %v431 = vld [vmem:[%s230 + $0x2f4] sm:$0xf]
        %v432 = vld [vmem:[%s230 + $0x2f8] sm:$0xf]
        %v433 = vld [vmem:[%s230 + $0x2fc] sm:$0xf]
        %v434 = vld [vmem:[%s230 + $0x300] sm:$0xf]
        %v435 = vld [vmem:[%s230 + $0x304] sm:$0xf]
        %v436 = vld [vmem:[%s230 + $0x308] sm:$0xf]
        %v437 = vld [vmem:[%s230 + $0x30c] sm:$0xf]
        %v438 = vld [vmem:[%s230 + $0x310] sm:$0xf]
        %v439 = vld [vmem:[%s230 + $0x314] sm:$0xf]
        %v440 = vld [vmem:[%s230 + $0x318] sm:$0xf]
        %v441 = vld [vmem:[%s230 + $0x31c] sm:$0xf]
        %v442 = vld [vmem:[%s230 + $0x320] sm:$0xf]
        %v443 = vld [vmem:[%s230 + $0x324] sm:$0xf]
        %v444 = vld [vmem:[%s230 + $0x328] sm:$0xf]
        %v445 = vld [vmem:[%s230 + $0x32c] sm:$0xf]
        %v446 = vld [vmem:[%s230 + $0x330] sm:$0xf]
        %v447 = vld [vmem:[%s230 + $0x334] sm:$0xf]
        %v448 = vld [vmem:[%s230 + $0x338] sm:$0xf]
        %v449 = vld [vmem:[%s230 + $0x33c] sm:$0xf]
        %v450 = vld [vmem:[%s230 + $0x340] sm:$0xf]
        %v451 = vld [vmem:[%s230 + $0x344] sm:$0xf]
        %v452 = vld [vmem:[%s230 + $0x348] sm:$0xf]
        %v453 = vld [vmem:[%s230 + $0x34c] sm:$0xf]
        %v454 = vld [vmem:[%s230 + $0x350] sm:$0xf]
        %v455 = vld [vmem:[%s230 + $0x354] sm:$0xf]
        %v456 = vld [vmem:[%s230 + $0x358] sm:$0xf]
        %v457 = vld [vmem:[%s230 + $0x35c] sm:$0xf]
        %v458 = vld [vmem:[%s230 + $0x360] sm:$0xf]
        %v459 = vld [vmem:[%s230 + $0x364] sm:$0xf]
        %v460 = vld [vmem:[%s230 + $0x368] sm:$0xf]
        %v461 = vld [vmem:[%s230 + $0x36c] sm:$0xf]
        %v462 = vld [vmem:[%s230 + $0x370] sm:$0xf]
        %v463 = vld [vmem:[%s230 + $0x374] sm:$0xf]
        %v464 = vld [vmem:[%s230 + $0x378] sm:$0xf]
        %v465 = vld [vmem:[%s230 + $0x37c] sm:$0xf]
        %v466 = vld [vmem:[%s230 + $0x380] sm:$0xf]
        %v467 = vld [vmem:[%s230 + $0x384] sm:$0xf]
        %v468 = vld [vmem:[%s230 + $0x388] sm:$0xf]
        %v469 = vld [vmem:[%s230 + $0x38c] sm:$0xf]
        %v470 = vld [vmem:[%s230 + $0x390] sm:$0xf]
        %v471 = vld [vmem:[%s230 + $0x394] sm:$0xf]
        %v472 = vld [vmem:[%s230 + $0x398] sm:$0xf]
        %v473 = vld [vmem:[%s230 + $0x39c] sm:$0xf]
        %v474 = vld [vmem:[%s230 + $0x3a0] sm:$0xf]
        %v475 = vld [vmem:[%s230 + $0x3a4] sm:$0xf]
        %v476 = vld [vmem:[%s230 + $0x3a8] sm:$0xf]
        %v477 = vld [vmem:[%s230 + $0x3ac] sm:$0xf]
        %v478 = vld [vmem:[%s230 + $0x3b0] sm:$0xf]
        %v479 = vld [vmem:[%s230 + $0x3b4] sm:$0xf]
        %v480 = vld [vmem:[%s230 + $0x3b8] sm:$0xf]
        %v481 = vld [vmem:[%s230 + $0x3bc] sm:$0xf]
        %v482 = vld [vmem:[%s230 + $0x3c0] sm:$0xf]
        %v483 = vld [vmem:[%s230 + $0x3c4] sm:$0xf]
        %v484 = vld [vmem:[%s230 + $0x3c8] sm:$0xf]
        %v485 = vld [vmem:[%s230 + $0x3cc] sm:$0xf]
        %v486 = vld [vmem:[%s230 + $0x3d0] sm:$0xf]
        %v487 = vld [vmem:[%s230 + $0x3d4] sm:$0xf]
        %v488 = vld [vmem:[%s230 + $0x3d8] sm:$0xf]
        %v489 = vld [vmem:[%s230 + $0x3dc] sm:$0xf]
        %v490 = vld [vmem:[%s230 + $0x3e0] sm:$0xf]
        %v491 = vld [vmem:[%s230 + $0x3e4] sm:$0xf]
        %v492 = vld [vmem:[%s230 + $0x3e8] sm:$0xf]
        %v493 = vld [vmem:[%s230 + $0x3ec] sm:$0xf]
        %v494 = vld [vmem:[%s230 + $0x3f0] sm:$0xf]
        %v495 = vld [vmem:[%s230 + $0x3f4] sm:$0xf]
        %v496 = vld [vmem:[%s230 + $0x3f8] sm:$0xf]
        %v497 = vld [vmem:[%s230 + $0x3fc] sm:$0xf]
        %v498 = vld [vmem:[%s230 + $0x400] sm:$0xf]
        %v499 = vld [vmem:[%s230 + $0x404] sm:$0xf]
        %v500 = vld [vmem:[%s230 + $0x408] sm:$0xf]
        %v501 = vld [vmem:[%s230 + $0x40c] sm:$0xf]
        %v502 = vld [vmem:[%s230 + $0x410] sm:$0xf]
        %v503 = vld [vmem:[%s230 + $0x414] sm:$0xf]
        %v504 = vld [vmem:[%s230 + $0x418] sm:$0xf]
        %v505 = vld [vmem:[%s230 + $0x41c] sm:$0xf]
        %v506 = vld [vmem:[%s230 + $0x420] sm:$0xf]
        %v507 = vld [vmem:[%s230 + $0x424] sm:$0xf]
        %v508 = vld [vmem:[%s230 + $0x428] sm:$0xf]
        %v509 = vld [vmem:[%s230 + $0x42c] sm:$0xf]
        %v510 = vld [vmem:[%s230 + $0x430] sm:$0xf]
        %v511 = vld [vmem:[%s230 + $0x434] sm:$0xf]
        %v512 = vld [vmem:[%s230 + $0x438] sm:$0xf]
        %v513 = vld [vmem:[%s230 + $0x43c] sm:$0xf]
        %v514 = vld [vmem:[%s230 + $0x440] sm:$0xf]
        %v515 = vld [vmem:[%s230 + $0x444] sm:$0xf]
        %v516 = vld [vmem:[%s230 + $0x448] sm:$0xf]
        %v517 = vld [vmem:[%s230 + $0x44c] sm:$0xf]
        %v518 = vld [vmem:[%s230 + $0x450] sm:$0xf]
        %v519 = vld [vmem:[%s230 + $0x454] sm:$0xf]
        %v520 = vld [vmem:[%s230 + $0x458] sm:$0xf]
        %v521 = vld [vmem:[%s230 + $0x45c] sm:$0xf]
        %v522 = vld [vmem:[%s230 + $0x460] sm:$0xf]
        %v523 = vld [vmem:[%s230 + $0x464] sm:$0xf]
        %v524 = vld [vmem:[%s230 + $0x468] sm:$0xf]
        %v525 = vld [vmem:[%s230 + $0x46c] sm:$0xf]
        %v526 = vld [vmem:[%s230 + $0x470] sm:$0xf]
        %v527 = vld [vmem:[%s230 + $0x474] sm:$0xf]
        %v528 = vld [vmem:[%s230 + $0x478] sm:$0xf]
        %v529 = vld [vmem:[%s230 + $0x47c] sm:$0xf]
        %v533 = vcombine.high %v239, %v239
        %v535 = vunpack.c.l.s4 1966171168
        %v536 = vunpack.c.0.s8 %v535
        %v537 = vlaneseq
        %v538 = vshrl.u32 %v537, 7
        %v539 = vsub.s32 %v536, %v538
        %v540 = vrot.slane %v239, %v539
        %v542 = vunpack.c.l.s4 1966171168
        %v543 = vunpack.c.0.s8 %v542
        %v544 = vlaneseq
        %v545 = vshrl.u32 %v544, 7
        %v546 = vsub.s32 %v543, %v545
        %v547 = vrot.slane %v533, %v546
        %v548 = vcombine.high %v540, %v540
        %v549 = vcombine.high %v547, %v547
        %v551 = vunpack.c.l.s4 1966171168
        %v552 = vunpack.c.0.s8 %v551
        %v553 = vlaneseq
        %v554 = vshrl.u32 %v553, 7
        %v555 = vsub.s32 %v552, %v554
        %v556 = vrot.slane %v540, %v555
        %v558 = vunpack.c.l.s4 1966171168
        %v559 = vunpack.c.0.s8 %v558
        %v560 = vlaneseq
        %v561 = vshrl.u32 %v560, 7
        %v562 = vsub.s32 %v559, %v561
        %v563 = vrot.slane %v547, %v562
        %v565 = vunpack.c.l.s4 1966171168
        %v566 = vunpack.c.0.s8 %v565
        %v567 = vlaneseq
        %v568 = vshrl.u32 %v567, 7
        %v569 = vsub.s32 %v566, %v568
        %v570 = vrot.slane %v548, %v569
        %v572 = vunpack.c.l.s4 1966171168
        %v573 = vunpack.c.0.s8 %v572
        %v574 = vlaneseq
        %v575 = vshrl.u32 %v574, 7
        %v576 = vsub.s32 %v573, %v575
        %v577 = vrot.slane %v549, %v576
        %v578 = vcombine.high %v556, %v556
        %v579 = vcombine.high %v563, %v563
        %v580 = vcombine.high %v570, %v570
        %v581 = vcombine.high %v577, %v577
        %v582 = vcombine.high %v240, %v240
        %v584 = vunpack.c.l.s4 1966171168
        %v585 = vunpack.c.0.s8 %v584
        %v586 = vlaneseq
        %v587 = vshrl.u32 %v586, 7
        %v588 = vsub.s32 %v585, %v587
        %v589 = vrot.slane %v240, %v588
        %v591 = vunpack.c.l.s4 1966171168
        %v592 = vunpack.c.0.s8 %v591
        %v593 = vlaneseq
        %v594 = vshrl.u32 %v593, 7
        %v595 = vsub.s32 %v592, %v594
        %v596 = vrot.slane %v582, %v595
        %v597 = vcombine.high %v589, %v589
        %v598 = vcombine.high %v596, %v596
        %v600 = vunpack.c.l.s4 1966171168
        %v601 = vunpack.c.0.s8 %v600
        %v602 = vlaneseq
        %v603 = vshrl.u32 %v602, 7
        %v604 = vsub.s32 %v601, %v603
        %v605 = vrot.slane %v589, %v604
        %v607 = vunpack.c.l.s4 1966171168
        %v608 = vunpack.c.0.s8 %v607
        %v609 = vlaneseq
        %v610 = vshrl.u32 %v609, 7
        %v611 = vsub.s32 %v608, %v610
        %v612 = vrot.slane %v596, %v611
        %v614 = vunpack.c.l.s4 1966171168
        %v615 = vunpack.c.0.s8 %v614
        %v616 = vlaneseq
        %v617 = vshrl.u32 %v616, 7
        %v618 = vsub.s32 %v615, %v617
        %v619 = vrot.slane %v597, %v618
        %v621 = vunpack.c.l.s4 1966171168
        %v622 = vunpack.c.0.s8 %v621
        %v623 = vlaneseq
        %v624 = vshrl.u32 %v623, 7
        %v625 = vsub.s32 %v622, %v624
        %v626 = vrot.slane %v598, %v625
        %v627 = vcombine.high %v605, %v605
        %v628 = vcombine.high %v612, %v612
        %v629 = vcombine.high %v619, %v619
        %v630 = vcombine.high %v626, %v626
        %v632 = vunpack.c.l.s4 1966171168
        %v633 = vunpack.c.0.s8 %v632
        %v634 = vlaneseq
        %v635 = vshrl.u32 %v634, 7
        %v636 = vsub.s32 %v633, %v635
        %v637 = vrot.slane %v241, %v636
        %v638 = vcombine.high %v637, %v637
        %v640 = vunpack.c.l.s4 1966171168
        %v641 = vunpack.c.0.s8 %v640
        %v642 = vlaneseq
        %v643 = vshrl.u32 %v642, 7
        %v644 = vsub.s32 %v641, %v643
        %v645 = vrot.slane %v637, %v644
        %v647 = vunpack.c.l.s4 1966171168
        %v648 = vunpack.c.0.s8 %v647
        %v649 = vlaneseq
        %v650 = vshrl.u32 %v649, 7
        %v651 = vsub.s32 %v648, %v650
        %v652 = vrot.slane %v638, %v651
        %v959 = vunpack.c.l.b16 %v242
        %v960 = vunpack.c.l.b16 %v243
        %v961 = vunpack.c.l.b16 %v244
        %v962 = vunpack.c.l.b16 %v245
        %v963 = vunpack.c.l.b16 %v246
        %v964 = vunpack.c.l.b16 %v247
        %v965 = vunpack.c.l.b16 %v248
        %v966 = vunpack.c.l.b16 %v249
        %v967 = vunpack.c.l.b16 %v250
        %v968 = vunpack.c.l.b16 %v251
        %v969 = vunpack.c.l.b16 %v252
        %v970 = vunpack.c.l.b16 %v253
        %v971 = vunpack.c.l.b16 %v254
        %v972 = vunpack.c.l.b16 %v255
        %v973 = vunpack.c.l.b16 %v256
        %v974 = vunpack.c.l.b16 %v257
        %v975 = vunpack.c.l.b16 %v258
        %v976 = vunpack.c.l.b16 %v259
        %v977 = vunpack.c.l.b16 %v260
        %v978 = vunpack.c.l.b16 %v261
        %v979 = vunpack.c.l.b16 %v262
        %v980 = vunpack.c.l.b16 %v263
        %v981 = vunpack.c.l.b16 %v264
        %v982 = vunpack.c.l.b16 %v265
        %v983 = vunpack.c.l.b16 %v266
        %v984 = vunpack.c.l.b16 %v267
        %v985 = vunpack.c.l.b16 %v268
        %v986 = vunpack.c.l.b16 %v269
        %v987 = vunpack.c.l.b16 %v270
        %v988 = vunpack.c.l.b16 %v271
        %v989 = vunpack.c.l.b16 %v272
        %v990 = vunpack.c.l.b16 %v273
        %v991 = vunpack.c.l.b16 %v274
        %v992 = vunpack.c.l.b16 %v275
        %v993 = vunpack.c.l.b16 %v276
        %v994 = vunpack.c.l.b16 %v277
        %v995 = vunpack.c.l.b16 %v278
        %v996 = vunpack.c.l.b16 %v279
        %v997 = vunpack.c.l.b16 %v280
        %v998 = vunpack.c.l.b16 %v281
        %v999 = vunpack.c.l.b16 %v282
        %v1000 = vunpack.c.l.b16 %v283
        %v1001 = vunpack.c.l.b16 %v284
        %v1002 = vunpack.c.l.b16 %v285
        %v1003 = vunpack.c.l.b16 %v286
        %v1004 = vunpack.c.l.b16 %v287
        %v1005 = vunpack.c.l.b16 %v288
        %v1006 = vunpack.c.l.b16 %v289
        %v1007 = vunpack.c.l.b16 %v290
        %v1008 = vunpack.c.l.b16 %v291
        %v1009 = vunpack.c.l.b16 %v292
        %v1010 = vunpack.c.l.b16 %v293
        %v1011 = vunpack.c.l.b16 %v294
        %v1012 = vunpack.c.l.b16 %v295
        %v1013 = vunpack.c.l.b16 %v296
        %v1014 = vunpack.c.l.b16 %v297
        %v1015 = vunpack.c.l.b16 %v298
        %v1016 = vunpack.c.l.b16 %v299
        %v1017 = vunpack.c.l.b16 %v300
        %v1018 = vunpack.c.l.b16 %v301
        %v1019 = vunpack.c.l.b16 %v302
        %v1020 = vunpack.c.l.b16 %v303
        %v1021 = vunpack.c.l.b16 %v304
        %v1022 = vunpack.c.l.b16 %v305
        %v1023 = vunpack.c.l.b16 %v306
        %v1024 = vunpack.c.l.b16 %v307
        %v1025 = vunpack.c.l.b16 %v308
        %v1026 = vunpack.c.l.b16 %v309
        %v1027 = vunpack.c.l.b16 %v310
        %v1028 = vunpack.c.l.b16 %v311
        %v1029 = vunpack.c.l.b16 %v312
        %v1030 = vunpack.c.l.b16 %v313
        %v1031 = vunpack.c.l.b16 %v314
        %v1032 = vunpack.c.l.b16 %v315
        %v1033 = vunpack.c.l.b16 %v316
        %v1034 = vunpack.c.l.b16 %v317
        %v1035 = vunpack.c.l.b16 %v318
        %v1036 = vunpack.c.l.b16 %v319
        %v1037 = vunpack.c.l.b16 %v320
        %v1038 = vunpack.c.l.b16 %v321
        %v1039 = vunpack.c.l.b16 %v322
        %v1040 = vunpack.c.l.b16 %v323
        %v1041 = vunpack.c.l.b16 %v324
        %v1042 = vunpack.c.l.b16 %v325
        %v1043 = vunpack.c.l.b16 %v326
        %v1044 = vunpack.c.l.b16 %v327
        %v1045 = vunpack.c.l.b16 %v328
        %v1046 = vunpack.c.l.b16 %v329
        %v1047 = vunpack.c.l.b16 %v330
        %v1048 = vunpack.c.l.b16 %v331
        %v1049 = vunpack.c.l.b16 %v332
        %v1050 = vunpack.c.l.b16 %v333
        %v1051 = vunpack.c.l.b16 %v334
        %v1052 = vunpack.c.l.b16 %v335
        %v1053 = vunpack.c.l.b16 %v336
        %v1054 = vunpack.c.l.b16 %v337
        %v1055 = vunpack.c.l.b16 %v338
        %v1056 = vunpack.c.l.b16 %v339
        %v1057 = vunpack.c.l.b16 %v340
        %v1058 = vunpack.c.l.b16 %v341
        %v1059 = vunpack.c.l.b16 %v342
        %v1060 = vunpack.c.l.b16 %v343
        %v1061 = vunpack.c.l.b16 %v344
        %v1062 = vunpack.c.l.b16 %v345
        %v1063 = vunpack.c.l.b16 %v346
        %v1064 = vunpack.c.l.b16 %v347
        %v1065 = vunpack.c.l.b16 %v348
        %v1066 = vunpack.c.l.b16 %v349
        %v1067 = vunpack.c.l.b16 %v350
        %v1068 = vunpack.c.l.b16 %v351
        %v1069 = vunpack.c.l.b16 %v352
        %v1070 = vunpack.c.l.b16 %v353
        %v1071 = vunpack.c.l.b16 %v354
        %v1072 = vunpack.c.l.b16 %v355
        %v1073 = vunpack.c.l.b16 %v356
        %v1074 = vunpack.c.l.b16 %v357
        %v1075 = vunpack.c.l.b16 %v358
        %v1076 = vunpack.c.l.b16 %v359
        %v1077 = vunpack.c.l.b16 %v360
        %v1078 = vunpack.c.l.b16 %v361
        %v1079 = vunpack.c.l.b16 %v362
        %v1080 = vunpack.c.l.b16 %v363
        %v1081 = vunpack.c.l.b16 %v364
        %v1082 = vunpack.c.l.b16 %v365
        %v1083 = vunpack.c.l.b16 %v366
        %v1084 = vunpack.c.l.b16 %v367
        %v1085 = vunpack.c.l.b16 %v368
        %v1086 = vunpack.c.l.b16 %v369
        %v1087 = vunpack.c.l.b16 %v370
        %v1088 = vunpack.c.l.b16 %v371
        %v1089 = vunpack.c.l.b16 %v372
        %v1090 = vunpack.c.l.b16 %v373
        %v1091 = vunpack.c.l.b16 %v374
        %v1092 = vunpack.c.l.b16 %v375
        %v1093 = vunpack.c.l.b16 %v376
        %v1094 = vunpack.c.l.b16 %v377
        %v1095 = vunpack.c.l.b16 %v378
        %v1096 = vunpack.c.l.b16 %v379
        %v1097 = vunpack.c.l.b16 %v380
        %v1098 = vunpack.c.l.b16 %v381
        %v1099 = vunpack.c.l.b16 %v382
        %v1100 = vunpack.c.l.b16 %v383
        %v1101 = vunpack.c.l.b16 %v384
        %v1102 = vunpack.c.l.b16 %v385
        %v1103 = vunpack.c.l.b16 %v386
        %v1104 = vunpack.c.l.b16 %v387
        %v1105 = vunpack.c.l.b16 %v388
        %v1106 = vunpack.c.l.b16 %v389
        %v1107 = vunpack.c.l.b16 %v390
        %v1108 = vunpack.c.l.b16 %v391
        %v1109 = vunpack.c.l.b16 %v392
        %v1110 = vunpack.c.l.b16 %v393
        %v1111 = vunpack.c.l.b16 %v394
        %v1112 = vunpack.c.l.b16 %v395
        %v1113 = vunpack.c.l.b16 %v396
        %v1114 = vunpack.c.l.b16 %v397
        %v1115 = vunpack.c.l.b16 %v398
        %v1116 = vunpack.c.l.b16 %v399
        %v1117 = vunpack.c.l.b16 %v400
        %v1118 = vunpack.c.l.b16 %v401
        %v1119 = vunpack.c.l.b16 %v402
        %v1120 = vunpack.c.l.b16 %v403
        %v1121 = vunpack.c.l.b16 %v404
        %v1122 = vunpack.c.l.b16 %v405
        %v1123 = vunpack.c.l.b16 %v406
        %v1124 = vunpack.c.l.b16 %v407
        %v1125 = vunpack.c.l.b16 %v408
        %v1126 = vunpack.c.l.b16 %v409
        %v1127 = vunpack.c.l.b16 %v410
        %v1128 = vunpack.c.l.b16 %v411
        %v1129 = vunpack.c.l.b16 %v412
        %v1130 = vunpack.c.l.b16 %v413
        %v1131 = vunpack.c.l.b16 %v414
        %v1132 = vunpack.c.l.b16 %v415
        %v1133 = vunpack.c.l.b16 %v416
        %v1134 = vunpack.c.l.b16 %v417
        %v1135 = vunpack.c.l.b16 %v418
        %v1136 = vunpack.c.l.b16 %v419
        %v1137 = vunpack.c.l.b16 %v420
        %v1138 = vunpack.c.l.b16 %v421
        %v1139 = vunpack.c.l.b16 %v422
        %v1140 = vunpack.c.l.b16 %v423
        %v1141 = vunpack.c.l.b16 %v424
        %v1142 = vunpack.c.l.b16 %v425
        %v1143 = vunpack.c.l.b16 %v426
        %v1144 = vunpack.c.l.b16 %v427
        %v1145 = vunpack.c.l.b16 %v428
        %v1146 = vunpack.c.l.b16 %v429
        %v1147 = vunpack.c.l.b16 %v430
        %v1148 = vunpack.c.l.b16 %v431
        %v1149 = vunpack.c.l.b16 %v432
        %v1150 = vunpack.c.l.b16 %v433
        %v1151 = vunpack.c.l.b16 %v434
        %v1152 = vunpack.c.l.b16 %v435
        %v1153 = vunpack.c.l.b16 %v436
        %v1154 = vunpack.c.l.b16 %v437
        %v1155 = vunpack.c.l.b16 %v438
        %v1156 = vunpack.c.l.b16 %v439
        %v1157 = vunpack.c.l.b16 %v440
        %v1158 = vunpack.c.l.b16 %v441
        %v1159 = vunpack.c.l.b16 %v442
        %v1160 = vunpack.c.l.b16 %v443
        %v1161 = vunpack.c.l.b16 %v444
        %v1162 = vunpack.c.l.b16 %v445
        %v1163 = vunpack.c.l.b16 %v446
        %v1164 = vunpack.c.l.b16 %v447
        %v1165 = vunpack.c.l.b16 %v448
        %v1166 = vunpack.c.l.b16 %v449
        %v1167 = vunpack.c.l.b16 %v450
        %v1168 = vunpack.c.l.b16 %v451
        %v1169 = vunpack.c.l.b16 %v452
        %v1170 = vunpack.c.l.b16 %v453
        %v1171 = vunpack.c.l.b16 %v454
        %v1172 = vunpack.c.l.b16 %v455
        %v1173 = vunpack.c.l.b16 %v456
        %v1174 = vunpack.c.l.b16 %v457
        %v1175 = vunpack.c.l.b16 %v458
        %v1176 = vunpack.c.l.b16 %v459
        %v1177 = vunpack.c.l.b16 %v460
        %v1178 = vunpack.c.l.b16 %v461
        %v1179 = vunpack.c.l.b16 %v462
        %v1180 = vunpack.c.l.b16 %v463
        %v1181 = vunpack.c.l.b16 %v464
        %v1182 = vunpack.c.l.b16 %v465
        %v1183 = vunpack.c.l.b16 %v466
        %v1184 = vunpack.c.l.b16 %v467
        %v1185 = vunpack.c.l.b16 %v468
        %v1186 = vunpack.c.l.b16 %v469
        %v1187 = vunpack.c.l.b16 %v470
        %v1188 = vunpack.c.l.b16 %v471
        %v1189 = vunpack.c.l.b16 %v472
        %v1190 = vunpack.c.l.b16 %v473
        %v1191 = vunpack.c.l.b16 %v474
        %v1192 = vunpack.c.l.b16 %v475
        %v1193 = vunpack.c.l.b16 %v476
        %v1194 = vunpack.c.l.b16 %v477
        %v1195 = vunpack.c.l.b16 %v478
        %v1196 = vunpack.c.l.b16 %v479
        %v1197 = vunpack.c.l.b16 %v480
        %v1198 = vunpack.c.l.b16 %v481
        %v1199 = vunpack.c.l.b16 %v482
        %v1200 = vunpack.c.l.b16 %v483
        %v1201 = vunpack.c.l.b16 %v484
        %v1202 = vunpack.c.l.b16 %v485
        %v1203 = vunpack.c.l.b16 %v486
        %v1204 = vunpack.c.l.b16 %v487
        %v1205 = vunpack.c.l.b16 %v488
        %v1206 = vunpack.c.l.b16 %v489
        %v1207 = vunpack.c.l.b16 %v490
        %v1208 = vunpack.c.l.b16 %v491
        %v1209 = vunpack.c.l.b16 %v492
        %v1210 = vunpack.c.l.b16 %v493
        %v1211 = vunpack.c.l.b16 %v494
        %v1212 = vunpack.c.l.b16 %v495
        %v1213 = vunpack.c.l.b16 %v496
        %v1214 = vunpack.c.l.b16 %v497
        %v1215 = vunpack.c.l.b16 %v498
        %v1216 = vunpack.c.l.b16 %v499
        %v1217 = vunpack.c.l.b16 %v500
        %v1218 = vunpack.c.l.b16 %v501
        %v1219 = vunpack.c.l.b16 %v502
        %v1220 = vunpack.c.l.b16 %v503
        %v1221 = vunpack.c.l.b16 %v504
        %v1222 = vunpack.c.l.b16 %v505
        %v1223 = vunpack.c.l.b16 %v506
        %v1224 = vunpack.c.l.b16 %v507
        %v1225 = vunpack.c.l.b16 %v508
        %v1226 = vunpack.c.l.b16 %v509
        %v1227 = vunpack.c.l.b16 %v510
        %v1228 = vunpack.c.l.b16 %v511
        %v1229 = vunpack.c.l.b16 %v512
        %v1230 = vunpack.c.l.b16 %v513
        %v1231 = vunpack.c.l.b16 %v514
        %v1232 = vunpack.c.l.b16 %v515
        %v1233 = vunpack.c.l.b16 %v516
        %v1234 = vunpack.c.l.b16 %v517
        %v1235 = vunpack.c.l.b16 %v518
        %v1236 = vunpack.c.l.b16 %v519
        %v1237 = vunpack.c.l.b16 %v520
        %v1238 = vunpack.c.l.b16 %v521
        %v1239 = vunpack.c.l.b16 %v522
        %v1240 = vunpack.c.l.b16 %v523
        %v1241 = vunpack.c.l.b16 %v524
        %v1242 = vunpack.c.l.b16 %v525
        %v1243 = vunpack.c.l.b16 %v526
        %v1244 = vunpack.c.l.b16 %v527
        %v1245 = vunpack.c.l.b16 %v528
        %v1246 = vunpack.c.l.b16 %v529
        %v1247 = vpack.c.b16 %v960, %v959
        %v1248 = vpack.c.b16 %v962, %v961
        %v1249 = vpack.c.b16 %v964, %v963
        %v1250 = vpack.c.b16 %v966, %v965
        %v1251 = vpack.c.b16 %v968, %v967
        %v1252 = vpack.c.b16 %v970, %v969
        %v1253 = vpack.c.b16 %v972, %v971
        %v1254 = vpack.c.b16 %v974, %v973
        %v1255 = vpack.c.b16 %v976, %v975
        %v1256 = vpack.c.b16 %v978, %v977
        %v1257 = vpack.c.b16 %v980, %v979
        %v1258 = vpack.c.b16 %v982, %v981
        %v1259 = vpack.c.b16 %v984, %v983
        %v1260 = vpack.c.b16 %v986, %v985
        %v1261 = vpack.c.b16 %v988, %v987
        %v1262 = vpack.c.b16 %v990, %v989
        %v1263 = vpack.c.b16 %v992, %v991
        %v1264 = vpack.c.b16 %v994, %v993
        %v1265 = vpack.c.b16 %v996, %v995
        %v1266 = vpack.c.b16 %v998, %v997
        %v1267 = vpack.c.b16 %v1000, %v999
        %v1268 = vpack.c.b16 %v1002, %v1001
        %v1269 = vpack.c.b16 %v1004, %v1003
        %v1270 = vpack.c.b16 %v1006, %v1005
        %v1271 = vpack.c.b16 %v1008, %v1007
        %v1272 = vpack.c.b16 %v1010, %v1009
        %v1273 = vpack.c.b16 %v1012, %v1011
        %v1274 = vpack.c.b16 %v1014, %v1013
        %v1275 = vpack.c.b16 %v1016, %v1015
        %v1276 = vpack.c.b16 %v1018, %v1017
        %v1277 = vpack.c.b16 %v1020, %v1019
        %v1278 = vpack.c.b16 %v1022, %v1021
        %v1279 = vpack.c.b16 %v1024, %v1023
        %v1280 = vpack.c.b16 %v1026, %v1025
        %v1281 = vpack.c.b16 %v1028, %v1027
        %v1282 = vpack.c.b16 %v1030, %v1029
        %v1283 = vpack.c.b16 %v1032, %v1031
        %v1284 = vpack.c.b16 %v1034, %v1033
        %v1285 = vpack.c.b16 %v1036, %v1035
        %v1286 = vpack.c.b16 %v1038, %v1037
        %v1287 = vpack.c.b16 %v1040, %v1039
        %v1288 = vpack.c.b16 %v1042, %v1041
        %v1289 = vpack.c.b16 %v1044, %v1043
        %v1290 = vpack.c.b16 %v1046, %v1045
        %v1291 = vpack.c.b16 %v1048, %v1047
        %v1292 = vpack.c.b16 %v1050, %v1049
        %v1293 = vpack.c.b16 %v1052, %v1051
        %v1294 = vpack.c.b16 %v1054, %v1053
        %v1295 = vpack.c.b16 %v1056, %v1055
        %v1296 = vpack.c.b16 %v1058, %v1057
        %v1297 = vpack.c.b16 %v1060, %v1059
        %v1298 = vpack.c.b16 %v1062, %v1061
        %v1299 = vpack.c.b16 %v1064, %v1063
        %v1300 = vpack.c.b16 %v1066, %v1065
        %v1301 = vpack.c.b16 %v1068, %v1067
        %v1302 = vpack.c.b16 %v1070, %v1069
        %v1303 = vpack.c.b16 %v1072, %v1071
        %v1304 = vpack.c.b16 %v1074, %v1073
        %v1305 = vpack.c.b16 %v1076, %v1075
        %v1306 = vpack.c.b16 %v1078, %v1077
        %v1307 = vpack.c.b16 %v1080, %v1079
        %v1308 = vpack.c.b16 %v1082, %v1081
        %v1309 = vpack.c.b16 %v1084, %v1083
        %v1310 = vpack.c.b16 %v1086, %v1085
        %v1311 = vpack.c.b16 %v1088, %v1087
        %v1312 = vpack.c.b16 %v1090, %v1089
        %v1313 = vpack.c.b16 %v1092, %v1091
        %v1314 = vpack.c.b16 %v1094, %v1093
        %v1315 = vpack.c.b16 %v1096, %v1095
        %v1316 = vpack.c.b16 %v1098, %v1097
        %v1317 = vpack.c.b16 %v1100, %v1099
        %v1318 = vpack.c.b16 %v1102, %v1101
        %v1319 = vpack.c.b16 %v1104, %v1103
        %v1320 = vpack.c.b16 %v1106, %v1105
        %v1321 = vpack.c.b16 %v1108, %v1107
        %v1322 = vpack.c.b16 %v1110, %v1109
        %v1323 = vpack.c.b16 %v1112, %v1111
        %v1324 = vpack.c.b16 %v1114, %v1113
        %v1325 = vpack.c.b16 %v1116, %v1115
        %v1326 = vpack.c.b16 %v1118, %v1117
        %v1327 = vpack.c.b16 %v1120, %v1119
        %v1328 = vpack.c.b16 %v1122, %v1121
        %v1329 = vpack.c.b16 %v1124, %v1123
        %v1330 = vpack.c.b16 %v1126, %v1125
        %v1331 = vpack.c.b16 %v1128, %v1127
        %v1332 = vpack.c.b16 %v1130, %v1129
        %v1333 = vpack.c.b16 %v1132, %v1131
        %v1334 = vpack.c.b16 %v1134, %v1133
        %v1335 = vpack.c.b16 %v1136, %v1135
        %v1336 = vpack.c.b16 %v1138, %v1137
        %v1337 = vpack.c.b16 %v1140, %v1139
        %v1338 = vpack.c.b16 %v1142, %v1141
        %v1339 = vpack.c.b16 %v1144, %v1143
        %v1340 = vpack.c.b16 %v1146, %v1145
        %v1341 = vpack.c.b16 %v1148, %v1147
        %v1342 = vpack.c.b16 %v1150, %v1149
        %v1343 = vpack.c.b16 %v1152, %v1151
        %v1344 = vpack.c.b16 %v1154, %v1153
        %v1345 = vpack.c.b16 %v1156, %v1155
        %v1346 = vpack.c.b16 %v1158, %v1157
        %v1347 = vpack.c.b16 %v1160, %v1159
        %v1348 = vpack.c.b16 %v1162, %v1161
        %v1349 = vpack.c.b16 %v1164, %v1163
        %v1350 = vpack.c.b16 %v1166, %v1165
        %v1351 = vpack.c.b16 %v1168, %v1167
        %v1352 = vpack.c.b16 %v1170, %v1169
        %v1353 = vpack.c.b16 %v1172, %v1171
        %v1354 = vpack.c.b16 %v1174, %v1173
        %v1355 = vpack.c.b16 %v1176, %v1175
        %v1356 = vpack.c.b16 %v1178, %v1177
        %v1357 = vpack.c.b16 %v1180, %v1179
        %v1358 = vpack.c.b16 %v1182, %v1181
        %v1359 = vpack.c.b16 %v1184, %v1183
        %v1360 = vpack.c.b16 %v1186, %v1185
        %v1361 = vpack.c.b16 %v1188, %v1187
        %v1362 = vpack.c.b16 %v1190, %v1189
        %v1363 = vpack.c.b16 %v1192, %v1191
        %v1364 = vpack.c.b16 %v1194, %v1193
        %v1365 = vpack.c.b16 %v1196, %v1195
        %v1366 = vpack.c.b16 %v1198, %v1197
        %v1367 = vpack.c.b16 %v1200, %v1199
        %v1368 = vpack.c.b16 %v1202, %v1201
        %v1369 = vpack.c.b16 %v1204, %v1203
        %v1370 = vpack.c.b16 %v1206, %v1205
        %v1371 = vpack.c.b16 %v1208, %v1207
        %v1372 = vpack.c.b16 %v1210, %v1209
        %v1373 = vpack.c.b16 %v1212, %v1211
        %v1374 = vpack.c.b16 %v1214, %v1213
        %v1375 = vpack.c.b16 %v1216, %v1215
        %v1376 = vpack.c.b16 %v1218, %v1217
        %v1377 = vpack.c.b16 %v1220, %v1219
        %v1378 = vpack.c.b16 %v1222, %v1221
        %v1379 = vpack.c.b16 %v1224, %v1223
        %v1380 = vpack.c.b16 %v1226, %v1225
        %v1381 = vpack.c.b16 %v1228, %v1227
        %v1382 = vpack.c.b16 %v1230, %v1229
        %v1383 = vpack.c.b16 %v1232, %v1231
        %v1384 = vpack.c.b16 %v1234, %v1233
        %v1385 = vpack.c.b16 %v1236, %v1235
        %v1386 = vpack.c.b16 %v1238, %v1237
        %v1387 = vpack.c.b16 %v1240, %v1239
        %v1388 = vpack.c.b16 %v1242, %v1241
        %v1389 = vpack.c.b16 %v1244, %v1243
        %v1390 = vpack.c.b16 %v1246, %v1245
        %1535 = vmatprep.subr.bf16.mxu0 0
        %1536 = vmatpush1.bf16.msra.mxu0 %v1254
        %1537 = vmatprep.subr.bf16.mxu0 0
        %1538 = vmatpush1.bf16.msra.mxu0 %v1253
        %1539 = vmatprep.subr.bf16.mxu0 0
        %1540 = vmatpush1.bf16.msra.mxu0 %v1252
        %1541 = vmatprep.subr.bf16.mxu0 0
        %1542 = vmatpush1.bf16.msra.mxu0 %v1251
        %1543 = vmatprep.subr.bf16.mxu0 0
        %1544 = vmatpush1.bf16.msra.mxu0 %v1250
        %1545 = vmatprep.subr.bf16.mxu0 0
        %1546 = vmatpush1.bf16.msra.mxu0 %v1249
        %1547 = vmatprep.subr.bf16.mxu0 0
        %1548 = vmatpush1.bf16.msra.mxu0 %v1248
        %1549 = vmatprep.subr.bf16.mxu0 0
        %1550 = vmatpush1.bf16.msra.mxu0 %v1247
        %1551 = vmatprep.subr.bf16.mxu0 0
        %1552 = vmatpush2.bf16.msra.mxu0 %v1262
        %1553 = vmatprep.subr.bf16.mxu0 0
        %1554 = vmatpush2.bf16.msra.mxu0 %v1261
        %1555 = vmatprep.subr.bf16.mxu0 0
        %1556 = vmatpush2.bf16.msra.mxu0 %v1260
        %1557 = vmatprep.subr.bf16.mxu0 0
        %1558 = vmatpush2.bf16.msra.mxu0 %v1259
        %1559 = vmatprep.subr.bf16.mxu0 0
        %1560 = vmatpush2.bf16.msra.mxu0 %v1258
        %1561 = vmatprep.subr.bf16.mxu0 0
        %1562 = vmatpush2.bf16.msra.mxu0 %v1257
        %1563 = vmatprep.subr.bf16.mxu0 0
        %1564 = vmatpush2.bf16.msra.mxu0 %v1256
        %1565 = vmatprep.subr.bf16.mxu0 0
        %1566 = vmatpush2.bf16.msra.mxu0 %v1255
        %1567 = vmatprep.mubr.bf16.mxu0 %v570
        %1568 = vmatmul.mubr.bf16.gmra.mxu0 %v556
        %v1569 = vpop.f32.mrf.mxu0
        %v1570 = vadd.f32 0.0, %v1569
        %v1571 = vpop.f32.mrf.mxu0
        %v1572 = vpop.f32.mrf.mxu0
        %v1573 = vpop.f32.mrf.mxu0
        %1574 = vdwg.mxu0
        %1575 = vmatprep.subr.bf16.mxu0 0
        %1576 = vmatpush1.bf16.msra.mxu0 %v1270
        %1577 = vmatprep.subr.bf16.mxu0 0
        %1578 = vmatpush1.bf16.msra.mxu0 %v1269
        %1579 = vmatprep.subr.bf16.mxu0 0
        %1580 = vmatpush1.bf16.msra.mxu0 %v1268
        %1581 = vmatprep.subr.bf16.mxu0 0
        %1582 = vmatpush1.bf16.msra.mxu0 %v1267
        %1583 = vmatprep.subr.bf16.mxu0 0
        %1584 = vmatpush1.bf16.msra.mxu0 %v1266
        %1585 = vmatprep.subr.bf16.mxu0 0
        %1586 = vmatpush1.bf16.msra.mxu0 %v1265
        %1587 = vmatprep.subr.bf16.mxu0 0
        %1588 = vmatpush1.bf16.msra.mxu0 %v1264
        %1589 = vmatprep.subr.bf16.mxu0 0
        %1590 = vmatpush1.bf16.msra.mxu0 %v1263
        %1591 = vmatprep.subr.bf16.mxu0 0
        %1592 = vmatpush2.bf16.msra.mxu0 %v1278
        %1593 = vmatprep.subr.bf16.mxu0 0
        %1594 = vmatpush2.bf16.msra.mxu0 %v1277
        %1595 = vmatprep.subr.bf16.mxu0 0
        %1596 = vmatpush2.bf16.msra.mxu0 %v1276
        %1597 = vmatprep.subr.bf16.mxu0 0
        %1598 = vmatpush2.bf16.msra.mxu0 %v1275
        %1599 = vmatprep.subr.bf16.mxu0 0
        %1600 = vmatpush2.bf16.msra.mxu0 %v1274
        %1601 = vmatprep.subr.bf16.mxu0 0
        %1602 = vmatpush2.bf16.msra.mxu0 %v1273
        %1603 = vmatprep.subr.bf16.mxu0 0
        %1604 = vmatpush2.bf16.msra.mxu0 %v1272
        %1605 = vmatprep.subr.bf16.mxu0 0
        %1606 = vmatpush2.bf16.msra.mxu0 %v1271
        %1607 = vmatprep.mubr.bf16.mxu0 %v580
        %1608 = vmatmul.mubr.bf16.gmra.mxu0 %v578
        %v1609 = vpop.f32.mrf.mxu0
        %v1610 = vadd.f32 %v1570, %v1609
        %v1611 = vpop.f32.mrf.mxu0
        %v1612 = vpop.f32.mrf.mxu0
        %v1613 = vpop.f32.mrf.mxu0
        %1614 = vdwg.mxu0
        %1615 = vmatprep.subr.bf16.mxu0 0
        %1616 = vmatpush1.bf16.msra.mxu0 %v1286
        %1617 = vmatprep.subr.bf16.mxu0 0
        %1618 = vmatpush1.bf16.msra.mxu0 %v1285
        %1619 = vmatprep.subr.bf16.mxu0 0
        %1620 = vmatpush1.bf16.msra.mxu0 %v1284
        %1621 = vmatprep.subr.bf16.mxu0 0
        %1622 = vmatpush1.bf16.msra.mxu0 %v1283
        %1623 = vmatprep.subr.bf16.mxu0 0
        %1624 = vmatpush1.bf16.msra.mxu0 %v1282
        %1625 = vmatprep.subr.bf16.mxu0 0
        %1626 = vmatpush1.bf16.msra.mxu0 %v1281
        %1627 = vmatprep.subr.bf16.mxu0 0
        %1628 = vmatpush1.bf16.msra.mxu0 %v1280
        %1629 = vmatprep.subr.bf16.mxu0 0
        %1630 = vmatpush1.bf16.msra.mxu0 %v1279
        %1631 = vmatprep.subr.bf16.mxu0 0
        %1632 = vmatpush2.bf16.msra.mxu0 %v1294
        %1633 = vmatprep.subr.bf16.mxu0 0
        %1634 = vmatpush2.bf16.msra.mxu0 %v1293
        %1635 = vmatprep.subr.bf16.mxu0 0
        %1636 = vmatpush2.bf16.msra.mxu0 %v1292
        %1637 = vmatprep.subr.bf16.mxu0 0
        %1638 = vmatpush2.bf16.msra.mxu0 %v1291
        %1639 = vmatprep.subr.bf16.mxu0 0
        %1640 = vmatpush2.bf16.msra.mxu0 %v1290
        %1641 = vmatprep.subr.bf16.mxu0 0
        %1642 = vmatpush2.bf16.msra.mxu0 %v1289
        %1643 = vmatprep.subr.bf16.mxu0 0
        %1644 = vmatpush2.bf16.msra.mxu0 %v1288
        %1645 = vmatprep.subr.bf16.mxu0 0
        %1646 = vmatpush2.bf16.msra.mxu0 %v1287
        %1647 = vmatprep.mubr.bf16.mxu0 %v577
        %1648 = vmatmul.mubr.bf16.gmra.mxu0 %v563
        %v1649 = vpop.f32.mrf.mxu0
        %v1650 = vadd.f32 %v1610, %v1649
        %v1651 = vpop.f32.mrf.mxu0
        %v1652 = vpop.f32.mrf.mxu0
        %v1653 = vpop.f32.mrf.mxu0
        %1654 = vdwg.mxu0
        %1655 = vmatprep.subr.bf16.mxu0 0
        %1656 = vmatpush1.bf16.msra.mxu0 %v1302
        %1657 = vmatprep.subr.bf16.mxu0 0
        %1658 = vmatpush1.bf16.msra.mxu0 %v1301
        %1659 = vmatprep.subr.bf16.mxu0 0
        %1660 = vmatpush1.bf16.msra.mxu0 %v1300
        %1661 = vmatprep.subr.bf16.mxu0 0
        %1662 = vmatpush1.bf16.msra.mxu0 %v1299
        %1663 = vmatprep.subr.bf16.mxu0 0
        %1664 = vmatpush1.bf16.msra.mxu0 %v1298
        %1665 = vmatprep.subr.bf16.mxu0 0
        %1666 = vmatpush1.bf16.msra.mxu0 %v1297
        %1667 = vmatprep.subr.bf16.mxu0 0
        %1668 = vmatpush1.bf16.msra.mxu0 %v1296
        %1669 = vmatprep.subr.bf16.mxu0 0
        %1670 = vmatpush1.bf16.msra.mxu0 %v1295
        %1671 = vmatprep.subr.bf16.mxu0 0
        %1672 = vmatpush2.bf16.msra.mxu0 %v1310
        %1673 = vmatprep.subr.bf16.mxu0 0
        %1674 = vmatpush2.bf16.msra.mxu0 %v1309
        %1675 = vmatprep.subr.bf16.mxu0 0
        %1676 = vmatpush2.bf16.msra.mxu0 %v1308
        %1677 = vmatprep.subr.bf16.mxu0 0
        %1678 = vmatpush2.bf16.msra.mxu0 %v1307
        %1679 = vmatprep.subr.bf16.mxu0 0
        %1680 = vmatpush2.bf16.msra.mxu0 %v1306
        %1681 = vmatprep.subr.bf16.mxu0 0
        %1682 = vmatpush2.bf16.msra.mxu0 %v1305
        %1683 = vmatprep.subr.bf16.mxu0 0
        %1684 = vmatpush2.bf16.msra.mxu0 %v1304
        %1685 = vmatprep.subr.bf16.mxu0 0
        %1686 = vmatpush2.bf16.msra.mxu0 %v1303
        %1687 = vmatprep.mubr.bf16.mxu0 %v581
        %1688 = vmatmul.mubr.bf16.gmra.mxu0 %v579
        %v1689 = vpop.f32.mrf.mxu0
        %v1690 = vadd.f32 %v1650, %v1689
        %v1691 = vpop.f32.mrf.mxu0
        %v1692 = vpop.f32.mrf.mxu0
        %v1693 = vpop.f32.mrf.mxu0
        %1694 = vdwg.mxu0
        %1695 = vmatprep.subr.bf16.mxu0 0
        %1696 = vmatpush1.bf16.msra.mxu0 %v1318
        %1697 = vmatprep.subr.bf16.mxu0 0
        %1698 = vmatpush1.bf16.msra.mxu0 %v1317
        %1699 = vmatprep.subr.bf16.mxu0 0
        %1700 = vmatpush1.bf16.msra.mxu0 %v1316
        %1701 = vmatprep.subr.bf16.mxu0 0
        %1702 = vmatpush1.bf16.msra.mxu0 %v1315
        %1703 = vmatprep.subr.bf16.mxu0 0
        %1704 = vmatpush1.bf16.msra.mxu0 %v1314
        %1705 = vmatprep.subr.bf16.mxu0 0
        %1706 = vmatpush1.bf16.msra.mxu0 %v1313
        %1707 = vmatprep.subr.bf16.mxu0 0
        %1708 = vmatpush1.bf16.msra.mxu0 %v1312
        %1709 = vmatprep.subr.bf16.mxu0 0
        %1710 = vmatpush1.bf16.msra.mxu0 %v1311
        %1711 = vmatprep.subr.bf16.mxu0 0
        %1712 = vmatpush2.bf16.msra.mxu0 %v1326
        %1713 = vmatprep.subr.bf16.mxu0 0
        %1714 = vmatpush2.bf16.msra.mxu0 %v1325
        %1715 = vmatprep.subr.bf16.mxu0 0
        %1716 = vmatpush2.bf16.msra.mxu0 %v1324
        %1717 = vmatprep.subr.bf16.mxu0 0
        %1718 = vmatpush2.bf16.msra.mxu0 %v1323
        %1719 = vmatprep.subr.bf16.mxu0 0
        %1720 = vmatpush2.bf16.msra.mxu0 %v1322
        %1721 = vmatprep.subr.bf16.mxu0 0
        %1722 = vmatpush2.bf16.msra.mxu0 %v1321
        %1723 = vmatprep.subr.bf16.mxu0 0
        %1724 = vmatpush2.bf16.msra.mxu0 %v1320
        %1725 = vmatprep.subr.bf16.mxu0 0
        %1726 = vmatpush2.bf16.msra.mxu0 %v1319
        %1727 = vmatprep.mubr.bf16.mxu0 %v619
        %1728 = vmatmul.mubr.bf16.gmra.mxu0 %v605
        %v1729 = vpop.f32.mrf.mxu0
        %v1730 = vadd.f32 %v1690, %v1729
        %v1731 = vpop.f32.mrf.mxu0
        %v1732 = vpop.f32.mrf.mxu0
        %v1733 = vpop.f32.mrf.mxu0
        %1734 = vdwg.mxu0
        %1735 = vmatprep.subr.bf16.mxu0 0
        %1736 = vmatpush1.bf16.msra.mxu0 %v1334
        %1737 = vmatprep.subr.bf16.mxu0 0
        %1738 = vmatpush1.bf16.msra.mxu0 %v1333
        %1739 = vmatprep.subr.bf16.mxu0 0
        %1740 = vmatpush1.bf16.msra.mxu0 %v1332
        %1741 = vmatprep.subr.bf16.mxu0 0
        %1742 = vmatpush1.bf16.msra.mxu0 %v1331
        %1743 = vmatprep.subr.bf16.mxu0 0
        %1744 = vmatpush1.bf16.msra.mxu0 %v1330
        %1745 = vmatprep.subr.bf16.mxu0 0
        %1746 = vmatpush1.bf16.msra.mxu0 %v1329
        %1747 = vmatprep.subr.bf16.mxu0 0
        %1748 = vmatpush1.bf16.msra.mxu0 %v1328
        %1749 = vmatprep.subr.bf16.mxu0 0
        %1750 = vmatpush1.bf16.msra.mxu0 %v1327
        %1751 = vmatprep.subr.bf16.mxu0 0
        %1752 = vmatpush2.bf16.msra.mxu0 %v1342
        %1753 = vmatprep.subr.bf16.mxu0 0
        %1754 = vmatpush2.bf16.msra.mxu0 %v1341
        %1755 = vmatprep.subr.bf16.mxu0 0
        %1756 = vmatpush2.bf16.msra.mxu0 %v1340
        %1757 = vmatprep.subr.bf16.mxu0 0
        %1758 = vmatpush2.bf16.msra.mxu0 %v1339
        %1759 = vmatprep.subr.bf16.mxu0 0
        %1760 = vmatpush2.bf16.msra.mxu0 %v1338
        %1761 = vmatprep.subr.bf16.mxu0 0
        %1762 = vmatpush2.bf16.msra.mxu0 %v1337
        %1763 = vmatprep.subr.bf16.mxu0 0
        %1764 = vmatpush2.bf16.msra.mxu0 %v1336
        %1765 = vmatprep.subr.bf16.mxu0 0
        %1766 = vmatpush2.bf16.msra.mxu0 %v1335
        %1767 = vmatprep.mubr.bf16.mxu0 %v629
        %1768 = vmatmul.mubr.bf16.gmra.mxu0 %v627
        %v1769 = vpop.f32.mrf.mxu0
        %v1770 = vadd.f32 %v1730, %v1769
        %v1771 = vpop.f32.mrf.mxu0
        %v1772 = vpop.f32.mrf.mxu0
        %v1773 = vpop.f32.mrf.mxu0
        %1774 = vdwg.mxu0
        %1775 = vmatprep.subr.bf16.mxu0 0
        %1776 = vmatpush1.bf16.msra.mxu0 %v1350
        %1777 = vmatprep.subr.bf16.mxu0 0
        %1778 = vmatpush1.bf16.msra.mxu0 %v1349
        %1779 = vmatprep.subr.bf16.mxu0 0
        %1780 = vmatpush1.bf16.msra.mxu0 %v1348
        %1781 = vmatprep.subr.bf16.mxu0 0
        %1782 = vmatpush1.bf16.msra.mxu0 %v1347
        %1783 = vmatprep.subr.bf16.mxu0 0
        %1784 = vmatpush1.bf16.msra.mxu0 %v1346
        %1785 = vmatprep.subr.bf16.mxu0 0
        %1786 = vmatpush1.bf16.msra.mxu0 %v1345
        %1787 = vmatprep.subr.bf16.mxu0 0
        %1788 = vmatpush1.bf16.msra.mxu0 %v1344
        %1789 = vmatprep.subr.bf16.mxu0 0
        %1790 = vmatpush1.bf16.msra.mxu0 %v1343
        %1791 = vmatprep.subr.bf16.mxu0 0
        %1792 = vmatpush2.bf16.msra.mxu0 %v1358
        %1793 = vmatprep.subr.bf16.mxu0 0
        %1794 = vmatpush2.bf16.msra.mxu0 %v1357
        %1795 = vmatprep.subr.bf16.mxu0 0
        %1796 = vmatpush2.bf16.msra.mxu0 %v1356
        %1797 = vmatprep.subr.bf16.mxu0 0
        %1798 = vmatpush2.bf16.msra.mxu0 %v1355
        %1799 = vmatprep.subr.bf16.mxu0 0
        %1800 = vmatpush2.bf16.msra.mxu0 %v1354
        %1801 = vmatprep.subr.bf16.mxu0 0
        %1802 = vmatpush2.bf16.msra.mxu0 %v1353
        %1803 = vmatprep.subr.bf16.mxu0 0
        %1804 = vmatpush2.bf16.msra.mxu0 %v1352
        %1805 = vmatprep.subr.bf16.mxu0 0
        %1806 = vmatpush2.bf16.msra.mxu0 %v1351
        %1807 = vmatprep.mubr.bf16.mxu0 %v626
        %1808 = vmatmul.mubr.bf16.gmra.mxu0 %v612
        %v1809 = vpop.f32.mrf.mxu0
        %v1810 = vadd.f32 %v1770, %v1809
        %v1811 = vpop.f32.mrf.mxu0
        %v1812 = vpop.f32.mrf.mxu0
        %v1813 = vpop.f32.mrf.mxu0
        %1814 = vdwg.mxu0
        %1815 = vmatprep.subr.bf16.mxu0 0
        %1816 = vmatpush1.bf16.msra.mxu0 %v1366
        %1817 = vmatprep.subr.bf16.mxu0 0
        %1818 = vmatpush1.bf16.msra.mxu0 %v1365
        %1819 = vmatprep.subr.bf16.mxu0 0
        %1820 = vmatpush1.bf16.msra.mxu0 %v1364
        %1821 = vmatprep.subr.bf16.mxu0 0
        %1822 = vmatpush1.bf16.msra.mxu0 %v1363
        %1823 = vmatprep.subr.bf16.mxu0 0
        %1824 = vmatpush1.bf16.msra.mxu0 %v1362
        %1825 = vmatprep.subr.bf16.mxu0 0
        %1826 = vmatpush1.bf16.msra.mxu0 %v1361
        %1827 = vmatprep.subr.bf16.mxu0 0
        %1828 = vmatpush1.bf16.msra.mxu0 %v1360
        %1829 = vmatprep.subr.bf16.mxu0 0
        %1830 = vmatpush1.bf16.msra.mxu0 %v1359
        %1831 = vmatprep.subr.bf16.mxu0 0
        %1832 = vmatpush2.bf16.msra.mxu0 %v1374
        %1833 = vmatprep.subr.bf16.mxu0 0
        %1834 = vmatpush2.bf16.msra.mxu0 %v1373
        %1835 = vmatprep.subr.bf16.mxu0 0
        %1836 = vmatpush2.bf16.msra.mxu0 %v1372
        %1837 = vmatprep.subr.bf16.mxu0 0
        %1838 = vmatpush2.bf16.msra.mxu0 %v1371
        %1839 = vmatprep.subr.bf16.mxu0 0
        %1840 = vmatpush2.bf16.msra.mxu0 %v1370
        %1841 = vmatprep.subr.bf16.mxu0 0
        %1842 = vmatpush2.bf16.msra.mxu0 %v1369
        %1843 = vmatprep.subr.bf16.mxu0 0
        %1844 = vmatpush2.bf16.msra.mxu0 %v1368
        %1845 = vmatprep.subr.bf16.mxu0 0
        %1846 = vmatpush2.bf16.msra.mxu0 %v1367
        %1847 = vmatprep.mubr.bf16.mxu0 %v630
        %1848 = vmatmul.mubr.bf16.gmra.mxu0 %v628
        %v1849 = vpop.f32.mrf.mxu0
        %v1850 = vadd.f32 %v1810, %v1849
        %v1851 = vpop.f32.mrf.mxu0
        %v1852 = vpop.f32.mrf.mxu0
        %v1853 = vpop.f32.mrf.mxu0
        %1854 = vdwg.mxu0
        %1855 = vmatprep.subr.bf16.mxu0 0
        %1856 = vmatpush1.bf16.msra.mxu0 %v1382
        %1857 = vmatprep.subr.bf16.mxu0 0
        %1858 = vmatpush1.bf16.msra.mxu0 %v1381
        %1859 = vmatprep.subr.bf16.mxu0 0
        %1860 = vmatpush1.bf16.msra.mxu0 %v1380
        %1861 = vmatprep.subr.bf16.mxu0 0
        %1862 = vmatpush1.bf16.msra.mxu0 %v1379
        %1863 = vmatprep.subr.bf16.mxu0 0
        %1864 = vmatpush1.bf16.msra.mxu0 %v1378
        %1865 = vmatprep.subr.bf16.mxu0 0
        %1866 = vmatpush1.bf16.msra.mxu0 %v1377
        %1867 = vmatprep.subr.bf16.mxu0 0
        %1868 = vmatpush1.bf16.msra.mxu0 %v1376
        %1869 = vmatprep.subr.bf16.mxu0 0
        %1870 = vmatpush1.bf16.msra.mxu0 %v1375
        %1871 = vmatprep.subr.bf16.mxu0 0
        %1872 = vmatpush2.bf16.msra.mxu0 %v1390
        %1873 = vmatprep.subr.bf16.mxu0 0
        %1874 = vmatpush2.bf16.msra.mxu0 %v1389
        %1875 = vmatprep.subr.bf16.mxu0 0
        %1876 = vmatpush2.bf16.msra.mxu0 %v1388
        %1877 = vmatprep.subr.bf16.mxu0 0
        %1878 = vmatpush2.bf16.msra.mxu0 %v1387
        %1879 = vmatprep.subr.bf16.mxu0 0
        %1880 = vmatpush2.bf16.msra.mxu0 %v1386
        %1881 = vmatprep.subr.bf16.mxu0 0
        %1882 = vmatpush2.bf16.msra.mxu0 %v1385
        %1883 = vmatprep.subr.bf16.mxu0 0
        %1884 = vmatpush2.bf16.msra.mxu0 %v1384
        %1885 = vmatprep.subr.bf16.mxu0 0
        %1886 = vmatpush2.bf16.msra.mxu0 %v1383
        %1887 = vmatprep.mubr.bf16.mxu0 %v652
        %1888 = vmatmul.mubr.bf16.gmra.mxu0 %v645
        %v1889 = vpop.f32.mrf.mxu0
        %v1890 = vadd.f32 %v1850, %v1889
        %v1891 = vpop.f32.mrf.mxu0
        %v1892 = vpop.f32.mrf.mxu0
        %v1893 = vpop.f32.mrf.mxu0
        %1894 = vdwg.mxu0
        %v1895 = vadd.f32 %v238, %v1890
        %1896 = vst [vmem:[#allocation2] sm:$0x3] %v1895
        %p1897 = scmp.eq.s32.totalorder %s17, 3
        // Predicated region
        $region45: #{net_forward.3} parent=39 // pred_check
          %p1898 = pneg %p1897
        $region46: #{net_forward.3} parent=39 // pred_check_branch
          %1900 = sbr.rel (%p1898) target = $region48
        $region47: #{net_forward.3} parent=39 // pred_region
          %v1901 = vld [vmem:[#allocation2] sm:$0x3]
          %v1902 = vld [vmem:[%s2] sm:$0x1]
          %v1904 = vlaneseq
          %v1905 = vshrl.u32 %v1904, 7
          %v1906 = vsub.s32 0, %v1905
          %v1907 = vrot.slane %v1902, %v1906
          %v1909 = vadd.f32 %v1901, %v1907
          %v1910 = vmax.f32 %v1909, 0.0
          %v1911 = vld [vmem:[%s3] sm:$0xff]
          %v1912 = vld [vmem:[%s3 + $0x8] sm:$0xff]
          %v1913 = vld [vmem:[%s3 + $0x10] sm:$0xff]
          %v1914 = vld [vmem:[%s3 + $0x18] sm:$0xff]
          %v1915 = vld [vmem:[%s3 + $0x20] sm:$0xff]
          %v1916 = vld [vmem:[%s3 + $0x28] sm:$0xff]
          %v1917 = vld [vmem:[%s3 + $0x30] sm:$0xff]
          %v1918 = vld [vmem:[%s3 + $0x38] sm:$0xff]
          %v1919 = vld [vmem:[%s3 + $0x40] sm:$0xff]
          %v1920 = vld [vmem:[%s3 + $0x48] sm:$0xff]
          %v1921 = vld [vmem:[%s3 + $0x50] sm:$0xff]
          %v1922 = vld [vmem:[%s3 + $0x58] sm:$0xff]
          %v1923 = vld [vmem:[%s3 + $0x60] sm:$0xff]
          %v1924 = vld [vmem:[%s3 + $0x68] sm:$0xff]
          %v1925 = vld [vmem:[%s3 + $0x70] sm:$0xff]
          %v1926 = vld [vmem:[%s3 + $0x78] sm:$0xff]
          %v1927 = vld [vmem:[%s4] sm:$0x1]
          %v1929 = vlaneseq
          %v1930 = vshrl.u32 %v1929, 7
          %v1931 = vsub.s32 0, %v1930
          %v1932 = vrot.slane %v1927, %v1931
          %1934 = vmatprep.subr.mxu0 0.0
          %1935 = vmatpush1.msra.mxu0 %v1926
          %1936 = vmatprep.subr.mxu0 0.0
          %1937 = vmatpush1.msra.mxu0 %v1925
          %1938 = vmatprep.subr.mxu0 0.0
          %1939 = vmatpush1.msra.mxu0 %v1924
          %1940 = vmatprep.subr.mxu0 0.0
          %1941 = vmatpush1.msra.mxu0 %v1923
          %1942 = vmatprep.subr.mxu0 0.0
          %1943 = vmatpush1.msra.mxu0 %v1922
          %1944 = vmatprep.subr.mxu0 0.0
          %1945 = vmatpush1.msra.mxu0 %v1921
          %1946 = vmatprep.subr.mxu0 0.0
          %1947 = vmatpush1.msra.mxu0 %v1920
          %1948 = vmatprep.subr.mxu0 0.0
          %1949 = vmatpush1.msra.mxu0 %v1919
          %1950 = vmatprep.subr.mxu0 0.0
          %1951 = vmatpush1.msra.mxu0 %v1918
          %1952 = vmatprep.subr.mxu0 0.0
          %1953 = vmatpush1.msra.mxu0 %v1917
          %1954 = vmatprep.subr.mxu0 0.0
          %1955 = vmatpush1.msra.mxu0 %v1916
          %1956 = vmatprep.subr.mxu0 0.0
          %1957 = vmatpush1.msra.mxu0 %v1915
          %1958 = vmatprep.subr.mxu0 0.0
          %1959 = vmatpush1.msra.mxu0 %v1914
          %1960 = vmatprep.subr.mxu0 0.0
          %1961 = vmatpush1.msra.mxu0 %v1913
          %1962 = vmatprep.subr.mxu0 0.0
          %1963 = vmatpush1.msra.mxu0 %v1912
          %1964 = vmatprep.subr.mxu0 0.0
          %1965 = vmatpush1.msra.mxu0 %v1911
          %1966 = vmatprep.subr.mxu0 0.0
          %1967 = vmatpush2.msra.mxu0 0.0
          %1968 = vmatprep.subr.mxu0 0.0
          %1969 = vmatpush2.msra.mxu0 0.0
          %1970 = vmatprep.subr.mxu0 0.0
          %1971 = vmatpush2.msra.mxu0 0.0
          %1972 = vmatprep.subr.mxu0 0.0
          %1973 = vmatpush2.msra.mxu0 0.0
          %1974 = vmatprep.subr.mxu0 0.0
          %1975 = vmatpush2.msra.mxu0 0.0
          %1976 = vmatprep.subr.mxu0 0.0
          %1977 = vmatpush2.msra.mxu0 0.0
          %1978 = vmatprep.subr.mxu0 0.0
          %1979 = vmatpush2.msra.mxu0 0.0
          %1980 = vmatprep.subr.mxu0 0.0
          %1981 = vmatpush2.msra.mxu0 0.0
          %1982 = vmatprep.subr.mxu0 0.0
          %1983 = vmatpush2.msra.mxu0 0.0
          %1984 = vmatprep.subr.mxu0 0.0
          %1985 = vmatpush2.msra.mxu0 0.0
          %1986 = vmatprep.subr.mxu0 0.0
          %1987 = vmatpush2.msra.mxu0 0.0
          %1988 = vmatprep.subr.mxu0 0.0
          %1989 = vmatpush2.msra.mxu0 0.0
          %1990 = vmatprep.subr.mxu0 0.0
          %1991 = vmatpush2.msra.mxu0 0.0
          %1992 = vmatprep.subr.mxu0 0.0
          %1993 = vmatpush2.msra.mxu0 0.0
          %1994 = vmatprep.subr.mxu0 0.0
          %1995 = vmatpush2.msra.mxu0 0.0
          %1996 = vmatprep.subr.mxu0 0.0
          %1997 = vmatpush2.msra.mxu0 0.0
          %1998 = vmatprep.mubr.f32.mxu0 0.0
          %1999 = vmatmul.mubr.f32.gmra.mxu0 %v1910
          %v2000 = vpop.f32.mrf.mxu0
          %v2001 = vadd.f32 %v1932, %v2000
          %v2002 = vpop.f32.mrf.mxu0
          %2003 = vdwg.mxu0
          %vm2004 = vcmask 74752
          %v2005 = vsel %vm2004, %v2001, -inf
          %2006 = vmax.xlane.f32.xlu0 %v2005
          %v2007 = vpop.xlane.xlu0 %2006
          %v2008 = vsub.f32 %v2001, %v2007
          %v2009 = vmul.f32 %v2008, 1.442695
          %v2010 = vpow.pop %v2009
          %v2011 = vsel %vm2004, %v2010, 0.0
          %2012 = vadd.xlane.f32.xlu0 %v2011
          %v2013 = vpop.xlane.xlu0 %2012
          %v2014 = vlog2.pop %v2013
          %v2015 = vmul.f32 %v2014, 0.6931472
          %v2016 = vadd.f32 %v2007, %v2015
          %v2017 = vsub.f32 %v2001, %v2016
          %2018 = vst.msk [vmem:[#allocation3] sm:$0x3] %vm2004, %v2017
        $region48: #{net_forward.3} parent=39 // pred_fallthru
          _
        // Predicated region
        $region49: #{net_forward.3} parent=39 // pred_check
          %p2019 = pneg %p145
        $region50: #{net_forward.3} parent=39 // pred_check_branch
          %2021 = sbr.rel (%p2019) target = $region52
        $region51: #{net_forward.3} parent=39 // pred_region
          %s2023 = ssub.s32 32, 32
          %2024 = vsyncadd [#allocation4], %s2023
          %s2026 = sshll.u32 [#allocation3], 4
          %s2027 = int_to_ptr.vmem [resolvable:$true] %s2026
          %2029 = dma.vmem_to_hbm [thread:$0]  %s2027, 32, %s5, [#allocation4]
        $region52: #{net_forward.3} parent=39 // pred_fallthru
          _
        // Predicated region
        $region53: #{net_forward.3} parent=39 // pred_check
          %p2030 = pneg %p145
        $region54: #{net_forward.3} parent=39 // pred_check_branch
          %2032 = sbr.rel (%p2030) target = $region56
        $region55: #{net_forward.3} parent=39 // pred_region
          %2033 = dma.done [#allocation4], 32
        $region56: #{net_forward.3} parent=39 // pred_fallthru
          _
      $region40: #{net_forward.3} parent=5 // pred_fallthru
        _
      %p2034 = scmp.le.s32.totalorder 2, %s12
      // Predicated region
      $region57: #{net_forward.3} parent=5 // pred_check
        %p2035 = pneg %p2034
      $region58: #{net_forward.3} parent=5 // pred_check_branch
        %2037 = sbr.rel (%p2035) target = $region60
      $region59: #{net_forward.3} parent=5 // pred_region
        %s2038 = ssub.s32 %s12, 2
      $region60: #{net_forward.3} parent=5 // pred_fallthru
        _
    $region6: #{net_forward.3} parent=1 // loop_footer
      %s16 = sadd.s32 1, %s12
    $region7: #{net_forward.3} parent=1 // loop_footer_branch
      %11 = sbr.rel target = $region3
    $region8: #{net_forward.3} parent=1 // loop_exit
      _
    %2039 = vsyncpa [#allocation4], 1
    %s2040 = scalar_lea.sflag [#allocation4], 1
    %2041 = vsyncpa %s2040, 1

// kernel: net_forward.2
$region0: #{net_forward.2}
  #allocation0 [shape = 'u32[]', space=smem, size = 0x4, offset = 0x4, fixed_abs, tag = 'smem constant byte address 0x4 - core index']
  #allocation1 [shape = 'u32[144,128]{1,0:T(1,128)}', space=vmem, size = 0x12000, scoped, tag = 'internal scratch']
  #allocation2 [shape = 'f32[622,288]{1,0:T(8,128)}', space=vmem, size = 0xea000, scoped, tag = 'scratch operand']
  %s0 = inlined_call_operand.vmem [shape: f32[2,676,9], index: 0, kind: input, shape index: {}]
  %s1 = inlined_call_operand.vmem [shape: f32[9,32], index: 1, kind: input, shape index: {}]
  %s2 = inlined_call_operand.vmem [shape: f32[1,32], index: 2, kind: input, shape index: {}]
  %s3 = inlined_call_operand.vmem [shape: f32[288,64], index: 3, kind: input, shape index: {}]
  %s4 = inlined_call_operand.vmem [shape: f32[1,64], index: 4, kind: input, shape index: {}]
  %s5 = inlined_call_operand.vmem [shape: f32[144,595], index: 5, kind: input, shape index: {}]
  %s6 = inlined_call_operand.vmem [shape: bf16[2,72,128], index: 6, kind: output, shape index: {}]
  %s7 = sld [smem:[#allocation0]]
  $region57: #{net_forward.2} parent=0
    _
  %s9 = ssub.s32 1, %s7
  %s10 = scalar_select 0, %s9, %s7
  loop: start=0, step=1, limit=4
  $region2: #{net_forward.2} parent=0 // loop_pre_header
    _
  $region3: #{net_forward.2} parent=0 // loop_header
    %s12 = sphi 0, %s16
    %p13 = scmp.ge.s32.totalorder %s12, 4
    %s22 = sphi 0, %s24
    %s25 = sphi 0, %s22
    %s26 = sphi 0, %s25
    %s42 = sphi 0, %s26
    %s46 = sphi 0, %s46
    %s48 = sphi 0, %s46
    %s49 = sphi 0, %s48
    %s63 = sphi 0, %s49
    %s67 = sphi 0, %s67
    %s69 = sphi 0, %s67
    %s70 = sphi 0, %s69
    %s84 = sphi 0, %s70
    %s88 = sphi 0, %s88
    %s90 = sphi 0, %s88
    %s91 = sphi 0, %s90
    %s105 = sphi 0, %s91
    %s109 = sphi 0, %s109
    %s111 = sphi 0, %s109
    %s112 = sphi 0, %s111
    %s126 = sphi 0, %s112
    %s130 = sphi 0, %s130
    %s132 = sphi 0, %s130
    %s133 = sphi 0, %s132
    %s147 = sphi 0, %s133
    %s153 = sphi 0, %s155
    %s156 = sphi 0, %s153
    %s157 = sphi 0, %s156
    %s173 = sphi 0, %s157
  $region4: #{net_forward.2} parent=0 // loop_header_branch
    %15 = sbr.rel (%p13) target = $region8
  $region5: #{net_forward.2} parent=0 // loop_body
    %s17 = ssub.s32 %s12, 1
    %s18 = ssub.s32 %s12, 2
    %s19 = sadd.s32 %s12, 1
    %s20 = ssub.s32 %s12, %s19
    %p21 = scmp.eq.s32.totalorder %s20, 0
    %s23 = sadd.s32 %s22, 1
    %s24 = scalar_select %p21, %s22, %s23
    %p27 = pneg %p21
    %p28 = scmp.eq.s32.totalorder %s12, 1
    %p29 = por %p27, %p28
    %p30 = scmp.ne.s32.totalorder %s22, %s25
    %p31 = scmp.eq.s32.totalorder %s12, 0
    %p32 = por %p30, %p31
    %p33 = scmp.ne.s32.totalorder %s22, %s25
    %p34 = scmp.eq.s32.totalorder %s17, 1
    %p35 = por %p33, %p34
    %p36 = scmp.ne.s32.totalorder %s25, %s26
    %p37 = scmp.eq.s32.totalorder %s17, 0
    %p38 = por %p36, %p37
    %p39 = scmp.ne.s32.totalorder %s25, %s26
    %p40 = scmp.eq.s32.totalorder %s18, 1
    %p41 = por %p39, %p40
    %p43 = scmp.ne.s32.totalorder %s26, %s42
    %p44 = scmp.eq.s32.totalorder %s18, 0
    %p45 = por %p43, %p44
    %s47 = sadd.s32 %s46, 1
    %p50 = scmp.eq.s32.totalorder %s12, 1
    %p51 = scmp.ne.s32.totalorder %s46, %s48
    %p52 = scmp.eq.s32.totalorder %s12, 0
    %p53 = por %p51, %p52
    %p54 = scmp.ne.s32.totalorder %s46, %s48
    %p55 = scmp.eq.s32.totalorder %s17, 1
    %p56 = por %p54, %p55
    %p57 = scmp.ne.s32.totalorder %s48, %s49
    %p58 = scmp.eq.s32.totalorder %s17, 0
    %p59 = por %p57, %p58
    %p60 = scmp.ne.s32.totalorder %s48, %s49
    %p61 = scmp.eq.s32.totalorder %s18, 1
    %p62 = por %p60, %p61
    %p64 = scmp.ne.s32.totalorder %s49, %s63
    %p65 = scmp.eq.s32.totalorder %s18, 0
    %p66 = por %p64, %p65
    %s68 = sadd.s32 %s67, 1
    %p71 = scmp.eq.s32.totalorder %s12, 1
    %p72 = scmp.ne.s32.totalorder %s67, %s69
    %p73 = scmp.eq.s32.totalorder %s12, 0
    %p74 = por %p72, %p73
    %p75 = scmp.ne.s32.totalorder %s67, %s69
    %p76 = scmp.eq.s32.totalorder %s17, 1
    %p77 = por %p75, %p76
    %p78 = scmp.ne.s32.totalorder %s69, %s70
    %p79 = scmp.eq.s32.totalorder %s17, 0
    %p80 = por %p78, %p79
    %p81 = scmp.ne.s32.totalorder %s69, %s70
    %p82 = scmp.eq.s32.totalorder %s18, 1
    %p83 = por %p81, %p82
    %p85 = scmp.ne.s32.totalorder %s70, %s84
    %p86 = scmp.eq.s32.totalorder %s18, 0
    %p87 = por %p85, %p86
    %s89 = sadd.s32 %s88, 1
    %p92 = scmp.eq.s32.totalorder %s12, 1
    %p93 = scmp.ne.s32.totalorder %s88, %s90
    %p94 = scmp.eq.s32.totalorder %s12, 0
    %p95 = por %p93, %p94
    %p96 = scmp.ne.s32.totalorder %s88, %s90
    %p97 = scmp.eq.s32.totalorder %s17, 1
    %p98 = por %p96, %p97
    %p99 = scmp.ne.s32.totalorder %s90, %s91
    %p100 = scmp.eq.s32.totalorder %s17, 0
    %p101 = por %p99, %p100
    %p102 = scmp.ne.s32.totalorder %s90, %s91
    %p103 = scmp.eq.s32.totalorder %s18, 1
    %p104 = por %p102, %p103
    %p106 = scmp.ne.s32.totalorder %s91, %s105
    %p107 = scmp.eq.s32.totalorder %s18, 0
    %p108 = por %p106, %p107
    %s110 = sadd.s32 %s109, 1
    %p113 = scmp.eq.s32.totalorder %s12, 1
    %p114 = scmp.ne.s32.totalorder %s109, %s111
    %p115 = scmp.eq.s32.totalorder %s12, 0
    %p116 = por %p114, %p115
    %p117 = scmp.ne.s32.totalorder %s109, %s111
    %p118 = scmp.eq.s32.totalorder %s17, 1
    %p119 = por %p117, %p118
    %p120 = scmp.ne.s32.totalorder %s111, %s112
    %p121 = scmp.eq.s32.totalorder %s17, 0
    %p122 = por %p120, %p121
    %p123 = scmp.ne.s32.totalorder %s111, %s112
    %p124 = scmp.eq.s32.totalorder %s18, 1
    %p125 = por %p123, %p124
    %p127 = scmp.ne.s32.totalorder %s112, %s126
    %p128 = scmp.eq.s32.totalorder %s18, 0
    %p129 = por %p127, %p128
    %s131 = sadd.s32 %s130, 1
    %p134 = scmp.eq.s32.totalorder %s12, 1
    %p135 = scmp.ne.s32.totalorder %s130, %s132
    %p136 = scmp.eq.s32.totalorder %s12, 0
    %p137 = por %p135, %p136
    %p138 = scmp.ne.s32.totalorder %s130, %s132
    %p139 = scmp.eq.s32.totalorder %s17, 1
    %p140 = por %p138, %p139
    %p141 = scmp.ne.s32.totalorder %s132, %s133
    %p142 = scmp.eq.s32.totalorder %s17, 0
    %p143 = por %p141, %p142
    %p144 = scmp.ne.s32.totalorder %s132, %s133
    %p145 = scmp.eq.s32.totalorder %s18, 1
    %p146 = por %p144, %p145
    %p148 = scmp.ne.s32.totalorder %s133, %s147
    %p149 = scmp.eq.s32.totalorder %s18, 0
    %p150 = por %p148, %p149
    %s151 = ssub.s32 %s12, %s19
    %p152 = scmp.eq.s32.totalorder %s151, 0
    %s154 = sadd.s32 %s153, 1
    %s155 = scalar_select %p152, %s153, %s154
    %p158 = pneg %p152
    %p159 = scmp.eq.s32.totalorder %s12, 1
    %p160 = por %p158, %p159
    %p161 = scmp.ne.s32.totalorder %s153, %s156
    %p162 = scmp.eq.s32.totalorder %s12, 0
    %p163 = por %p161, %p162
    %p164 = scmp.ne.s32.totalorder %s153, %s156
    %p165 = scmp.eq.s32.totalorder %s17, 1
    %p166 = por %p164, %p165
    %p167 = scmp.ne.s32.totalorder %s156, %s157
    %p168 = scmp.eq.s32.totalorder %s17, 0
    %p169 = por %p167, %p168
    %p170 = scmp.ne.s32.totalorder %s156, %s157
    %p171 = scmp.eq.s32.totalorder %s18, 1
    %p172 = por %p170, %p171
    %p174 = scmp.ne.s32.totalorder %s157, %s173
    %p175 = scmp.eq.s32.totalorder %s18, 0
    %p176 = por %p174, %p175
    %p177 = scmp.le.s32.totalorder 1, %s12
    %p178 = scmp.lt.s32.totalorder %s12, 3
    %p179 = pnand %p177, %p178
    %p180 = pneg %p179
    // Predicated region
    $region9: #{net_forward.2} parent=5 // pred_check
      _
    $region10: #{net_forward.2} parent=5 // pred_check_branch
      %182 = sbr.rel (%p179) target = $region12
    $region11: #{net_forward.2} parent=5 // pred_region
      %s183 = ssub.s32 %s12, 1
      // Predicated region
      $region13: #{net_forward.2} parent=11 // pred_check
        %p184 = pneg %p59
      $region14: #{net_forward.2} parent=11 // pred_check_branch
        %186 = sbr.rel (%p184) target = $region16
      $region15: #{net_forward.2} parent=11 // pred_region
        _
      $region16: #{net_forward.2} parent=11 // pred_fallthru
        _
      // Predicated region
      $region17: #{net_forward.2} parent=11 // pred_check
        %p187 = pneg %p80
      $region18: #{net_forward.2} parent=11 // pred_check_branch
        %189 = sbr.rel (%p187) target = $region20
      $region19: #{net_forward.2} parent=11 // pred_region
        _
      $region20: #{net_forward.2} parent=11 // pred_fallthru
        _
      // Predicated region
      $region21: #{net_forward.2} parent=11 // pred_check
        %p190 = pneg %p101
      $region22: #{net_forward.2} parent=11 // pred_check_branch
        %192 = sbr.rel (%p190) target = $region24
      $region23: #{net_forward.2} parent=11 // pred_region
        _
      $region24: #{net_forward.2} parent=11 // pred_fallthru
        _
      // Predicated region
      $region25: #{net_forward.2} parent=11 // pred_check
        %p193 = pneg %p122
      $region26: #{net_forward.2} parent=11 // pred_check_branch
        %195 = sbr.rel (%p193) target = $region28
      $region27: #{net_forward.2} parent=11 // pred_region
        _
      $region28: #{net_forward.2} parent=11 // pred_fallthru
        _
      // Predicated region
      $region29: #{net_forward.2} parent=11 // pred_check
        %p196 = pneg %p143
      $region30: #{net_forward.2} parent=11 // pred_check_branch
        %198 = sbr.rel (%p196) target = $region32
      $region31: #{net_forward.2} parent=11 // pred_region
        _
      $region32: #{net_forward.2} parent=11 // pred_fallthru
        _
    $region12: #{net_forward.2} parent=5 // pred_fallthru
      _
    %p199 = scmp.lt.s32.totalorder %s12, 2
    // Predicated region
    $region33: #{net_forward.2} parent=5 // pred_check
      %p200 = pneg %p199
    $region34: #{net_forward.2} parent=5 // pred_check_branch
      %202 = sbr.rel (%p200) target = $region36
    $region35: #{net_forward.2} parent=5 // pred_region
      // Predicated region
      $region37: #{net_forward.2} parent=35 // pred_check
        %p203 = pneg %p32
      $region38: #{net_forward.2} parent=35 // pred_check_branch
        %205 = sbr.rel (%p203) target = $region40
      $region39: #{net_forward.2} parent=35 // pred_region
        %p206 = scmp.lt.s32.totalorder %s12, 1
        %s207 = scalar_select %p206, %s12, 1
        %s208 = smul.addr %s207, 85
        %s209 = smul.addr %s208, 8
        %s210 = scalar_lea.vmem %s0, %s209
      $region40: #{net_forward.2} parent=35 // pred_fallthru
        _
    $region36: #{net_forward.2} parent=5 // pred_fallthru
      _
    %p211 = scmp.le.s32.totalorder 1, %s12
    %p212 = scmp.lt.s32.totalorder %s12, 3
    %p213 = pnand %p211, %p212
    %p214 = pneg %p213
    // Predicated region
    $region41: #{net_forward.2} parent=5 // pred_check
      _
    $region42: #{net_forward.2} parent=5 // pred_check_branch
      %216 = sbr.rel (%p213) target = $region44
    $region43: #{net_forward.2} parent=5 // pred_region
      %s217 = ssub.s32 %s12, 1
      %p218 = scmp.lt.s32.totalorder %s17, 1
      %s219 = scalar_select %p218, %s17, 1
      %s220 = smul.addr %s219, 85
      %s221 = smul.addr %s220, 8
      %s222 = scalar_lea.vmem %s0, %s221
      %p223 = pneg %p38
      %p224 = pneg %p35
      %p225 = pneg %p59
      %p226 = pneg %p56
      %p227 = pneg %p80
      %p228 = pneg %p77
      %p229 = pneg %p101
      %p230 = pneg %p98
      %p231 = pneg %p122
      %p232 = pneg %p119
      %p233 = pneg %p143
      %p234 = pneg %p140
      %p235 = pneg %p169
      %p236 = pneg %p166
      %p237 = scmp.lt.s32.totalorder %s17, 1
      %s238 = scalar_select %p237, %s17, 1
      %s239 = smul.addr %s238, 9
      %s240 = smul.addr %s239, 4
      %s241 = scalar_lea.vmem %s6, %s240
      %p242 = scmp.lt.s32.totalorder %s17, 1
      %s243 = scalar_select %p242, %s17, 1
      %s244 = smul.addr %s243, 85
      %s245 = smul.addr %s244, 8
      %s246 = scalar_lea.vmem %s0, %s245
      %p247 = scmp.lt.s32.totalorder %s17, 1
      %s248 = scalar_select %p247, %s17, 1
      %s249 = smul.addr %s248, 9
      %s250 = smul.addr %s249, 4
      %s251 = scalar_lea.vmem %s6, %s250
      %v252 = vld [vmem:[%s246] sm:$0xff]
      %v253 = vld [vmem:[%s246 + $0x8] sm:$0xff]
      %v254 = vld [vmem:[%s246 + $0x10] sm:$0xff]
      %v255 = vld [vmem:[%s246 + $0x18] sm:$0xff]
      %v256 = vld [vmem:[%s246 + $0x20] sm:$0xff]
      %v257 = vld [vmem:[%s246 + $0x28] sm:$0xff]
      %v258 = vld [vmem:[%s246 + $0x30] sm:$0xff]
      %v259 = vld [vmem:[%s246 + $0x38] sm:$0xff]
      %v260 = vld [vmem:[%s246 + $0x40] sm:$0xff]
      %v261 = vld [vmem:[%s246 + $0x48] sm:$0xff]
      %v262 = vld [vmem:[%s246 + $0x50] sm:$0xff]
      %v263 = vld [vmem:[%s246 + $0x58] sm:$0xff]
      %v264 = vld [vmem:[%s246 + $0x60] sm:$0xff]
      %v265 = vld [vmem:[%s246 + $0x68] sm:$0xff]
      %v266 = vld [vmem:[%s246 + $0x70] sm:$0xff]
      %v267 = vld [vmem:[%s246 + $0x78] sm:$0xff]
      %v268 = vld [vmem:[%s246 + $0x80] sm:$0xff]
      %v269 = vld [vmem:[%s246 + $0x88] sm:$0xff]
      %v270 = vld [vmem:[%s246 + $0x90] sm:$0xff]
      %v271 = vld [vmem:[%s246 + $0x98] sm:$0xff]
      %v272 = vld [vmem:[%s246 + $0xa0] sm:$0xff]
      %v273 = vld [vmem:[%s246 + $0xa8] sm:$0xff]
      %v274 = vld [vmem:[%s246 + $0xb0] sm:$0xff]
      %v275 = vld [vmem:[%s246 + $0xb8] sm:$0xff]
      %v276 = vld [vmem:[%s246 + $0xc0] sm:$0xff]
      %v277 = vld [vmem:[%s246 + $0xc8] sm:$0xff]
      %v278 = vld [vmem:[%s246 + $0xd0] sm:$0xff]
      %v279 = vld [vmem:[%s246 + $0xd8] sm:$0xff]
      %v280 = vld [vmem:[%s246 + $0xe0] sm:$0xff]
      %v281 = vld [vmem:[%s246 + $0xe8] sm:$0xff]
      %v282 = vld [vmem:[%s246 + $0xf0] sm:$0xff]
      %v283 = vld [vmem:[%s246 + $0xf8] sm:$0xff]
      %v284 = vld [vmem:[%s246 + $0x100] sm:$0xff]
      %v285 = vld [vmem:[%s246 + $0x108] sm:$0xff]
      %v286 = vld [vmem:[%s246 + $0x110] sm:$0xff]
      %v287 = vld [vmem:[%s246 + $0x118] sm:$0xff]
      %v288 = vld [vmem:[%s246 + $0x120] sm:$0xff]
      %v289 = vld [vmem:[%s246 + $0x128] sm:$0xff]
      %v290 = vld [vmem:[%s246 + $0x130] sm:$0xff]
      %v291 = vld [vmem:[%s246 + $0x138] sm:$0xff]
      %v292 = vld [vmem:[%s246 + $0x140] sm:$0xff]
      %v293 = vld [vmem:[%s246 + $0x148] sm:$0xff]
      %v294 = vld [vmem:[%s246 + $0x150] sm:$0xff]
      %v295 = vld [vmem:[%s246 + $0x158] sm:$0xff]
      %v296 = vld [vmem:[%s246 + $0x160] sm:$0xff]
      %v297 = vld [vmem:[%s246 + $0x168] sm:$0xff]
      %v298 = vld [vmem:[%s246 + $0x170] sm:$0xff]
      %v299 = vld [vmem:[%s246 + $0x178] sm:$0xff]
      %v300 = vld [vmem:[%s246 + $0x180] sm:$0xff]
      %v301 = vld [vmem:[%s246 + $0x188] sm:$0xff]
      %v302 = vld [vmem:[%s246 + $0x190] sm:$0xff]
      %v303 = vld [vmem:[%s246 + $0x198] sm:$0xff]
      %v304 = vld [vmem:[%s246 + $0x1a0] sm:$0xff]
      %v305 = vld [vmem:[%s246 + $0x1a8] sm:$0xff]
      %v306 = vld [vmem:[%s246 + $0x1b0] sm:$0xff]
      %v307 = vld [vmem:[%s246 + $0x1b8] sm:$0xff]
      %v308 = vld [vmem:[%s246 + $0x1c0] sm:$0xff]
      %v309 = vld [vmem:[%s246 + $0x1c8] sm:$0xff]
      %v310 = vld [vmem:[%s246 + $0x1d0] sm:$0xff]
      %v311 = vld [vmem:[%s246 + $0x1d8] sm:$0xff]
      %v312 = vld [vmem:[%s246 + $0x1e0] sm:$0xff]
      %v313 = vld [vmem:[%s246 + $0x1e8] sm:$0xff]
      %v314 = vld [vmem:[%s246 + $0x1f0] sm:$0xff]
      %v315 = vld [vmem:[%s246 + $0x1f8] sm:$0xff]
      %v316 = vld [vmem:[%s246 + $0x200] sm:$0xff]
      %v317 = vld [vmem:[%s246 + $0x208] sm:$0xff]
      %v318 = vld [vmem:[%s246 + $0x210] sm:$0xff]
      %v319 = vld [vmem:[%s246 + $0x218] sm:$0xff]
      %v320 = vld [vmem:[%s246 + $0x220] sm:$0xff]
      %v321 = vld [vmem:[%s246 + $0x228] sm:$0xff]
      %v322 = vld [vmem:[%s246 + $0x230] sm:$0xff]
      %v323 = vld [vmem:[%s246 + $0x238] sm:$0xff]
      %v324 = vld [vmem:[%s246 + $0x240] sm:$0xff]
      %v325 = vld [vmem:[%s246 + $0x248] sm:$0xff]
      %v326 = vld [vmem:[%s246 + $0x250] sm:$0xff]
      %v327 = vld [vmem:[%s246 + $0x258] sm:$0xff]
      %v328 = vld [vmem:[%s246 + $0x260] sm:$0xff]
      %v329 = vld [vmem:[%s246 + $0x268] sm:$0xff]
      %v330 = vld [vmem:[%s246 + $0x270] sm:$0xff]
      %v331 = vld [vmem:[%s246 + $0x278] sm:$0xff]
      %v332 = vld [vmem:[%s246 + $0x280] sm:$0xff]
      %v333 = vld [vmem:[%s246 + $0x288] sm:$0xff]
      %v334 = vld [vmem:[%s246 + $0x290] sm:$0xff]
      %v335 = vld [vmem:[%s246 + $0x298] sm:$0xff]
      %v336 = vld [vmem:[%s246 + $0x2a0] sm:$0xf]
      %v337 = vld [vmem:[%s1] sm:$0xff]
      %v338 = vld [vmem:[%s1 + $0x8] sm:$0x1]
      %v339 = vld [vmem:[%s2] sm:$0x1]
      %v341 = vlaneseq
      %v342 = vshrl.u32 %v341, 7
      %v343 = vsub.s32 0, %v342
      %v344 = vrot.slane %v339, %v343
      %vm346 = vcmask 72704
      %v348 = vsel %vm346, %v252, 0
      %v351 = vsel %vm346, %v253, 0
      %v354 = vsel %vm346, %v254, 0
      %v357 = vsel %vm346, %v255, 0
      %v360 = vsel %vm346, %v256, 0
      %v363 = vsel %vm346, %v257, 0
      %v366 = vsel %vm346, %v258, 0
      %v369 = vsel %vm346, %v259, 0
      %v372 = vsel %vm346, %v260, 0
      %v375 = vsel %vm346, %v261, 0
      %v378 = vsel %vm346, %v262, 0
      %v381 = vsel %vm346, %v263, 0
      %v384 = vsel %vm346, %v264, 0
      %v387 = vsel %vm346, %v265, 0
      %v390 = vsel %vm346, %v266, 0
      %v393 = vsel %vm346, %v267, 0
      %v396 = vsel %vm346, %v268, 0
      %v399 = vsel %vm346, %v269, 0
      %v402 = vsel %vm346, %v270, 0
      %v405 = vsel %vm346, %v271, 0
      %v408 = vsel %vm346, %v272, 0
      %v411 = vsel %vm346, %v273, 0
      %v414 = vsel %vm346, %v274, 0
      %v417 = vsel %vm346, %v275, 0
      %v420 = vsel %vm346, %v276, 0
      %v423 = vsel %vm346, %v277, 0
      %v426 = vsel %vm346, %v278, 0
      %v429 = vsel %vm346, %v279, 0
      %v432 = vsel %vm346, %v280, 0
      %v435 = vsel %vm346, %v281, 0
      %v438 = vsel %vm346, %v282, 0
      %v441 = vsel %vm346, %v283, 0
      %v444 = vsel %vm346, %v284, 0
      %v447 = vsel %vm346, %v285, 0
      %v450 = vsel %vm346, %v286, 0
      %v453 = vsel %vm346, %v287, 0
      %v456 = vsel %vm346, %v288, 0
      %v459 = vsel %vm346, %v289, 0
      %v462 = vsel %vm346, %v290, 0
      %v465 = vsel %vm346, %v291, 0
      %v468 = vsel %vm346, %v292, 0
      %v471 = vsel %vm346, %v293, 0
      %v474 = vsel %vm346, %v294, 0
      %v477 = vsel %vm346, %v295, 0
      %v480 = vsel %vm346, %v296, 0
      %v483 = vsel %vm346, %v297, 0
      %v486 = vsel %vm346, %v298, 0
      %v489 = vsel %vm346, %v299, 0
      %v492 = vsel %vm346, %v300, 0
      %v495 = vsel %vm346, %v301, 0
      %v498 = vsel %vm346, %v302, 0
      %v501 = vsel %vm346, %v303, 0
      %v504 = vsel %vm346, %v304, 0
      %v507 = vsel %vm346, %v305, 0
      %v510 = vsel %vm346, %v306, 0
      %v513 = vsel %vm346, %v307, 0
      %v516 = vsel %vm346, %v308, 0
      %v519 = vsel %vm346, %v309, 0
      %v522 = vsel %vm346, %v310, 0
      %v525 = vsel %vm346, %v311, 0
      %v528 = vsel %vm346, %v312, 0
      %v531 = vsel %vm346, %v313, 0
      %v534 = vsel %vm346, %v314, 0
      %v537 = vsel %vm346, %v315, 0
      %v540 = vsel %vm346, %v316, 0
      %v543 = vsel %vm346, %v317, 0
      %v546 = vsel %vm346, %v318, 0
      %v549 = vsel %vm346, %v319, 0
      %v552 = vsel %vm346, %v320, 0
      %v555 = vsel %vm346, %v321, 0
      %v558 = vsel %vm346, %v322, 0
      %v561 = vsel %vm346, %v323, 0
      %v564 = vsel %vm346, %v324, 0
      %v567 = vsel %vm346, %v325, 0
      %v570 = vsel %vm346, %v326, 0
      %v573 = vsel %vm346, %v327, 0
      %v576 = vsel %vm346, %v328, 0
      %v579 = vsel %vm346, %v329, 0
      %v582 = vsel %vm346, %v330, 0
      %v585 = vsel %vm346, %v331, 0
      %v588 = vsel %vm346, %v332, 0
      %v591 = vsel %vm346, %v333, 0
      %v594 = vsel %vm346, %v334, 0
      %v597 = vsel %vm346, %v335, 0
      %v600 = vsel %vm346, %v336, 0
      %vm602 = vcmask 1040384
      %v604 = vsel %vm602, %v338, 0
      %606 = vmatprep.subr.mxu0 0.0
      %607 = vmatpush1.msra.mxu0 0.0
      %608 = vmatprep.subr.mxu0 0.0
      %609 = vmatpush1.msra.mxu0 0.0
      %610 = vmatprep.subr.mxu0 0.0
      %611 = vmatpush1.msra.mxu0 0.0
      %612 = vmatprep.subr.mxu0 0.0
      %613 = vmatpush1.msra.mxu0 0.0
      %614 = vmatprep.subr.mxu0 0.0
      %615 = vmatpush1.msra.mxu0 0.0
      %616 = vmatprep.subr.mxu0 0.0
      %617 = vmatpush1.msra.mxu0 0.0
      %618 = vmatprep.subr.mxu0 0.0
      %619 = vmatpush1.msra.mxu0 0.0
      %620 = vmatprep.subr.mxu0 0.0
      %621 = vmatpush1.msra.mxu0 0.0
      %622 = vmatprep.subr.mxu0 0.0
      %623 = vmatpush1.msra.mxu0 0.0
      %624 = vmatprep.subr.mxu0 0.0
      %625 = vmatpush1.msra.mxu0 0.0
      %626 = vmatprep.subr.mxu0 0.0
      %627 = vmatpush1.msra.mxu0 0.0
      %628 = vmatprep.subr.mxu0 0.0
      %629 = vmatpush1.msra.mxu0 0.0
      %630 = vmatprep.subr.mxu0 0.0
      %631 = vmatpush1.msra.mxu0 0.0
      %632 = vmatprep.subr.mxu0 0.0
      %633 = vmatpush1.msra.mxu0 0.0
      %634 = vmatprep.subr.mxu0 0.0
      %635 = vmatpush1.msra.mxu0 %v604
      %636 = vmatprep.subr.mxu0 0.0
      %637 = vmatpush1.msra.mxu0 %v337
      %638 = vmatprep.subr.mxu0 0.0
      %639 = vmatpush2.msra.mxu0 0.0
      %640 = vmatprep.subr.mxu0 0.0
      %641 = vmatpush2.msra.mxu0 0.0
      %642 = vmatprep.subr.mxu0 0.0
      %643 = vmatpush2.msra.mxu0 0.0
      %644 = vmatprep.subr.mxu0 0.0
      %645 = vmatpush2.msra.mxu0 0.0
      %646 = vmatprep.subr.mxu0 0.0
      %647 = vmatpush2.msra.mxu0 0.0
      %648 = vmatprep.subr.mxu0 0.0
      %649 = vmatpush2.msra.mxu0 0.0
      %650 = vmatprep.subr.mxu0 0.0
      %651 = vmatpush2.msra.mxu0 0.0
      %652 = vmatprep.subr.mxu0 0.0
      %653 = vmatpush2.msra.mxu0 0.0
      %654 = vmatprep.subr.mxu0 0.0
      %655 = vmatpush2.msra.mxu0 0.0
      %656 = vmatprep.subr.mxu0 0.0
      %657 = vmatpush2.msra.mxu0 0.0
      %658 = vmatprep.subr.mxu0 0.0
      %659 = vmatpush2.msra.mxu0 0.0
      %660 = vmatprep.subr.mxu0 0.0
      %661 = vmatpush2.msra.mxu0 0.0
      %662 = vmatprep.subr.mxu0 0.0
      %663 = vmatpush2.msra.mxu0 0.0
      %664 = vmatprep.subr.mxu0 0.0
      %665 = vmatpush2.msra.mxu0 0.0
      %666 = vmatprep.subr.mxu0 0.0
      %667 = vmatpush2.msra.mxu0 0.0
      %668 = vmatprep.subr.mxu0 0.0
      %669 = vmatpush2.msra.mxu0 0.0
      %670 = vmatprep.mubr.f32.mxu0 0.0
      %671 = vmatmul.mubr.f32.gmra.mxu0 %v348
      %v672 = vpop.f32.mrf.mxu0
      %v673 = vadd.f32 %v344, %v672
      %v674 = vpop.f32.mrf.mxu0
      %675 = vmatprep.mubr.f32.mxu0 0.0
      %676 = vmatmul.mubr.f32.gmra.mxu0 %v351
      %v677 = vpop.f32.mrf.mxu0
      %v678 = vadd.f32 %v344, %v677
      %v679 = vpop.f32.mrf.mxu0
      %680 = vmatprep.mubr.f32.mxu0 0.0
      %681 = vmatmul.mubr.f32.gmra.mxu0 %v354
      %v682 = vpop.f32.mrf.mxu0
      %v683 = vadd.f32 %v344, %v682
      %v684 = vpop.f32.mrf.mxu0
      %685 = vmatprep.mubr.f32.mxu0 0.0
      %686 = vmatmul.mubr.f32.gmra.mxu0 %v357
      %v687 = vpop.f32.mrf.mxu0
      %v688 = vadd.f32 %v344, %v687
      %v689 = vpop.f32.mrf.mxu0
      %690 = vmatprep.mubr.f32.mxu0 0.0
      %691 = vmatmul.mubr.f32.gmra.mxu0 %v360
      %v692 = vpop.f32.mrf.mxu0
      %v693 = vadd.f32 %v344, %v692
      %v694 = vpop.f32.mrf.mxu0
      %695 = vmatprep.mubr.f32.mxu0 0.0
      %696 = vmatmul.mubr.f32.gmra.mxu0 %v363
      %v697 = vpop.f32.mrf.mxu0
      %v698 = vadd.f32 %v344, %v697
      %v699 = vpop.f32.mrf.mxu0
      %700 = vmatprep.mubr.f32.mxu0 0.0
      %701 = vmatmul.mubr.f32.gmra.mxu0 %v366
      %v702 = vpop.f32.mrf.mxu0
      %v703 = vadd.f32 %v344, %v702
      %v704 = vpop.f32.mrf.mxu0
      %705 = vmatprep.mubr.f32.mxu0 0.0
      %706 = vmatmul.mubr.f32.gmra.mxu0 %v369
      %v707 = vpop.f32.mrf.mxu0
      %v708 = vadd.f32 %v344, %v707
      %v709 = vpop.f32.mrf.mxu0
      %710 = vmatprep.mubr.f32.mxu0 0.0
      %711 = vmatmul.mubr.f32.gmra.mxu0 %v372
      %v712 = vpop.f32.mrf.mxu0
      %v713 = vadd.f32 %v344, %v712
      %v714 = vpop.f32.mrf.mxu0
      %715 = vmatprep.mubr.f32.mxu0 0.0
      %716 = vmatmul.mubr.f32.gmra.mxu0 %v375
      %v717 = vpop.f32.mrf.mxu0
      %v718 = vadd.f32 %v344, %v717
      %v719 = vpop.f32.mrf.mxu0
      %720 = vmatprep.mubr.f32.mxu0 0.0
      %721 = vmatmul.mubr.f32.gmra.mxu0 %v378
      %v722 = vpop.f32.mrf.mxu0
      %v723 = vadd.f32 %v344, %v722
      %v724 = vpop.f32.mrf.mxu0
      %725 = vmatprep.mubr.f32.mxu0 0.0
      %726 = vmatmul.mubr.f32.gmra.mxu0 %v381
      %v727 = vpop.f32.mrf.mxu0
      %v728 = vadd.f32 %v344, %v727
      %v729 = vpop.f32.mrf.mxu0
      %730 = vmatprep.mubr.f32.mxu0 0.0
      %731 = vmatmul.mubr.f32.gmra.mxu0 %v384
      %v732 = vpop.f32.mrf.mxu0
      %v733 = vadd.f32 %v344, %v732
      %v734 = vpop.f32.mrf.mxu0
      %735 = vmatprep.mubr.f32.mxu0 0.0
      %736 = vmatmul.mubr.f32.gmra.mxu0 %v387
      %v737 = vpop.f32.mrf.mxu0
      %v738 = vadd.f32 %v344, %v737
      %v739 = vpop.f32.mrf.mxu0
      %740 = vmatprep.mubr.f32.mxu0 0.0
      %741 = vmatmul.mubr.f32.gmra.mxu0 %v390
      %v742 = vpop.f32.mrf.mxu0
      %v743 = vadd.f32 %v344, %v742
      %v744 = vpop.f32.mrf.mxu0
      %745 = vmatprep.mubr.f32.mxu0 0.0
      %746 = vmatmul.mubr.f32.gmra.mxu0 %v393
      %v747 = vpop.f32.mrf.mxu0
      %v748 = vadd.f32 %v344, %v747
      %v749 = vpop.f32.mrf.mxu0
      %750 = vmatprep.mubr.f32.mxu0 0.0
      %751 = vmatmul.mubr.f32.gmra.mxu0 %v396
      %v752 = vpop.f32.mrf.mxu0
      %v753 = vadd.f32 %v344, %v752
      %v754 = vpop.f32.mrf.mxu0
      %755 = vmatprep.mubr.f32.mxu0 0.0
      %756 = vmatmul.mubr.f32.gmra.mxu0 %v399
      %v757 = vpop.f32.mrf.mxu0
      %v758 = vadd.f32 %v344, %v757
      %v759 = vpop.f32.mrf.mxu0
      %760 = vmatprep.mubr.f32.mxu0 0.0
      %761 = vmatmul.mubr.f32.gmra.mxu0 %v402
      %v762 = vpop.f32.mrf.mxu0
      %v763 = vadd.f32 %v344, %v762
      %v764 = vpop.f32.mrf.mxu0
      %765 = vmatprep.mubr.f32.mxu0 0.0
      %766 = vmatmul.mubr.f32.gmra.mxu0 %v405
      %v767 = vpop.f32.mrf.mxu0
      %v768 = vadd.f32 %v344, %v767
      %v769 = vpop.f32.mrf.mxu0
      %770 = vmatprep.mubr.f32.mxu0 0.0
      %771 = vmatmul.mubr.f32.gmra.mxu0 %v408
      %v772 = vpop.f32.mrf.mxu0
      %v773 = vadd.f32 %v344, %v772
      %v774 = vpop.f32.mrf.mxu0
      %775 = vmatprep.mubr.f32.mxu0 0.0
      %776 = vmatmul.mubr.f32.gmra.mxu0 %v411
      %v777 = vpop.f32.mrf.mxu0
      %v778 = vadd.f32 %v344, %v777
      %v779 = vpop.f32.mrf.mxu0
      %780 = vmatprep.mubr.f32.mxu0 0.0
      %781 = vmatmul.mubr.f32.gmra.mxu0 %v414
      %v782 = vpop.f32.mrf.mxu0
      %v783 = vadd.f32 %v344, %v782
      %v784 = vpop.f32.mrf.mxu0
      %785 = vmatprep.mubr.f32.mxu0 0.0
      %786 = vmatmul.mubr.f32.gmra.mxu0 %v417
      %v787 = vpop.f32.mrf.mxu0
      %v788 = vadd.f32 %v344, %v787
      %v789 = vpop.f32.mrf.mxu0
      %790 = vmatprep.mubr.f32.mxu0 0.0
      %791 = vmatmul.mubr.f32.gmra.mxu0 %v420
      %v792 = vpop.f32.mrf.mxu0
      %v793 = vadd.f32 %v344, %v792
      %v794 = vpop.f32.mrf.mxu0
      %795 = vmatprep.mubr.f32.mxu0 0.0
      %796 = vmatmul.mubr.f32.gmra.mxu0 %v423
      %v797 = vpop.f32.mrf.mxu0
      %v798 = vadd.f32 %v344, %v797
      %v799 = vpop.f32.mrf.mxu0
      %800 = vmatprep.mubr.f32.mxu0 0.0
      %801 = vmatmul.mubr.f32.gmra.mxu0 %v426
      %v802 = vpop.f32.mrf.mxu0
      %v803 = vadd.f32 %v344, %v802
      %v804 = vpop.f32.mrf.mxu0
      %805 = vmatprep.mubr.f32.mxu0 0.0
      %806 = vmatmul.mubr.f32.gmra.mxu0 %v429
      %v807 = vpop.f32.mrf.mxu0
      %v808 = vadd.f32 %v344, %v807
      %v809 = vpop.f32.mrf.mxu0
      %810 = vmatprep.mubr.f32.mxu0 0.0
      %811 = vmatmul.mubr.f32.gmra.mxu0 %v432
      %v812 = vpop.f32.mrf.mxu0
      %v813 = vadd.f32 %v344, %v812
      %v814 = vpop.f32.mrf.mxu0
      %815 = vmatprep.mubr.f32.mxu0 0.0
      %816 = vmatmul.mubr.f32.gmra.mxu0 %v435
      %v817 = vpop.f32.mrf.mxu0
      %v818 = vadd.f32 %v344, %v817
      %v819 = vpop.f32.mrf.mxu0
      %820 = vmatprep.mubr.f32.mxu0 0.0
      %821 = vmatmul.mubr.f32.gmra.mxu0 %v438
      %v822 = vpop.f32.mrf.mxu0
      %v823 = vadd.f32 %v344, %v822
      %v824 = vpop.f32.mrf.mxu0
      %825 = vmatprep.mubr.f32.mxu0 0.0
      %826 = vmatmul.mubr.f32.gmra.mxu0 %v441
      %v827 = vpop.f32.mrf.mxu0
      %v828 = vadd.f32 %v344, %v827
      %v829 = vpop.f32.mrf.mxu0
      %830 = vmatprep.mubr.f32.mxu0 0.0
      %831 = vmatmul.mubr.f32.gmra.mxu0 %v444
      %v832 = vpop.f32.mrf.mxu0
      %v833 = vadd.f32 %v344, %v832
      %v834 = vpop.f32.mrf.mxu0
      %835 = vmatprep.mubr.f32.mxu0 0.0
      %836 = vmatmul.mubr.f32.gmra.mxu0 %v447
      %v837 = vpop.f32.mrf.mxu0
      %v838 = vadd.f32 %v344, %v837
      %v839 = vpop.f32.mrf.mxu0
      %840 = vmatprep.mubr.f32.mxu0 0.0
      %841 = vmatmul.mubr.f32.gmra.mxu0 %v450
      %v842 = vpop.f32.mrf.mxu0
      %v843 = vadd.f32 %v344, %v842
      %v844 = vpop.f32.mrf.mxu0
      %845 = vmatprep.mubr.f32.mxu0 0.0
      %846 = vmatmul.mubr.f32.gmra.mxu0 %v453
      %v847 = vpop.f32.mrf.mxu0
      %v848 = vadd.f32 %v344, %v847
      %v849 = vpop.f32.mrf.mxu0
      %850 = vmatprep.mubr.f32.mxu0 0.0
      %851 = vmatmul.mubr.f32.gmra.mxu0 %v456
      %v852 = vpop.f32.mrf.mxu0
      %v853 = vadd.f32 %v344, %v852
      %v854 = vpop.f32.mrf.mxu0
      %855 = vmatprep.mubr.f32.mxu0 0.0
      %856 = vmatmul.mubr.f32.gmra.mxu0 %v459
      %v857 = vpop.f32.mrf.mxu0
      %v858 = vadd.f32 %v344, %v857
      %v859 = vpop.f32.mrf.mxu0
      %860 = vmatprep.mubr.f32.mxu0 0.0
      %861 = vmatmul.mubr.f32.gmra.mxu0 %v462
      %v862 = vpop.f32.mrf.mxu0
      %v863 = vadd.f32 %v344, %v862
      %v864 = vpop.f32.mrf.mxu0
      %865 = vmatprep.mubr.f32.mxu0 0.0
      %866 = vmatmul.mubr.f32.gmra.mxu0 %v465
      %v867 = vpop.f32.mrf.mxu0
      %v868 = vadd.f32 %v344, %v867
      %v869 = vpop.f32.mrf.mxu0
      %870 = vmatprep.mubr.f32.mxu0 0.0
      %871 = vmatmul.mubr.f32.gmra.mxu0 %v468
      %v872 = vpop.f32.mrf.mxu0
      %v873 = vadd.f32 %v344, %v872
      %v874 = vpop.f32.mrf.mxu0
      %875 = vmatprep.mubr.f32.mxu0 0.0
      %876 = vmatmul.mubr.f32.gmra.mxu0 %v471
      %v877 = vpop.f32.mrf.mxu0
      %v878 = vadd.f32 %v344, %v877
      %v879 = vpop.f32.mrf.mxu0
      %880 = vmatprep.mubr.f32.mxu0 0.0
      %881 = vmatmul.mubr.f32.gmra.mxu0 %v474
      %v882 = vpop.f32.mrf.mxu0
      %v883 = vadd.f32 %v344, %v882
      %v884 = vpop.f32.mrf.mxu0
      %885 = vmatprep.mubr.f32.mxu0 0.0
      %886 = vmatmul.mubr.f32.gmra.mxu0 %v477
      %v887 = vpop.f32.mrf.mxu0
      %v888 = vadd.f32 %v344, %v887
      %v889 = vpop.f32.mrf.mxu0
      %890 = vmatprep.mubr.f32.mxu0 0.0
      %891 = vmatmul.mubr.f32.gmra.mxu0 %v480
      %v892 = vpop.f32.mrf.mxu0
      %v893 = vadd.f32 %v344, %v892
      %v894 = vpop.f32.mrf.mxu0
      %895 = vmatprep.mubr.f32.mxu0 0.0
      %896 = vmatmul.mubr.f32.gmra.mxu0 %v483
      %v897 = vpop.f32.mrf.mxu0
      %v898 = vadd.f32 %v344, %v897
      %v899 = vpop.f32.mrf.mxu0
      %900 = vmatprep.mubr.f32.mxu0 0.0
      %901 = vmatmul.mubr.f32.gmra.mxu0 %v486
      %v902 = vpop.f32.mrf.mxu0
      %v903 = vadd.f32 %v344, %v902
      %v904 = vpop.f32.mrf.mxu0
      %905 = vmatprep.mubr.f32.mxu0 0.0
      %906 = vmatmul.mubr.f32.gmra.mxu0 %v489
      %v907 = vpop.f32.mrf.mxu0
      %v908 = vadd.f32 %v344, %v907
      %v909 = vpop.f32.mrf.mxu0
      %910 = vmatprep.mubr.f32.mxu0 0.0
      %911 = vmatmul.mubr.f32.gmra.mxu0 %v492
      %v912 = vpop.f32.mrf.mxu0
      %v913 = vadd.f32 %v344, %v912
      %v914 = vpop.f32.mrf.mxu0
      %915 = vmatprep.mubr.f32.mxu0 0.0
      %916 = vmatmul.mubr.f32.gmra.mxu0 %v495
      %v917 = vpop.f32.mrf.mxu0
      %v918 = vadd.f32 %v344, %v917
      %v919 = vpop.f32.mrf.mxu0
      %920 = vmatprep.mubr.f32.mxu0 0.0
      %921 = vmatmul.mubr.f32.gmra.mxu0 %v498
      %v922 = vpop.f32.mrf.mxu0
      %v923 = vadd.f32 %v344, %v922
      %v924 = vpop.f32.mrf.mxu0
      %925 = vmatprep.mubr.f32.mxu0 0.0
      %926 = vmatmul.mubr.f32.gmra.mxu0 %v501
      %v927 = vpop.f32.mrf.mxu0
      %v928 = vadd.f32 %v344, %v927
      %v929 = vpop.f32.mrf.mxu0
      %930 = vmatprep.mubr.f32.mxu0 0.0
      %931 = vmatmul.mubr.f32.gmra.mxu0 %v504
      %v932 = vpop.f32.mrf.mxu0
      %v933 = vadd.f32 %v344, %v932
      %v934 = vpop.f32.mrf.mxu0
      %935 = vmatprep.mubr.f32.mxu0 0.0
      %936 = vmatmul.mubr.f32.gmra.mxu0 %v507
      %v937 = vpop.f32.mrf.mxu0
      %v938 = vadd.f32 %v344, %v937
      %v939 = vpop.f32.mrf.mxu0
      %940 = vmatprep.mubr.f32.mxu0 0.0
      %941 = vmatmul.mubr.f32.gmra.mxu0 %v510
      %v942 = vpop.f32.mrf.mxu0
      %v943 = vadd.f32 %v344, %v942
      %v944 = vpop.f32.mrf.mxu0
      %945 = vmatprep.mubr.f32.mxu0 0.0
      %946 = vmatmul.mubr.f32.gmra.mxu0 %v513
      %v947 = vpop.f32.mrf.mxu0
      %v948 = vadd.f32 %v344, %v947
      %v949 = vpop.f32.mrf.mxu0
      %950 = vmatprep.mubr.f32.mxu0 0.0
      %951 = vmatmul.mubr.f32.gmra.mxu0 %v516
      %v952 = vpop.f32.mrf.mxu0
      %v953 = vadd.f32 %v344, %v952
      %v954 = vpop.f32.mrf.mxu0
      %955 = vmatprep.mubr.f32.mxu0 0.0
      %956 = vmatmul.mubr.f32.gmra.mxu0 %v519
      %v957 = vpop.f32.mrf.mxu0
      %v958 = vadd.f32 %v344, %v957
      %v959 = vpop.f32.mrf.mxu0
      %960 = vmatprep.mubr.f32.mxu0 0.0
      %961 = vmatmul.mubr.f32.gmra.mxu0 %v522
      %v962 = vpop.f32.mrf.mxu0
      %v963 = vadd.f32 %v344, %v962
      %v964 = vpop.f32.mrf.mxu0
      %965 = vmatprep.mubr.f32.mxu0 0.0
      %966 = vmatmul.mubr.f32.gmra.mxu0 %v525
      %v967 = vpop.f32.mrf.mxu0
      %v968 = vadd.f32 %v344, %v967
      %v969 = vpop.f32.mrf.mxu0
      %970 = vmatprep.mubr.f32.mxu0 0.0
      %971 = vmatmul.mubr.f32.gmra.mxu0 %v528
      %v972 = vpop.f32.mrf.mxu0
      %v973 = vadd.f32 %v344, %v972
      %v974 = vpop.f32.mrf.mxu0
      %975 = vmatprep.mubr.f32.mxu0 0.0
      %976 = vmatmul.mubr.f32.gmra.mxu0 %v531
      %v977 = vpop.f32.mrf.mxu0
      %v978 = vadd.f32 %v344, %v977
      %v979 = vpop.f32.mrf.mxu0
      %980 = vmatprep.mubr.f32.mxu0 0.0
      %981 = vmatmul.mubr.f32.gmra.mxu0 %v534
      %v982 = vpop.f32.mrf.mxu0
      %v983 = vadd.f32 %v344, %v982
      %v984 = vpop.f32.mrf.mxu0
      %985 = vmatprep.mubr.f32.mxu0 0.0
      %986 = vmatmul.mubr.f32.gmra.mxu0 %v537
      %v987 = vpop.f32.mrf.mxu0
      %v988 = vadd.f32 %v344, %v987
      %v989 = vpop.f32.mrf.mxu0
      %990 = vmatprep.mubr.f32.mxu0 0.0
      %991 = vmatmul.mubr.f32.gmra.mxu0 %v540
      %v992 = vpop.f32.mrf.mxu0
      %v993 = vadd.f32 %v344, %v992
      %v994 = vpop.f32.mrf.mxu0
      %995 = vmatprep.mubr.f32.mxu0 0.0
      %996 = vmatmul.mubr.f32.gmra.mxu0 %v543
      %v997 = vpop.f32.mrf.mxu0
      %v998 = vadd.f32 %v344, %v997
      %v999 = vpop.f32.mrf.mxu0
      %1000 = vmatprep.mubr.f32.mxu0 0.0
      %1001 = vmatmul.mubr.f32.gmra.mxu0 %v546
      %v1002 = vpop.f32.mrf.mxu0
      %v1003 = vadd.f32 %v344, %v1002
      %v1004 = vpop.f32.mrf.mxu0
      %1005 = vmatprep.mubr.f32.mxu0 0.0
      %1006 = vmatmul.mubr.f32.gmra.mxu0 %v549
      %v1007 = vpop.f32.mrf.mxu0
      %v1008 = vadd.f32 %v344, %v1007
      %v1009 = vpop.f32.mrf.mxu0
      %1010 = vmatprep.mubr.f32.mxu0 0.0
      %1011 = vmatmul.mubr.f32.gmra.mxu0 %v552
      %v1012 = vpop.f32.mrf.mxu0
      %v1013 = vadd.f32 %v344, %v1012
      %v1014 = vpop.f32.mrf.mxu0
      %1015 = vmatprep.mubr.f32.mxu0 0.0
      %1016 = vmatmul.mubr.f32.gmra.mxu0 %v555
      %v1017 = vpop.f32.mrf.mxu0
      %v1018 = vadd.f32 %v344, %v1017
      %v1019 = vpop.f32.mrf.mxu0
      %1020 = vmatprep.mubr.f32.mxu0 0.0
      %1021 = vmatmul.mubr.f32.gmra.mxu0 %v558
      %v1022 = vpop.f32.mrf.mxu0
      %v1023 = vadd.f32 %v344, %v1022
      %v1024 = vpop.f32.mrf.mxu0
      %1025 = vmatprep.mubr.f32.mxu0 0.0
      %1026 = vmatmul.mubr.f32.gmra.mxu0 %v561
      %v1027 = vpop.f32.mrf.mxu0
      %v1028 = vadd.f32 %v344, %v1027
      %v1029 = vpop.f32.mrf.mxu0
      %1030 = vmatprep.mubr.f32.mxu0 0.0
      %1031 = vmatmul.mubr.f32.gmra.mxu0 %v564
      %v1032 = vpop.f32.mrf.mxu0
      %v1033 = vadd.f32 %v344, %v1032
      %v1034 = vpop.f32.mrf.mxu0
      %1035 = vmatprep.mubr.f32.mxu0 0.0
      %1036 = vmatmul.mubr.f32.gmra.mxu0 %v567
      %v1037 = vpop.f32.mrf.mxu0
      %v1038 = vadd.f32 %v344, %v1037
      %v1039 = vpop.f32.mrf.mxu0
      %1040 = vmatprep.mubr.f32.mxu0 0.0
      %1041 = vmatmul.mubr.f32.gmra.mxu0 %v570
      %v1042 = vpop.f32.mrf.mxu0
      %v1043 = vadd.f32 %v344, %v1042
      %v1044 = vpop.f32.mrf.mxu0
      %1045 = vmatprep.mubr.f32.mxu0 0.0
      %1046 = vmatmul.mubr.f32.gmra.mxu0 %v573
      %v1047 = vpop.f32.mrf.mxu0
      %v1048 = vadd.f32 %v344, %v1047
      %v1049 = vpop.f32.mrf.mxu0
      %1050 = vmatprep.mubr.f32.mxu0 0.0
      %1051 = vmatmul.mubr.f32.gmra.mxu0 %v576
      %v1052 = vpop.f32.mrf.mxu0
      %v1053 = vadd.f32 %v344, %v1052
      %v1054 = vpop.f32.mrf.mxu0
      %1055 = vmatprep.mubr.f32.mxu0 0.0
      %1056 = vmatmul.mubr.f32.gmra.mxu0 %v579
      %v1057 = vpop.f32.mrf.mxu0
      %v1058 = vadd.f32 %v344, %v1057
      %v1059 = vpop.f32.mrf.mxu0
      %1060 = vmatprep.mubr.f32.mxu0 0.0
      %1061 = vmatmul.mubr.f32.gmra.mxu0 %v582
      %v1062 = vpop.f32.mrf.mxu0
      %v1063 = vadd.f32 %v344, %v1062
      %v1064 = vpop.f32.mrf.mxu0
      %1065 = vmatprep.mubr.f32.mxu0 0.0
      %1066 = vmatmul.mubr.f32.gmra.mxu0 %v585
      %v1067 = vpop.f32.mrf.mxu0
      %v1068 = vadd.f32 %v344, %v1067
      %v1069 = vpop.f32.mrf.mxu0
      %1070 = vmatprep.mubr.f32.mxu0 0.0
      %1071 = vmatmul.mubr.f32.gmra.mxu0 %v588
      %v1072 = vpop.f32.mrf.mxu0
      %v1073 = vadd.f32 %v344, %v1072
      %v1074 = vpop.f32.mrf.mxu0
      %1075 = vmatprep.mubr.f32.mxu0 0.0
      %1076 = vmatmul.mubr.f32.gmra.mxu0 %v591
      %v1077 = vpop.f32.mrf.mxu0
      %v1078 = vadd.f32 %v344, %v1077
      %v1079 = vpop.f32.mrf.mxu0
      %1080 = vmatprep.mubr.f32.mxu0 0.0
      %1081 = vmatmul.mubr.f32.gmra.mxu0 %v594
      %v1082 = vpop.f32.mrf.mxu0
      %v1083 = vadd.f32 %v344, %v1082
      %v1084 = vpop.f32.mrf.mxu0
      %1085 = vmatprep.mubr.f32.mxu0 0.0
      %1086 = vmatmul.mubr.f32.gmra.mxu0 %v597
      %v1087 = vpop.f32.mrf.mxu0
      %v1088 = vadd.f32 %v344, %v1087
      %v1089 = vpop.f32.mrf.mxu0
      %1090 = vmatprep.mubr.f32.mxu0 0.0
      %1091 = vmatmul.mubr.f32.gmra.mxu0 %v600
      %v1092 = vpop.f32.mrf.mxu0
      %v1093 = vadd.f32 %v344, %v1092
      %v1094 = vpop.f32.mrf.mxu0
      %1095 = vdwg.mxu0
      %v1096 = vmax.f32 %v673, 0.0
      %v1097 = vmax.f32 %v678, 0.0
      %v1098 = vmax.f32 %v683, 0.0
      %v1099 = vmax.f32 %v688, 0.0
      %v1100 = vmax.f32 %v693, 0.0
      %v1101 = vmax.f32 %v698, 0.0
      %v1102 = vmax.f32 %v703, 0.0
      %v1103 = vmax.f32 %v708, 0.0
      %v1104 = vmax.f32 %v713, 0.0
      %v1105 = vmax.f32 %v718, 0.0
      %v1106 = vmax.f32 %v723, 0.0
      %v1107 = vmax.f32 %v728, 0.0
      %v1108 = vmax.f32 %v733, 0.0
      %v1109 = vmax.f32 %v738, 0.0
      %v1110 = vmax.f32 %v743, 0.0
      %v1111 = vmax.f32 %v748, 0.0
      %v1112 = vmax.f32 %v753, 0.0
      %v1113 = vmax.f32 %v758, 0.0
      %v1114 = vmax.f32 %v763, 0.0
      %v1115 = vmax.f32 %v768, 0.0
      %v1116 = vmax.f32 %v773, 0.0
      %v1117 = vmax.f32 %v778, 0.0
      %v1118 = vmax.f32 %v783, 0.0
      %v1119 = vmax.f32 %v788, 0.0
      %v1120 = vmax.f32 %v793, 0.0
      %v1121 = vmax.f32 %v798, 0.0
      %v1122 = vmax.f32 %v803, 0.0
      %v1123 = vmax.f32 %v808, 0.0
      %v1124 = vmax.f32 %v813, 0.0
      %v1125 = vmax.f32 %v818, 0.0
      %v1126 = vmax.f32 %v823, 0.0
      %v1127 = vmax.f32 %v828, 0.0
      %v1128 = vmax.f32 %v833, 0.0
      %v1129 = vmax.f32 %v838, 0.0
      %v1130 = vmax.f32 %v843, 0.0
      %v1131 = vmax.f32 %v848, 0.0
      %v1132 = vmax.f32 %v853, 0.0
      %v1133 = vmax.f32 %v858, 0.0
      %v1134 = vmax.f32 %v863, 0.0
      %v1135 = vmax.f32 %v868, 0.0
      %v1136 = vmax.f32 %v873, 0.0
      %v1137 = vmax.f32 %v878, 0.0
      %v1138 = vmax.f32 %v883, 0.0
      %v1139 = vmax.f32 %v888, 0.0
      %v1140 = vmax.f32 %v893, 0.0
      %v1141 = vmax.f32 %v898, 0.0
      %v1142 = vmax.f32 %v903, 0.0
      %v1143 = vmax.f32 %v908, 0.0
      %v1144 = vmax.f32 %v913, 0.0
      %v1145 = vmax.f32 %v918, 0.0
      %v1146 = vmax.f32 %v923, 0.0
      %v1147 = vmax.f32 %v928, 0.0
      %v1148 = vmax.f32 %v933, 0.0
      %v1149 = vmax.f32 %v938, 0.0
      %v1150 = vmax.f32 %v943, 0.0
      %v1151 = vmax.f32 %v948, 0.0
      %v1152 = vmax.f32 %v953, 0.0
      %v1153 = vmax.f32 %v958, 0.0
      %v1154 = vmax.f32 %v963, 0.0
      %v1155 = vmax.f32 %v968, 0.0
      %v1156 = vmax.f32 %v973, 0.0
      %v1157 = vmax.f32 %v978, 0.0
      %v1158 = vmax.f32 %v983, 0.0
      %v1159 = vmax.f32 %v988, 0.0
      %v1160 = vmax.f32 %v993, 0.0
      %v1161 = vmax.f32 %v998, 0.0
      %v1162 = vmax.f32 %v1003, 0.0
      %v1163 = vmax.f32 %v1008, 0.0
      %v1164 = vmax.f32 %v1013, 0.0
      %v1165 = vmax.f32 %v1018, 0.0
      %v1166 = vmax.f32 %v1023, 0.0
      %v1167 = vmax.f32 %v1028, 0.0
      %v1168 = vmax.f32 %v1033, 0.0
      %v1169 = vmax.f32 %v1038, 0.0
      %v1170 = vmax.f32 %v1043, 0.0
      %v1171 = vmax.f32 %v1048, 0.0
      %v1172 = vmax.f32 %v1053, 0.0
      %v1173 = vmax.f32 %v1058, 0.0
      %v1174 = vmax.f32 %v1063, 0.0
      %v1175 = vmax.f32 %v1068, 0.0
      %v1176 = vmax.f32 %v1073, 0.0
      %v1177 = vmax.f32 %v1078, 0.0
      %v1178 = vmax.f32 %v1083, 0.0
      %v1179 = vmax.f32 %v1088, 0.0
      %v1180 = vmax.f32 %v1093, 0.0
      %vm1181 = vcmask 261120
      %1182 = vst.msk [vmem:[#allocation2] sm:$0xff] %vm1181, %v1096
      %1183 = vst.msk [vmem:[#allocation2 + $0x18] sm:$0xff] %vm1181, %v1097
      %1184 = vst.msk [vmem:[#allocation2 + $0x30] sm:$0xff] %vm1181, %v1098
      %1185 = vst.msk [vmem:[#allocation2 + $0x48] sm:$0xff] %vm1181, %v1099
      %1186 = vst.msk [vmem:[#allocation2 + $0x60] sm:$0xff] %vm1181, %v1100
      %1187 = vst.msk [vmem:[#allocation2 + $0x78] sm:$0xff] %vm1181, %v1101
      %1188 = vst.msk [vmem:[#allocation2 + $0x90] sm:$0xff] %vm1181, %v1102
      %1189 = vst.msk [vmem:[#allocation2 + $0xa8] sm:$0xff] %vm1181, %v1103
      %1190 = vst.msk [vmem:[#allocation2 + $0xc0] sm:$0xff] %vm1181, %v1104
      %1191 = vst.msk [vmem:[#allocation2 + $0xd8] sm:$0xff] %vm1181, %v1105
      %1192 = vst.msk [vmem:[#allocation2 + $0xf0] sm:$0xff] %vm1181, %v1106
      %1193 = vst.msk [vmem:[#allocation2 + $0x108] sm:$0xff] %vm1181, %v1107
      %1194 = vst.msk [vmem:[#allocation2 + $0x120] sm:$0xff] %vm1181, %v1108
      %1195 = vst.msk [vmem:[#allocation2 + $0x138] sm:$0xff] %vm1181, %v1109
      %1196 = vst.msk [vmem:[#allocation2 + $0x150] sm:$0xff] %vm1181, %v1110
      %1197 = vst.msk [vmem:[#allocation2 + $0x168] sm:$0xff] %vm1181, %v1111
      %1198 = vst.msk [vmem:[#allocation2 + $0x180] sm:$0xff] %vm1181, %v1112
      %1199 = vst.msk [vmem:[#allocation2 + $0x198] sm:$0xff] %vm1181, %v1113
      %1200 = vst.msk [vmem:[#allocation2 + $0x1b0] sm:$0xff] %vm1181, %v1114
      %1201 = vst.msk [vmem:[#allocation2 + $0x1c8] sm:$0xff] %vm1181, %v1115
      %1202 = vst.msk [vmem:[#allocation2 + $0x1e0] sm:$0xff] %vm1181, %v1116
      %1203 = vst.msk [vmem:[#allocation2 + $0x1f8] sm:$0xff] %vm1181, %v1117
      %1204 = vst.msk [vmem:[#allocation2 + $0x210] sm:$0xff] %vm1181, %v1118
      %1205 = vst.msk [vmem:[#allocation2 + $0x228] sm:$0xff] %vm1181, %v1119
      %1206 = vst.msk [vmem:[#allocation2 + $0x240] sm:$0xff] %vm1181, %v1120
      %1207 = vst.msk [vmem:[#allocation2 + $0x258] sm:$0xff] %vm1181, %v1121
      %1208 = vst.msk [vmem:[#allocation2 + $0x270] sm:$0xff] %vm1181, %v1122
      %1209 = vst.msk [vmem:[#allocation2 + $0x288] sm:$0xff] %vm1181, %v1123
      %1210 = vst.msk [vmem:[#allocation2 + $0x2a0] sm:$0xff] %vm1181, %v1124
      %1211 = vst.msk [vmem:[#allocation2 + $0x2b8] sm:$0xff] %vm1181, %v1125
      %1212 = vst.msk [vmem:[#allocation2 + $0x2d0] sm:$0xff] %vm1181, %v1126
      %1213 = vst.msk [vmem:[#allocation2 + $0x2e8] sm:$0xff] %vm1181, %v1127
      %1214 = vst.msk [vmem:[#allocation2 + $0x300] sm:$0xff] %vm1181, %v1128
      %1215 = vst.msk [vmem:[#allocation2 + $0x318] sm:$0xff] %vm1181, %v1129
      %1216 = vst.msk [vmem:[#allocation2 + $0x330] sm:$0xff] %vm1181, %v1130
      %1217 = vst.msk [vmem:[#allocation2 + $0x348] sm:$0xff] %vm1181, %v1131
      %1218 = vst.msk [vmem:[#allocation2 + $0x360] sm:$0xff] %vm1181, %v1132
      %1219 = vst.msk [vmem:[#allocation2 + $0x378] sm:$0xff] %vm1181, %v1133
      %1220 = vst.msk [vmem:[#allocation2 + $0x390] sm:$0xff] %vm1181, %v1134
      %1221 = vst.msk [vmem:[#allocation2 + $0x3a8] sm:$0xff] %vm1181, %v1135
      %1222 = vst.msk [vmem:[#allocation2 + $0x3c0] sm:$0xff] %vm1181, %v1136
      %1223 = vst.msk [vmem:[#allocation2 + $0x3d8] sm:$0xff] %vm1181, %v1137
      %1224 = vst.msk [vmem:[#allocation2 + $0x3f0] sm:$0xff] %vm1181, %v1138
      %1225 = vst.msk [vmem:[#allocation2 + $0x408] sm:$0xff] %vm1181, %v1139
      %1226 = vst.msk [vmem:[#allocation2 + $0x420] sm:$0xff] %vm1181, %v1140
      %1227 = vst.msk [vmem:[#allocation2 + $0x438] sm:$0xff] %vm1181, %v1141
      %1228 = vst.msk [vmem:[#allocation2 + $0x450] sm:$0xff] %vm1181, %v1142
      %1229 = vst.msk [vmem:[#allocation2 + $0x468] sm:$0xff] %vm1181, %v1143
      %1230 = vst.msk [vmem:[#allocation2 + $0x480] sm:$0xff] %vm1181, %v1144
      %1231 = vst.msk [vmem:[#allocation2 + $0x498] sm:$0xff] %vm1181, %v1145
      %1232 = vst.msk [vmem:[#allocation2 + $0x4b0] sm:$0xff] %vm1181, %v1146
      %1233 = vst.msk [vmem:[#allocation2 + $0x4c8] sm:$0xff] %vm1181, %v1147
      %1234 = vst.msk [vmem:[#allocation2 + $0x4e0] sm:$0xff] %vm1181, %v1148
      %1235 = vst.msk [vmem:[#allocation2 + $0x4f8] sm:$0xff] %vm1181, %v1149
      %1236 = vst.msk [vmem:[#allocation2 + $0x510] sm:$0xff] %vm1181, %v1150
      %1237 = vst.msk [vmem:[#allocation2 + $0x528] sm:$0xff] %vm1181, %v1151
      %1238 = vst.msk [vmem:[#allocation2 + $0x540] sm:$0xff] %vm1181, %v1152
      %1239 = vst.msk [vmem:[#allocation2 + $0x558] sm:$0xff] %vm1181, %v1153
      %1240 = vst.msk [vmem:[#allocation2 + $0x570] sm:$0xff] %vm1181, %v1154
      %1241 = vst.msk [vmem:[#allocation2 + $0x588] sm:$0xff] %vm1181, %v1155
      %1242 = vst.msk [vmem:[#allocation2 + $0x5a0] sm:$0xff] %vm1181, %v1156
      %1243 = vst.msk [vmem:[#allocation2 + $0x5b8] sm:$0xff] %vm1181, %v1157
      %1244 = vst.msk [vmem:[#allocation2 + $0x5d0] sm:$0xff] %vm1181, %v1158
      %1245 = vst.msk [vmem:[#allocation2 + $0x5e8] sm:$0xff] %vm1181, %v1159
      %1246 = vst.msk [vmem:[#allocation2 + $0x600] sm:$0xff] %vm1181, %v1160
      %1247 = vst.msk [vmem:[#allocation2 + $0x618] sm:$0xff] %vm1181, %v1161
      %1248 = vst.msk [vmem:[#allocation2 + $0x630] sm:$0xff] %vm1181, %v1162
      %1249 = vst.msk [vmem:[#allocation2 + $0x648] sm:$0xff] %vm1181, %v1163
      %1250 = vst.msk [vmem:[#allocation2 + $0x660] sm:$0xff] %vm1181, %v1164
      %1251 = vst.msk [vmem:[#allocation2 + $0x678] sm:$0xff] %vm1181, %v1165
      %1252 = vst.msk [vmem:[#allocation2 + $0x690] sm:$0xff] %vm1181, %v1166
      %1253 = vst.msk [vmem:[#allocation2 + $0x6a8] sm:$0xff] %vm1181, %v1167
      %1254 = vst.msk [vmem:[#allocation2 + $0x6c0] sm:$0xff] %vm1181, %v1168
      %1255 = vst.msk [vmem:[#allocation2 + $0x6d8] sm:$0xff] %vm1181, %v1169
      %1256 = vst.msk [vmem:[#allocation2 + $0x6f0] sm:$0xff] %vm1181, %v1170
      %1257 = vst.msk [vmem:[#allocation2 + $0x708] sm:$0xff] %vm1181, %v1171
      %1258 = vst.msk [vmem:[#allocation2 + $0x720] sm:$0xff] %vm1181, %v1172
      %vm1259 = vcmask 259072
      %1260 = vst.msk [vmem:[#allocation2 + $0x738] sm:$0x3f] %vm1259, %v1173
      %vm1339 = vcmask 1046528
      %v1340 = vrot.slane %v1096, 1
      %v1341 = vrot.slane %v1097, 1
      %v1342 = vsel %vm1339, %v1340, %v1341
      %v1343 = vrot.slane %v1098, 1
      %v1344 = vsel %vm1339, %v1341, %v1343
      %v1345 = vrot.slane %v1099, 1
      %v1346 = vsel %vm1339, %v1343, %v1345
      %v1347 = vrot.slane %v1100, 1
      %v1348 = vsel %vm1339, %v1345, %v1347
      %v1349 = vrot.slane %v1101, 1
      %v1350 = vsel %vm1339, %v1347, %v1349
      %v1351 = vrot.slane %v1102, 1
      %v1352 = vsel %vm1339, %v1349, %v1351
      %v1353 = vrot.slane %v1103, 1
      %v1354 = vsel %vm1339, %v1351, %v1353
      %v1355 = vrot.slane %v1104, 1
      %v1356 = vsel %vm1339, %v1353, %v1355
      %v1357 = vrot.slane %v1105, 1
      %v1358 = vsel %vm1339, %v1355, %v1357
      %v1359 = vrot.slane %v1106, 1
      %v1360 = vsel %vm1339, %v1357, %v1359
      %v1361 = vrot.slane %v1107, 1
      %v1362 = vsel %vm1339, %v1359, %v1361
      %v1363 = vrot.slane %v1108, 1
      %v1364 = vsel %vm1339, %v1361, %v1363
      %v1365 = vrot.slane %v1109, 1
      %v1366 = vsel %vm1339, %v1363, %v1365
      %v1367 = vrot.slane %v1110, 1
      %v1368 = vsel %vm1339, %v1365, %v1367
      %v1369 = vrot.slane %v1111, 1
      %v1370 = vsel %vm1339, %v1367, %v1369
      %v1371 = vrot.slane %v1112, 1
      %v1372 = vsel %vm1339, %v1369, %v1371
      %v1373 = vrot.slane %v1113, 1
      %v1374 = vsel %vm1339, %v1371, %v1373
      %v1375 = vrot.slane %v1114, 1
      %v1376 = vsel %vm1339, %v1373, %v1375
      %v1377 = vrot.slane %v1115, 1
      %v1378 = vsel %vm1339, %v1375, %v1377
      %v1379 = vrot.slane %v1116, 1
      %v1380 = vsel %vm1339, %v1377, %v1379
      %v1381 = vrot.slane %v1117, 1
      %v1382 = vsel %vm1339, %v1379, %v1381
      %v1383 = vrot.slane %v1118, 1
      %v1384 = vsel %vm1339, %v1381, %v1383
      %v1385 = vrot.slane %v1119, 1
      %v1386 = vsel %vm1339, %v1383, %v1385
      %v1387 = vrot.slane %v1120, 1
      %v1388 = vsel %vm1339, %v1385, %v1387
      %v1389 = vrot.slane %v1121, 1
      %v1390 = vsel %vm1339, %v1387, %v1389
      %v1391 = vrot.slane %v1122, 1
      %v1392 = vsel %vm1339, %v1389, %v1391
      %v1393 = vrot.slane %v1123, 1
      %v1394 = vsel %vm1339, %v1391, %v1393
      %v1395 = vrot.slane %v1124, 1
      %v1396 = vsel %vm1339, %v1393, %v1395
      %v1397 = vrot.slane %v1125, 1
      %v1398 = vsel %vm1339, %v1395, %v1397
      %v1399 = vrot.slane %v1126, 1
      %v1400 = vsel %vm1339, %v1397, %v1399
      %v1401 = vrot.slane %v1127, 1
      %v1402 = vsel %vm1339, %v1399, %v1401
      %v1403 = vrot.slane %v1128, 1
      %v1404 = vsel %vm1339, %v1401, %v1403
      %v1405 = vrot.slane %v1129, 1
      %v1406 = vsel %vm1339, %v1403, %v1405
      %v1407 = vrot.slane %v1130, 1
      %v1408 = vsel %vm1339, %v1405, %v1407
      %v1409 = vrot.slane %v1131, 1
      %v1410 = vsel %vm1339, %v1407, %v1409
      %v1411 = vrot.slane %v1132, 1
      %v1412 = vsel %vm1339, %v1409, %v1411
      %v1413 = vrot.slane %v1133, 1
      %v1414 = vsel %vm1339, %v1411, %v1413
      %v1415 = vrot.slane %v1134, 1
      %v1416 = vsel %vm1339, %v1413, %v1415
      %v1417 = vrot.slane %v1135, 1
      %v1418 = vsel %vm1339, %v1415, %v1417
      %v1419 = vrot.slane %v1136, 1
      %v1420 = vsel %vm1339, %v1417, %v1419
      %v1421 = vrot.slane %v1137, 1
      %v1422 = vsel %vm1339, %v1419, %v1421
      %v1423 = vrot.slane %v1138, 1
      %v1424 = vsel %vm1339, %v1421, %v1423
      %v1425 = vrot.slane %v1139, 1
      %v1426 = vsel %vm1339, %v1423, %v1425
      %v1427 = vrot.slane %v1140, 1
      %v1428 = vsel %vm1339, %v1425, %v1427
      %v1429 = vrot.slane %v1141, 1
      %v1430 = vsel %vm1339, %v1427, %v1429
      %v1431 = vrot.slane %v1142, 1
      %v1432 = vsel %vm1339, %v1429, %v1431
      %v1433 = vrot.slane %v1143, 1
      %v1434 = vsel %vm1339, %v1431, %v1433
      %v1435 = vrot.slane %v1144, 1
      %v1436 = vsel %vm1339, %v1433, %v1435
      %v1437 = vrot.slane %v1145, 1
      %v1438 = vsel %vm1339, %v1435, %v1437
      %v1439 = vrot.slane %v1146, 1
      %v1440 = vsel %vm1339, %v1437, %v1439
      %v1441 = vrot.slane %v1147, 1
      %v1442 = vsel %vm1339, %v1439, %v1441
      %v1443 = vrot.slane %v1148, 1
      %v1444 = vsel %vm1339, %v1441, %v1443
      %v1445 = vrot.slane %v1149, 1
      %v1446 = vsel %vm1339, %v1443, %v1445
      %v1447 = vrot.slane %v1150, 1
      %v1448 = vsel %vm1339, %v1445, %v1447
      %v1449 = vrot.slane %v1151, 1
      %v1450 = vsel %vm1339, %v1447, %v1449
      %v1451 = vrot.slane %v1152, 1
      %v1452 = vsel %vm1339, %v1449, %v1451
      %v1453 = vrot.slane %v1153, 1
      %v1454 = vsel %vm1339, %v1451, %v1453
      %v1455 = vrot.slane %v1154, 1
      %v1456 = vsel %vm1339, %v1453, %v1455
      %v1457 = vrot.slane %v1155, 1
      %v1458 = vsel %vm1339, %v1455, %v1457
      %v1459 = vrot.slane %v1156, 1
      %v1460 = vsel %vm1339, %v1457, %v1459
      %v1461 = vrot.slane %v1157, 1
      %v1462 = vsel %vm1339, %v1459, %v1461
      %v1463 = vrot.slane %v1158, 1
      %v1464 = vsel %vm1339, %v1461, %v1463
      %v1465 = vrot.slane %v1159, 1
      %v1466 = vsel %vm1339, %v1463, %v1465
      %v1467 = vrot.slane %v1160, 1
      %v1468 = vsel %vm1339, %v1465, %v1467
      %v1469 = vrot.slane %v1161, 1
      %v1470 = vsel %vm1339, %v1467, %v1469
      %v1471 = vrot.slane %v1162, 1
      %v1472 = vsel %vm1339, %v1469, %v1471
      %v1473 = vrot.slane %v1163, 1
      %v1474 = vsel %vm1339, %v1471, %v1473
      %v1475 = vrot.slane %v1164, 1
      %v1476 = vsel %vm1339, %v1473, %v1475
      %v1477 = vrot.slane %v1165, 1
      %v1478 = vsel %vm1339, %v1475, %v1477
      %v1479 = vrot.slane %v1166, 1
      %v1480 = vsel %vm1339, %v1477, %v1479
      %v1481 = vrot.slane %v1167, 1
      %v1482 = vsel %vm1339, %v1479, %v1481
      %v1483 = vrot.slane %v1168, 1
      %v1484 = vsel %vm1339, %v1481, %v1483
      %v1485 = vrot.slane %v1169, 1
      %v1486 = vsel %vm1339, %v1483, %v1485
      %v1487 = vrot.slane %v1170, 1
      %v1488 = vsel %vm1339, %v1485, %v1487
      %v1489 = vrot.slane %v1171, 1
      %v1490 = vsel %vm1339, %v1487, %v1489
      %v1491 = vrot.slane %v1172, 1
      %v1492 = vsel %vm1339, %v1489, %v1491
      %v1493 = vrot.slane %v1173, 1
      %v1494 = vsel %vm1339, %v1491, %v1493
      %1495 = vrot.lane.b32.xlu0 %v1342, 32
      %v1496 = vpop.permute.xlu0 %1495
      %1497 = vrot.lane.b32.xlu0 %v1344, 32
      %v1498 = vpop.permute.xlu0 %1497
      %1499 = vrot.lane.b32.xlu0 %v1346, 32
      %v1500 = vpop.permute.xlu0 %1499
      %1501 = vrot.lane.b32.xlu0 %v1348, 32
      %v1502 = vpop.permute.xlu0 %1501
      %1503 = vrot.lane.b32.xlu0 %v1350, 32
      %v1504 = vpop.permute.xlu0 %1503
      %1505 = vrot.lane.b32.xlu0 %v1352, 32
      %v1506 = vpop.permute.xlu0 %1505
      %1507 = vrot.lane.b32.xlu0 %v1354, 32
      %v1508 = vpop.permute.xlu0 %1507
      %1509 = vrot.lane.b32.xlu0 %v1356, 32
      %v1510 = vpop.permute.xlu0 %1509
      %1511 = vrot.lane.b32.xlu0 %v1358, 32
      %v1512 = vpop.permute.xlu0 %1511
      %1513 = vrot.lane.b32.xlu0 %v1360, 32
      %v1514 = vpop.permute.xlu0 %1513
      %1515 = vrot.lane.b32.xlu0 %v1362, 32
      %v1516 = vpop.permute.xlu0 %1515
      %1517 = vrot.lane.b32.xlu0 %v1364, 32
      %v1518 = vpop.permute.xlu0 %1517
      %1519 = vrot.lane.b32.xlu0 %v1366, 32
      %v1520 = vpop.permute.xlu0 %1519
      %1521 = vrot.lane.b32.xlu0 %v1368, 32
      %v1522 = vpop.permute.xlu0 %1521
      %1523 = vrot.lane.b32.xlu0 %v1370, 32
      %v1524 = vpop.permute.xlu0 %1523
      %1525 = vrot.lane.b32.xlu0 %v1372, 32
      %v1526 = vpop.permute.xlu0 %1525
      %1527 = vrot.lane.b32.xlu0 %v1374, 32
      %v1528 = vpop.permute.xlu0 %1527
      %1529 = vrot.lane.b32.xlu0 %v1376, 32
      %v1530 = vpop.permute.xlu0 %1529
      %1531 = vrot.lane.b32.xlu0 %v1378, 32
      %v1532 = vpop.permute.xlu0 %1531
      %1533 = vrot.lane.b32.xlu0 %v1380, 32
      %v1534 = vpop.permute.xlu0 %1533
      %1535 = vrot.lane.b32.xlu0 %v1382, 32
      %v1536 = vpop.permute.xlu0 %1535
      %1537 = vrot.lane.b32.xlu0 %v1384, 32
      %v1538 = vpop.permute.xlu0 %1537
      %1539 = vrot.lane.b32.xlu0 %v1386, 32
      %v1540 = vpop.permute.xlu0 %1539
      %1541 = vrot.lane.b32.xlu0 %v1388, 32
      %v1542 = vpop.permute.xlu0 %1541
      %1543 = vrot.lane.b32.xlu0 %v1390, 32
      %v1544 = vpop.permute.xlu0 %1543
      %1545 = vrot.lane.b32.xlu0 %v1392, 32
      %v1546 = vpop.permute.xlu0 %1545
      %1547 = vrot.lane.b32.xlu0 %v1394, 32
      %v1548 = vpop.permute.xlu0 %1547
      %1549 = vrot.lane.b32.xlu0 %v1396, 32
      %v1550 = vpop.permute.xlu0 %1549
      %1551 = vrot.lane.b32.xlu0 %v1398, 32
      %v1552 = vpop.permute.xlu0 %1551
      %1553 = vrot.lane.b32.xlu0 %v1400, 32
      %v1554 = vpop.permute.xlu0 %1553
      %1555 = vrot.lane.b32.xlu0 %v1402, 32
      %v1556 = vpop.permute.xlu0 %1555
      %1557 = vrot.lane.b32.xlu0 %v1404, 32
      %v1558 = vpop.permute.xlu0 %1557
      %1559 = vrot.lane.b32.xlu0 %v1406, 32
      %v1560 = vpop.permute.xlu0 %1559
      %1561 = vrot.lane.b32.xlu0 %v1408, 32
      %v1562 = vpop.permute.xlu0 %1561
      %1563 = vrot.lane.b32.xlu0 %v1410, 32
      %v1564 = vpop.permute.xlu0 %1563
      %1565 = vrot.lane.b32.xlu0 %v1412, 32
      %v1566 = vpop.permute.xlu0 %1565
      %1567 = vrot.lane.b32.xlu0 %v1414, 32
      %v1568 = vpop.permute.xlu0 %1567
      %1569 = vrot.lane.b32.xlu0 %v1416, 32
      %v1570 = vpop.permute.xlu0 %1569
      %1571 = vrot.lane.b32.xlu0 %v1418, 32
      %v1572 = vpop.permute.xlu0 %1571
      %1573 = vrot.lane.b32.xlu0 %v1420, 32
      %v1574 = vpop.permute.xlu0 %1573
      %1575 = vrot.lane.b32.xlu0 %v1422, 32
      %v1576 = vpop.permute.xlu0 %1575
      %1577 = vrot.lane.b32.xlu0 %v1424, 32
      %v1578 = vpop.permute.xlu0 %1577
      %1579 = vrot.lane.b32.xlu0 %v1426, 32
      %v1580 = vpop.permute.xlu0 %1579
      %1581 = vrot.lane.b32.xlu0 %v1428, 32
      %v1582 = vpop.permute.xlu0 %1581
      %1583 = vrot.lane.b32.xlu0 %v1430, 32
      %v1584 = vpop.permute.xlu0 %1583
      %1585 = vrot.lane.b32.xlu0 %v1432, 32
      %v1586 = vpop.permute.xlu0 %1585
      %1587 = vrot.lane.b32.xlu0 %v1434, 32
      %v1588 = vpop.permute.xlu0 %1587
      %1589 = vrot.lane.b32.xlu0 %v1436, 32
      %v1590 = vpop.permute.xlu0 %1589
      %1591 = vrot.lane.b32.xlu0 %v1438, 32
      %v1592 = vpop.permute.xlu0 %1591
      %1593 = vrot.lane.b32.xlu0 %v1440, 32
      %v1594 = vpop.permute.xlu0 %1593
      %1595 = vrot.lane.b32.xlu0 %v1442, 32
      %v1596 = vpop.permute.xlu0 %1595
      %1597 = vrot.lane.b32.xlu0 %v1444, 32
      %v1598 = vpop.permute.xlu0 %1597
      %1599 = vrot.lane.b32.xlu0 %v1446, 32
      %v1600 = vpop.permute.xlu0 %1599
      %1601 = vrot.lane.b32.xlu0 %v1448, 32
      %v1602 = vpop.permute.xlu0 %1601
      %1603 = vrot.lane.b32.xlu0 %v1450, 32
      %v1604 = vpop.permute.xlu0 %1603
      %1605 = vrot.lane.b32.xlu0 %v1452, 32
      %v1606 = vpop.permute.xlu0 %1605
      %1607 = vrot.lane.b32.xlu0 %v1454, 32
      %v1608 = vpop.permute.xlu0 %1607
      %1609 = vrot.lane.b32.xlu0 %v1456, 32
      %v1610 = vpop.permute.xlu0 %1609
      %1611 = vrot.lane.b32.xlu0 %v1458, 32
      %v1612 = vpop.permute.xlu0 %1611
      %1613 = vrot.lane.b32.xlu0 %v1460, 32
      %v1614 = vpop.permute.xlu0 %1613
      %1615 = vrot.lane.b32.xlu0 %v1462, 32
      %v1616 = vpop.permute.xlu0 %1615
      %1617 = vrot.lane.b32.xlu0 %v1464, 32
      %v1618 = vpop.permute.xlu0 %1617
      %1619 = vrot.lane.b32.xlu0 %v1466, 32
      %v1620 = vpop.permute.xlu0 %1619
      %1621 = vrot.lane.b32.xlu0 %v1468, 32
      %v1622 = vpop.permute.xlu0 %1621
      %1623 = vrot.lane.b32.xlu0 %v1470, 32
      %v1624 = vpop.permute.xlu0 %1623
      %1625 = vrot.lane.b32.xlu0 %v1472, 32
      %v1626 = vpop.permute.xlu0 %1625
      %1627 = vrot.lane.b32.xlu0 %v1474, 32
      %v1628 = vpop.permute.xlu0 %1627
      %1629 = vrot.lane.b32.xlu0 %v1476, 32
      %v1630 = vpop.permute.xlu0 %1629
      %1631 = vrot.lane.b32.xlu0 %v1478, 32
      %v1632 = vpop.permute.xlu0 %1631
      %1633 = vrot.lane.b32.xlu0 %v1480, 32
      %v1634 = vpop.permute.xlu0 %1633
      %1635 = vrot.lane.b32.xlu0 %v1482, 32
      %v1636 = vpop.permute.xlu0 %1635
      %1637 = vrot.lane.b32.xlu0 %v1484, 32
      %v1638 = vpop.permute.xlu0 %1637
      %1639 = vrot.lane.b32.xlu0 %v1486, 32
      %v1640 = vpop.permute.xlu0 %1639
      %1641 = vrot.lane.b32.xlu0 %v1488, 32
      %v1642 = vpop.permute.xlu0 %1641
      %1643 = vrot.lane.b32.xlu0 %v1490, 32
      %v1644 = vpop.permute.xlu0 %1643
      %1645 = vrot.lane.b32.xlu0 %v1492, 32
      %v1646 = vpop.permute.xlu0 %1645
      %1647 = vrot.lane.b32.xlu0 %v1494, 32
      %v1648 = vpop.permute.xlu0 %1647
      %1649 = vrot.lane.b32.xlu0 %v1493, 32
      %v1650 = vpop.permute.xlu0 %1649
      %vm1729 = vcmask 523520
      %1730 = vst.msk [vmem:[#allocation2] sm:$0xff] %vm1729, %v1496
      %1731 = vst.msk [vmem:[#allocation2 + $0x18] sm:$0xff] %vm1729, %v1498
      %1732 = vst.msk [vmem:[#allocation2 + $0x30] sm:$0xff] %vm1729, %v1500
      %1733 = vst.msk [vmem:[#allocation2 + $0x48] sm:$0xff] %vm1729, %v1502
      %1734 = vst.msk [vmem:[#allocation2 + $0x60] sm:$0xff] %vm1729, %v1504
      %1735 = vst.msk [vmem:[#allocation2 + $0x78] sm:$0xff] %vm1729, %v1506
      %1736 = vst.msk [vmem:[#allocation2 + $0x90] sm:$0xff] %vm1729, %v1508
      %1737 = vst.msk [vmem:[#allocation2 + $0xa8] sm:$0xff] %vm1729, %v1510
      %1738 = vst.msk [vmem:[#allocation2 + $0xc0] sm:$0xff] %vm1729, %v1512
      %1739 = vst.msk [vmem:[#allocation2 + $0xd8] sm:$0xff] %vm1729, %v1514
      %1740 = vst.msk [vmem:[#allocation2 + $0xf0] sm:$0xff] %vm1729, %v1516
      %1741 = vst.msk [vmem:[#allocation2 + $0x108] sm:$0xff] %vm1729, %v1518
      %1742 = vst.msk [vmem:[#allocation2 + $0x120] sm:$0xff] %vm1729, %v1520
      %1743 = vst.msk [vmem:[#allocation2 + $0x138] sm:$0xff] %vm1729, %v1522
      %1744 = vst.msk [vmem:[#allocation2 + $0x150] sm:$0xff] %vm1729, %v1524
      %1745 = vst.msk [vmem:[#allocation2 + $0x168] sm:$0xff] %vm1729, %v1526
      %1746 = vst.msk [vmem:[#allocation2 + $0x180] sm:$0xff] %vm1729, %v1528
      %1747 = vst.msk [vmem:[#allocation2 + $0x198] sm:$0xff] %vm1729, %v1530
      %1748 = vst.msk [vmem:[#allocation2 + $0x1b0] sm:$0xff] %vm1729, %v1532
      %1749 = vst.msk [vmem:[#allocation2 + $0x1c8] sm:$0xff] %vm1729, %v1534
      %1750 = vst.msk [vmem:[#allocation2 + $0x1e0] sm:$0xff] %vm1729, %v1536
      %1751 = vst.msk [vmem:[#allocation2 + $0x1f8] sm:$0xff] %vm1729, %v1538
      %1752 = vst.msk [vmem:[#allocation2 + $0x210] sm:$0xff] %vm1729, %v1540
      %1753 = vst.msk [vmem:[#allocation2 + $0x228] sm:$0xff] %vm1729, %v1542
      %1754 = vst.msk [vmem:[#allocation2 + $0x240] sm:$0xff] %vm1729, %v1544
      %1755 = vst.msk [vmem:[#allocation2 + $0x258] sm:$0xff] %vm1729, %v1546
      %1756 = vst.msk [vmem:[#allocation2 + $0x270] sm:$0xff] %vm1729, %v1548
      %1757 = vst.msk [vmem:[#allocation2 + $0x288] sm:$0xff] %vm1729, %v1550
      %1758 = vst.msk [vmem:[#allocation2 + $0x2a0] sm:$0xff] %vm1729, %v1552
      %1759 = vst.msk [vmem:[#allocation2 + $0x2b8] sm:$0xff] %vm1729, %v1554
      %1760 = vst.msk [vmem:[#allocation2 + $0x2d0] sm:$0xff] %vm1729, %v1556
      %1761 = vst.msk [vmem:[#allocation2 + $0x2e8] sm:$0xff] %vm1729, %v1558
      %1762 = vst.msk [vmem:[#allocation2 + $0x300] sm:$0xff] %vm1729, %v1560
      %1763 = vst.msk [vmem:[#allocation2 + $0x318] sm:$0xff] %vm1729, %v1562
      %1764 = vst.msk [vmem:[#allocation2 + $0x330] sm:$0xff] %vm1729, %v1564
      %1765 = vst.msk [vmem:[#allocation2 + $0x348] sm:$0xff] %vm1729, %v1566
      %1766 = vst.msk [vmem:[#allocation2 + $0x360] sm:$0xff] %vm1729, %v1568
      %1767 = vst.msk [vmem:[#allocation2 + $0x378] sm:$0xff] %vm1729, %v1570
      %1768 = vst.msk [vmem:[#allocation2 + $0x390] sm:$0xff] %vm1729, %v1572
      %1769 = vst.msk [vmem:[#allocation2 + $0x3a8] sm:$0xff] %vm1729, %v1574
      %1770 = vst.msk [vmem:[#allocation2 + $0x3c0] sm:$0xff] %vm1729, %v1576
      %1771 = vst.msk [vmem:[#allocation2 + $0x3d8] sm:$0xff] %vm1729, %v1578
      %1772 = vst.msk [vmem:[#allocation2 + $0x3f0] sm:$0xff] %vm1729, %v1580
      %1773 = vst.msk [vmem:[#allocation2 + $0x408] sm:$0xff] %vm1729, %v1582
      %1774 = vst.msk [vmem:[#allocation2 + $0x420] sm:$0xff] %vm1729, %v1584
      %1775 = vst.msk [vmem:[#allocation2 + $0x438] sm:$0xff] %vm1729, %v1586
      %1776 = vst.msk [vmem:[#allocation2 + $0x450] sm:$0xff] %vm1729, %v1588
      %1777 = vst.msk [vmem:[#allocation2 + $0x468] sm:$0xff] %vm1729, %v1590
      %1778 = vst.msk [vmem:[#allocation2 + $0x480] sm:$0xff] %vm1729, %v1592
      %1779 = vst.msk [vmem:[#allocation2 + $0x498] sm:$0xff] %vm1729, %v1594
      %1780 = vst.msk [vmem:[#allocation2 + $0x4b0] sm:$0xff] %vm1729, %v1596
      %1781 = vst.msk [vmem:[#allocation2 + $0x4c8] sm:$0xff] %vm1729, %v1598
      %1782 = vst.msk [vmem:[#allocation2 + $0x4e0] sm:$0xff] %vm1729, %v1600
      %1783 = vst.msk [vmem:[#allocation2 + $0x4f8] sm:$0xff] %vm1729, %v1602
      %1784 = vst.msk [vmem:[#allocation2 + $0x510] sm:$0xff] %vm1729, %v1604
      %1785 = vst.msk [vmem:[#allocation2 + $0x528] sm:$0xff] %vm1729, %v1606
      %1786 = vst.msk [vmem:[#allocation2 + $0x540] sm:$0xff] %vm1729, %v1608
      %1787 = vst.msk [vmem:[#allocation2 + $0x558] sm:$0xff] %vm1729, %v1610
      %1788 = vst.msk [vmem:[#allocation2 + $0x570] sm:$0xff] %vm1729, %v1612
      %1789 = vst.msk [vmem:[#allocation2 + $0x588] sm:$0xff] %vm1729, %v1614
      %1790 = vst.msk [vmem:[#allocation2 + $0x5a0] sm:$0xff] %vm1729, %v1616
      %1791 = vst.msk [vmem:[#allocation2 + $0x5b8] sm:$0xff] %vm1729, %v1618
      %1792 = vst.msk [vmem:[#allocation2 + $0x5d0] sm:$0xff] %vm1729, %v1620
      %1793 = vst.msk [vmem:[#allocation2 + $0x5e8] sm:$0xff] %vm1729, %v1622
      %1794 = vst.msk [vmem:[#allocation2 + $0x600] sm:$0xff] %vm1729, %v1624
      %1795 = vst.msk [vmem:[#allocation2 + $0x618] sm:$0xff] %vm1729, %v1626
      %1796 = vst.msk [vmem:[#allocation2 + $0x630] sm:$0xff] %vm1729, %v1628
      %1797 = vst.msk [vmem:[#allocation2 + $0x648] sm:$0xff] %vm1729, %v1630
      %1798 = vst.msk [vmem:[#allocation2 + $0x660] sm:$0xff] %vm1729, %v1632
      %1799 = vst.msk [vmem:[#allocation2 + $0x678] sm:$0xff] %vm1729, %v1634
      %1800 = vst.msk [vmem:[#allocation2 + $0x690] sm:$0xff] %vm1729, %v1636
      %1801 = vst.msk [vmem:[#allocation2 + $0x6a8] sm:$0xff] %vm1729, %v1638
      %1802 = vst.msk [vmem:[#allocation2 + $0x6c0] sm:$0xff] %vm1729, %v1640
      %1803 = vst.msk [vmem:[#allocation2 + $0x6d8] sm:$0xff] %vm1729, %v1642
      %1804 = vst.msk [vmem:[#allocation2 + $0x6f0] sm:$0xff] %vm1729, %v1644
      %1805 = vst.msk [vmem:[#allocation2 + $0x708] sm:$0xff] %vm1729, %v1646
      %1806 = vst.msk [vmem:[#allocation2 + $0x720] sm:$0xff] %vm1729, %v1648
      %vm1807 = vcmask 521472
      %1808 = vst.msk [vmem:[#allocation2 + $0x738] sm:$0x3f] %vm1807, %v1650
      %vm1809 = vcmask 1045504
      %v1810 = vrot.slane %v1096, 2
      %v1811 = vrot.slane %v1097, 2
      %v1812 = vsel %vm1809, %v1810, %v1811
      %v1813 = vrot.slane %v1098, 2
      %v1814 = vsel %vm1809, %v1811, %v1813
      %v1815 = vrot.slane %v1099, 2
      %v1816 = vsel %vm1809, %v1813, %v1815
      %v1817 = vrot.slane %v1100, 2
      %v1818 = vsel %vm1809, %v1815, %v1817
      %v1819 = vrot.slane %v1101, 2
      %v1820 = vsel %vm1809, %v1817, %v1819
      %v1821 = vrot.slane %v1102, 2
      %v1822 = vsel %vm1809, %v1819, %v1821
      %v1823 = vrot.slane %v1103, 2
      %v1824 = vsel %vm1809, %v1821, %v1823
      %v1825 = vrot.slane %v1104, 2
      %v1826 = vsel %vm1809, %v1823, %v1825
      %v1827 = vrot.slane %v1105, 2
      %v1828 = vsel %vm1809, %v1825, %v1827
      %v1829 = vrot.slane %v1106, 2
      %v1830 = vsel %vm1809, %v1827, %v1829
      %v1831 = vrot.slane %v1107, 2
      %v1832 = vsel %vm1809, %v1829, %v1831
      %v1833 = vrot.slane %v1108, 2
      %v1834 = vsel %vm1809, %v1831, %v1833
      %v1835 = vrot.slane %v1109, 2
      %v1836 = vsel %vm1809, %v1833, %v1835
      %v1837 = vrot.slane %v1110, 2
      %v1838 = vsel %vm1809, %v1835, %v1837
      %v1839 = vrot.slane %v1111, 2
      %v1840 = vsel %vm1809, %v1837, %v1839
      %v1841 = vrot.slane %v1112, 2
      %v1842 = vsel %vm1809, %v1839, %v1841
      %v1843 = vrot.slane %v1113, 2
      %v1844 = vsel %vm1809, %v1841, %v1843
      %v1845 = vrot.slane %v1114, 2
      %v1846 = vsel %vm1809, %v1843, %v1845
      %v1847 = vrot.slane %v1115, 2
      %v1848 = vsel %vm1809, %v1845, %v1847
      %v1849 = vrot.slane %v1116, 2
      %v1850 = vsel %vm1809, %v1847, %v1849
      %v1851 = vrot.slane %v1117, 2
      %v1852 = vsel %vm1809, %v1849, %v1851
      %v1853 = vrot.slane %v1118, 2
      %v1854 = vsel %vm1809, %v1851, %v1853
      %v1855 = vrot.slane %v1119, 2
      %v1856 = vsel %vm1809, %v1853, %v1855
      %v1857 = vrot.slane %v1120, 2
      %v1858 = vsel %vm1809, %v1855, %v1857
      %v1859 = vrot.slane %v1121, 2
      %v1860 = vsel %vm1809, %v1857, %v1859
      %v1861 = vrot.slane %v1122, 2
      %v1862 = vsel %vm1809, %v1859, %v1861
      %v1863 = vrot.slane %v1123, 2
      %v1864 = vsel %vm1809, %v1861, %v1863
      %v1865 = vrot.slane %v1124, 2
      %v1866 = vsel %vm1809, %v1863, %v1865
      %v1867 = vrot.slane %v1125, 2
      %v1868 = vsel %vm1809, %v1865, %v1867
      %v1869 = vrot.slane %v1126, 2
      %v1870 = vsel %vm1809, %v1867, %v1869
      %v1871 = vrot.slane %v1127, 2
      %v1872 = vsel %vm1809, %v1869, %v1871
      %v1873 = vrot.slane %v1128, 2
      %v1874 = vsel %vm1809, %v1871, %v1873
      %v1875 = vrot.slane %v1129, 2
      %v1876 = vsel %vm1809, %v1873, %v1875
      %v1877 = vrot.slane %v1130, 2
      %v1878 = vsel %vm1809, %v1875, %v1877
      %v1879 = vrot.slane %v1131, 2
      %v1880 = vsel %vm1809, %v1877, %v1879
      %v1881 = vrot.slane %v1132, 2
      %v1882 = vsel %vm1809, %v1879, %v1881
      %v1883 = vrot.slane %v1133, 2
      %v1884 = vsel %vm1809, %v1881, %v1883
      %v1885 = vrot.slane %v1134, 2
      %v1886 = vsel %vm1809, %v1883, %v1885
      %v1887 = vrot.slane %v1135, 2
      %v1888 = vsel %vm1809, %v1885, %v1887
      %v1889 = vrot.slane %v1136, 2
      %v1890 = vsel %vm1809, %v1887, %v1889
      %v1891 = vrot.slane %v1137, 2
      %v1892 = vsel %vm1809, %v1889, %v1891
      %v1893 = vrot.slane %v1138, 2
      %v1894 = vsel %vm1809, %v1891, %v1893
      %v1895 = vrot.slane %v1139, 2
      %v1896 = vsel %vm1809, %v1893, %v1895
      %v1897 = vrot.slane %v1140, 2
      %v1898 = vsel %vm1809, %v1895, %v1897
      %v1899 = vrot.slane %v1141, 2
      %v1900 = vsel %vm1809, %v1897, %v1899
      %v1901 = vrot.slane %v1142, 2
      %v1902 = vsel %vm1809, %v1899, %v1901
      %v1903 = vrot.slane %v1143, 2
      %v1904 = vsel %vm1809, %v1901, %v1903
      %v1905 = vrot.slane %v1144, 2
      %v1906 = vsel %vm1809, %v1903, %v1905
      %v1907 = vrot.slane %v1145, 2
      %v1908 = vsel %vm1809, %v1905, %v1907
      %v1909 = vrot.slane %v1146, 2
      %v1910 = vsel %vm1809, %v1907, %v1909
      %v1911 = vrot.slane %v1147, 2
      %v1912 = vsel %vm1809, %v1909, %v1911
      %v1913 = vrot.slane %v1148, 2
      %v1914 = vsel %vm1809, %v1911, %v1913
      %v1915 = vrot.slane %v1149, 2
      %v1916 = vsel %vm1809, %v1913, %v1915
      %v1917 = vrot.slane %v1150, 2
      %v1918 = vsel %vm1809, %v1915, %v1917
      %v1919 = vrot.slane %v1151, 2
      %v1920 = vsel %vm1809, %v1917, %v1919
      %v1921 = vrot.slane %v1152, 2
      %v1922 = vsel %vm1809, %v1919, %v1921
      %v1923 = vrot.slane %v1153, 2
      %v1924 = vsel %vm1809, %v1921, %v1923
      %v1925 = vrot.slane %v1154, 2
      %v1926 = vsel %vm1809, %v1923, %v1925
      %v1927 = vrot.slane %v1155, 2
      %v1928 = vsel %vm1809, %v1925, %v1927
      %v1929 = vrot.slane %v1156, 2
      %v1930 = vsel %vm1809, %v1927, %v1929
      %v1931 = vrot.slane %v1157, 2
      %v1932 = vsel %vm1809, %v1929, %v1931
      %v1933 = vrot.slane %v1158, 2
      %v1934 = vsel %vm1809, %v1931, %v1933
      %v1935 = vrot.slane %v1159, 2
      %v1936 = vsel %vm1809, %v1933, %v1935
      %v1937 = vrot.slane %v1160, 2
      %v1938 = vsel %vm1809, %v1935, %v1937
      %v1939 = vrot.slane %v1161, 2
      %v1940 = vsel %vm1809, %v1937, %v1939
      %v1941 = vrot.slane %v1162, 2
      %v1942 = vsel %vm1809, %v1939, %v1941
      %v1943 = vrot.slane %v1163, 2
      %v1944 = vsel %vm1809, %v1941, %v1943
      %v1945 = vrot.slane %v1164, 2
      %v1946 = vsel %vm1809, %v1943, %v1945
      %v1947 = vrot.slane %v1165, 2
      %v1948 = vsel %vm1809, %v1945, %v1947
      %v1949 = vrot.slane %v1166, 2
      %v1950 = vsel %vm1809, %v1947, %v1949
      %v1951 = vrot.slane %v1167, 2
      %v1952 = vsel %vm1809, %v1949, %v1951
      %v1953 = vrot.slane %v1168, 2
      %v1954 = vsel %vm1809, %v1951, %v1953
      %v1955 = vrot.slane %v1169, 2
      %v1956 = vsel %vm1809, %v1953, %v1955
      %v1957 = vrot.slane %v1170, 2
      %v1958 = vsel %vm1809, %v1955, %v1957
      %v1959 = vrot.slane %v1171, 2
      %v1960 = vsel %vm1809, %v1957, %v1959
      %v1961 = vrot.slane %v1172, 2
      %v1962 = vsel %vm1809, %v1959, %v1961
      %v1963 = vrot.slane %v1173, 2
      %v1964 = vsel %vm1809, %v1961, %v1963
      %1965 = vrot.lane.b32.xlu0 %v1812, 64
      %v1966 = vpop.permute.xlu0 %1965
      %1967 = vrot.lane.b32.xlu0 %v1814, 64
      %v1968 = vpop.permute.xlu0 %1967
      %1969 = vrot.lane.b32.xlu0 %v1816, 64
      %v1970 = vpop.permute.xlu0 %1969
      %1971 = vrot.lane.b32.xlu0 %v1818, 64
      %v1972 = vpop.permute.xlu0 %1971
      %1973 = vrot.lane.b32.xlu0 %v1820, 64
      %v1974 = vpop.permute.xlu0 %1973
      %1975 = vrot.lane.b32.xlu0 %v1822, 64
      %v1976 = vpop.permute.xlu0 %1975
      %1977 = vrot.lane.b32.xlu0 %v1824, 64
      %v1978 = vpop.permute.xlu0 %1977
      %1979 = vrot.lane.b32.xlu0 %v1826, 64
      %v1980 = vpop.permute.xlu0 %1979
      %1981 = vrot.lane.b32.xlu0 %v1828, 64
      %v1982 = vpop.permute.xlu0 %1981
      %1983 = vrot.lane.b32.xlu0 %v1830, 64
      %v1984 = vpop.permute.xlu0 %1983
      %1985 = vrot.lane.b32.xlu0 %v1832, 64
      %v1986 = vpop.permute.xlu0 %1985
      %1987 = vrot.lane.b32.xlu0 %v1834, 64
      %v1988 = vpop.permute.xlu0 %1987
      %1989 = vrot.lane.b32.xlu0 %v1836, 64
      %v1990 = vpop.permute.xlu0 %1989
      %1991 = vrot.lane.b32.xlu0 %v1838, 64
      %v1992 = vpop.permute.xlu0 %1991
      %1993 = vrot.lane.b32.xlu0 %v1840, 64
      %v1994 = vpop.permute.xlu0 %1993
      %1995 = vrot.lane.b32.xlu0 %v1842, 64
      %v1996 = vpop.permute.xlu0 %1995
      %1997 = vrot.lane.b32.xlu0 %v1844, 64
      %v1998 = vpop.permute.xlu0 %1997
      %1999 = vrot.lane.b32.xlu0 %v1846, 64
      %v2000 = vpop.permute.xlu0 %1999
      %2001 = vrot.lane.b32.xlu0 %v1848, 64
      %v2002 = vpop.permute.xlu0 %2001
      %2003 = vrot.lane.b32.xlu0 %v1850, 64
      %v2004 = vpop.permute.xlu0 %2003
      %2005 = vrot.lane.b32.xlu0 %v1852, 64
      %v2006 = vpop.permute.xlu0 %2005
      %2007 = vrot.lane.b32.xlu0 %v1854, 64
      %v2008 = vpop.permute.xlu0 %2007
      %2009 = vrot.lane.b32.xlu0 %v1856, 64
      %v2010 = vpop.permute.xlu0 %2009
      %2011 = vrot.lane.b32.xlu0 %v1858, 64
      %v2012 = vpop.permute.xlu0 %2011
      %2013 = vrot.lane.b32.xlu0 %v1860, 64
      %v2014 = vpop.permute.xlu0 %2013
      %2015 = vrot.lane.b32.xlu0 %v1862, 64
      %v2016 = vpop.permute.xlu0 %2015
      %2017 = vrot.lane.b32.xlu0 %v1864, 64
      %v2018 = vpop.permute.xlu0 %2017
      %2019 = vrot.lane.b32.xlu0 %v1866, 64
      %v2020 = vpop.permute.xlu0 %2019
      %2021 = vrot.lane.b32.xlu0 %v1868, 64
      %v2022 = vpop.permute.xlu0 %2021
      %2023 = vrot.lane.b32.xlu0 %v1870, 64
      %v2024 = vpop.permute.xlu0 %2023
      %2025 = vrot.lane.b32.xlu0 %v1872, 64
      %v2026 = vpop.permute.xlu0 %2025
      %2027 = vrot.lane.b32.xlu0 %v1874, 64
      %v2028 = vpop.permute.xlu0 %2027
      %2029 = vrot.lane.b32.xlu0 %v1876, 64
      %v2030 = vpop.permute.xlu0 %2029
      %2031 = vrot.lane.b32.xlu0 %v1878, 64
      %v2032 = vpop.permute.xlu0 %2031
      %2033 = vrot.lane.b32.xlu0 %v1880, 64
      %v2034 = vpop.permute.xlu0 %2033
      %2035 = vrot.lane.b32.xlu0 %v1882, 64
      %v2036 = vpop.permute.xlu0 %2035
      %2037 = vrot.lane.b32.xlu0 %v1884, 64
      %v2038 = vpop.permute.xlu0 %2037
      %2039 = vrot.lane.b32.xlu0 %v1886, 64
      %v2040 = vpop.permute.xlu0 %2039
      %2041 = vrot.lane.b32.xlu0 %v1888, 64
      %v2042 = vpop.permute.xlu0 %2041
      %2043 = vrot.lane.b32.xlu0 %v1890, 64
      %v2044 = vpop.permute.xlu0 %2043
      %2045 = vrot.lane.b32.xlu0 %v1892, 64
      %v2046 = vpop.permute.xlu0 %2045
      %2047 = vrot.lane.b32.xlu0 %v1894, 64
      %v2048 = vpop.permute.xlu0 %2047
      %2049 = vrot.lane.b32.xlu0 %v1896, 64
      %v2050 = vpop.permute.xlu0 %2049
      %2051 = vrot.lane.b32.xlu0 %v1898, 64
      %v2052 = vpop.permute.xlu0 %2051
      %2053 = vrot.lane.b32.xlu0 %v1900, 64
      %v2054 = vpop.permute.xlu0 %2053
      %2055 = vrot.lane.b32.xlu0 %v1902, 64
      %v2056 = vpop.permute.xlu0 %2055
      %2057 = vrot.lane.b32.xlu0 %v1904, 64
      %v2058 = vpop.permute.xlu0 %2057
      %2059 = vrot.lane.b32.xlu0 %v1906, 64
      %v2060 = vpop.permute.xlu0 %2059
      %2061 = vrot.lane.b32.xlu0 %v1908, 64
      %v2062 = vpop.permute.xlu0 %2061
      %2063 = vrot.lane.b32.xlu0 %v1910, 64
      %v2064 = vpop.permute.xlu0 %2063
      %2065 = vrot.lane.b32.xlu0 %v1912, 64
      %v2066 = vpop.permute.xlu0 %2065
      %2067 = vrot.lane.b32.xlu0 %v1914, 64
      %v2068 = vpop.permute.xlu0 %2067
      %2069 = vrot.lane.b32.xlu0 %v1916, 64
      %v2070 = vpop.permute.xlu0 %2069
      %2071 = vrot.lane.b32.xlu0 %v1918, 64
      %v2072 = vpop.permute.xlu0 %2071
      %2073 = vrot.lane.b32.xlu0 %v1920, 64
      %v2074 = vpop.permute.xlu0 %2073
      %2075 = vrot.lane.b32.xlu0 %v1922, 64
      %v2076 = vpop.permute.xlu0 %2075
      %2077 = vrot.lane.b32.xlu0 %v1924, 64
      %v2078 = vpop.permute.xlu0 %2077
      %2079 = vrot.lane.b32.xlu0 %v1926, 64
      %v2080 = vpop.permute.xlu0 %2079
      %2081 = vrot.lane.b32.xlu0 %v1928, 64
      %v2082 = vpop.permute.xlu0 %2081
      %2083 = vrot.lane.b32.xlu0 %v1930, 64
      %v2084 = vpop.permute.xlu0 %2083
      %2085 = vrot.lane.b32.xlu0 %v1932, 64
      %v2086 = vpop.permute.xlu0 %2085
      %2087 = vrot.lane.b32.xlu0 %v1934, 64
      %v2088 = vpop.permute.xlu0 %2087
      %2089 = vrot.lane.b32.xlu0 %v1936, 64
      %v2090 = vpop.permute.xlu0 %2089
      %2091 = vrot.lane.b32.xlu0 %v1938, 64
      %v2092 = vpop.permute.xlu0 %2091
      %2093 = vrot.lane.b32.xlu0 %v1940, 64
      %v2094 = vpop.permute.xlu0 %2093
      %2095 = vrot.lane.b32.xlu0 %v1942, 64
      %v2096 = vpop.permute.xlu0 %2095
      %2097 = vrot.lane.b32.xlu0 %v1944, 64
      %v2098 = vpop.permute.xlu0 %2097
      %2099 = vrot.lane.b32.xlu0 %v1946, 64
      %v2100 = vpop.permute.xlu0 %2099
      %2101 = vrot.lane.b32.xlu0 %v1948, 64
      %v2102 = vpop.permute.xlu0 %2101
      %2103 = vrot.lane.b32.xlu0 %v1950, 64
      %v2104 = vpop.permute.xlu0 %2103
      %2105 = vrot.lane.b32.xlu0 %v1952, 64
      %v2106 = vpop.permute.xlu0 %2105
      %2107 = vrot.lane.b32.xlu0 %v1954, 64
      %v2108 = vpop.permute.xlu0 %2107
      %2109 = vrot.lane.b32.xlu0 %v1956, 64
      %v2110 = vpop.permute.xlu0 %2109
      %2111 = vrot.lane.b32.xlu0 %v1958, 64
      %v2112 = vpop.permute.xlu0 %2111
      %2113 = vrot.lane.b32.xlu0 %v1960, 64
      %v2114 = vpop.permute.xlu0 %2113
      %2115 = vrot.lane.b32.xlu0 %v1962, 64
      %v2116 = vpop.permute.xlu0 %2115
      %2117 = vrot.lane.b32.xlu0 %v1964, 64
      %v2118 = vpop.permute.xlu0 %2117
      %2119 = vrot.lane.b32.xlu0 %v1963, 64
      %v2120 = vpop.permute.xlu0 %2119
      %vm2199 = vcmask 785920
      %2200 = vst.msk [vmem:[#allocation2] sm:$0xff] %vm2199, %v1966
      %2201 = vst.msk [vmem:[#allocation2 + $0x18] sm:$0xff] %vm2199, %v1968
      %2202 = vst.msk [vmem:[#allocation2 + $0x30] sm:$0xff] %vm2199, %v1970
      %2203 = vst.msk [vmem:[#allocation2 + $0x48] sm:$0xff] %vm2199, %v1972
      %2204 = vst.msk [vmem:[#allocation2 + $0x60] sm:$0xff] %vm2199, %v1974
      %2205 = vst.msk [vmem:[#allocation2 + $0x78] sm:$0xff] %vm2199, %v1976
      %2206 = vst.msk [vmem:[#allocation2 + $0x90] sm:$0xff] %vm2199, %v1978
      %2207 = vst.msk [vmem:[#allocation2 + $0xa8] sm:$0xff] %vm2199, %v1980
      %2208 = vst.msk [vmem:[#allocation2 + $0xc0] sm:$0xff] %vm2199, %v1982
      %2209 = vst.msk [vmem:[#allocation2 + $0xd8] sm:$0xff] %vm2199, %v1984
      %2210 = vst.msk [vmem:[#allocation2 + $0xf0] sm:$0xff] %vm2199, %v1986
      %2211 = vst.msk [vmem:[#allocation2 + $0x108] sm:$0xff] %vm2199, %v1988
      %2212 = vst.msk [vmem:[#allocation2 + $0x120] sm:$0xff] %vm2199, %v1990
      %2213 = vst.msk [vmem:[#allocation2 + $0x138] sm:$0xff] %vm2199, %v1992
      %2214 = vst.msk [vmem:[#allocation2 + $0x150] sm:$0xff] %vm2199, %v1994
      %2215 = vst.msk [vmem:[#allocation2 + $0x168] sm:$0xff] %vm2199, %v1996
      %2216 = vst.msk [vmem:[#allocation2 + $0x180] sm:$0xff] %vm2199, %v1998
      %2217 = vst.msk [vmem:[#allocation2 + $0x198] sm:$0xff] %vm2199, %v2000
      %2218 = vst.msk [vmem:[#allocation2 + $0x1b0] sm:$0xff] %vm2199, %v2002
      %2219 = vst.msk [vmem:[#allocation2 + $0x1c8] sm:$0xff] %vm2199, %v2004
      %2220 = vst.msk [vmem:[#allocation2 + $0x1e0] sm:$0xff] %vm2199, %v2006
      %2221 = vst.msk [vmem:[#allocation2 + $0x1f8] sm:$0xff] %vm2199, %v2008
      %2222 = vst.msk [vmem:[#allocation2 + $0x210] sm:$0xff] %vm2199, %v2010
      %2223 = vst.msk [vmem:[#allocation2 + $0x228] sm:$0xff] %vm2199, %v2012
      %2224 = vst.msk [vmem:[#allocation2 + $0x240] sm:$0xff] %vm2199, %v2014
      %2225 = vst.msk [vmem:[#allocation2 + $0x258] sm:$0xff] %vm2199, %v2016
      %2226 = vst.msk [vmem:[#allocation2 + $0x270] sm:$0xff] %vm2199, %v2018
      %2227 = vst.msk [vmem:[#allocation2 + $0x288] sm:$0xff] %vm2199, %v2020
      %2228 = vst.msk [vmem:[#allocation2 + $0x2a0] sm:$0xff] %vm2199, %v2022
      %2229 = vst.msk [vmem:[#allocation2 + $0x2b8] sm:$0xff] %vm2199, %v2024
      %2230 = vst.msk [vmem:[#allocation2 + $0x2d0] sm:$0xff] %vm2199, %v2026
      %2231 = vst.msk [vmem:[#allocation2 + $0x2e8] sm:$0xff] %vm2199, %v2028
      %2232 = vst.msk [vmem:[#allocation2 + $0x300] sm:$0xff] %vm2199, %v2030
      %2233 = vst.msk [vmem:[#allocation2 + $0x318] sm:$0xff] %vm2199, %v2032
      %2234 = vst.msk [vmem:[#allocation2 + $0x330] sm:$0xff] %vm2199, %v2034
      %2235 = vst.msk [vmem:[#allocation2 + $0x348] sm:$0xff] %vm2199, %v2036
      %2236 = vst.msk [vmem:[#allocation2 + $0x360] sm:$0xff] %vm2199, %v2038
      %2237 = vst.msk [vmem:[#allocation2 + $0x378] sm:$0xff] %vm2199, %v2040
      %2238 = vst.msk [vmem:[#allocation2 + $0x390] sm:$0xff] %vm2199, %v2042
      %2239 = vst.msk [vmem:[#allocation2 + $0x3a8] sm:$0xff] %vm2199, %v2044
      %2240 = vst.msk [vmem:[#allocation2 + $0x3c0] sm:$0xff] %vm2199, %v2046
      %2241 = vst.msk [vmem:[#allocation2 + $0x3d8] sm:$0xff] %vm2199, %v2048
      %2242 = vst.msk [vmem:[#allocation2 + $0x3f0] sm:$0xff] %vm2199, %v2050
      %2243 = vst.msk [vmem:[#allocation2 + $0x408] sm:$0xff] %vm2199, %v2052
      %2244 = vst.msk [vmem:[#allocation2 + $0x420] sm:$0xff] %vm2199, %v2054
      %2245 = vst.msk [vmem:[#allocation2 + $0x438] sm:$0xff] %vm2199, %v2056
      %2246 = vst.msk [vmem:[#allocation2 + $0x450] sm:$0xff] %vm2199, %v2058
      %2247 = vst.msk [vmem:[#allocation2 + $0x468] sm:$0xff] %vm2199, %v2060
      %2248 = vst.msk [vmem:[#allocation2 + $0x480] sm:$0xff] %vm2199, %v2062
      %2249 = vst.msk [vmem:[#allocation2 + $0x498] sm:$0xff] %vm2199, %v2064
      %2250 = vst.msk [vmem:[#allocation2 + $0x4b0] sm:$0xff] %vm2199, %v2066
      %2251 = vst.msk [vmem:[#allocation2 + $0x4c8] sm:$0xff] %vm2199, %v2068
      %2252 = vst.msk [vmem:[#allocation2 + $0x4e0] sm:$0xff] %vm2199, %v2070
      %2253 = vst.msk [vmem:[#allocation2 + $0x4f8] sm:$0xff] %vm2199, %v2072
      %2254 = vst.msk [vmem:[#allocation2 + $0x510] sm:$0xff] %vm2199, %v2074
      %2255 = vst.msk [vmem:[#allocation2 + $0x528] sm:$0xff] %vm2199, %v2076
      %2256 = vst.msk [vmem:[#allocation2 + $0x540] sm:$0xff] %vm2199, %v2078
      %2257 = vst.msk [vmem:[#allocation2 + $0x558] sm:$0xff] %vm2199, %v2080
      %2258 = vst.msk [vmem:[#allocation2 + $0x570] sm:$0xff] %vm2199, %v2082
      %2259 = vst.msk [vmem:[#allocation2 + $0x588] sm:$0xff] %vm2199, %v2084
      %2260 = vst.msk [vmem:[#allocation2 + $0x5a0] sm:$0xff] %vm2199, %v2086
      %2261 = vst.msk [vmem:[#allocation2 + $0x5b8] sm:$0xff] %vm2199, %v2088
      %2262 = vst.msk [vmem:[#allocation2 + $0x5d0] sm:$0xff] %vm2199, %v2090
      %2263 = vst.msk [vmem:[#allocation2 + $0x5e8] sm:$0xff] %vm2199, %v2092
      %2264 = vst.msk [vmem:[#allocation2 + $0x600] sm:$0xff] %vm2199, %v2094
      %2265 = vst.msk [vmem:[#allocation2 + $0x618] sm:$0xff] %vm2199, %v2096
      %2266 = vst.msk [vmem:[#allocation2 + $0x630] sm:$0xff] %vm2199, %v2098
      %2267 = vst.msk [vmem:[#allocation2 + $0x648] sm:$0xff] %vm2199, %v2100
      %2268 = vst.msk [vmem:[#allocation2 + $0x660] sm:$0xff] %vm2199, %v2102
      %2269 = vst.msk [vmem:[#allocation2 + $0x678] sm:$0xff] %vm2199, %v2104
      %2270 = vst.msk [vmem:[#allocation2 + $0x690] sm:$0xff] %vm2199, %v2106
      %2271 = vst.msk [vmem:[#allocation2 + $0x6a8] sm:$0xff] %vm2199, %v2108
      %2272 = vst.msk [vmem:[#allocation2 + $0x6c0] sm:$0xff] %vm2199, %v2110
      %2273 = vst.msk [vmem:[#allocation2 + $0x6d8] sm:$0xff] %vm2199, %v2112
      %2274 = vst.msk [vmem:[#allocation2 + $0x6f0] sm:$0xff] %vm2199, %v2114
      %2275 = vst.msk [vmem:[#allocation2 + $0x708] sm:$0xff] %vm2199, %v2116
      %2276 = vst.msk [vmem:[#allocation2 + $0x720] sm:$0xff] %vm2199, %v2118
      %vm2277 = vcmask 783872
      %2278 = vst.msk [vmem:[#allocation2 + $0x738] sm:$0x3f] %vm2277, %v2120
      %v2282 = vrot.slane %v1174, 2
      %v2283 = vsel %vm1809, %v1963, %v2282
      %v2284 = vrot.slane %v1175, 2
      %v2285 = vsel %vm1809, %v2282, %v2284
      %v2286 = vrot.slane %v1176, 2
      %v2287 = vsel %vm1809, %v2284, %v2286
      %2288 = vrot.lane.b32.xlu0 %v1818, 96
      %v2289 = vpop.permute.xlu0 %2288
      %2290 = vrot.lane.b32.xlu0 %v1820, 96
      %v2291 = vpop.permute.xlu0 %2290
      %2292 = vrot.lane.b32.xlu0 %v1822, 96
      %v2293 = vpop.permute.xlu0 %2292
      %2294 = vrot.lane.b32.xlu0 %v1824, 96
      %v2295 = vpop.permute.xlu0 %2294
      %2296 = vrot.lane.b32.xlu0 %v1826, 96
      %v2297 = vpop.permute.xlu0 %2296
      %2298 = vrot.lane.b32.xlu0 %v1828, 96
      %v2299 = vpop.permute.xlu0 %2298
      %2300 = vrot.lane.b32.xlu0 %v1830, 96
      %v2301 = vpop.permute.xlu0 %2300
      %2302 = vrot.lane.b32.xlu0 %v1832, 96
      %v2303 = vpop.permute.xlu0 %2302
      %2304 = vrot.lane.b32.xlu0 %v1834, 96
      %v2305 = vpop.permute.xlu0 %2304
      %2306 = vrot.lane.b32.xlu0 %v1836, 96
      %v2307 = vpop.permute.xlu0 %2306
      %2308 = vrot.lane.b32.xlu0 %v1838, 96
      %v2309 = vpop.permute.xlu0 %2308
      %2310 = vrot.lane.b32.xlu0 %v1840, 96
      %v2311 = vpop.permute.xlu0 %2310
      %2312 = vrot.lane.b32.xlu0 %v1842, 96
      %v2313 = vpop.permute.xlu0 %2312
      %2314 = vrot.lane.b32.xlu0 %v1844, 96
      %v2315 = vpop.permute.xlu0 %2314
      %2316 = vrot.lane.b32.xlu0 %v1846, 96
      %v2317 = vpop.permute.xlu0 %2316
      %2318 = vrot.lane.b32.xlu0 %v1848, 96
      %v2319 = vpop.permute.xlu0 %2318
      %2320 = vrot.lane.b32.xlu0 %v1850, 96
      %v2321 = vpop.permute.xlu0 %2320
      %2322 = vrot.lane.b32.xlu0 %v1852, 96
      %v2323 = vpop.permute.xlu0 %2322
      %2324 = vrot.lane.b32.xlu0 %v1854, 96
      %v2325 = vpop.permute.xlu0 %2324
      %2326 = vrot.lane.b32.xlu0 %v1856, 96
      %v2327 = vpop.permute.xlu0 %2326
      %2328 = vrot.lane.b32.xlu0 %v1858, 96
      %v2329 = vpop.permute.xlu0 %2328
      %2330 = vrot.lane.b32.xlu0 %v1860, 96
      %v2331 = vpop.permute.xlu0 %2330
      %2332 = vrot.lane.b32.xlu0 %v1862, 96
      %v2333 = vpop.permute.xlu0 %2332
      %2334 = vrot.lane.b32.xlu0 %v1864, 96
      %v2335 = vpop.permute.xlu0 %2334
      %2336 = vrot.lane.b32.xlu0 %v1866, 96
      %v2337 = vpop.permute.xlu0 %2336
      %2338 = vrot.lane.b32.xlu0 %v1868, 96
      %v2339 = vpop.permute.xlu0 %2338
      %2340 = vrot.lane.b32.xlu0 %v1870, 96
      %v2341 = vpop.permute.xlu0 %2340
      %2342 = vrot.lane.b32.xlu0 %v1872, 96
      %v2343 = vpop.permute.xlu0 %2342
      %2344 = vrot.lane.b32.xlu0 %v1874, 96
      %v2345 = vpop.permute.xlu0 %2344
      %2346 = vrot.lane.b32.xlu0 %v1876, 96
      %v2347 = vpop.permute.xlu0 %2346
      %2348 = vrot.lane.b32.xlu0 %v1878, 96
      %v2349 = vpop.permute.xlu0 %2348
      %2350 = vrot.lane.b32.xlu0 %v1880, 96
      %v2351 = vpop.permute.xlu0 %2350
      %2352 = vrot.lane.b32.xlu0 %v1882, 96
      %v2353 = vpop.permute.xlu0 %2352
      %2354 = vrot.lane.b32.xlu0 %v1884, 96
      %v2355 = vpop.permute.xlu0 %2354
      %2356 = vrot.lane.b32.xlu0 %v1886, 96
      %v2357 = vpop.permute.xlu0 %2356
      %2358 = vrot.lane.b32.xlu0 %v1888, 96
      %v2359 = vpop.permute.xlu0 %2358
      %2360 = vrot.lane.b32.xlu0 %v1890, 96
      %v2361 = vpop.permute.xlu0 %2360
      %2362 = vrot.lane.b32.xlu0 %v1892, 96
      %v2363 = vpop.permute.xlu0 %2362
      %2364 = vrot.lane.b32.xlu0 %v1894, 96
      %v2365 = vpop.permute.xlu0 %2364
      %2366 = vrot.lane.b32.xlu0 %v1896, 96
      %v2367 = vpop.permute.xlu0 %2366
      %2368 = vrot.lane.b32.xlu0 %v1898, 96
      %v2369 = vpop.permute.xlu0 %2368
      %2370 = vrot.lane.b32.xlu0 %v1900, 96
      %v2371 = vpop.permute.xlu0 %2370
      %2372 = vrot.lane.b32.xlu0 %v1902, 96
      %v2373 = vpop.permute.xlu0 %2372
      %2374 = vrot.lane.b32.xlu0 %v1904, 96
      %v2375 = vpop.permute.xlu0 %2374
      %2376 = vrot.lane.b32.xlu0 %v1906, 96
      %v2377 = vpop.permute.xlu0 %2376
      %2378 = vrot.lane.b32.xlu0 %v1908, 96
      %v2379 = vpop.permute.xlu0 %2378
      %2380 = vrot.lane.b32.xlu0 %v1910, 96
      %v2381 = vpop.permute.xlu0 %2380
      %2382 = vrot.lane.b32.xlu0 %v1912, 96
      %v2383 = vpop.permute.xlu0 %2382
      %2384 = vrot.lane.b32.xlu0 %v1914, 96
      %v2385 = vpop.permute.xlu0 %2384
      %2386 = vrot.lane.b32.xlu0 %v1916, 96
      %v2387 = vpop.permute.xlu0 %2386
      %2388 = vrot.lane.b32.xlu0 %v1918, 96
      %v2389 = vpop.permute.xlu0 %2388
      %2390 = vrot.lane.b32.xlu0 %v1920, 96
      %v2391 = vpop.permute.xlu0 %2390
      %2392 = vrot.lane.b32.xlu0 %v1922, 96
      %v2393 = vpop.permute.xlu0 %2392
      %2394 = vrot.lane.b32.xlu0 %v1924, 96
      %v2395 = vpop.permute.xlu0 %2394
      %2396 = vrot.lane.b32.xlu0 %v1926, 96
      %v2397 = vpop.permute.xlu0 %2396
      %2398 = vrot.lane.b32.xlu0 %v1928, 96
      %v2399 = vpop.permute.xlu0 %2398
      %2400 = vrot.lane.b32.xlu0 %v1930, 96
      %v2401 = vpop.permute.xlu0 %2400
      %2402 = vrot.lane.b32.xlu0 %v1932, 96
      %v2403 = vpop.permute.xlu0 %2402
      %2404 = vrot.lane.b32.xlu0 %v1934, 96
      %v2405 = vpop.permute.xlu0 %2404
      %2406 = vrot.lane.b32.xlu0 %v1936, 96
      %v2407 = vpop.permute.xlu0 %2406
      %2408 = vrot.lane.b32.xlu0 %v1938, 96
      %v2409 = vpop.permute.xlu0 %2408
      %2410 = vrot.lane.b32.xlu0 %v1940, 96
      %v2411 = vpop.permute.xlu0 %2410
      %2412 = vrot.lane.b32.xlu0 %v1942, 96
      %v2413 = vpop.permute.xlu0 %2412
      %2414 = vrot.lane.b32.xlu0 %v1944, 96
      %v2415 = vpop.permute.xlu0 %2414
      %2416 = vrot.lane.b32.xlu0 %v1946, 96
      %v2417 = vpop.permute.xlu0 %2416
      %2418 = vrot.lane.b32.xlu0 %v1948, 96
      %v2419 = vpop.permute.xlu0 %2418
      %2420 = vrot.lane.b32.xlu0 %v1950, 96
      %v2421 = vpop.permute.xlu0 %2420
      %2422 = vrot.lane.b32.xlu0 %v1952, 96
      %v2423 = vpop.permute.xlu0 %2422
      %2424 = vrot.lane.b32.xlu0 %v1954, 96
      %v2425 = vpop.permute.xlu0 %2424
      %2426 = vrot.lane.b32.xlu0 %v1956, 96
      %v2427 = vpop.permute.xlu0 %2426
      %2428 = vrot.lane.b32.xlu0 %v1958, 96
      %v2429 = vpop.permute.xlu0 %2428
      %2430 = vrot.lane.b32.xlu0 %v1960, 96
      %v2431 = vpop.permute.xlu0 %2430
      %2432 = vrot.lane.b32.xlu0 %v1962, 96
      %v2433 = vpop.permute.xlu0 %2432
      %2434 = vrot.lane.b32.xlu0 %v1964, 96
      %v2435 = vpop.permute.xlu0 %2434
      %2436 = vrot.lane.b32.xlu0 %v2283, 96
      %v2437 = vpop.permute.xlu0 %2436
      %2438 = vrot.lane.b32.xlu0 %v2285, 96
      %v2439 = vpop.permute.xlu0 %2438
      %2440 = vrot.lane.b32.xlu0 %v2287, 96
      %v2441 = vpop.permute.xlu0 %2440
      %2442 = vrot.lane.b32.xlu0 %v2286, 96
      %v2443 = vpop.permute.xlu0 %2442
      %vm2522 = vcmask 1048320
      %2523 = vst.msk [vmem:[#allocation2] sm:$0xff] %vm2522, %v2289
      %2524 = vst.msk [vmem:[#allocation2 + $0x18] sm:$0xff] %vm2522, %v2291
      %2525 = vst.msk [vmem:[#allocation2 + $0x30] sm:$0xff] %vm2522, %v2293
      %2526 = vst.msk [vmem:[#allocation2 + $0x48] sm:$0xff] %vm2522, %v2295
      %2527 = vst.msk [vmem:[#allocation2 + $0x60] sm:$0xff] %vm2522, %v2297
      %2528 = vst.msk [vmem:[#allocation2 + $0x78] sm:$0xff] %vm2522, %v2299
      %2529 = vst.msk [vmem:[#allocation2 + $0x90] sm:$0xff] %vm2522, %v2301
      %2530 = vst.msk [vmem:[#allocation2 + $0xa8] sm:$0xff] %vm2522, %v2303
      %2531 = vst.msk [vmem:[#allocation2 + $0xc0] sm:$0xff] %vm2522, %v2305
      %2532 = vst.msk [vmem:[#allocation2 + $0xd8] sm:$0xff] %vm2522, %v2307
      %2533 = vst.msk [vmem:[#allocation2 + $0xf0] sm:$0xff] %vm2522, %v2309
      %2534 = vst.msk [vmem:[#allocation2 + $0x108] sm:$0xff] %vm2522, %v2311
      %2535 = vst.msk [vmem:[#allocation2 + $0x120] sm:$0xff] %vm2522, %v2313
      %2536 = vst.msk [vmem:[#allocation2 + $0x138] sm:$0xff] %vm2522, %v2315
      %2537 = vst.msk [vmem:[#allocation2 + $0x150] sm:$0xff] %vm2522, %v2317
      %2538 = vst.msk [vmem:[#allocation2 + $0x168] sm:$0xff] %vm2522, %v2319
      %2539 = vst.msk [vmem:[#allocation2 + $0x180] sm:$0xff] %vm2522, %v2321
      %2540 = vst.msk [vmem:[#allocation2 + $0x198] sm:$0xff] %vm2522, %v2323
      %2541 = vst.msk [vmem:[#allocation2 + $0x1b0] sm:$0xff] %vm2522, %v2325
      %2542 = vst.msk [vmem:[#allocation2 + $0x1c8] sm:$0xff] %vm2522, %v2327
      %2543 = vst.msk [vmem:[#allocation2 + $0x1e0] sm:$0xff] %vm2522, %v2329
      %2544 = vst.msk [vmem:[#allocation2 + $0x1f8] sm:$0xff] %vm2522, %v2331
      %2545 = vst.msk [vmem:[#allocation2 + $0x210] sm:$0xff] %vm2522, %v2333
      %2546 = vst.msk [vmem:[#allocation2 + $0x228] sm:$0xff] %vm2522, %v2335
      %2547 = vst.msk [vmem:[#allocation2 + $0x240] sm:$0xff] %vm2522, %v2337
      %2548 = vst.msk [vmem:[#allocation2 + $0x258] sm:$0xff] %vm2522, %v2339
      %2549 = vst.msk [vmem:[#allocation2 + $0x270] sm:$0xff] %vm2522, %v2341
      %2550 = vst.msk [vmem:[#allocation2 + $0x288] sm:$0xff] %vm2522, %v2343
      %2551 = vst.msk [vmem:[#allocation2 + $0x2a0] sm:$0xff] %vm2522, %v2345
      %2552 = vst.msk [vmem:[#allocation2 + $0x2b8] sm:$0xff] %vm2522, %v2347
      %2553 = vst.msk [vmem:[#allocation2 + $0x2d0] sm:$0xff] %vm2522, %v2349
      %2554 = vst.msk [vmem:[#allocation2 + $0x2e8] sm:$0xff] %vm2522, %v2351
      %2555 = vst.msk [vmem:[#allocation2 + $0x300] sm:$0xff] %vm2522, %v2353
      %2556 = vst.msk [vmem:[#allocation2 + $0x318] sm:$0xff] %vm2522, %v2355
      %2557 = vst.msk [vmem:[#allocation2 + $0x330] sm:$0xff] %vm2522, %v2357
      %2558 = vst.msk [vmem:[#allocation2 + $0x348] sm:$0xff] %vm2522, %v2359
      %2559 = vst.msk [vmem:[#allocation2 + $0x360] sm:$0xff] %vm2522, %v2361
      %2560 = vst.msk [vmem:[#allocation2 + $0x378] sm:$0xff] %vm2522, %v2363
      %2561 = vst.msk [vmem:[#allocation2 + $0x390] sm:$0xff] %vm2522, %v2365
      %2562 = vst.msk [vmem:[#allocation2 + $0x3a8] sm:$0xff] %vm2522, %v2367
      %2563 = vst.msk [vmem:[#allocation2 + $0x3c0] sm:$0xff] %vm2522, %v2369
      %2564 = vst.msk [vmem:[#allocation2 + $0x3d8] sm:$0xff] %vm2522, %v2371
      %2565 = vst.msk [vmem:[#allocation2 + $0x3f0] sm:$0xff] %vm2522, %v2373
      %2566 = vst.msk [vmem:[#allocation2 + $0x408] sm:$0xff] %vm2522, %v2375
      %2567 = vst.msk [vmem:[#allocation2 + $0x420] sm:$0xff] %vm2522, %v2377
      %2568 = vst.msk [vmem:[#allocation2 + $0x438] sm:$0xff] %vm2522, %v2379
      %2569 = vst.msk [vmem:[#allocation2 + $0x450] sm:$0xff] %vm2522, %v2381
      %2570 = vst.msk [vmem:[#allocation2 + $0x468] sm:$0xff] %vm2522, %v2383
      %2571 = vst.msk [vmem:[#allocation2 + $0x480] sm:$0xff] %vm2522, %v2385
      %2572 = vst.msk [vmem:[#allocation2 + $0x498] sm:$0xff] %vm2522, %v2387
      %2573 = vst.msk [vmem:[#allocation2 + $0x4b0] sm:$0xff] %vm2522, %v2389
      %2574 = vst.msk [vmem:[#allocation2 + $0x4c8] sm:$0xff] %vm2522, %v2391
      %2575 = vst.msk [vmem:[#allocation2 + $0x4e0] sm:$0xff] %vm2522, %v2393
      %2576 = vst.msk [vmem:[#allocation2 + $0x4f8] sm:$0xff] %vm2522, %v2395
      %2577 = vst.msk [vmem:[#allocation2 + $0x510] sm:$0xff] %vm2522, %v2397
      %2578 = vst.msk [vmem:[#allocation2 + $0x528] sm:$0xff] %vm2522, %v2399
      %2579 = vst.msk [vmem:[#allocation2 + $0x540] sm:$0xff] %vm2522, %v2401
      %2580 = vst.msk [vmem:[#allocation2 + $0x558] sm:$0xff] %vm2522, %v2403
      %2581 = vst.msk [vmem:[#allocation2 + $0x570] sm:$0xff] %vm2522, %v2405
      %2582 = vst.msk [vmem:[#allocation2 + $0x588] sm:$0xff] %vm2522, %v2407
      %2583 = vst.msk [vmem:[#allocation2 + $0x5a0] sm:$0xff] %vm2522, %v2409
      %2584 = vst.msk [vmem:[#allocation2 + $0x5b8] sm:$0xff] %vm2522, %v2411
      %2585 = vst.msk [vmem:[#allocation2 + $0x5d0] sm:$0xff] %vm2522, %v2413
      %2586 = vst.msk [vmem:[#allocation2 + $0x5e8] sm:$0xff] %vm2522, %v2415
      %2587 = vst.msk [vmem:[#allocation2 + $0x600] sm:$0xff] %vm2522, %v2417
      %2588 = vst.msk [vmem:[#allocation2 + $0x618] sm:$0xff] %vm2522, %v2419
      %2589 = vst.msk [vmem:[#allocation2 + $0x630] sm:$0xff] %vm2522, %v2421
      %2590 = vst.msk [vmem:[#allocation2 + $0x648] sm:$0xff] %vm2522, %v2423
      %2591 = vst.msk [vmem:[#allocation2 + $0x660] sm:$0xff] %vm2522, %v2425
      %2592 = vst.msk [vmem:[#allocation2 + $0x678] sm:$0xff] %vm2522, %v2427
      %2593 = vst.msk [vmem:[#allocation2 + $0x690] sm:$0xff] %vm2522, %v2429
      %2594 = vst.msk [vmem:[#allocation2 + $0x6a8] sm:$0xff] %vm2522, %v2431
      %2595 = vst.msk [vmem:[#allocation2 + $0x6c0] sm:$0xff] %vm2522, %v2433
      %2596 = vst.msk [vmem:[#allocation2 + $0x6d8] sm:$0xff] %vm2522, %v2435
      %2597 = vst.msk [vmem:[#allocation2 + $0x6f0] sm:$0xff] %vm2522, %v2437
      %2598 = vst.msk [vmem:[#allocation2 + $0x708] sm:$0xff] %vm2522, %v2439
      %2599 = vst.msk [vmem:[#allocation2 + $0x720] sm:$0xff] %vm2522, %v2441
      %vm2600 = vcmask 1046272
      %2601 = vst.msk [vmem:[#allocation2 + $0x738] sm:$0x3f] %vm2600, %v2443
      %vm2603 = vcmask 1044480
      %v2604 = vrot.slane %v1099, 3
      %v2605 = vrot.slane %v1100, 3
      %v2606 = vsel %vm2603, %v2604, %v2605
      %v2607 = vrot.slane %v1101, 3
      %v2608 = vsel %vm2603, %v2605, %v2607
      %v2609 = vrot.slane %v1102, 3
      %v2610 = vsel %vm2603, %v2607, %v2609
      %v2611 = vrot.slane %v1103, 3
      %v2612 = vsel %vm2603, %v2609, %v2611
      %v2613 = vrot.slane %v1104, 3
      %v2614 = vsel %vm2603, %v2611, %v2613
      %v2615 = vrot.slane %v1105, 3
      %v2616 = vsel %vm2603, %v2613, %v2615
      %v2617 = vrot.slane %v1106, 3
      %v2618 = vsel %vm2603, %v2615, %v2617
      %v2619 = vrot.slane %v1107, 3
      %v2620 = vsel %vm2603, %v2617, %v2619
      %v2621 = vrot.slane %v1108, 3
      %v2622 = vsel %vm2603, %v2619, %v2621
      %v2623 = vrot.slane %v1109, 3
      %v2624 = vsel %vm2603, %v2621, %v2623
      %v2625 = vrot.slane %v1110, 3
      %v2626 = vsel %vm2603, %v2623, %v2625
      %v2627 = vrot.slane %v1111, 3
      %v2628 = vsel %vm2603, %v2625, %v2627
      %v2629 = vrot.slane %v1112, 3
      %v2630 = vsel %vm2603, %v2627, %v2629
      %v2631 = vrot.slane %v1113, 3
      %v2632 = vsel %vm2603, %v2629, %v2631
      %v2633 = vrot.slane %v1114, 3
      %v2634 = vsel %vm2603, %v2631, %v2633
      %v2635 = vrot.slane %v1115, 3
      %v2636 = vsel %vm2603, %v2633, %v2635
      %v2637 = vrot.slane %v1116, 3
      %v2638 = vsel %vm2603, %v2635, %v2637
      %v2639 = vrot.slane %v1117, 3
      %v2640 = vsel %vm2603, %v2637, %v2639
      %v2641 = vrot.slane %v1118, 3
      %v2642 = vsel %vm2603, %v2639, %v2641
      %v2643 = vrot.slane %v1119, 3
      %v2644 = vsel %vm2603, %v2641, %v2643
      %v2645 = vrot.slane %v1120, 3
      %v2646 = vsel %vm2603, %v2643, %v2645
      %v2647 = vrot.slane %v1121, 3
      %v2648 = vsel %vm2603, %v2645, %v2647
      %v2649 = vrot.slane %v1122, 3
      %v2650 = vsel %vm2603, %v2647, %v2649
      %v2651 = vrot.slane %v1123, 3
      %v2652 = vsel %vm2603, %v2649, %v2651
      %v2653 = vrot.slane %v1124, 3
      %v2654 = vsel %vm2603, %v2651, %v2653
      %v2655 = vrot.slane %v1125, 3
      %v2656 = vsel %vm2603, %v2653, %v2655
      %v2657 = vrot.slane %v1126, 3
      %v2658 = vsel %vm2603, %v2655, %v2657
      %v2659 = vrot.slane %v1127, 3
      %v2660 = vsel %vm2603, %v2657, %v2659
      %v2661 = vrot.slane %v1128, 3
      %v2662 = vsel %vm2603, %v2659, %v2661
      %v2663 = vrot.slane %v1129, 3
      %v2664 = vsel %vm2603, %v2661, %v2663
      %v2665 = vrot.slane %v1130, 3
      %v2666 = vsel %vm2603, %v2663, %v2665
      %v2667 = vrot.slane %v1131, 3
      %v2668 = vsel %vm2603, %v2665, %v2667
      %v2669 = vrot.slane %v1132, 3
      %v2670 = vsel %vm2603, %v2667, %v2669
      %v2671 = vrot.slane %v1133, 3
      %v2672 = vsel %vm2603, %v2669, %v2671
      %v2673 = vrot.slane %v1134, 3
      %v2674 = vsel %vm2603, %v2671, %v2673
      %v2675 = vrot.slane %v1135, 3
      %v2676 = vsel %vm2603, %v2673, %v2675
      %v2677 = vrot.slane %v1136, 3
      %v2678 = vsel %vm2603, %v2675, %v2677
      %v2679 = vrot.slane %v1137, 3
      %v2680 = vsel %vm2603, %v2677, %v2679
      %v2681 = vrot.slane %v1138, 3
      %v2682 = vsel %vm2603, %v2679, %v2681
      %v2683 = vrot.slane %v1139, 3
      %v2684 = vsel %vm2603, %v2681, %v2683
      %v2685 = vrot.slane %v1140, 3
      %v2686 = vsel %vm2603, %v2683, %v2685
      %v2687 = vrot.slane %v1141, 3
      %v2688 = vsel %vm2603, %v2685, %v2687
      %v2689 = vrot.slane %v1142, 3
      %v2690 = vsel %vm2603, %v2687, %v2689
      %v2691 = vrot.slane %v1143, 3
      %v2692 = vsel %vm2603, %v2689, %v2691
      %v2693 = vrot.slane %v1144, 3
      %v2694 = vsel %vm2603, %v2691, %v2693
      %v2695 = vrot.slane %v1145, 3
      %v2696 = vsel %vm2603, %v2693, %v2695
      %v2697 = vrot.slane %v1146, 3
      %v2698 = vsel %vm2603, %v2695, %v2697
      %v2699 = vrot.slane %v1147, 3
      %v2700 = vsel %vm2603, %v2697, %v2699
      %v2701 = vrot.slane %v1148, 3
      %v2702 = vsel %vm2603, %v2699, %v2701
      %v2703 = vrot.slane %v1149, 3
      %v2704 = vsel %vm2603, %v2701, %v2703
      %v2705 = vrot.slane %v1150, 3
      %v2706 = vsel %vm2603, %v2703, %v2705
      %v2707 = vrot.slane %v1151, 3
      %v2708 = vsel %vm2603, %v2705, %v2707
      %v2709 = vrot.slane %v1152, 3
      %v2710 = vsel %vm2603, %v2707, %v2709
      %v2711 = vrot.slane %v1153, 3
      %v2712 = vsel %vm2603, %v2709, %v2711
      %v2713 = vrot.slane %v1154, 3
      %v2714 = vsel %vm2603, %v2711, %v2713
      %v2715 = vrot.slane %v1155, 3
      %v2716 = vsel %vm2603, %v2713, %v2715
      %v2717 = vrot.slane %v1156, 3
      %v2718 = vsel %vm2603, %v2715, %v2717
      %v2719 = vrot.slane %v1157, 3
      %v2720 = vsel %vm2603, %v2717, %v2719
      %v2721 = vrot.slane %v1158, 3
      %v2722 = vsel %vm2603, %v2719, %v2721
      %v2723 = vrot.slane %v1159, 3
      %v2724 = vsel %vm2603, %v2721, %v2723
      %v2725 = vrot.slane %v1160, 3
      %v2726 = vsel %vm2603, %v2723, %v2725
      %v2727 = vrot.slane %v1161, 3
      %v2728 = vsel %vm2603, %v2725, %v2727
      %v2729 = vrot.slane %v1162, 3
      %v2730 = vsel %vm2603, %v2727, %v2729
      %v2731 = vrot.slane %v1163, 3
      %v2732 = vsel %vm2603, %v2729, %v2731
      %v2733 = vrot.slane %v1164, 3
      %v2734 = vsel %vm2603, %v2731, %v2733
      %v2735 = vrot.slane %v1165, 3
      %v2736 = vsel %vm2603, %v2733, %v2735
      %v2737 = vrot.slane %v1166, 3
      %v2738 = vsel %vm2603, %v2735, %v2737
      %v2739 = vrot.slane %v1167, 3
      %v2740 = vsel %vm2603, %v2737, %v2739
      %v2741 = vrot.slane %v1168, 3
      %v2742 = vsel %vm2603, %v2739, %v2741
      %v2743 = vrot.slane %v1169, 3
      %v2744 = vsel %vm2603, %v2741, %v2743
      %v2745 = vrot.slane %v1170, 3
      %v2746 = vsel %vm2603, %v2743, %v2745
      %v2747 = vrot.slane %v1171, 3
      %v2748 = vsel %vm2603, %v2745, %v2747
      %v2749 = vrot.slane %v1172, 3
      %v2750 = vsel %vm2603, %v2747, %v2749
      %v2751 = vrot.slane %v1173, 3
      %v2752 = vsel %vm2603, %v2749, %v2751
      %v2753 = vrot.slane %v1174, 3
      %v2754 = vsel %vm2603, %v2751, %v2753
      %v2755 = vrot.slane %v1175, 3
      %v2756 = vsel %vm2603, %v2753, %v2755
      %v2757 = vrot.slane %v1176, 3
      %v2758 = vsel %vm2603, %v2755, %v2757
      %v2759 = vrot.slane %v1177, 3
      %v2760 = vsel %vm2603, %v2757, %v2759
      %2839 = vst.msk [vmem:[#allocation2 + $0x8] sm:$0xff] %vm1181, %v2606
      %2840 = vst.msk [vmem:[#allocation2 + $0x20] sm:$0xff] %vm1181, %v2608
      %2841 = vst.msk [vmem:[#allocation2 + $0x38] sm:$0xff] %vm1181, %v2610
      %2842 = vst.msk [vmem:[#allocation2 + $0x50] sm:$0xff] %vm1181, %v2612
      %2843 = vst.msk [vmem:[#allocation2 + $0x68] sm:$0xff] %vm1181, %v2614
      %2844 = vst.msk [vmem:[#allocation2 + $0x80] sm:$0xff] %vm1181, %v2616
      %2845 = vst.msk [vmem:[#allocation2 + $0x98] sm:$0xff] %vm1181, %v2618
      %2846 = vst.msk [vmem:[#allocation2 + $0xb0] sm:$0xff] %vm1181, %v2620
      %2847 = vst.msk [vmem:[#allocation2 + $0xc8] sm:$0xff] %vm1181, %v2622
      %2848 = vst.msk [vmem:[#allocation2 + $0xe0] sm:$0xff] %vm1181, %v2624
      %2849 = vst.msk [vmem:[#allocation2 + $0xf8] sm:$0xff] %vm1181, %v2626
      %2850 = vst.msk [vmem:[#allocation2 + $0x110] sm:$0xff] %vm1181, %v2628
      %2851 = vst.msk [vmem:[#allocation2 + $0x128] sm:$0xff] %vm1181, %v2630
      %2852 = vst.msk [vmem:[#allocation2 + $0x140] sm:$0xff] %vm1181, %v2632
      %2853 = vst.msk [vmem:[#allocation2 + $0x158] sm:$0xff] %vm1181, %v2634
      %2854 = vst.msk [vmem:[#allocation2 + $0x170] sm:$0xff] %vm1181, %v2636
      %2855 = vst.msk [vmem:[#allocation2 + $0x188] sm:$0xff] %vm1181, %v2638
      %2856 = vst.msk [vmem:[#allocation2 + $0x1a0] sm:$0xff] %vm1181, %v2640
      %2857 = vst.msk [vmem:[#allocation2 + $0x1b8] sm:$0xff] %vm1181, %v2642
      %2858 = vst.msk [vmem:[#allocation2 + $0x1d0] sm:$0xff] %vm1181, %v2644
      %2859 = vst.msk [vmem:[#allocation2 + $0x1e8] sm:$0xff] %vm1181, %v2646
      %2860 = vst.msk [vmem:[#allocation2 + $0x200] sm:$0xff] %vm1181, %v2648
      %2861 = vst.msk [vmem:[#allocation2 + $0x218] sm:$0xff] %vm1181, %v2650
      %2862 = vst.msk [vmem:[#allocation2 + $0x230] sm:$0xff] %vm1181, %v2652
      %2863 = vst.msk [vmem:[#allocation2 + $0x248] sm:$0xff] %vm1181, %v2654
      %2864 = vst.msk [vmem:[#allocation2 + $0x260] sm:$0xff] %vm1181, %v2656
      %2865 = vst.msk [vmem:[#allocation2 + $0x278] sm:$0xff] %vm1181, %v2658
      %2866 = vst.msk [vmem:[#allocation2 + $0x290] sm:$0xff] %vm1181, %v2660
      %2867 = vst.msk [vmem:[#allocation2 + $0x2a8] sm:$0xff] %vm1181, %v2662
      %2868 = vst.msk [vmem:[#allocation2 + $0x2c0] sm:$0xff] %vm1181, %v2664
      %2869 = vst.msk [vmem:[#allocation2 + $0x2d8] sm:$0xff] %vm1181, %v2666
      %2870 = vst.msk [vmem:[#allocation2 + $0x2f0] sm:$0xff] %vm1181, %v2668
      %2871 = vst.msk [vmem:[#allocation2 + $0x308] sm:$0xff] %vm1181, %v2670
      %2872 = vst.msk [vmem:[#allocation2 + $0x320] sm:$0xff] %vm1181, %v2672
      %2873 = vst.msk [vmem:[#allocation2 + $0x338] sm:$0xff] %vm1181, %v2674
      %2874 = vst.msk [vmem:[#allocation2 + $0x350] sm:$0xff] %vm1181, %v2676
      %2875 = vst.msk [vmem:[#allocation2 + $0x368] sm:$0xff] %vm1181, %v2678
      %2876 = vst.msk [vmem:[#allocation2 + $0x380] sm:$0xff] %vm1181, %v2680
      %2877 = vst.msk [vmem:[#allocation2 + $0x398] sm:$0xff] %vm1181, %v2682
      %2878 = vst.msk [vmem:[#allocation2 + $0x3b0] sm:$0xff] %vm1181, %v2684
      %2879 = vst.msk [vmem:[#allocation2 + $0x3c8] sm:$0xff] %vm1181, %v2686
      %2880 = vst.msk [vmem:[#allocation2 + $0x3e0] sm:$0xff] %vm1181, %v2688
      %2881 = vst.msk [vmem:[#allocation2 + $0x3f8] sm:$0xff] %vm1181, %v2690
      %2882 = vst.msk [vmem:[#allocation2 + $0x410] sm:$0xff] %vm1181, %v2692
      %2883 = vst.msk [vmem:[#allocation2 + $0x428] sm:$0xff] %vm1181, %v2694
      %2884 = vst.msk [vmem:[#allocation2 + $0x440] sm:$0xff] %vm1181, %v2696
      %2885 = vst.msk [vmem:[#allocation2 + $0x458] sm:$0xff] %vm1181, %v2698
      %2886 = vst.msk [vmem:[#allocation2 + $0x470] sm:$0xff] %vm1181, %v2700
      %2887 = vst.msk [vmem:[#allocation2 + $0x488] sm:$0xff] %vm1181, %v2702
      %2888 = vst.msk [vmem:[#allocation2 + $0x4a0] sm:$0xff] %vm1181, %v2704
      %2889 = vst.msk [vmem:[#allocation2 + $0x4b8] sm:$0xff] %vm1181, %v2706
      %2890 = vst.msk [vmem:[#allocation2 + $0x4d0] sm:$0xff] %vm1181, %v2708
      %2891 = vst.msk [vmem:[#allocation2 + $0x4e8] sm:$0xff] %vm1181, %v2710
      %2892 = vst.msk [vmem:[#allocation2 + $0x500] sm:$0xff] %vm1181, %v2712
      %2893 = vst.msk [vmem:[#allocation2 + $0x518] sm:$0xff] %vm1181, %v2714
      %2894 = vst.msk [vmem:[#allocation2 + $0x530] sm:$0xff] %vm1181, %v2716
      %2895 = vst.msk [vmem:[#allocation2 + $0x548] sm:$0xff] %vm1181, %v2718
      %2896 = vst.msk [vmem:[#allocation2 + $0x560] sm:$0xff] %vm1181, %v2720
      %2897 = vst.msk [vmem:[#allocation2 + $0x578] sm:$0xff] %vm1181, %v2722
      %2898 = vst.msk [vmem:[#allocation2 + $0x590] sm:$0xff] %vm1181, %v2724
      %2899 = vst.msk [vmem:[#allocation2 + $0x5a8] sm:$0xff] %vm1181, %v2726
      %2900 = vst.msk [vmem:[#allocation2 + $0x5c0] sm:$0xff] %vm1181, %v2728
      %2901 = vst.msk [vmem:[#allocation2 + $0x5d8] sm:$0xff] %vm1181, %v2730
      %2902 = vst.msk [vmem:[#allocation2 + $0x5f0] sm:$0xff] %vm1181, %v2732
      %2903 = vst.msk [vmem:[#allocation2 + $0x608] sm:$0xff] %vm1181, %v2734
      %2904 = vst.msk [vmem:[#allocation2 + $0x620] sm:$0xff] %vm1181, %v2736
      %2905 = vst.msk [vmem:[#allocation2 + $0x638] sm:$0xff] %vm1181, %v2738
      %2906 = vst.msk [vmem:[#allocation2 + $0x650] sm:$0xff] %vm1181, %v2740
      %2907 = vst.msk [vmem:[#allocation2 + $0x668] sm:$0xff] %vm1181, %v2742
      %2908 = vst.msk [vmem:[#allocation2 + $0x680] sm:$0xff] %vm1181, %v2744
      %2909 = vst.msk [vmem:[#allocation2 + $0x698] sm:$0xff] %vm1181, %v2746
      %2910 = vst.msk [vmem:[#allocation2 + $0x6b0] sm:$0xff] %vm1181, %v2748
      %2911 = vst.msk [vmem:[#allocation2 + $0x6c8] sm:$0xff] %vm1181, %v2750
      %2912 = vst.msk [vmem:[#allocation2 + $0x6e0] sm:$0xff] %vm1181, %v2752
      %2913 = vst.msk [vmem:[#allocation2 + $0x6f8] sm:$0xff] %vm1181, %v2754
      %2914 = vst.msk [vmem:[#allocation2 + $0x710] sm:$0xff] %vm1181, %v2756
      %2915 = vst.msk [vmem:[#allocation2 + $0x728] sm:$0xff] %vm1181, %v2758
      %2916 = vst.msk [vmem:[#allocation2 + $0x740] sm:$0x3f] %vm1259, %v2760
      %vm2917 = vcmask 1043456
      %v2918 = vrot.slane %v1099, 4
      %v2919 = vrot.slane %v1100, 4
      %v2920 = vsel %vm2917, %v2918, %v2919
      %v2921 = vrot.slane %v1101, 4
      %v2922 = vsel %vm2917, %v2919, %v2921
      %v2923 = vrot.slane %v1102, 4
      %v2924 = vsel %vm2917, %v2921, %v2923
      %v2925 = vrot.slane %v1103, 4
      %v2926 = vsel %vm2917, %v2923, %v2925
      %v2927 = vrot.slane %v1104, 4
      %v2928 = vsel %vm2917, %v2925, %v2927
      %v2929 = vrot.slane %v1105, 4
      %v2930 = vsel %vm2917, %v2927, %v2929
      %v2931 = vrot.slane %v1106, 4
      %v2932 = vsel %vm2917, %v2929, %v2931
      %v2933 = vrot.slane %v1107, 4
      %v2934 = vsel %vm2917, %v2931, %v2933
      %v2935 = vrot.slane %v1108, 4
      %v2936 = vsel %vm2917, %v2933, %v2935
      %v2937 = vrot.slane %v1109, 4
      %v2938 = vsel %vm2917, %v2935, %v2937
      %v2939 = vrot.slane %v1110, 4
      %v2940 = vsel %vm2917, %v2937, %v2939
      %v2941 = vrot.slane %v1111, 4
      %v2942 = vsel %vm2917, %v2939, %v2941
      %v2943 = vrot.slane %v1112, 4
      %v2944 = vsel %vm2917, %v2941, %v2943
      %v2945 = vrot.slane %v1113, 4
      %v2946 = vsel %vm2917, %v2943, %v2945
      %v2947 = vrot.slane %v1114, 4
      %v2948 = vsel %vm2917, %v2945, %v2947
      %v2949 = vrot.slane %v1115, 4
      %v2950 = vsel %vm2917, %v2947, %v2949
      %v2951 = vrot.slane %v1116, 4
      %v2952 = vsel %vm2917, %v2949, %v2951
      %v2953 = vrot.slane %v1117, 4
      %v2954 = vsel %vm2917, %v2951, %v2953
      %v2955 = vrot.slane %v1118, 4
      %v2956 = vsel %vm2917, %v2953, %v2955
      %v2957 = vrot.slane %v1119, 4
      %v2958 = vsel %vm2917, %v2955, %v2957
      %v2959 = vrot.slane %v1120, 4
      %v2960 = vsel %vm2917, %v2957, %v2959
      %v2961 = vrot.slane %v1121, 4
      %v2962 = vsel %vm2917, %v2959, %v2961
      %v2963 = vrot.slane %v1122, 4
      %v2964 = vsel %vm2917, %v2961, %v2963
      %v2965 = vrot.slane %v1123, 4
      %v2966 = vsel %vm2917, %v2963, %v2965
      %v2967 = vrot.slane %v1124, 4
      %v2968 = vsel %vm2917, %v2965, %v2967
      %v2969 = vrot.slane %v1125, 4
      %v2970 = vsel %vm2917, %v2967, %v2969
      %v2971 = vrot.slane %v1126, 4
      %v2972 = vsel %vm2917, %v2969, %v2971
      %v2973 = vrot.slane %v1127, 4
      %v2974 = vsel %vm2917, %v2971, %v2973
      %v2975 = vrot.slane %v1128, 4
      %v2976 = vsel %vm2917, %v2973, %v2975
      %v2977 = vrot.slane %v1129, 4
      %v2978 = vsel %vm2917, %v2975, %v2977
      %v2979 = vrot.slane %v1130, 4
      %v2980 = vsel %vm2917, %v2977, %v2979
      %v2981 = vrot.slane %v1131, 4
      %v2982 = vsel %vm2917, %v2979, %v2981
      %v2983 = vrot.slane %v1132, 4
      %v2984 = vsel %vm2917, %v2981, %v2983
      %v2985 = vrot.slane %v1133, 4
      %v2986 = vsel %vm2917, %v2983, %v2985
      %v2987 = vrot.slane %v1134, 4
      %v2988 = vsel %vm2917, %v2985, %v2987
      %v2989 = vrot.slane %v1135, 4
      %v2990 = vsel %vm2917, %v2987, %v2989
      %v2991 = vrot.slane %v1136, 4
      %v2992 = vsel %vm2917, %v2989, %v2991
      %v2993 = vrot.slane %v1137, 4
      %v2994 = vsel %vm2917, %v2991, %v2993
      %v2995 = vrot.slane %v1138, 4
      %v2996 = vsel %vm2917, %v2993, %v2995
      %v2997 = vrot.slane %v1139, 4
      %v2998 = vsel %vm2917, %v2995, %v2997
      %v2999 = vrot.slane %v1140, 4
      %v3000 = vsel %vm2917, %v2997, %v2999
      %v3001 = vrot.slane %v1141, 4
      %v3002 = vsel %vm2917, %v2999, %v3001
      %v3003 = vrot.slane %v1142, 4
      %v3004 = vsel %vm2917, %v3001, %v3003
      %v3005 = vrot.slane %v1143, 4
      %v3006 = vsel %vm2917, %v3003, %v3005
      %v3007 = vrot.slane %v1144, 4
      %v3008 = vsel %vm2917, %v3005, %v3007
      %v3009 = vrot.slane %v1145, 4
      %v3010 = vsel %vm2917, %v3007, %v3009
      %v3011 = vrot.slane %v1146, 4
      %v3012 = vsel %vm2917, %v3009, %v3011
      %v3013 = vrot.slane %v1147, 4
      %v3014 = vsel %vm2917, %v3011, %v3013
      %v3015 = vrot.slane %v1148, 4
      %v3016 = vsel %vm2917, %v3013, %v3015
      %v3017 = vrot.slane %v1149, 4
      %v3018 = vsel %vm2917, %v3015, %v3017
      %v3019 = vrot.slane %v1150, 4
      %v3020 = vsel %vm2917, %v3017, %v3019
      %v3021 = vrot.slane %v1151, 4
      %v3022 = vsel %vm2917, %v3019, %v3021
      %v3023 = vrot.slane %v1152, 4
      %v3024 = vsel %vm2917, %v3021, %v3023
      %v3025 = vrot.slane %v1153, 4
      %v3026 = vsel %vm2917, %v3023, %v3025
      %v3027 = vrot.slane %v1154, 4
      %v3028 = vsel %vm2917, %v3025, %v3027
      %v3029 = vrot.slane %v1155, 4
      %v3030 = vsel %vm2917, %v3027, %v3029
      %v3031 = vrot.slane %v1156, 4
      %v3032 = vsel %vm2917, %v3029, %v3031
      %v3033 = vrot.slane %v1157, 4
      %v3034 = vsel %vm2917, %v3031, %v3033
      %v3035 = vrot.slane %v1158, 4
      %v3036 = vsel %vm2917, %v3033, %v3035
      %v3037 = vrot.slane %v1159, 4
      %v3038 = vsel %vm2917, %v3035, %v3037
      %v3039 = vrot.slane %v1160, 4
      %v3040 = vsel %vm2917, %v3037, %v3039
      %v3041 = vrot.slane %v1161, 4
      %v3042 = vsel %vm2917, %v3039, %v3041
      %v3043 = vrot.slane %v1162, 4
      %v3044 = vsel %vm2917, %v3041, %v3043
      %v3045 = vrot.slane %v1163, 4
      %v3046 = vsel %vm2917, %v3043, %v3045
      %v3047 = vrot.slane %v1164, 4
      %v3048 = vsel %vm2917, %v3045, %v3047
      %v3049 = vrot.slane %v1165, 4
      %v3050 = vsel %vm2917, %v3047, %v3049
      %v3051 = vrot.slane %v1166, 4
      %v3052 = vsel %vm2917, %v3049, %v3051
      %v3053 = vrot.slane %v1167, 4
      %v3054 = vsel %vm2917, %v3051, %v3053
      %v3055 = vrot.slane %v1168, 4
      %v3056 = vsel %vm2917, %v3053, %v3055
      %v3057 = vrot.slane %v1169, 4
      %v3058 = vsel %vm2917, %v3055, %v3057
      %v3059 = vrot.slane %v1170, 4
      %v3060 = vsel %vm2917, %v3057, %v3059
      %v3061 = vrot.slane %v1171, 4
      %v3062 = vsel %vm2917, %v3059, %v3061
      %v3063 = vrot.slane %v1172, 4
      %v3064 = vsel %vm2917, %v3061, %v3063
      %v3065 = vrot.slane %v1173, 4
      %v3066 = vsel %vm2917, %v3063, %v3065
      %v3067 = vrot.slane %v1174, 4
      %v3068 = vsel %vm2917, %v3065, %v3067
      %v3069 = vrot.slane %v1175, 4
      %v3070 = vsel %vm2917, %v3067, %v3069
      %v3071 = vrot.slane %v1176, 4
      %v3072 = vsel %vm2917, %v3069, %v3071
      %v3073 = vrot.slane %v1177, 4
      %v3074 = vsel %vm2917, %v3071, %v3073
      %3075 = vrot.lane.b32.xlu0 %v2920, 32
      %v3076 = vpop.permute.xlu0 %3075
      %3077 = vrot.lane.b32.xlu0 %v2922, 32
      %v3078 = vpop.permute.xlu0 %3077
      %3079 = vrot.lane.b32.xlu0 %v2924, 32
      %v3080 = vpop.permute.xlu0 %3079
      %3081 = vrot.lane.b32.xlu0 %v2926, 32
      %v3082 = vpop.permute.xlu0 %3081
      %3083 = vrot.lane.b32.xlu0 %v2928, 32
      %v3084 = vpop.permute.xlu0 %3083
      %3085 = vrot.lane.b32.xlu0 %v2930, 32
      %v3086 = vpop.permute.xlu0 %3085
      %3087 = vrot.lane.b32.xlu0 %v2932, 32
      %v3088 = vpop.permute.xlu0 %3087
      %3089 = vrot.lane.b32.xlu0 %v2934, 32
      %v3090 = vpop.permute.xlu0 %3089
      %3091 = vrot.lane.b32.xlu0 %v2936, 32
      %v3092 = vpop.permute.xlu0 %3091
      %3093 = vrot.lane.b32.xlu0 %v2938, 32
      %v3094 = vpop.permute.xlu0 %3093
      %3095 = vrot.lane.b32.xlu0 %v2940, 32
      %v3096 = vpop.permute.xlu0 %3095
      %3097 = vrot.lane.b32.xlu0 %v2942, 32
      %v3098 = vpop.permute.xlu0 %3097
      %3099 = vrot.lane.b32.xlu0 %v2944, 32
      %v3100 = vpop.permute.xlu0 %3099
      %3101 = vrot.lane.b32.xlu0 %v2946, 32
      %v3102 = vpop.permute.xlu0 %3101
      %3103 = vrot.lane.b32.xlu0 %v2948, 32
      %v3104 = vpop.permute.xlu0 %3103
      %3105 = vrot.lane.b32.xlu0 %v2950, 32
      %v3106 = vpop.permute.xlu0 %3105
      %3107 = vrot.lane.b32.xlu0 %v2952, 32
      %v3108 = vpop.permute.xlu0 %3107
      %3109 = vrot.lane.b32.xlu0 %v2954, 32
      %v3110 = vpop.permute.xlu0 %3109
      %3111 = vrot.lane.b32.xlu0 %v2956, 32
      %v3112 = vpop.permute.xlu0 %3111
      %3113 = vrot.lane.b32.xlu0 %v2958, 32
      %v3114 = vpop.permute.xlu0 %3113
      %3115 = vrot.lane.b32.xlu0 %v2960, 32
      %v3116 = vpop.permute.xlu0 %3115
      %3117 = vrot.lane.b32.xlu0 %v2962, 32
      %v3118 = vpop.permute.xlu0 %3117
      %3119 = vrot.lane.b32.xlu0 %v2964, 32
      %v3120 = vpop.permute.xlu0 %3119
      %3121 = vrot.lane.b32.xlu0 %v2966, 32
      %v3122 = vpop.permute.xlu0 %3121
      %3123 = vrot.lane.b32.xlu0 %v2968, 32
      %v3124 = vpop.permute.xlu0 %3123
      %3125 = vrot.lane.b32.xlu0 %v2970, 32
      %v3126 = vpop.permute.xlu0 %3125
      %3127 = vrot.lane.b32.xlu0 %v2972, 32
      %v3128 = vpop.permute.xlu0 %3127
      %3129 = vrot.lane.b32.xlu0 %v2974, 32
      %v3130 = vpop.permute.xlu0 %3129
      %3131 = vrot.lane.b32.xlu0 %v2976, 32
      %v3132 = vpop.permute.xlu0 %3131
      %3133 = vrot.lane.b32.xlu0 %v2978, 32
      %v3134 = vpop.permute.xlu0 %3133
      %3135 = vrot.lane.b32.xlu0 %v2980, 32
      %v3136 = vpop.permute.xlu0 %3135
      %3137 = vrot.lane.b32.xlu0 %v2982, 32
      %v3138 = vpop.permute.xlu0 %3137
      %3139 = vrot.lane.b32.xlu0 %v2984, 32
      %v3140 = vpop.permute.xlu0 %3139
      %3141 = vrot.lane.b32.xlu0 %v2986, 32
      %v3142 = vpop.permute.xlu0 %3141
      %3143 = vrot.lane.b32.xlu0 %v2988, 32
      %v3144 = vpop.permute.xlu0 %3143
      %3145 = vrot.lane.b32.xlu0 %v2990, 32
      %v3146 = vpop.permute.xlu0 %3145
      %3147 = vrot.lane.b32.xlu0 %v2992, 32
      %v3148 = vpop.permute.xlu0 %3147
      %3149 = vrot.lane.b32.xlu0 %v2994, 32
      %v3150 = vpop.permute.xlu0 %3149
      %3151 = vrot.lane.b32.xlu0 %v2996, 32
      %v3152 = vpop.permute.xlu0 %3151
      %3153 = vrot.lane.b32.xlu0 %v2998, 32
      %v3154 = vpop.permute.xlu0 %3153
      %3155 = vrot.lane.b32.xlu0 %v3000, 32
      %v3156 = vpop.permute.xlu0 %3155
      %3157 = vrot.lane.b32.xlu0 %v3002, 32
      %v3158 = vpop.permute.xlu0 %3157
      %3159 = vrot.lane.b32.xlu0 %v3004, 32
      %v3160 = vpop.permute.xlu0 %3159
      %3161 = vrot.lane.b32.xlu0 %v3006, 32
      %v3162 = vpop.permute.xlu0 %3161
      %3163 = vrot.lane.b32.xlu0 %v3008, 32
      %v3164 = vpop.permute.xlu0 %3163
      %3165 = vrot.lane.b32.xlu0 %v3010, 32
      %v3166 = vpop.permute.xlu0 %3165
      %3167 = vrot.lane.b32.xlu0 %v3012, 32
      %v3168 = vpop.permute.xlu0 %3167
      %3169 = vrot.lane.b32.xlu0 %v3014, 32
      %v3170 = vpop.permute.xlu0 %3169
      %3171 = vrot.lane.b32.xlu0 %v3016, 32
      %v3172 = vpop.permute.xlu0 %3171
      %3173 = vrot.lane.b32.xlu0 %v3018, 32
      %v3174 = vpop.permute.xlu0 %3173
      %3175 = vrot.lane.b32.xlu0 %v3020, 32
      %v3176 = vpop.permute.xlu0 %3175
      %3177 = vrot.lane.b32.xlu0 %v3022, 32
      %v3178 = vpop.permute.xlu0 %3177
      %3179 = vrot.lane.b32.xlu0 %v3024, 32
      %v3180 = vpop.permute.xlu0 %3179
      %3181 = vrot.lane.b32.xlu0 %v3026, 32
      %v3182 = vpop.permute.xlu0 %3181
      %3183 = vrot.lane.b32.xlu0 %v3028, 32
      %v3184 = vpop.permute.xlu0 %3183
      %3185 = vrot.lane.b32.xlu0 %v3030, 32
      %v3186 = vpop.permute.xlu0 %3185
      %3187 = vrot.lane.b32.xlu0 %v3032, 32
      %v3188 = vpop.permute.xlu0 %3187
      %3189 = vrot.lane.b32.xlu0 %v3034, 32
      %v3190 = vpop.permute.xlu0 %3189
      %3191 = vrot.lane.b32.xlu0 %v3036, 32
      %v3192 = vpop.permute.xlu0 %3191
      %3193 = vrot.lane.b32.xlu0 %v3038, 32
      %v3194 = vpop.permute.xlu0 %3193
      %3195 = vrot.lane.b32.xlu0 %v3040, 32
      %v3196 = vpop.permute.xlu0 %3195
      %3197 = vrot.lane.b32.xlu0 %v3042, 32
      %v3198 = vpop.permute.xlu0 %3197
      %3199 = vrot.lane.b32.xlu0 %v3044, 32
      %v3200 = vpop.permute.xlu0 %3199
      %3201 = vrot.lane.b32.xlu0 %v3046, 32
      %v3202 = vpop.permute.xlu0 %3201
      %3203 = vrot.lane.b32.xlu0 %v3048, 32
      %v3204 = vpop.permute.xlu0 %3203
      %3205 = vrot.lane.b32.xlu0 %v3050, 32
      %v3206 = vpop.permute.xlu0 %3205
      %3207 = vrot.lane.b32.xlu0 %v3052, 32
      %v3208 = vpop.permute.xlu0 %3207
      %3209 = vrot.lane.b32.xlu0 %v3054, 32
      %v3210 = vpop.permute.xlu0 %3209
      %3211 = vrot.lane.b32.xlu0 %v3056, 32
      %v3212 = vpop.permute.xlu0 %3211
      %3213 = vrot.lane.b32.xlu0 %v3058, 32
      %v3214 = vpop.permute.xlu0 %3213
      %3215 = vrot.lane.b32.xlu0 %v3060, 32
      %v3216 = vpop.permute.xlu0 %3215
      %3217 = vrot.lane.b32.xlu0 %v3062, 32
      %v3218 = vpop.permute.xlu0 %3217
      %3219 = vrot.lane.b32.xlu0 %v3064, 32
      %v3220 = vpop.permute.xlu0 %3219
      %3221 = vrot.lane.b32.xlu0 %v3066, 32
      %v3222 = vpop.permute.xlu0 %3221
      %3223 = vrot.lane.b32.xlu0 %v3068, 32
      %v3224 = vpop.permute.xlu0 %3223
      %3225 = vrot.lane.b32.xlu0 %v3070, 32
      %v3226 = vpop.permute.xlu0 %3225
      %3227 = vrot.lane.b32.xlu0 %v3072, 32
      %v3228 = vpop.permute.xlu0 %3227
      %3229 = vrot.lane.b32.xlu0 %v3074, 32
      %v3230 = vpop.permute.xlu0 %3229
      %3309 = vst.msk [vmem:[#allocation2 + $0x8] sm:$0xff] %vm1729, %v3076
      %3310 = vst.msk [vmem:[#allocation2 + $0x20] sm:$0xff] %vm1729, %v3078
      %3311 = vst.msk [vmem:[#allocation2 + $0x38] sm:$0xff] %vm1729, %v3080
      %3312 = vst.msk [vmem:[#allocation2 + $0x50] sm:$0xff] %vm1729, %v3082
      %3313 = vst.msk [vmem:[#allocation2 + $0x68] sm:$0xff] %vm1729, %v3084
      %3314 = vst.msk [vmem:[#allocation2 + $0x80] sm:$0xff] %vm1729, %v3086
      %3315 = vst.msk [vmem:[#allocation2 + $0x98] sm:$0xff] %vm1729, %v3088
      %3316 = vst.msk [vmem:[#allocation2 + $0xb0] sm:$0xff] %vm1729, %v3090
      %3317 = vst.msk [vmem:[#allocation2 + $0xc8] sm:$0xff] %vm1729, %v3092
      %3318 = vst.msk [vmem:[#allocation2 + $0xe0] sm:$0xff] %vm1729, %v3094
      %3319 = vst.msk [vmem:[#allocation2 + $0xf8] sm:$0xff] %vm1729, %v3096
      %3320 = vst.msk [vmem:[#allocation2 + $0x110] sm:$0xff] %vm1729, %v3098
      %3321 = vst.msk [vmem:[#allocation2 + $0x128] sm:$0xff] %vm1729, %v3100
      %3322 = vst.msk [vmem:[#allocation2 + $0x140] sm:$0xff] %vm1729, %v3102
      %3323 = vst.msk [vmem:[#allocation2 + $0x158] sm:$0xff] %vm1729, %v3104
      %3324 = vst.msk [vmem:[#allocation2 + $0x170] sm:$0xff] %vm1729, %v3106
      %3325 = vst.msk [vmem:[#allocation2 + $0x188] sm:$0xff] %vm1729, %v3108
      %3326 = vst.msk [vmem:[#allocation2 + $0x1a0] sm:$0xff] %vm1729, %v3110
      %3327 = vst.msk [vmem:[#allocation2 + $0x1b8] sm:$0xff] %vm1729, %v3112
      %3328 = vst.msk [vmem:[#allocation2 + $0x1d0] sm:$0xff] %vm1729, %v3114
      %3329 = vst.msk [vmem:[#allocation2 + $0x1e8] sm:$0xff] %vm1729, %v3116
      %3330 = vst.msk [vmem:[#allocation2 + $0x200] sm:$0xff] %vm1729, %v3118
      %3331 = vst.msk [vmem:[#allocation2 + $0x218] sm:$0xff] %vm1729, %v3120
      %3332 = vst.msk [vmem:[#allocation2 + $0x230] sm:$0xff] %vm1729, %v3122
      %3333 = vst.msk [vmem:[#allocation2 + $0x248] sm:$0xff] %vm1729, %v3124
      %3334 = vst.msk [vmem:[#allocation2 + $0x260] sm:$0xff] %vm1729, %v3126
      %3335 = vst.msk [vmem:[#allocation2 + $0x278] sm:$0xff] %vm1729, %v3128
      %3336 = vst.msk [vmem:[#allocation2 + $0x290] sm:$0xff] %vm1729, %v3130
      %3337 = vst.msk [vmem:[#allocation2 + $0x2a8] sm:$0xff] %vm1729, %v3132
      %3338 = vst.msk [vmem:[#allocation2 + $0x2c0] sm:$0xff] %vm1729, %v3134
      %3339 = vst.msk [vmem:[#allocation2 + $0x2d8] sm:$0xff] %vm1729, %v3136
      %3340 = vst.msk [vmem:[#allocation2 + $0x2f0] sm:$0xff] %vm1729, %v3138
      %3341 = vst.msk [vmem:[#allocation2 + $0x308] sm:$0xff] %vm1729, %v3140
      %3342 = vst.msk [vmem:[#allocation2 + $0x320] sm:$0xff] %vm1729, %v3142
      %3343 = vst.msk [vmem:[#allocation2 + $0x338] sm:$0xff] %vm1729, %v3144
      %3344 = vst.msk [vmem:[#allocation2 + $0x350] sm:$0xff] %vm1729, %v3146
      %3345 = vst.msk [vmem:[#allocation2 + $0x368] sm:$0xff] %vm1729, %v3148
      %3346 = vst.msk [vmem:[#allocation2 + $0x380] sm:$0xff] %vm1729, %v3150
      %3347 = vst.msk [vmem:[#allocation2 + $0x398] sm:$0xff] %vm1729, %v3152
      %3348 = vst.msk [vmem:[#allocation2 + $0x3b0] sm:$0xff] %vm1729, %v3154
      %3349 = vst.msk [vmem:[#allocation2 + $0x3c8] sm:$0xff] %vm1729, %v3156
      %3350 = vst.msk [vmem:[#allocation2 + $0x3e0] sm:$0xff] %vm1729, %v3158
      %3351 = vst.msk [vmem:[#allocation2 + $0x3f8] sm:$0xff] %vm1729, %v3160
      %3352 = vst.msk [vmem:[#allocation2 + $0x410] sm:$0xff] %vm1729, %v3162
      %3353 = vst.msk [vmem:[#allocation2 + $0x428] sm:$0xff] %vm1729, %v3164
      %3354 = vst.msk [vmem:[#allocation2 + $0x440] sm:$0xff] %vm1729, %v3166
      %3355 = vst.msk [vmem:[#allocation2 + $0x458] sm:$0xff] %vm1729, %v3168
      %3356 = vst.msk [vmem:[#allocation2 + $0x470] sm:$0xff] %vm1729, %v3170
      %3357 = vst.msk [vmem:[#allocation2 + $0x488] sm:$0xff] %vm1729, %v3172
      %3358 = vst.msk [vmem:[#allocation2 + $0x4a0] sm:$0xff] %vm1729, %v3174
      %3359 = vst.msk [vmem:[#allocation2 + $0x4b8] sm:$0xff] %vm1729, %v3176
      %3360 = vst.msk [vmem:[#allocation2 + $0x4d0] sm:$0xff] %vm1729, %v3178
      %3361 = vst.msk [vmem:[#allocation2 + $0x4e8] sm:$0xff] %vm1729, %v3180
      %3362 = vst.msk [vmem:[#allocation2 + $0x500] sm:$0xff] %vm1729, %v3182
      %3363 = vst.msk [vmem:[#allocation2 + $0x518] sm:$0xff] %vm1729, %v3184
      %3364 = vst.msk [vmem:[#allocation2 + $0x530] sm:$0xff] %vm1729, %v3186
      %3365 = vst.msk [vmem:[#allocation2 + $0x548] sm:$0xff] %vm1729, %v3188
      %3366 = vst.msk [vmem:[#allocation2 + $0x560] sm:$0xff] %vm1729, %v3190
      %3367 = vst.msk [vmem:[#allocation2 + $0x578] sm:$0xff] %vm1729, %v3192
      %3368 = vst.msk [vmem:[#allocation2 + $0x590] sm:$0xff] %vm1729, %v3194
      %3369 = vst.msk [vmem:[#allocation2 + $0x5a8] sm:$0xff] %vm1729, %v3196
      %3370 = vst.msk [vmem:[#allocation2 + $0x5c0] sm:$0xff] %vm1729, %v3198
      %3371 = vst.msk [vmem:[#allocation2 + $0x5d8] sm:$0xff] %vm1729, %v3200
      %3372 = vst.msk [vmem:[#allocation2 + $0x5f0] sm:$0xff] %vm1729, %v3202
      %3373 = vst.msk [vmem:[#allocation2 + $0x608] sm:$0xff] %vm1729, %v3204
      %3374 = vst.msk [vmem:[#allocation2 + $0x620] sm:$0xff] %vm1729, %v3206
      %3375 = vst.msk [vmem:[#allocation2 + $0x638] sm:$0xff] %vm1729, %v3208
      %3376 = vst.msk [vmem:[#allocation2 + $0x650] sm:$0xff] %vm1729, %v3210
      %3377 = vst.msk [vmem:[#allocation2 + $0x668] sm:$0xff] %vm1729, %v3212
      %3378 = vst.msk [vmem:[#allocation2 + $0x680] sm:$0xff] %vm1729, %v3214
      %3379 = vst.msk [vmem:[#allocation2 + $0x698] sm:$0xff] %vm1729, %v3216
      %3380 = vst.msk [vmem:[#allocation2 + $0x6b0] sm:$0xff] %vm1729, %v3218
      %3381 = vst.msk [vmem:[#allocation2 + $0x6c8] sm:$0xff] %vm1729, %v3220
      %3382 = vst.msk [vmem:[#allocation2 + $0x6e0] sm:$0xff] %vm1729, %v3222
      %3383 = vst.msk [vmem:[#allocation2 + $0x6f8] sm:$0xff] %vm1729, %v3224
      %3384 = vst.msk [vmem:[#allocation2 + $0x710] sm:$0xff] %vm1729, %v3226
      %3385 = vst.msk [vmem:[#allocation2 + $0x728] sm:$0xff] %vm1729, %v3228
      %3386 = vst.msk [vmem:[#allocation2 + $0x740] sm:$0x3f] %vm1807, %v3230
      %v3390 = vrot.slane %v1178, 4
      %v3391 = vsel %vm2917, %v3073, %v3390
      %v3392 = vrot.slane %v1179, 4
      %v3393 = vsel %vm2917, %v3390, %v3392
      %v3394 = vrot.slane %v1180, 4
      %v3395 = vsel %vm2917, %v3392, %v3394
      %3396 = vrot.lane.b32.xlu0 %v2926, 64
      %v3397 = vpop.permute.xlu0 %3396
      %3398 = vrot.lane.b32.xlu0 %v2928, 64
      %v3399 = vpop.permute.xlu0 %3398
      %3400 = vrot.lane.b32.xlu0 %v2930, 64
      %v3401 = vpop.permute.xlu0 %3400
      %3402 = vrot.lane.b32.xlu0 %v2932, 64
      %v3403 = vpop.permute.xlu0 %3402
      %3404 = vrot.lane.b32.xlu0 %v2934, 64
      %v3405 = vpop.permute.xlu0 %3404
      %3406 = vrot.lane.b32.xlu0 %v2936, 64
      %v3407 = vpop.permute.xlu0 %3406
      %3408 = vrot.lane.b32.xlu0 %v2938, 64
      %v3409 = vpop.permute.xlu0 %3408
      %3410 = vrot.lane.b32.xlu0 %v2940, 64
      %v3411 = vpop.permute.xlu0 %3410
      %3412 = vrot.lane.b32.xlu0 %v2942, 64
      %v3413 = vpop.permute.xlu0 %3412
      %3414 = vrot.lane.b32.xlu0 %v2944, 64
      %v3415 = vpop.permute.xlu0 %3414
      %3416 = vrot.lane.b32.xlu0 %v2946, 64
      %v3417 = vpop.permute.xlu0 %3416
      %3418 = vrot.lane.b32.xlu0 %v2948, 64
      %v3419 = vpop.permute.xlu0 %3418
      %3420 = vrot.lane.b32.xlu0 %v2950, 64
      %v3421 = vpop.permute.xlu0 %3420
      %3422 = vrot.lane.b32.xlu0 %v2952, 64
      %v3423 = vpop.permute.xlu0 %3422
      %3424 = vrot.lane.b32.xlu0 %v2954, 64
      %v3425 = vpop.permute.xlu0 %3424
      %3426 = vrot.lane.b32.xlu0 %v2956, 64
      %v3427 = vpop.permute.xlu0 %3426
      %3428 = vrot.lane.b32.xlu0 %v2958, 64
      %v3429 = vpop.permute.xlu0 %3428
      %3430 = vrot.lane.b32.xlu0 %v2960, 64
      %v3431 = vpop.permute.xlu0 %3430
      %3432 = vrot.lane.b32.xlu0 %v2962, 64
      %v3433 = vpop.permute.xlu0 %3432
      %3434 = vrot.lane.b32.xlu0 %v2964, 64
      %v3435 = vpop.permute.xlu0 %3434
      %3436 = vrot.lane.b32.xlu0 %v2966, 64
      %v3437 = vpop.permute.xlu0 %3436
      %3438 = vrot.lane.b32.xlu0 %v2968, 64
      %v3439 = vpop.permute.xlu0 %3438
      %3440 = vrot.lane.b32.xlu0 %v2970, 64
      %v3441 = vpop.permute.xlu0 %3440
      %3442 = vrot.lane.b32.xlu0 %v2972, 64
      %v3443 = vpop.permute.xlu0 %3442
      %3444 = vrot.lane.b32.xlu0 %v2974, 64
      %v3445 = vpop.permute.xlu0 %3444
      %3446 = vrot.lane.b32.xlu0 %v2976, 64
      %v3447 = vpop.permute.xlu0 %3446
      %3448 = vrot.lane.b32.xlu0 %v2978, 64
      %v3449 = vpop.permute.xlu0 %3448
      %3450 = vrot.lane.b32.xlu0 %v2980, 64
      %v3451 = vpop.permute.xlu0 %3450
      %3452 = vrot.lane.b32.xlu0 %v2982, 64
      %v3453 = vpop.permute.xlu0 %3452
      %3454 = vrot.lane.b32.xlu0 %v2984, 64
      %v3455 = vpop.permute.xlu0 %3454
      %3456 = vrot.lane.b32.xlu0 %v2986, 64
      %v3457 = vpop.permute.xlu0 %3456
      %3458 = vrot.lane.b32.xlu0 %v2988, 64
      %v3459 = vpop.permute.xlu0 %3458
      %3460 = vrot.lane.b32.xlu0 %v2990, 64
      %v3461 = vpop.permute.xlu0 %3460
      %3462 = vrot.lane.b32.xlu0 %v2992, 64
      %v3463 = vpop.permute.xlu0 %3462
      %3464 = vrot.lane.b32.xlu0 %v2994, 64
      %v3465 = vpop.permute.xlu0 %3464
      %3466 = vrot.lane.b32.xlu0 %v2996, 64
      %v3467 = vpop.permute.xlu0 %3466
      %3468 = vrot.lane.b32.xlu0 %v2998, 64
      %v3469 = vpop.permute.xlu0 %3468
      %3470 = vrot.lane.b32.xlu0 %v3000, 64
      %v3471 = vpop.permute.xlu0 %3470
      %3472 = vrot.lane.b32.xlu0 %v3002, 64
      %v3473 = vpop.permute.xlu0 %3472
      %3474 = vrot.lane.b32.xlu0 %v3004, 64
      %v3475 = vpop.permute.xlu0 %3474
      %3476 = vrot.lane.b32.xlu0 %v3006, 64
      %v3477 = vpop.permute.xlu0 %3476
      %3478 = vrot.lane.b32.xlu0 %v3008, 64
      %v3479 = vpop.permute.xlu0 %3478
      %3480 = vrot.lane.b32.xlu0 %v3010, 64
      %v3481 = vpop.permute.xlu0 %3480
      %3482 = vrot.lane.b32.xlu0 %v3012, 64
      %v3483 = vpop.permute.xlu0 %3482
      %3484 = vrot.lane.b32.xlu0 %v3014, 64
      %v3485 = vpop.permute.xlu0 %3484
      %3486 = vrot.lane.b32.xlu0 %v3016, 64
      %v3487 = vpop.permute.xlu0 %3486
      %3488 = vrot.lane.b32.xlu0 %v3018, 64
      %v3489 = vpop.permute.xlu0 %3488
      %3490 = vrot.lane.b32.xlu0 %v3020, 64
      %v3491 = vpop.permute.xlu0 %3490
      %3492 = vrot.lane.b32.xlu0 %v3022, 64
      %v3493 = vpop.permute.xlu0 %3492
      %3494 = vrot.lane.b32.xlu0 %v3024, 64
      %v3495 = vpop.permute.xlu0 %3494
      %3496 = vrot.lane.b32.xlu0 %v3026, 64
      %v3497 = vpop.permute.xlu0 %3496
      %3498 = vrot.lane.b32.xlu0 %v3028, 64
      %v3499 = vpop.permute.xlu0 %3498
      %3500 = vrot.lane.b32.xlu0 %v3030, 64
      %v3501 = vpop.permute.xlu0 %3500
      %3502 = vrot.lane.b32.xlu0 %v3032, 64
      %v3503 = vpop.permute.xlu0 %3502
      %3504 = vrot.lane.b32.xlu0 %v3034, 64
      %v3505 = vpop.permute.xlu0 %3504
      %3506 = vrot.lane.b32.xlu0 %v3036, 64
      %v3507 = vpop.permute.xlu0 %3506
      %3508 = vrot.lane.b32.xlu0 %v3038, 64
      %v3509 = vpop.permute.xlu0 %3508
      %3510 = vrot.lane.b32.xlu0 %v3040, 64
      %v3511 = vpop.permute.xlu0 %3510
      %3512 = vrot.lane.b32.xlu0 %v3042, 64
      %v3513 = vpop.permute.xlu0 %3512
      %3514 = vrot.lane.b32.xlu0 %v3044, 64
      %v3515 = vpop.permute.xlu0 %3514
      %3516 = vrot.lane.b32.xlu0 %v3046, 64
      %v3517 = vpop.permute.xlu0 %3516
      %3518 = vrot.lane.b32.xlu0 %v3048, 64
      %v3519 = vpop.permute.xlu0 %3518
      %3520 = vrot.lane.b32.xlu0 %v3050, 64
      %v3521 = vpop.permute.xlu0 %3520
      %3522 = vrot.lane.b32.xlu0 %v3052, 64
      %v3523 = vpop.permute.xlu0 %3522
      %3524 = vrot.lane.b32.xlu0 %v3054, 64
      %v3525 = vpop.permute.xlu0 %3524
      %3526 = vrot.lane.b32.xlu0 %v3056, 64
      %v3527 = vpop.permute.xlu0 %3526
      %3528 = vrot.lane.b32.xlu0 %v3058, 64
      %v3529 = vpop.permute.xlu0 %3528
      %3530 = vrot.lane.b32.xlu0 %v3060, 64
      %v3531 = vpop.permute.xlu0 %3530
      %3532 = vrot.lane.b32.xlu0 %v3062, 64
      %v3533 = vpop.permute.xlu0 %3532
      %3534 = vrot.lane.b32.xlu0 %v3064, 64
      %v3535 = vpop.permute.xlu0 %3534
      %3536 = vrot.lane.b32.xlu0 %v3066, 64
      %v3537 = vpop.permute.xlu0 %3536
      %3538 = vrot.lane.b32.xlu0 %v3068, 64
      %v3539 = vpop.permute.xlu0 %3538
      %3540 = vrot.lane.b32.xlu0 %v3070, 64
      %v3541 = vpop.permute.xlu0 %3540
      %3542 = vrot.lane.b32.xlu0 %v3072, 64
      %v3543 = vpop.permute.xlu0 %3542
      %3544 = vrot.lane.b32.xlu0 %v3074, 64
      %v3545 = vpop.permute.xlu0 %3544
      %3546 = vrot.lane.b32.xlu0 %v3391, 64
      %v3547 = vpop.permute.xlu0 %3546
      %3548 = vrot.lane.b32.xlu0 %v3393, 64
      %v3549 = vpop.permute.xlu0 %3548
      %3550 = vrot.lane.b32.xlu0 %v3395, 64
      %v3551 = vpop.permute.xlu0 %3550
      %3630 = vst.msk [vmem:[#allocation2 + $0x8] sm:$0xff] %vm2199, %v3397
      %3631 = vst.msk [vmem:[#allocation2 + $0x20] sm:$0xff] %vm2199, %v3399
      %3632 = vst.msk [vmem:[#allocation2 + $0x38] sm:$0xff] %vm2199, %v3401
      %3633 = vst.msk [vmem:[#allocation2 + $0x50] sm:$0xff] %vm2199, %v3403
      %3634 = vst.msk [vmem:[#allocation2 + $0x68] sm:$0xff] %vm2199, %v3405
      %3635 = vst.msk [vmem:[#allocation2 + $0x80] sm:$0xff] %vm2199, %v3407
      %3636 = vst.msk [vmem:[#allocation2 + $0x98] sm:$0xff] %vm2199, %v3409
      %3637 = vst.msk [vmem:[#allocation2 + $0xb0] sm:$0xff] %vm2199, %v3411
      %3638 = vst.msk [vmem:[#allocation2 + $0xc8] sm:$0xff] %vm2199, %v3413
      %3639 = vst.msk [vmem:[#allocation2 + $0xe0] sm:$0xff] %vm2199, %v3415
      %3640 = vst.msk [vmem:[#allocation2 + $0xf8] sm:$0xff] %vm2199, %v3417
      %3641 = vst.msk [vmem:[#allocation2 + $0x110] sm:$0xff] %vm2199, %v3419
      %3642 = vst.msk [vmem:[#allocation2 + $0x128] sm:$0xff] %vm2199, %v3421
      %3643 = vst.msk [vmem:[#allocation2 + $0x140] sm:$0xff] %vm2199, %v3423
      %3644 = vst.msk [vmem:[#allocation2 + $0x158] sm:$0xff] %vm2199, %v3425
      %3645 = vst.msk [vmem:[#allocation2 + $0x170] sm:$0xff] %vm2199, %v3427
      %3646 = vst.msk [vmem:[#allocation2 + $0x188] sm:$0xff] %vm2199, %v3429
      %3647 = vst.msk [vmem:[#allocation2 + $0x1a0] sm:$0xff] %vm2199, %v3431
      %3648 = vst.msk [vmem:[#allocation2 + $0x1b8] sm:$0xff] %vm2199, %v3433
      %3649 = vst.msk [vmem:[#allocation2 + $0x1d0] sm:$0xff] %vm2199, %v3435
      %3650 = vst.msk [vmem:[#allocation2 + $0x1e8] sm:$0xff] %vm2199, %v3437
      %3651 = vst.msk [vmem:[#allocation2 + $0x200] sm:$0xff] %vm2199, %v3439
      %3652 = vst.msk [vmem:[#allocation2 + $0x218] sm:$0xff] %vm2199, %v3441
      %3653 = vst.msk [vmem:[#allocation2 + $0x230] sm:$0xff] %vm2199, %v3443
      %3654 = vst.msk [vmem:[#allocation2 + $0x248] sm:$0xff] %vm2199, %v3445
      %3655 = vst.msk [vmem:[#allocation2 + $0x260] sm:$0xff] %vm2199, %v3447
      %3656 = vst.msk [vmem:[#allocation2 + $0x278] sm:$0xff] %vm2199, %v3449
      %3657 = vst.msk [vmem:[#allocation2 + $0x290] sm:$0xff] %vm2199, %v3451
      %3658 = vst.msk [vmem:[#allocation2 + $0x2a8] sm:$0xff] %vm2199, %v3453
      %3659 = vst.msk [vmem:[#allocation2 + $0x2c0] sm:$0xff] %vm2199, %v3455
      %3660 = vst.msk [vmem:[#allocation2 + $0x2d8] sm:$0xff] %vm2199, %v3457
      %3661 = vst.msk [vmem:[#allocation2 + $0x2f0] sm:$0xff] %vm2199, %v3459
      %3662 = vst.msk [vmem:[#allocation2 + $0x308] sm:$0xff] %vm2199, %v3461
      %3663 = vst.msk [vmem:[#allocation2 + $0x320] sm:$0xff] %vm2199, %v3463
      %3664 = vst.msk [vmem:[#allocation2 + $0x338] sm:$0xff] %vm2199, %v3465
      %3665 = vst.msk [vmem:[#allocation2 + $0x350] sm:$0xff] %vm2199, %v3467
      %3666 = vst.msk [vmem:[#allocation2 + $0x368] sm:$0xff] %vm2199, %v3469
      %3667 = vst.msk [vmem:[#allocation2 + $0x380] sm:$0xff] %vm2199, %v3471
      %3668 = vst.msk [vmem:[#allocation2 + $0x398] sm:$0xff] %vm2199, %v3473
      %3669 = vst.msk [vmem:[#allocation2 + $0x3b0] sm:$0xff] %vm2199, %v3475
      %3670 = vst.msk [vmem:[#allocation2 + $0x3c8] sm:$0xff] %vm2199, %v3477
      %3671 = vst.msk [vmem:[#allocation2 + $0x3e0] sm:$0xff] %vm2199, %v3479
      %3672 = vst.msk [vmem:[#allocation2 + $0x3f8] sm:$0xff] %vm2199, %v3481
      %3673 = vst.msk [vmem:[#allocation2 + $0x410] sm:$0xff] %vm2199, %v3483
      %3674 = vst.msk [vmem:[#allocation2 + $0x428] sm:$0xff] %vm2199, %v3485
      %3675 = vst.msk [vmem:[#allocation2 + $0x440] sm:$0xff] %vm2199, %v3487
      %3676 = vst.msk [vmem:[#allocation2 + $0x458] sm:$0xff] %vm2199, %v3489
      %3677 = vst.msk [vmem:[#allocation2 + $0x470] sm:$0xff] %vm2199, %v3491
      %3678 = vst.msk [vmem:[#allocation2 + $0x488] sm:$0xff] %vm2199, %v3493
      %3679 = vst.msk [vmem:[#allocation2 + $0x4a0] sm:$0xff] %vm2199, %v3495
      %3680 = vst.msk [vmem:[#allocation2 + $0x4b8] sm:$0xff] %vm2199, %v3497
      %3681 = vst.msk [vmem:[#allocation2 + $0x4d0] sm:$0xff] %vm2199, %v3499
      %3682 = vst.msk [vmem:[#allocation2 + $0x4e8] sm:$0xff] %vm2199, %v3501
      %3683 = vst.msk [vmem:[#allocation2 + $0x500] sm:$0xff] %vm2199, %v3503
      %3684 = vst.msk [vmem:[#allocation2 + $0x518] sm:$0xff] %vm2199, %v3505
      %3685 = vst.msk [vmem:[#allocation2 + $0x530] sm:$0xff] %vm2199, %v3507
      %3686 = vst.msk [vmem:[#allocation2 + $0x548] sm:$0xff] %vm2199, %v3509
      %3687 = vst.msk [vmem:[#allocation2 + $0x560] sm:$0xff] %vm2199, %v3511
      %3688 = vst.msk [vmem:[#allocation2 + $0x578] sm:$0xff] %vm2199, %v3513
      %3689 = vst.msk [vmem:[#allocation2 + $0x590] sm:$0xff] %vm2199, %v3515
      %3690 = vst.msk [vmem:[#allocation2 + $0x5a8] sm:$0xff] %vm2199, %v3517
      %3691 = vst.msk [vmem:[#allocation2 + $0x5c0] sm:$0xff] %vm2199, %v3519
      %3692 = vst.msk [vmem:[#allocation2 + $0x5d8] sm:$0xff] %vm2199, %v3521
      %3693 = vst.msk [vmem:[#allocation2 + $0x5f0] sm:$0xff] %vm2199, %v3523
      %3694 = vst.msk [vmem:[#allocation2 + $0x608] sm:$0xff] %vm2199, %v3525
      %3695 = vst.msk [vmem:[#allocation2 + $0x620] sm:$0xff] %vm2199, %v3527
      %3696 = vst.msk [vmem:[#allocation2 + $0x638] sm:$0xff] %vm2199, %v3529
      %3697 = vst.msk [vmem:[#allocation2 + $0x650] sm:$0xff] %vm2199, %v3531
      %3698 = vst.msk [vmem:[#allocation2 + $0x668] sm:$0xff] %vm2199, %v3533
      %3699 = vst.msk [vmem:[#allocation2 + $0x680] sm:$0xff] %vm2199, %v3535
      %3700 = vst.msk [vmem:[#allocation2 + $0x698] sm:$0xff] %vm2199, %v3537
      %3701 = vst.msk [vmem:[#allocation2 + $0x6b0] sm:$0xff] %vm2199, %v3539
      %3702 = vst.msk [vmem:[#allocation2 + $0x6c8] sm:$0xff] %vm2199, %v3541
      %3703 = vst.msk [vmem:[#allocation2 + $0x6e0] sm:$0xff] %vm2199, %v3543
      %3704 = vst.msk [vmem:[#allocation2 + $0x6f8] sm:$0xff] %vm2199, %v3545
      %3705 = vst.msk [vmem:[#allocation2 + $0x710] sm:$0xff] %vm2199, %v3547
      %3706 = vst.msk [vmem:[#allocation2 + $0x728] sm:$0xff] %vm2199, %v3549
      %3707 = vst.msk [vmem:[#allocation2 + $0x740] sm:$0x3f] %vm2277, %v3551
      %vm3708 = vcmask 1042432
      %v3709 = vrot.slane %v1102, 5
      %v3710 = vrot.slane %v1103, 5
      %v3711 = vsel %vm3708, %v3709, %v3710
      %v3712 = vrot.slane %v1104, 5
      %v3713 = vsel %vm3708, %v3710, %v3712
      %v3714 = vrot.slane %v1105, 5
      %v3715 = vsel %vm3708, %v3712, %v3714
      %v3716 = vrot.slane %v1106, 5
      %v3717 = vsel %vm3708, %v3714, %v3716
      %v3718 = vrot.slane %v1107, 5
      %v3719 = vsel %vm3708, %v3716, %v3718
      %v3720 = vrot.slane %v1108, 5
      %v3721 = vsel %vm3708, %v3718, %v3720
      %v3722 = vrot.slane %v1109, 5
      %v3723 = vsel %vm3708, %v3720, %v3722
      %v3724 = vrot.slane %v1110, 5
      %v3725 = vsel %vm3708, %v3722, %v3724
      %v3726 = vrot.slane %v1111, 5
      %v3727 = vsel %vm3708, %v3724, %v3726
      %v3728 = vrot.slane %v1112, 5
      %v3729 = vsel %vm3708, %v3726, %v3728
      %v3730 = vrot.slane %v1113, 5
      %v3731 = vsel %vm3708, %v3728, %v3730
      %v3732 = vrot.slane %v1114, 5
      %v3733 = vsel %vm3708, %v3730, %v3732
      %v3734 = vrot.slane %v1115, 5
      %v3735 = vsel %vm3708, %v3732, %v3734
      %v3736 = vrot.slane %v1116, 5
      %v3737 = vsel %vm3708, %v3734, %v3736
      %v3738 = vrot.slane %v1117, 5
      %v3739 = vsel %vm3708, %v3736, %v3738
      %v3740 = vrot.slane %v1118, 5
      %v3741 = vsel %vm3708, %v3738, %v3740
      %v3742 = vrot.slane %v1119, 5
      %v3743 = vsel %vm3708, %v3740, %v3742
      %v3744 = vrot.slane %v1120, 5
      %v3745 = vsel %vm3708, %v3742, %v3744
      %v3746 = vrot.slane %v1121, 5
      %v3747 = vsel %vm3708, %v3744, %v3746
      %v3748 = vrot.slane %v1122, 5
      %v3749 = vsel %vm3708, %v3746, %v3748
      %v3750 = vrot.slane %v1123, 5
      %v3751 = vsel %vm3708, %v3748, %v3750
      %v3752 = vrot.slane %v1124, 5
      %v3753 = vsel %vm3708, %v3750, %v3752
      %v3754 = vrot.slane %v1125, 5
      %v3755 = vsel %vm3708, %v3752, %v3754
      %v3756 = vrot.slane %v1126, 5
      %v3757 = vsel %vm3708, %v3754, %v3756
      %v3758 = vrot.slane %v1127, 5
      %v3759 = vsel %vm3708, %v3756, %v3758
      %v3760 = vrot.slane %v1128, 5
      %v3761 = vsel %vm3708, %v3758, %v3760
      %v3762 = vrot.slane %v1129, 5
      %v3763 = vsel %vm3708, %v3760, %v3762
      %v3764 = vrot.slane %v1130, 5
      %v3765 = vsel %vm3708, %v3762, %v3764
      %v3766 = vrot.slane %v1131, 5
      %v3767 = vsel %vm3708, %v3764, %v3766
      %v3768 = vrot.slane %v1132, 5
      %v3769 = vsel %vm3708, %v3766, %v3768
      %v3770 = vrot.slane %v1133, 5
      %v3771 = vsel %vm3708, %v3768, %v3770
      %v3772 = vrot.slane %v1134, 5
      %v3773 = vsel %vm3708, %v3770, %v3772
      %v3774 = vrot.slane %v1135, 5
      %v3775 = vsel %vm3708, %v3772, %v3774
      %v3776 = vrot.slane %v1136, 5
      %v3777 = vsel %vm3708, %v3774, %v3776
      %v3778 = vrot.slane %v1137, 5
      %v3779 = vsel %vm3708, %v3776, %v3778
      %v3780 = vrot.slane %v1138, 5
      %v3781 = vsel %vm3708, %v3778, %v3780
      %v3782 = vrot.slane %v1139, 5
      %v3783 = vsel %vm3708, %v3780, %v3782
      %v3784 = vrot.slane %v1140, 5
      %v3785 = vsel %vm3708, %v3782, %v3784
      %v3786 = vrot.slane %v1141, 5
      %v3787 = vsel %vm3708, %v3784, %v3786
      %v3788 = vrot.slane %v1142, 5
      %v3789 = vsel %vm3708, %v3786, %v3788
      %v3790 = vrot.slane %v1143, 5
      %v3791 = vsel %vm3708, %v3788, %v3790
      %v3792 = vrot.slane %v1144, 5
      %v3793 = vsel %vm3708, %v3790, %v3792
      %v3794 = vrot.slane %v1145, 5
      %v3795 = vsel %vm3708, %v3792, %v3794
      %v3796 = vrot.slane %v1146, 5
      %v3797 = vsel %vm3708, %v3794, %v3796
      %v3798 = vrot.slane %v1147, 5
      %v3799 = vsel %vm3708, %v3796, %v3798
      %v3800 = vrot.slane %v1148, 5
      %v3801 = vsel %vm3708, %v3798, %v3800
      %v3802 = vrot.slane %v1149, 5
      %v3803 = vsel %vm3708, %v3800, %v3802
      %v3804 = vrot.slane %v1150, 5
      %v3805 = vsel %vm3708, %v3802, %v3804
      %v3806 = vrot.slane %v1151, 5
      %v3807 = vsel %vm3708, %v3804, %v3806
      %v3808 = vrot.slane %v1152, 5
      %v3809 = vsel %vm3708, %v3806, %v3808
      %v3810 = vrot.slane %v1153, 5
      %v3811 = vsel %vm3708, %v3808, %v3810
      %v3812 = vrot.slane %v1154, 5
      %v3813 = vsel %vm3708, %v3810, %v3812
      %v3814 = vrot.slane %v1155, 5
      %v3815 = vsel %vm3708, %v3812, %v3814
      %v3816 = vrot.slane %v1156, 5
      %v3817 = vsel %vm3708, %v3814, %v3816
      %v3818 = vrot.slane %v1157, 5
      %v3819 = vsel %vm3708, %v3816, %v3818
      %v3820 = vrot.slane %v1158, 5
      %v3821 = vsel %vm3708, %v3818, %v3820
      %v3822 = vrot.slane %v1159, 5
      %v3823 = vsel %vm3708, %v3820, %v3822
      %v3824 = vrot.slane %v1160, 5
      %v3825 = vsel %vm3708, %v3822, %v3824
      %v3826 = vrot.slane %v1161, 5
      %v3827 = vsel %vm3708, %v3824, %v3826
      %v3828 = vrot.slane %v1162, 5
      %v3829 = vsel %vm3708, %v3826, %v3828
      %v3830 = vrot.slane %v1163, 5
      %v3831 = vsel %vm3708, %v3828, %v3830
      %v3832 = vrot.slane %v1164, 5
      %v3833 = vsel %vm3708, %v3830, %v3832
      %v3834 = vrot.slane %v1165, 5
      %v3835 = vsel %vm3708, %v3832, %v3834
      %v3836 = vrot.slane %v1166, 5
      %v3837 = vsel %vm3708, %v3834, %v3836
      %v3838 = vrot.slane %v1167, 5
      %v3839 = vsel %vm3708, %v3836, %v3838
      %v3840 = vrot.slane %v1168, 5
      %v3841 = vsel %vm3708, %v3838, %v3840
      %v3842 = vrot.slane %v1169, 5
      %v3843 = vsel %vm3708, %v3840, %v3842
      %v3844 = vrot.slane %v1170, 5
      %v3845 = vsel %vm3708, %v3842, %v3844
      %v3846 = vrot.slane %v1171, 5
      %v3847 = vsel %vm3708, %v3844, %v3846
      %v3848 = vrot.slane %v1172, 5
      %v3849 = vsel %vm3708, %v3846, %v3848
      %v3850 = vrot.slane %v1173, 5
      %v3851 = vsel %vm3708, %v3848, %v3850
      %v3852 = vrot.slane %v1174, 5
      %v3853 = vsel %vm3708, %v3850, %v3852
      %v3854 = vrot.slane %v1175, 5
      %v3855 = vsel %vm3708, %v3852, %v3854
      %v3856 = vrot.slane %v1176, 5
      %v3857 = vsel %vm3708, %v3854, %v3856
      %v3858 = vrot.slane %v1177, 5
      %v3859 = vsel %vm3708, %v3856, %v3858
      %v3860 = vrot.slane %v1178, 5
      %v3861 = vsel %vm3708, %v3858, %v3860
      %v3862 = vrot.slane %v1179, 5
      %v3863 = vsel %vm3708, %v3860, %v3862
      %v3864 = vrot.slane %v1180, 5
      %v3865 = vsel %vm3708, %v3862, %v3864
      %3866 = vrot.lane.b32.xlu0 %v3711, 96
      %v3867 = vpop.permute.xlu0 %3866
      %3868 = vrot.lane.b32.xlu0 %v3713, 96
      %v3869 = vpop.permute.xlu0 %3868
      %3870 = vrot.lane.b32.xlu0 %v3715, 96
      %v3871 = vpop.permute.xlu0 %3870
      %3872 = vrot.lane.b32.xlu0 %v3717, 96
      %v3873 = vpop.permute.xlu0 %3872
      %3874 = vrot.lane.b32.xlu0 %v3719, 96
      %v3875 = vpop.permute.xlu0 %3874
      %3876 = vrot.lane.b32.xlu0 %v3721, 96
      %v3877 = vpop.permute.xlu0 %3876
      %3878 = vrot.lane.b32.xlu0 %v3723, 96
      %v3879 = vpop.permute.xlu0 %3878
      %3880 = vrot.lane.b32.xlu0 %v3725, 96
      %v3881 = vpop.permute.xlu0 %3880
      %3882 = vrot.lane.b32.xlu0 %v3727, 96
      %v3883 = vpop.permute.xlu0 %3882
      %3884 = vrot.lane.b32.xlu0 %v3729, 96
      %v3885 = vpop.permute.xlu0 %3884
      %3886 = vrot.lane.b32.xlu0 %v3731, 96
      %v3887 = vpop.permute.xlu0 %3886
      %3888 = vrot.lane.b32.xlu0 %v3733, 96
      %v3889 = vpop.permute.xlu0 %3888
      %3890 = vrot.lane.b32.xlu0 %v3735, 96
      %v3891 = vpop.permute.xlu0 %3890
      %3892 = vrot.lane.b32.xlu0 %v3737, 96
      %v3893 = vpop.permute.xlu0 %3892
      %3894 = vrot.lane.b32.xlu0 %v3739, 96
      %v3895 = vpop.permute.xlu0 %3894
      %3896 = vrot.lane.b32.xlu0 %v3741, 96
      %v3897 = vpop.permute.xlu0 %3896
      %3898 = vrot.lane.b32.xlu0 %v3743, 96
      %v3899 = vpop.permute.xlu0 %3898
      %3900 = vrot.lane.b32.xlu0 %v3745, 96
      %v3901 = vpop.permute.xlu0 %3900
      %3902 = vrot.lane.b32.xlu0 %v3747, 96
      %v3903 = vpop.permute.xlu0 %3902
      %3904 = vrot.lane.b32.xlu0 %v3749, 96
      %v3905 = vpop.permute.xlu0 %3904
      %3906 = vrot.lane.b32.xlu0 %v3751, 96
      %v3907 = vpop.permute.xlu0 %3906
      %3908 = vrot.lane.b32.xlu0 %v3753, 96
      %v3909 = vpop.permute.xlu0 %3908
      %3910 = vrot.lane.b32.xlu0 %v3755, 96
      %v3911 = vpop.permute.xlu0 %3910
      %3912 = vrot.lane.b32.xlu0 %v3757, 96
      %v3913 = vpop.permute.xlu0 %3912
      %3914 = vrot.lane.b32.xlu0 %v3759, 96
      %v3915 = vpop.permute.xlu0 %3914
      %3916 = vrot.lane.b32.xlu0 %v3761, 96
      %v3917 = vpop.permute.xlu0 %3916
      %3918 = vrot.lane.b32.xlu0 %v3763, 96
      %v3919 = vpop.permute.xlu0 %3918
      %3920 = vrot.lane.b32.xlu0 %v3765, 96
      %v3921 = vpop.permute.xlu0 %3920
      %3922 = vrot.lane.b32.xlu0 %v3767, 96
      %v3923 = vpop.permute.xlu0 %3922
      %3924 = vrot.lane.b32.xlu0 %v3769, 96
      %v3925 = vpop.permute.xlu0 %3924
      %3926 = vrot.lane.b32.xlu0 %v3771, 96
      %v3927 = vpop.permute.xlu0 %3926
      %3928 = vrot.lane.b32.xlu0 %v3773, 96
      %v3929 = vpop.permute.xlu0 %3928
      %3930 = vrot.lane.b32.xlu0 %v3775, 96
      %v3931 = vpop.permute.xlu0 %3930
      %3932 = vrot.lane.b32.xlu0 %v3777, 96
      %v3933 = vpop.permute.xlu0 %3932
      %3934 = vrot.lane.b32.xlu0 %v3779, 96
      %v3935 = vpop.permute.xlu0 %3934
      %3936 = vrot.lane.b32.xlu0 %v3781, 96
      %v3937 = vpop.permute.xlu0 %3936
      %3938 = vrot.lane.b32.xlu0 %v3783, 96
      %v3939 = vpop.permute.xlu0 %3938
      %3940 = vrot.lane.b32.xlu0 %v3785, 96
      %v3941 = vpop.permute.xlu0 %3940
      %3942 = vrot.lane.b32.xlu0 %v3787, 96
      %v3943 = vpop.permute.xlu0 %3942
      %3944 = vrot.lane.b32.xlu0 %v3789, 96
      %v3945 = vpop.permute.xlu0 %3944
      %3946 = vrot.lane.b32.xlu0 %v3791, 96
      %v3947 = vpop.permute.xlu0 %3946
      %3948 = vrot.lane.b32.xlu0 %v3793, 96
      %v3949 = vpop.permute.xlu0 %3948
      %3950 = vrot.lane.b32.xlu0 %v3795, 96
      %v3951 = vpop.permute.xlu0 %3950
      %3952 = vrot.lane.b32.xlu0 %v3797, 96
      %v3953 = vpop.permute.xlu0 %3952
      %3954 = vrot.lane.b32.xlu0 %v3799, 96
      %v3955 = vpop.permute.xlu0 %3954
      %3956 = vrot.lane.b32.xlu0 %v3801, 96
      %v3957 = vpop.permute.xlu0 %3956
      %3958 = vrot.lane.b32.xlu0 %v3803, 96
      %v3959 = vpop.permute.xlu0 %3958
      %3960 = vrot.lane.b32.xlu0 %v3805, 96
      %v3961 = vpop.permute.xlu0 %3960
      %3962 = vrot.lane.b32.xlu0 %v3807, 96
      %v3963 = vpop.permute.xlu0 %3962
      %3964 = vrot.lane.b32.xlu0 %v3809, 96
      %v3965 = vpop.permute.xlu0 %3964
      %3966 = vrot.lane.b32.xlu0 %v3811, 96
      %v3967 = vpop.permute.xlu0 %3966
      %3968 = vrot.lane.b32.xlu0 %v3813, 96
      %v3969 = vpop.permute.xlu0 %3968
      %3970 = vrot.lane.b32.xlu0 %v3815, 96
      %v3971 = vpop.permute.xlu0 %3970
      %3972 = vrot.lane.b32.xlu0 %v3817, 96
      %v3973 = vpop.permute.xlu0 %3972
      %3974 = vrot.lane.b32.xlu0 %v3819, 96
      %v3975 = vpop.permute.xlu0 %3974
      %3976 = vrot.lane.b32.xlu0 %v3821, 96
      %v3977 = vpop.permute.xlu0 %3976
      %3978 = vrot.lane.b32.xlu0 %v3823, 96
      %v3979 = vpop.permute.xlu0 %3978
      %3980 = vrot.lane.b32.xlu0 %v3825, 96
      %v3981 = vpop.permute.xlu0 %3980
      %3982 = vrot.lane.b32.xlu0 %v3827, 96
      %v3983 = vpop.permute.xlu0 %3982
      %3984 = vrot.lane.b32.xlu0 %v3829, 96
      %v3985 = vpop.permute.xlu0 %3984
      %3986 = vrot.lane.b32.xlu0 %v3831, 96
      %v3987 = vpop.permute.xlu0 %3986
      %3988 = vrot.lane.b32.xlu0 %v3833, 96
      %v3989 = vpop.permute.xlu0 %3988
      %3990 = vrot.lane.b32.xlu0 %v3835, 96
      %v3991 = vpop.permute.xlu0 %3990
      %3992 = vrot.lane.b32.xlu0 %v3837, 96
      %v3993 = vpop.permute.xlu0 %3992
      %3994 = vrot.lane.b32.xlu0 %v3839, 96
      %v3995 = vpop.permute.xlu0 %3994
      %3996 = vrot.lane.b32.xlu0 %v3841, 96
      %v3997 = vpop.permute.xlu0 %3996
      %3998 = vrot.lane.b32.xlu0 %v3843, 96
      %v3999 = vpop.permute.xlu0 %3998
      %4000 = vrot.lane.b32.xlu0 %v3845, 96
      %v4001 = vpop.permute.xlu0 %4000
      %4002 = vrot.lane.b32.xlu0 %v3847, 96
      %v4003 = vpop.permute.xlu0 %4002
      %4004 = vrot.lane.b32.xlu0 %v3849, 96
      %v4005 = vpop.permute.xlu0 %4004
      %4006 = vrot.lane.b32.xlu0 %v3851, 96
      %v4007 = vpop.permute.xlu0 %4006
      %4008 = vrot.lane.b32.xlu0 %v3853, 96
      %v4009 = vpop.permute.xlu0 %4008
      %4010 = vrot.lane.b32.xlu0 %v3855, 96
      %v4011 = vpop.permute.xlu0 %4010
      %4012 = vrot.lane.b32.xlu0 %v3857, 96
      %v4013 = vpop.permute.xlu0 %4012
      %4014 = vrot.lane.b32.xlu0 %v3859, 96
      %v4015 = vpop.permute.xlu0 %4014
      %4016 = vrot.lane.b32.xlu0 %v3861, 96
      %v4017 = vpop.permute.xlu0 %4016
      %4018 = vrot.lane.b32.xlu0 %v3863, 96
      %v4019 = vpop.permute.xlu0 %4018
      %4020 = vrot.lane.b32.xlu0 %v3865, 96
      %v4021 = vpop.permute.xlu0 %4020
      %4100 = vst.msk [vmem:[#allocation2 + $0x8] sm:$0xff] %vm2522, %v3867
      %4101 = vst.msk [vmem:[#allocation2 + $0x20] sm:$0xff] %vm2522, %v3869
      %4102 = vst.msk [vmem:[#allocation2 + $0x38] sm:$0xff] %vm2522, %v3871
      %4103 = vst.msk [vmem:[#allocation2 + $0x50] sm:$0xff] %vm2522, %v3873
      %4104 = vst.msk [vmem:[#allocation2 + $0x68] sm:$0xff] %vm2522, %v3875
      %4105 = vst.msk [vmem:[#allocation2 + $0x80] sm:$0xff] %vm2522, %v3877
      %4106 = vst.msk [vmem:[#allocation2 + $0x98] sm:$0xff] %vm2522, %v3879
      %4107 = vst.msk [vmem:[#allocation2 + $0xb0] sm:$0xff] %vm2522, %v3881
      %4108 = vst.msk [vmem:[#allocation2 + $0xc8] sm:$0xff] %vm2522, %v3883
      %4109 = vst.msk [vmem:[#allocation2 + $0xe0] sm:$0xff] %vm2522, %v3885
      %4110 = vst.msk [vmem:[#allocation2 + $0xf8] sm:$0xff] %vm2522, %v3887
      %4111 = vst.msk [vmem:[#allocation2 + $0x110] sm:$0xff] %vm2522, %v3889
      %4112 = vst.msk [vmem:[#allocation2 + $0x128] sm:$0xff] %vm2522, %v3891
      %4113 = vst.msk [vmem:[#allocation2 + $0x140] sm:$0xff] %vm2522, %v3893
      %4114 = vst.msk [vmem:[#allocation2 + $0x158] sm:$0xff] %vm2522, %v3895
      %4115 = vst.msk [vmem:[#allocation2 + $0x170] sm:$0xff] %vm2522, %v3897
      %4116 = vst.msk [vmem:[#allocation2 + $0x188] sm:$0xff] %vm2522, %v3899
      %4117 = vst.msk [vmem:[#allocation2 + $0x1a0] sm:$0xff] %vm2522, %v3901
      %4118 = vst.msk [vmem:[#allocation2 + $0x1b8] sm:$0xff] %vm2522, %v3903
      %4119 = vst.msk [vmem:[#allocation2 + $0x1d0] sm:$0xff] %vm2522, %v3905
      %4120 = vst.msk [vmem:[#allocation2 + $0x1e8] sm:$0xff] %vm2522, %v3907
      %4121 = vst.msk [vmem:[#allocation2 + $0x200] sm:$0xff] %vm2522, %v3909
      %4122 = vst.msk [vmem:[#allocation2 + $0x218] sm:$0xff] %vm2522, %v3911
      %4123 = vst.msk [vmem:[#allocation2 + $0x230] sm:$0xff] %vm2522, %v3913
      %4124 = vst.msk [vmem:[#allocation2 + $0x248] sm:$0xff] %vm2522, %v3915
      %4125 = vst.msk [vmem:[#allocation2 + $0x260] sm:$0xff] %vm2522, %v3917
      %4126 = vst.msk [vmem:[#allocation2 + $0x278] sm:$0xff] %vm2522, %v3919
      %4127 = vst.msk [vmem:[#allocation2 + $0x290] sm:$0xff] %vm2522, %v3921
      %4128 = vst.msk [vmem:[#allocation2 + $0x2a8] sm:$0xff] %vm2522, %v3923
      %4129 = vst.msk [vmem:[#allocation2 + $0x2c0] sm:$0xff] %vm2522, %v3925
      %4130 = vst.msk [vmem:[#allocation2 + $0x2d8] sm:$0xff] %vm2522, %v3927
      %4131 = vst.msk [vmem:[#allocation2 + $0x2f0] sm:$0xff] %vm2522, %v3929
      %4132 = vst.msk [vmem:[#allocation2 + $0x308] sm:$0xff] %vm2522, %v3931
      %4133 = vst.msk [vmem:[#allocation2 + $0x320] sm:$0xff] %vm2522, %v3933
      %4134 = vst.msk [vmem:[#allocation2 + $0x338] sm:$0xff] %vm2522, %v3935
      %4135 = vst.msk [vmem:[#allocation2 + $0x350] sm:$0xff] %vm2522, %v3937
      %4136 = vst.msk [vmem:[#allocation2 + $0x368] sm:$0xff] %vm2522, %v3939
      %4137 = vst.msk [vmem:[#allocation2 + $0x380] sm:$0xff] %vm2522, %v3941
      %4138 = vst.msk [vmem:[#allocation2 + $0x398] sm:$0xff] %vm2522, %v3943
      %4139 = vst.msk [vmem:[#allocation2 + $0x3b0] sm:$0xff] %vm2522, %v3945
      %4140 = vst.msk [vmem:[#allocation2 + $0x3c8] sm:$0xff] %vm2522, %v3947
      %4141 = vst.msk [vmem:[#allocation2 + $0x3e0] sm:$0xff] %vm2522, %v3949
      %4142 = vst.msk [vmem:[#allocation2 + $0x3f8] sm:$0xff] %vm2522, %v3951
      %4143 = vst.msk [vmem:[#allocation2 + $0x410] sm:$0xff] %vm2522, %v3953
      %4144 = vst.msk [vmem:[#allocation2 + $0x428] sm:$0xff] %vm2522, %v3955
      %4145 = vst.msk [vmem:[#allocation2 + $0x440] sm:$0xff] %vm2522, %v3957
      %4146 = vst.msk [vmem:[#allocation2 + $0x458] sm:$0xff] %vm2522, %v3959
      %4147 = vst.msk [vmem:[#allocation2 + $0x470] sm:$0xff] %vm2522, %v3961
      %4148 = vst.msk [vmem:[#allocation2 + $0x488] sm:$0xff] %vm2522, %v3963
      %4149 = vst.msk [vmem:[#allocation2 + $0x4a0] sm:$0xff] %vm2522, %v3965
      %4150 = vst.msk [vmem:[#allocation2 + $0x4b8] sm:$0xff] %vm2522, %v3967
      %4151 = vst.msk [vmem:[#allocation2 + $0x4d0] sm:$0xff] %vm2522, %v3969
      %4152 = vst.msk [vmem:[#allocation2 + $0x4e8] sm:$0xff] %vm2522, %v3971
      %4153 = vst.msk [vmem:[#allocation2 + $0x500] sm:$0xff] %vm2522, %v3973
      %4154 = vst.msk [vmem:[#allocation2 + $0x518] sm:$0xff] %vm2522, %v3975
      %4155 = vst.msk [vmem:[#allocation2 + $0x530] sm:$0xff] %vm2522, %v3977
      %4156 = vst.msk [vmem:[#allocation2 + $0x548] sm:$0xff] %vm2522, %v3979
      %4157 = vst.msk [vmem:[#allocation2 + $0x560] sm:$0xff] %vm2522, %v3981
      %4158 = vst.msk [vmem:[#allocation2 + $0x578] sm:$0xff] %vm2522, %v3983
      %4159 = vst.msk [vmem:[#allocation2 + $0x590] sm:$0xff] %vm2522, %v3985
      %4160 = vst.msk [vmem:[#allocation2 + $0x5a8] sm:$0xff] %vm2522, %v3987
      %4161 = vst.msk [vmem:[#allocation2 + $0x5c0] sm:$0xff] %vm2522, %v3989
      %4162 = vst.msk [vmem:[#allocation2 + $0x5d8] sm:$0xff] %vm2522, %v3991
      %4163 = vst.msk [vmem:[#allocation2 + $0x5f0] sm:$0xff] %vm2522, %v3993
      %4164 = vst.msk [vmem:[#allocation2 + $0x608] sm:$0xff] %vm2522, %v3995
      %4165 = vst.msk [vmem:[#allocation2 + $0x620] sm:$0xff] %vm2522, %v3997
      %4166 = vst.msk [vmem:[#allocation2 + $0x638] sm:$0xff] %vm2522, %v3999
      %4167 = vst.msk [vmem:[#allocation2 + $0x650] sm:$0xff] %vm2522, %v4001
      %4168 = vst.msk [vmem:[#allocation2 + $0x668] sm:$0xff] %vm2522, %v4003
      %4169 = vst.msk [vmem:[#allocation2 + $0x680] sm:$0xff] %vm2522, %v4005
      %4170 = vst.msk [vmem:[#allocation2 + $0x698] sm:$0xff] %vm2522, %v4007
      %4171 = vst.msk [vmem:[#allocation2 + $0x6b0] sm:$0xff] %vm2522, %v4009
      %4172 = vst.msk [vmem:[#allocation2 + $0x6c8] sm:$0xff] %vm2522, %v4011
      %4173 = vst.msk [vmem:[#allocation2 + $0x6e0] sm:$0xff] %vm2522, %v4013
      %4174 = vst.msk [vmem:[#allocation2 + $0x6f8] sm:$0xff] %vm2522, %v4015
      %4175 = vst.msk [vmem:[#allocation2 + $0x710] sm:$0xff] %vm2522, %v4017
      %4176 = vst.msk [vmem:[#allocation2 + $0x728] sm:$0xff] %vm2522, %v4019
      %4177 = vst.msk [vmem:[#allocation2 + $0x740] sm:$0x3f] %vm2600, %v4021
      %vm4178 = vcmask 1041408
      %v4179 = vrot.slane %v1102, 6
      %v4180 = vrot.slane %v1103, 6
      %v4181 = vsel %vm4178, %v4179, %v4180
      %v4182 = vrot.slane %v1104, 6
      %v4183 = vsel %vm4178, %v4180, %v4182
      %v4184 = vrot.slane %v1105, 6
      %v4185 = vsel %vm4178, %v4182, %v4184
      %v4186 = vrot.slane %v1106, 6
      %v4187 = vsel %vm4178, %v4184, %v4186
      %v4188 = vrot.slane %v1107, 6
      %v4189 = vsel %vm4178, %v4186, %v4188
      %v4190 = vrot.slane %v1108, 6
      %v4191 = vsel %vm4178, %v4188, %v4190
      %v4192 = vrot.slane %v1109, 6
      %v4193 = vsel %vm4178, %v4190, %v4192
      %v4194 = vrot.slane %v1110, 6
      %v4195 = vsel %vm4178, %v4192, %v4194
      %v4196 = vrot.slane %v1111, 6
      %v4197 = vsel %vm4178, %v4194, %v4196
      %v4198 = vrot.slane %v1112, 6
      %v4199 = vsel %vm4178, %v4196, %v4198
      %v4200 = vrot.slane %v1113, 6
      %v4201 = vsel %vm4178, %v4198, %v4200
      %v4202 = vrot.slane %v1114, 6
      %v4203 = vsel %vm4178, %v4200, %v4202
      %v4204 = vrot.slane %v1115, 6
      %v4205 = vsel %vm4178, %v4202, %v4204
      %v4206 = vrot.slane %v1116, 6
      %v4207 = vsel %vm4178, %v4204, %v4206
      %v4208 = vrot.slane %v1117, 6
      %v4209 = vsel %vm4178, %v4206, %v4208
      %v4210 = vrot.slane %v1118, 6
      %v4211 = vsel %vm4178, %v4208, %v4210
      %v4212 = vrot.slane %v1119, 6
      %v4213 = vsel %vm4178, %v4210, %v4212
      %v4214 = vrot.slane %v1120, 6
      %v4215 = vsel %vm4178, %v4212, %v4214
      %v4216 = vrot.slane %v1121, 6
      %v4217 = vsel %vm4178, %v4214, %v4216
      %v4218 = vrot.slane %v1122, 6
      %v4219 = vsel %vm4178, %v4216, %v4218
      %v4220 = vrot.slane %v1123, 6
      %v4221 = vsel %vm4178, %v4218, %v4220
      %v4222 = vrot.slane %v1124, 6
      %v4223 = vsel %vm4178, %v4220, %v4222
      %v4224 = vrot.slane %v1125, 6
      %v4225 = vsel %vm4178, %v4222, %v4224
      %v4226 = vrot.slane %v1126, 6
      %v4227 = vsel %vm4178, %v4224, %v4226
      %v4228 = vrot.slane %v1127, 6
      %v4229 = vsel %vm4178, %v4226, %v4228
      %v4230 = vrot.slane %v1128, 6
      %v4231 = vsel %vm4178, %v4228, %v4230
      %v4232 = vrot.slane %v1129, 6
      %v4233 = vsel %vm4178, %v4230, %v4232
      %v4234 = vrot.slane %v1130, 6
      %v4235 = vsel %vm4178, %v4232, %v4234
      %v4236 = vrot.slane %v1131, 6
      %v4237 = vsel %vm4178, %v4234, %v4236
      %v4238 = vrot.slane %v1132, 6
      %v4239 = vsel %vm4178, %v4236, %v4238
      %v4240 = vrot.slane %v1133, 6
      %v4241 = vsel %vm4178, %v4238, %v4240
      %v4242 = vrot.slane %v1134, 6
      %v4243 = vsel %vm4178, %v4240, %v4242
      %v4244 = vrot.slane %v1135, 6
      %v4245 = vsel %vm4178, %v4242, %v4244
      %v4246 = vrot.slane %v1136, 6
      %v4247 = vsel %vm4178, %v4244, %v4246
      %v4248 = vrot.slane %v1137, 6
      %v4249 = vsel %vm4178, %v4246, %v4248
      %v4250 = vrot.slane %v1138, 6
      %v4251 = vsel %vm4178, %v4248, %v4250
      %v4252 = vrot.slane %v1139, 6
      %v4253 = vsel %vm4178, %v4250, %v4252
      %v4254 = vrot.slane %v1140, 6
      %v4255 = vsel %vm4178, %v4252, %v4254
      %v4256 = vrot.slane %v1141, 6
      %v4257 = vsel %vm4178, %v4254, %v4256
      %v4258 = vrot.slane %v1142, 6
      %v4259 = vsel %vm4178, %v4256, %v4258
      %v4260 = vrot.slane %v1143, 6
      %v4261 = vsel %vm4178, %v4258, %v4260
      %v4262 = vrot.slane %v1144, 6
      %v4263 = vsel %vm4178, %v4260, %v4262
      %v4264 = vrot.slane %v1145, 6
      %v4265 = vsel %vm4178, %v4262, %v4264
      %v4266 = vrot.slane %v1146, 6
      %v4267 = vsel %vm4178, %v4264, %v4266
      %v4268 = vrot.slane %v1147, 6
      %v4269 = vsel %vm4178, %v4266, %v4268
      %v4270 = vrot.slane %v1148, 6
      %v4271 = vsel %vm4178, %v4268, %v4270
      %v4272 = vrot.slane %v1149, 6
      %v4273 = vsel %vm4178, %v4270, %v4272
      %v4274 = vrot.slane %v1150, 6
      %v4275 = vsel %vm4178, %v4272, %v4274
      %v4276 = vrot.slane %v1151, 6
      %v4277 = vsel %vm4178, %v4274, %v4276
      %v4278 = vrot.slane %v1152, 6
      %v4279 = vsel %vm4178, %v4276, %v4278
      %v4280 = vrot.slane %v1153, 6
      %v4281 = vsel %vm4178, %v4278, %v4280
      %v4282 = vrot.slane %v1154, 6
      %v4283 = vsel %vm4178, %v4280, %v4282
      %v4284 = vrot.slane %v1155, 6
      %v4285 = vsel %vm4178, %v4282, %v4284
      %v4286 = vrot.slane %v1156, 6
      %v4287 = vsel %vm4178, %v4284, %v4286
      %v4288 = vrot.slane %v1157, 6
      %v4289 = vsel %vm4178, %v4286, %v4288
      %v4290 = vrot.slane %v1158, 6
      %v4291 = vsel %vm4178, %v4288, %v4290
      %v4292 = vrot.slane %v1159, 6
      %v4293 = vsel %vm4178, %v4290, %v4292
      %v4294 = vrot.slane %v1160, 6
      %v4295 = vsel %vm4178, %v4292, %v4294
      %v4296 = vrot.slane %v1161, 6
      %v4297 = vsel %vm4178, %v4294, %v4296
      %v4298 = vrot.slane %v1162, 6
      %v4299 = vsel %vm4178, %v4296, %v4298
      %v4300 = vrot.slane %v1163, 6
      %v4301 = vsel %vm4178, %v4298, %v4300
      %v4302 = vrot.slane %v1164, 6
      %v4303 = vsel %vm4178, %v4300, %v4302
      %v4304 = vrot.slane %v1165, 6
      %v4305 = vsel %vm4178, %v4302, %v4304
      %v4306 = vrot.slane %v1166, 6
      %v4307 = vsel %vm4178, %v4304, %v4306
      %v4308 = vrot.slane %v1167, 6
      %v4309 = vsel %vm4178, %v4306, %v4308
      %v4310 = vrot.slane %v1168, 6
      %v4311 = vsel %vm4178, %v4308, %v4310
      %v4312 = vrot.slane %v1169, 6
      %v4313 = vsel %vm4178, %v4310, %v4312
      %v4314 = vrot.slane %v1170, 6
      %v4315 = vsel %vm4178, %v4312, %v4314
      %v4316 = vrot.slane %v1171, 6
      %v4317 = vsel %vm4178, %v4314, %v4316
      %v4318 = vrot.slane %v1172, 6
      %v4319 = vsel %vm4178, %v4316, %v4318
      %v4320 = vrot.slane %v1173, 6
      %v4321 = vsel %vm4178, %v4318, %v4320
      %v4322 = vrot.slane %v1174, 6
      %v4323 = vsel %vm4178, %v4320, %v4322
      %v4324 = vrot.slane %v1175, 6
      %v4325 = vsel %vm4178, %v4322, %v4324
      %v4326 = vrot.slane %v1176, 6
      %v4327 = vsel %vm4178, %v4324, %v4326
      %v4328 = vrot.slane %v1177, 6
      %v4329 = vsel %vm4178, %v4326, %v4328
      %v4330 = vrot.slane %v1178, 6
      %v4331 = vsel %vm4178, %v4328, %v4330
      %v4332 = vrot.slane %v1179, 6
      %v4333 = vsel %vm4178, %v4330, %v4332
      %v4334 = vrot.slane %v1180, 6
      %v4335 = vsel %vm4178, %v4332, %v4334
      %4414 = vst.msk [vmem:[#allocation2 + $0x10] sm:$0xff] %vm1181, %v4181
      %4415 = vst.msk [vmem:[#allocation2 + $0x28] sm:$0xff] %vm1181, %v4183
      %4416 = vst.msk [vmem:[#allocation2 + $0x40] sm:$0xff] %vm1181, %v4185
      %4417 = vst.msk [vmem:[#allocation2 + $0x58] sm:$0xff] %vm1181, %v4187
      %4418 = vst.msk [vmem:[#allocation2 + $0x70] sm:$0xff] %vm1181, %v4189
      %4419 = vst.msk [vmem:[#allocation2 + $0x88] sm:$0xff] %vm1181, %v4191
      %4420 = vst.msk [vmem:[#allocation2 + $0xa0] sm:$0xff] %vm1181, %v4193
      %4421 = vst.msk [vmem:[#allocation2 + $0xb8] sm:$0xff] %vm1181, %v4195
      %4422 = vst.msk [vmem:[#allocation2 + $0xd0] sm:$0xff] %vm1181, %v4197
      %4423 = vst.msk [vmem:[#allocation2 + $0xe8] sm:$0xff] %vm1181, %v4199
      %4424 = vst.msk [vmem:[#allocation2 + $0x100] sm:$0xff] %vm1181, %v4201
      %4425 = vst.msk [vmem:[#allocation2 + $0x118] sm:$0xff] %vm1181, %v4203
      %4426 = vst.msk [vmem:[#allocation2 + $0x130] sm:$0xff] %vm1181, %v4205
      %4427 = vst.msk [vmem:[#allocation2 + $0x148] sm:$0xff] %vm1181, %v4207
      %4428 = vst.msk [vmem:[#allocation2 + $0x160] sm:$0xff] %vm1181, %v4209
      %4429 = vst.msk [vmem:[#allocation2 + $0x178] sm:$0xff] %vm1181, %v4211
      %4430 = vst.msk [vmem:[#allocation2 + $0x190] sm:$0xff] %vm1181, %v4213
      %4431 = vst.msk [vmem:[#allocation2 + $0x1a8] sm:$0xff] %vm1181, %v4215
      %4432 = vst.msk [vmem:[#allocation2 + $0x1c0] sm:$0xff] %vm1181, %v4217
      %4433 = vst.msk [vmem:[#allocation2 + $0x1d8] sm:$0xff] %vm1181, %v4219
      %4434 = vst.msk [vmem:[#allocation2 + $0x1f0] sm:$0xff] %vm1181, %v4221
      %4435 = vst.msk [vmem:[#allocation2 + $0x208] sm:$0xff] %vm1181, %v4223
      %4436 = vst.msk [vmem:[#allocation2 + $0x220] sm:$0xff] %vm1181, %v4225
      %4437 = vst.msk [vmem:[#allocation2 + $0x238] sm:$0xff] %vm1181, %v4227
      %4438 = vst.msk [vmem:[#allocation2 + $0x250] sm:$0xff] %vm1181, %v4229
      %4439 = vst.msk [vmem:[#allocation2 + $0x268] sm:$0xff] %vm1181, %v4231
      %4440 = vst.msk [vmem:[#allocation2 + $0x280] sm:$0xff] %vm1181, %v4233
      %4441 = vst.msk [vmem:[#allocation2 + $0x298] sm:$0xff] %vm1181, %v4235
      %4442 = vst.msk [vmem:[#allocation2 + $0x2b0] sm:$0xff] %vm1181, %v4237
      %4443 = vst.msk [vmem:[#allocation2 + $0x2c8] sm:$0xff] %vm1181, %v4239
      %4444 = vst.msk [vmem:[#allocation2 + $0x2e0] sm:$0xff] %vm1181, %v4241
      %4445 = vst.msk [vmem:[#allocation2 + $0x2f8] sm:$0xff] %vm1181, %v4243
      %4446 = vst.msk [vmem:[#allocation2 + $0x310] sm:$0xff] %vm1181, %v4245
      %4447 = vst.msk [vmem:[#allocation2 + $0x328] sm:$0xff] %vm1181, %v4247
      %4448 = vst.msk [vmem:[#allocation2 + $0x340] sm:$0xff] %vm1181, %v4249
      %4449 = vst.msk [vmem:[#allocation2 + $0x358] sm:$0xff] %vm1181, %v4251
      %4450 = vst.msk [vmem:[#allocation2 + $0x370] sm:$0xff] %vm1181, %v4253
      %4451 = vst.msk [vmem:[#allocation2 + $0x388] sm:$0xff] %vm1181, %v4255
      %4452 = vst.msk [vmem:[#allocation2 + $0x3a0] sm:$0xff] %vm1181, %v4257
      %4453 = vst.msk [vmem:[#allocation2 + $0x3b8] sm:$0xff] %vm1181, %v4259
      %4454 = vst.msk [vmem:[#allocation2 + $0x3d0] sm:$0xff] %vm1181, %v4261
      %4455 = vst.msk [vmem:[#allocation2 + $0x3e8] sm:$0xff] %vm1181, %v4263
      %4456 = vst.msk [vmem:[#allocation2 + $0x400] sm:$0xff] %vm1181, %v4265
      %4457 = vst.msk [vmem:[#allocation2 + $0x418] sm:$0xff] %vm1181, %v4267
      %4458 = vst.msk [vmem:[#allocation2 + $0x430] sm:$0xff] %vm1181, %v4269
      %4459 = vst.msk [vmem:[#allocation2 + $0x448] sm:$0xff] %vm1181, %v4271
      %4460 = vst.msk [vmem:[#allocation2 + $0x460] sm:$0xff] %vm1181, %v4273
      %4461 = vst.msk [vmem:[#allocation2 + $0x478] sm:$0xff] %vm1181, %v4275
      %4462 = vst.msk [vmem:[#allocation2 + $0x490] sm:$0xff] %vm1181, %v4277
      %4463 = vst.msk [vmem:[#allocation2 + $0x4a8] sm:$0xff] %vm1181, %v4279
      %4464 = vst.msk [vmem:[#allocation2 + $0x4c0] sm:$0xff] %vm1181, %v4281
      %4465 = vst.msk [vmem:[#allocation2 + $0x4d8] sm:$0xff] %vm1181, %v4283
      %4466 = vst.msk [vmem:[#allocation2 + $0x4f0] sm:$0xff] %vm1181, %v4285
      %4467 = vst.msk [vmem:[#allocation2 + $0x508] sm:$0xff] %vm1181, %v4287
      %4468 = vst.msk [vmem:[#allocation2 + $0x520] sm:$0xff] %vm1181, %v4289
      %4469 = vst.msk [vmem:[#allocation2 + $0x538] sm:$0xff] %vm1181, %v4291
      %4470 = vst.msk [vmem:[#allocation2 + $0x550] sm:$0xff] %vm1181, %v4293
      %4471 = vst.msk [vmem:[#allocation2 + $0x568] sm:$0xff] %vm1181, %v4295
      %4472 = vst.msk [vmem:[#allocation2 + $0x580] sm:$0xff] %vm1181, %v4297
      %4473 = vst.msk [vmem:[#allocation2 + $0x598] sm:$0xff] %vm1181, %v4299
      %4474 = vst.msk [vmem:[#allocation2 + $0x5b0] sm:$0xff] %vm1181, %v4301
      %4475 = vst.msk [vmem:[#allocation2 + $0x5c8] sm:$0xff] %vm1181, %v4303
      %4476 = vst.msk [vmem:[#allocation2 + $0x5e0] sm:$0xff] %vm1181, %v4305
      %4477 = vst.msk [vmem:[#allocation2 + $0x5f8] sm:$0xff] %vm1181, %v4307
      %4478 = vst.msk [vmem:[#allocation2 + $0x610] sm:$0xff] %vm1181, %v4309
      %4479 = vst.msk [vmem:[#allocation2 + $0x628] sm:$0xff] %vm1181, %v4311
      %4480 = vst.msk [vmem:[#allocation2 + $0x640] sm:$0xff] %vm1181, %v4313
      %4481 = vst.msk [vmem:[#allocation2 + $0x658] sm:$0xff] %vm1181, %v4315
      %4482 = vst.msk [vmem:[#allocation2 + $0x670] sm:$0xff] %vm1181, %v4317
      %4483 = vst.msk [vmem:[#allocation2 + $0x688] sm:$0xff] %vm1181, %v4319
      %4484 = vst.msk [vmem:[#allocation2 + $0x6a0] sm:$0xff] %vm1181, %v4321
      %4485 = vst.msk [vmem:[#allocation2 + $0x6b8] sm:$0xff] %vm1181, %v4323
      %4486 = vst.msk [vmem:[#allocation2 + $0x6d0] sm:$0xff] %vm1181, %v4325
      %4487 = vst.msk [vmem:[#allocation2 + $0x6e8] sm:$0xff] %vm1181, %v4327
      %4488 = vst.msk [vmem:[#allocation2 + $0x700] sm:$0xff] %vm1181, %v4329
      %4489 = vst.msk [vmem:[#allocation2 + $0x718] sm:$0xff] %vm1181, %v4331
      %4490 = vst.msk [vmem:[#allocation2 + $0x730] sm:$0xff] %vm1181, %v4333
      %4491 = vst.msk [vmem:[#allocation2 + $0x748] sm:$0x3f] %vm1259, %v4335
      %v4492 = vld [vmem:[#allocation2] sm:$0xff]
      %v4493 = vld [vmem:[#allocation2 + $0x8] sm:$0xff]
      %v4494 = vld [vmem:[#allocation2 + $0x10] sm:$0xff]
      %v4495 = vld [vmem:[#allocation2 + $0x18] sm:$0xff]
      %v4496 = vld [vmem:[#allocation2 + $0x20] sm:$0xff]
      %v4497 = vld [vmem:[#allocation2 + $0x28] sm:$0xff]
      %v4498 = vld [vmem:[#allocation2 + $0x30] sm:$0xff]
      %v4499 = vld [vmem:[#allocation2 + $0x38] sm:$0xff]
      %v4500 = vld [vmem:[#allocation2 + $0x40] sm:$0xff]
      %v4501 = vld [vmem:[#allocation2 + $0x48] sm:$0xff]
      %v4502 = vld [vmem:[#allocation2 + $0x50] sm:$0xff]
      %v4503 = vld [vmem:[#allocation2 + $0x58] sm:$0xff]
      %v4504 = vld [vmem:[#allocation2 + $0x60] sm:$0xff]
      %v4505 = vld [vmem:[#allocation2 + $0x68] sm:$0xff]
      %v4506 = vld [vmem:[#allocation2 + $0x70] sm:$0xff]
      %v4507 = vld [vmem:[#allocation2 + $0x78] sm:$0xff]
      %v4508 = vld [vmem:[#allocation2 + $0x80] sm:$0xff]
      %v4509 = vld [vmem:[#allocation2 + $0x88] sm:$0xff]
      %v4510 = vld [vmem:[#allocation2 + $0x90] sm:$0xff]
      %v4511 = vld [vmem:[#allocation2 + $0x98] sm:$0xff]
      %v4512 = vld [vmem:[#allocation2 + $0xa0] sm:$0xff]
      %v4513 = vld [vmem:[#allocation2 + $0xa8] sm:$0xff]
      %v4514 = vld [vmem:[#allocation2 + $0xb0] sm:$0xff]
      %v4515 = vld [vmem:[#allocation2 + $0xb8] sm:$0xff]
      %v4516 = vld [vmem:[#allocation2 + $0xc0] sm:$0xff]
      %v4517 = vld [vmem:[#allocation2 + $0xc8] sm:$0xff]
      %v4518 = vld [vmem:[#allocation2 + $0xd0] sm:$0xff]
      %v4519 = vld [vmem:[#allocation2 + $0xd8] sm:$0xff]
      %v4520 = vld [vmem:[#allocation2 + $0xe0] sm:$0xff]
      %v4521 = vld [vmem:[#allocation2 + $0xe8] sm:$0xff]
      %v4522 = vld [vmem:[#allocation2 + $0xf0] sm:$0xff]
      %v4523 = vld [vmem:[#allocation2 + $0xf8] sm:$0xff]
      %v4524 = vld [vmem:[#allocation2 + $0x100] sm:$0xff]
      %v4525 = vld [vmem:[#allocation2 + $0x108] sm:$0xff]
      %v4526 = vld [vmem:[#allocation2 + $0x110] sm:$0xff]
      %v4527 = vld [vmem:[#allocation2 + $0x118] sm:$0xff]
      %v4528 = vld [vmem:[#allocation2 + $0x120] sm:$0xff]
      %v4529 = vld [vmem:[#allocation2 + $0x128] sm:$0xff]
      %v4530 = vld [vmem:[#allocation2 + $0x130] sm:$0xff]
      %v4531 = vld [vmem:[#allocation2 + $0x138] sm:$0xff]
      %v4532 = vld [vmem:[#allocation2 + $0x140] sm:$0xff]
      %v4533 = vld [vmem:[#allocation2 + $0x148] sm:$0xff]
      %v4534 = vld [vmem:[#allocation2 + $0x150] sm:$0xff]
      %v4535 = vld [vmem:[#allocation2 + $0x158] sm:$0xff]
      %v4536 = vld [vmem:[#allocation2 + $0x160] sm:$0xff]
      %v4537 = vld [vmem:[#allocation2 + $0x168] sm:$0xff]
      %v4538 = vld [vmem:[#allocation2 + $0x170] sm:$0xff]
      %v4539 = vld [vmem:[#allocation2 + $0x178] sm:$0xff]
      %v4540 = vld [vmem:[#allocation2 + $0x180] sm:$0xff]
      %v4541 = vld [vmem:[#allocation2 + $0x188] sm:$0xff]
      %v4542 = vld [vmem:[#allocation2 + $0x190] sm:$0xff]
      %v4543 = vld [vmem:[#allocation2 + $0x198] sm:$0xff]
      %v4544 = vld [vmem:[#allocation2 + $0x1a0] sm:$0xff]
      %v4545 = vld [vmem:[#allocation2 + $0x1a8] sm:$0xff]
      %v4546 = vld [vmem:[#allocation2 + $0x1b0] sm:$0xff]
      %v4547 = vld [vmem:[#allocation2 + $0x1b8] sm:$0xff]
      %v4548 = vld [vmem:[#allocation2 + $0x1c0] sm:$0xff]
      %v4549 = vld [vmem:[#allocation2 + $0x1c8] sm:$0xff]
      %v4550 = vld [vmem:[#allocation2 + $0x1d0] sm:$0xff]
      %v4551 = vld [vmem:[#allocation2 + $0x1d8] sm:$0xff]
      %v4552 = vld [vmem:[#allocation2 + $0x1e0] sm:$0xff]
      %v4553 = vld [vmem:[#allocation2 + $0x1e8] sm:$0xff]
      %v4554 = vld [vmem:[#allocation2 + $0x1f0] sm:$0xff]
      %v4555 = vld [vmem:[#allocation2 + $0x1f8] sm:$0xff]
      %v4556 = vld [vmem:[#allocation2 + $0x200] sm:$0xff]
      %v4557 = vld [vmem:[#allocation2 + $0x208] sm:$0xff]
      %v4558 = vld [vmem:[#allocation2 + $0x210] sm:$0xff]
      %v4559 = vld [vmem:[#allocation2 + $0x218] sm:$0xff]
      %v4560 = vld [vmem:[#allocation2 + $0x220] sm:$0xff]
      %v4561 = vld [vmem:[#allocation2 + $0x228] sm:$0xff]
      %v4562 = vld [vmem:[#allocation2 + $0x230] sm:$0xff]
      %v4563 = vld [vmem:[#allocation2 + $0x238] sm:$0xff]
      %v4564 = vld [vmem:[#allocation2 + $0x240] sm:$0xff]
      %v4565 = vld [vmem:[#allocation2 + $0x248] sm:$0xff]
      %v4566 = vld [vmem:[#allocation2 + $0x250] sm:$0xff]
      %v4567 = vld [vmem:[#allocation2 + $0x258] sm:$0xff]
      %v4568 = vld [vmem:[#allocation2 + $0x260] sm:$0xff]
      %v4569 = vld [vmem:[#allocation2 + $0x268] sm:$0xff]
      %v4570 = vld [vmem:[#allocation2 + $0x270] sm:$0xff]
      %v4571 = vld [vmem:[#allocation2 + $0x278] sm:$0xff]
      %v4572 = vld [vmem:[#allocation2 + $0x280] sm:$0xff]
      %v4573 = vld [vmem:[#allocation2 + $0x288] sm:$0xff]
      %v4574 = vld [vmem:[#allocation2 + $0x290] sm:$0xff]
      %v4575 = vld [vmem:[#allocation2 + $0x298] sm:$0xff]
      %v4576 = vld [vmem:[#allocation2 + $0x2a0] sm:$0xff]
      %v4577 = vld [vmem:[#allocation2 + $0x2a8] sm:$0xff]
      %v4578 = vld [vmem:[#allocation2 + $0x2b0] sm:$0xff]
      %v4579 = vld [vmem:[#allocation2 + $0x2b8] sm:$0xff]
      %v4580 = vld [vmem:[#allocation2 + $0x2c0] sm:$0xff]
      %v4581 = vld [vmem:[#allocation2 + $0x2c8] sm:$0xff]
      %v4582 = vld [vmem:[#allocation2 + $0x2d0] sm:$0xff]
      %v4583 = vld [vmem:[#allocation2 + $0x2d8] sm:$0xff]
      %v4584 = vld [vmem:[#allocation2 + $0x2e0] sm:$0xff]
      %v4585 = vld [vmem:[#allocation2 + $0x2e8] sm:$0xff]
      %v4586 = vld [vmem:[#allocation2 + $0x2f0] sm:$0xff]
      %v4587 = vld [vmem:[#allocation2 + $0x2f8] sm:$0xff]
      %v4588 = vld [vmem:[#allocation2 + $0x300] sm:$0xff]
      %v4589 = vld [vmem:[#allocation2 + $0x308] sm:$0xff]
      %v4590 = vld [vmem:[#allocation2 + $0x310] sm:$0xff]
      %v4591 = vld [vmem:[#allocation2 + $0x318] sm:$0xff]
      %v4592 = vld [vmem:[#allocation2 + $0x320] sm:$0xff]
      %v4593 = vld [vmem:[#allocation2 + $0x328] sm:$0xff]
      %v4594 = vld [vmem:[#allocation2 + $0x330] sm:$0xff]
      %v4595 = vld [vmem:[#allocation2 + $0x338] sm:$0xff]
      %v4596 = vld [vmem:[#allocation2 + $0x340] sm:$0xff]
      %v4597 = vld [vmem:[#allocation2 + $0x348] sm:$0xff]
      %v4598 = vld [vmem:[#allocation2 + $0x350] sm:$0xff]
      %v4599 = vld [vmem:[#allocation2 + $0x358] sm:$0xff]
      %v4600 = vld [vmem:[#allocation2 + $0x360] sm:$0xff]
      %v4601 = vld [vmem:[#allocation2 + $0x368] sm:$0xff]
      %v4602 = vld [vmem:[#allocation2 + $0x370] sm:$0xff]
      %v4603 = vld [vmem:[#allocation2 + $0x378] sm:$0xff]
      %v4604 = vld [vmem:[#allocation2 + $0x380] sm:$0xff]
      %v4605 = vld [vmem:[#allocation2 + $0x388] sm:$0xff]
      %v4606 = vld [vmem:[#allocation2 + $0x390] sm:$0xff]
      %v4607 = vld [vmem:[#allocation2 + $0x398] sm:$0xff]
      %v4608 = vld [vmem:[#allocation2 + $0x3a0] sm:$0xff]
      %v4609 = vld [vmem:[#allocation2 + $0x3a8] sm:$0xff]
      %v4610 = vld [vmem:[#allocation2 + $0x3b0] sm:$0xff]
      %v4611 = vld [vmem:[#allocation2 + $0x3b8] sm:$0xff]
      %v4612 = vld [vmem:[#allocation2 + $0x3c0] sm:$0xff]
      %v4613 = vld [vmem:[#allocation2 + $0x3c8] sm:$0xff]
      %v4614 = vld [vmem:[#allocation2 + $0x3d0] sm:$0xff]
      %v4615 = vld [vmem:[#allocation2 + $0x3d8] sm:$0xff]
      %v4616 = vld [vmem:[#allocation2 + $0x3e0] sm:$0xff]
      %v4617 = vld [vmem:[#allocation2 + $0x3e8] sm:$0xff]
      %v4618 = vld [vmem:[#allocation2 + $0x3f0] sm:$0xff]
      %v4619 = vld [vmem:[#allocation2 + $0x3f8] sm:$0xff]
      %v4620 = vld [vmem:[#allocation2 + $0x400] sm:$0xff]
      %v4621 = vld [vmem:[#allocation2 + $0x408] sm:$0xff]
      %v4622 = vld [vmem:[#allocation2 + $0x410] sm:$0xff]
      %v4623 = vld [vmem:[#allocation2 + $0x418] sm:$0xff]
      %v4624 = vld [vmem:[#allocation2 + $0x420] sm:$0xff]
      %v4625 = vld [vmem:[#allocation2 + $0x428] sm:$0xff]
      %v4626 = vld [vmem:[#allocation2 + $0x430] sm:$0xff]
      %v4627 = vld [vmem:[#allocation2 + $0x438] sm:$0xff]
      %v4628 = vld [vmem:[#allocation2 + $0x440] sm:$0xff]
      %v4629 = vld [vmem:[#allocation2 + $0x448] sm:$0xff]
      %v4630 = vld [vmem:[#allocation2 + $0x450] sm:$0xff]
      %v4631 = vld [vmem:[#allocation2 + $0x458] sm:$0xff]
      %v4632 = vld [vmem:[#allocation2 + $0x460] sm:$0xff]
      %v4633 = vld [vmem:[#allocation2 + $0x468] sm:$0xff]
      %v4634 = vld [vmem:[#allocation2 + $0x470] sm:$0xff]
      %v4635 = vld [vmem:[#allocation2 + $0x478] sm:$0xff]
      %v4636 = vld [vmem:[#allocation2 + $0x480] sm:$0xff]
      %v4637 = vld [vmem:[#allocation2 + $0x488] sm:$0xff]
      %v4638 = vld [vmem:[#allocation2 + $0x490] sm:$0xff]
      %v4639 = vld [vmem:[#allocation2 + $0x498] sm:$0xff]
      %v4640 = vld [vmem:[#allocation2 + $0x4a0] sm:$0xff]
      %v4641 = vld [vmem:[#allocation2 + $0x4a8] sm:$0xff]
      %v4642 = vld [vmem:[#allocation2 + $0x4b0] sm:$0xff]
      %v4643 = vld [vmem:[#allocation2 + $0x4b8] sm:$0xff]
      %v4644 = vld [vmem:[#allocation2 + $0x4c0] sm:$0xff]
      %v4645 = vld [vmem:[#allocation2 + $0x4c8] sm:$0xff]
      %v4646 = vld [vmem:[#allocation2 + $0x4d0] sm:$0xff]
      %v4647 = vld [vmem:[#allocation2 + $0x4d8] sm:$0xff]
      %v4648 = vld [vmem:[#allocation2 + $0x4e0] sm:$0xff]
      %v4649 = vld [vmem:[#allocation2 + $0x4e8] sm:$0xff]
      %v4650 = vld [vmem:[#allocation2 + $0x4f0] sm:$0xff]
      %v4651 = vld [vmem:[#allocation2 + $0x4f8] sm:$0xff]
      %v4652 = vld [vmem:[#allocation2 + $0x500] sm:$0xff]
      %v4653 = vld [vmem:[#allocation2 + $0x508] sm:$0xff]
      %v4654 = vld [vmem:[#allocation2 + $0x510] sm:$0xff]
      %v4655 = vld [vmem:[#allocation2 + $0x518] sm:$0xff]
      %v4656 = vld [vmem:[#allocation2 + $0x520] sm:$0xff]
      %v4657 = vld [vmem:[#allocation2 + $0x528] sm:$0xff]
      %v4658 = vld [vmem:[#allocation2 + $0x530] sm:$0xff]
      %v4659 = vld [vmem:[#allocation2 + $0x538] sm:$0xff]
      %v4660 = vld [vmem:[#allocation2 + $0x540] sm:$0xff]
      %v4661 = vld [vmem:[#allocation2 + $0x548] sm:$0xff]
      %v4662 = vld [vmem:[#allocation2 + $0x550] sm:$0xff]
      %v4663 = vld [vmem:[#allocation2 + $0x558] sm:$0xff]
      %v4664 = vld [vmem:[#allocation2 + $0x560] sm:$0xff]
      %v4665 = vld [vmem:[#allocation2 + $0x568] sm:$0xff]
      %v4666 = vld [vmem:[#allocation2 + $0x570] sm:$0xff]
      %v4667 = vld [vmem:[#allocation2 + $0x578] sm:$0xff]
      %v4668 = vld [vmem:[#allocation2 + $0x580] sm:$0xff]
      %v4669 = vld [vmem:[#allocation2 + $0x588] sm:$0xff]
      %v4670 = vld [vmem:[#allocation2 + $0x590] sm:$0xff]
      %v4671 = vld [vmem:[#allocation2 + $0x598] sm:$0xff]
      %v4672 = vld [vmem:[#allocation2 + $0x5a0] sm:$0xff]
      %v4673 = vld [vmem:[#allocation2 + $0x5a8] sm:$0xff]
      %v4674 = vld [vmem:[#allocation2 + $0x5b0] sm:$0xff]
      %v4675 = vld [vmem:[#allocation2 + $0x5b8] sm:$0xff]
      %v4676 = vld [vmem:[#allocation2 + $0x5c0] sm:$0xff]
      %v4677 = vld [vmem:[#allocation2 + $0x5c8] sm:$0xff]
      %v4678 = vld [vmem:[#allocation2 + $0x5d0] sm:$0xff]
      %v4679 = vld [vmem:[#allocation2 + $0x5d8] sm:$0xff]
      %v4680 = vld [vmem:[#allocation2 + $0x5e0] sm:$0xff]
      %v4681 = vld [vmem:[#allocation2 + $0x5e8] sm:$0xff]
      %v4682 = vld [vmem:[#allocation2 + $0x5f0] sm:$0xff]
      %v4683 = vld [vmem:[#allocation2 + $0x5f8] sm:$0xff]
      %v4684 = vld [vmem:[#allocation2 + $0x600] sm:$0xff]
      %v4685 = vld [vmem:[#allocation2 + $0x608] sm:$0xff]
      %v4686 = vld [vmem:[#allocation2 + $0x610] sm:$0xff]
      %v4687 = vld [vmem:[#allocation2 + $0x618] sm:$0xff]
      %v4688 = vld [vmem:[#allocation2 + $0x620] sm:$0xff]
      %v4689 = vld [vmem:[#allocation2 + $0x628] sm:$0xff]
      %v4690 = vld [vmem:[#allocation2 + $0x630] sm:$0xff]
      %v4691 = vld [vmem:[#allocation2 + $0x638] sm:$0xff]
      %v4692 = vld [vmem:[#allocation2 + $0x640] sm:$0xff]
      %v4693 = vld [vmem:[#allocation2 + $0x648] sm:$0xff]
      %v4694 = vld [vmem:[#allocation2 + $0x650] sm:$0xff]
      %v4695 = vld [vmem:[#allocation2 + $0x658] sm:$0xff]
      %v4696 = vld [vmem:[#allocation2 + $0x660] sm:$0xff]
      %v4697 = vld [vmem:[#allocation2 + $0x668] sm:$0xff]
      %v4698 = vld [vmem:[#allocation2 + $0x670] sm:$0xff]
      %v4699 = vld [vmem:[#allocation2 + $0x678] sm:$0xff]
      %v4700 = vld [vmem:[#allocation2 + $0x680] sm:$0xff]
      %v4701 = vld [vmem:[#allocation2 + $0x688] sm:$0xff]
      %v4702 = vld [vmem:[#allocation2 + $0x690] sm:$0xff]
      %v4703 = vld [vmem:[#allocation2 + $0x698] sm:$0xff]
      %v4704 = vld [vmem:[#allocation2 + $0x6a0] sm:$0xff]
      %v4705 = vld [vmem:[#allocation2 + $0x6a8] sm:$0xff]
      %v4706 = vld [vmem:[#allocation2 + $0x6b0] sm:$0xff]
      %v4707 = vld [vmem:[#allocation2 + $0x6b8] sm:$0xff]
      %v4708 = vld [vmem:[#allocation2 + $0x6c0] sm:$0xff]
      %v4709 = vld [vmem:[#allocation2 + $0x6c8] sm:$0xff]
      %v4710 = vld [vmem:[#allocation2 + $0x6d0] sm:$0xff]
      %v4711 = vld [vmem:[#allocation2 + $0x6d8] sm:$0xff]
      %v4712 = vld [vmem:[#allocation2 + $0x6e0] sm:$0xff]
      %v4713 = vld [vmem:[#allocation2 + $0x6e8] sm:$0xff]
      %v4714 = vld [vmem:[#allocation2 + $0x6f0] sm:$0xff]
      %v4715 = vld [vmem:[#allocation2 + $0x6f8] sm:$0xff]
      %v4716 = vld [vmem:[#allocation2 + $0x700] sm:$0xff]
      %v4717 = vld [vmem:[#allocation2 + $0x708] sm:$0xff]
      %v4718 = vld [vmem:[#allocation2 + $0x710] sm:$0xff]
      %v4719 = vld [vmem:[#allocation2 + $0x718] sm:$0xff]
      %v4720 = vld [vmem:[#allocation2 + $0x720] sm:$0xff]
      %v4721 = vld [vmem:[#allocation2 + $0x728] sm:$0xff]
      %v4722 = vld [vmem:[#allocation2 + $0x730] sm:$0xff]
      %v4723 = vld [vmem:[#allocation2 + $0x738] sm:$0x3f]
      %v4724 = vld [vmem:[#allocation2 + $0x740] sm:$0x3f]
      %v4725 = vld [vmem:[#allocation2 + $0x748] sm:$0x3f]
      %v4726 = vld [vmem:[%s3] sm:$0xff]
      %v4727 = vld [vmem:[%s3 + $0x8] sm:$0xff]
      %v4728 = vld [vmem:[%s3 + $0x10] sm:$0xff]
      %v4729 = vld [vmem:[%s3 + $0x18] sm:$0xff]
      %v4730 = vld [vmem:[%s3 + $0x20] sm:$0xff]
      %v4731 = vld [vmem:[%s3 + $0x28] sm:$0xff]
      %v4732 = vld [vmem:[%s3 + $0x30] sm:$0xff]
      %v4733 = vld [vmem:[%s3 + $0x38] sm:$0xff]
      %v4734 = vld [vmem:[%s3 + $0x40] sm:$0xff]
      %v4735 = vld [vmem:[%s3 + $0x48] sm:$0xff]
      %v4736 = vld [vmem:[%s3 + $0x50] sm:$0xff]
      %v4737 = vld [vmem:[%s3 + $0x58] sm:$0xff]
      %v4738 = vld [vmem:[%s3 + $0x60] sm:$0xff]
      %v4739 = vld [vmem:[%s3 + $0x68] sm:$0xff]
      %v4740 = vld [vmem:[%s3 + $0x70] sm:$0xff]
      %v4741 = vld [vmem:[%s3 + $0x78] sm:$0xff]
      %v4742 = vld [vmem:[%s3 + $0x80] sm:$0xff]
      %v4743 = vld [vmem:[%s3 + $0x88] sm:$0xff]
      %v4744 = vld [vmem:[%s3 + $0x90] sm:$0xff]
      %v4745 = vld [vmem:[%s3 + $0x98] sm:$0xff]
      %v4746 = vld [vmem:[%s3 + $0xa0] sm:$0xff]
      %v4747 = vld [vmem:[%s3 + $0xa8] sm:$0xff]
      %v4748 = vld [vmem:[%s3 + $0xb0] sm:$0xff]
      %v4749 = vld [vmem:[%s3 + $0xb8] sm:$0xff]
      %v4750 = vld [vmem:[%s3 + $0xc0] sm:$0xff]
      %v4751 = vld [vmem:[%s3 + $0xc8] sm:$0xff]
      %v4752 = vld [vmem:[%s3 + $0xd0] sm:$0xff]
      %v4753 = vld [vmem:[%s3 + $0xd8] sm:$0xff]
      %v4754 = vld [vmem:[%s3 + $0xe0] sm:$0xff]
      %v4755 = vld [vmem:[%s3 + $0xe8] sm:$0xff]
      %v4756 = vld [vmem:[%s3 + $0xf0] sm:$0xff]
      %v4757 = vld [vmem:[%s3 + $0xf8] sm:$0xff]
      %v4758 = vld [vmem:[%s3 + $0x100] sm:$0xff]
      %v4759 = vld [vmem:[%s3 + $0x108] sm:$0xff]
      %v4760 = vld [vmem:[%s3 + $0x110] sm:$0xff]
      %v4761 = vld [vmem:[%s3 + $0x118] sm:$0xff]
      %v4763 = vsel %vm1181, %v4494, 0
      %v4766 = vsel %vm1181, %v4497, 0
      %v4769 = vsel %vm1181, %v4500, 0
      %v4772 = vsel %vm1181, %v4503, 0
      %v4775 = vsel %vm1181, %v4506, 0
      %v4778 = vsel %vm1181, %v4509, 0
      %v4781 = vsel %vm1181, %v4512, 0
      %v4784 = vsel %vm1181, %v4515, 0
      %v4787 = vsel %vm1181, %v4518, 0
      %v4790 = vsel %vm1181, %v4521, 0
      %v4793 = vsel %vm1181, %v4524, 0
      %v4796 = vsel %vm1181, %v4527, 0
      %v4799 = vsel %vm1181, %v4530, 0
      %v4802 = vsel %vm1181, %v4533, 0
      %v4805 = vsel %vm1181, %v4536, 0
      %v4808 = vsel %vm1181, %v4539, 0
      %v4811 = vsel %vm1181, %v4542, 0
      %v4814 = vsel %vm1181, %v4545, 0
      %v4817 = vsel %vm1181, %v4548, 0
      %v4820 = vsel %vm1181, %v4551, 0
      %v4823 = vsel %vm1181, %v4554, 0
      %v4826 = vsel %vm1181, %v4557, 0
      %v4829 = vsel %vm1181, %v4560, 0
      %v4832 = vsel %vm1181, %v4563, 0
      %v4835 = vsel %vm1181, %v4566, 0
      %v4838 = vsel %vm1181, %v4569, 0
      %v4841 = vsel %vm1181, %v4572, 0
      %v4844 = vsel %vm1181, %v4575, 0
      %v4847 = vsel %vm1181, %v4578, 0
      %v4850 = vsel %vm1181, %v4581, 0
      %v4853 = vsel %vm1181, %v4584, 0
      %v4856 = vsel %vm1181, %v4587, 0
      %v4859 = vsel %vm1181, %v4590, 0
      %v4862 = vsel %vm1181, %v4593, 0
      %v4865 = vsel %vm1181, %v4596, 0
      %v4868 = vsel %vm1181, %v4599, 0
      %v4871 = vsel %vm1181, %v4602, 0
      %v4874 = vsel %vm1181, %v4605, 0
      %v4877 = vsel %vm1181, %v4608, 0
      %v4880 = vsel %vm1181, %v4611, 0
      %v4883 = vsel %vm1181, %v4614, 0
      %v4886 = vsel %vm1181, %v4617, 0
      %v4889 = vsel %vm1181, %v4620, 0
      %v4892 = vsel %vm1181, %v4623, 0
      %v4895 = vsel %vm1181, %v4626, 0
      %v4898 = vsel %vm1181, %v4629, 0
      %v4901 = vsel %vm1181, %v4632, 0
      %v4904 = vsel %vm1181, %v4635, 0
      %v4907 = vsel %vm1181, %v4638, 0
      %v4910 = vsel %vm1181, %v4641, 0
      %v4913 = vsel %vm1181, %v4644, 0
      %v4916 = vsel %vm1181, %v4647, 0
      %v4919 = vsel %vm1181, %v4650, 0
      %v4922 = vsel %vm1181, %v4653, 0
      %v4925 = vsel %vm1181, %v4656, 0
      %v4928 = vsel %vm1181, %v4659, 0
      %v4931 = vsel %vm1181, %v4662, 0
      %v4934 = vsel %vm1181, %v4665, 0
      %v4937 = vsel %vm1181, %v4668, 0
      %v4940 = vsel %vm1181, %v4671, 0
      %v4943 = vsel %vm1181, %v4674, 0
      %v4946 = vsel %vm1181, %v4677, 0
      %v4949 = vsel %vm1181, %v4680, 0
      %v4952 = vsel %vm1181, %v4683, 0
      %v4955 = vsel %vm1181, %v4686, 0
      %v4958 = vsel %vm1181, %v4689, 0
      %v4961 = vsel %vm1181, %v4692, 0
      %v4964 = vsel %vm1181, %v4695, 0
      %v4967 = vsel %vm1181, %v4698, 0
      %v4970 = vsel %vm1181, %v4701, 0
      %v4973 = vsel %vm1181, %v4704, 0
      %v4976 = vsel %vm1181, %v4707, 0
      %v4979 = vsel %vm1181, %v4710, 0
      %v4982 = vsel %vm1181, %v4713, 0
      %v4985 = vsel %vm1181, %v4716, 0
      %v4988 = vsel %vm1181, %v4719, 0
      %v4991 = vsel %vm1181, %v4722, 0
      %v4994 = vsel %vm1181, %v4725, 0
      %4996 = vmatprep.subr.mxu0 0.0
      %4997 = vmatpush1.msra.mxu0 %v4741
      %4998 = vmatprep.subr.mxu0 0.0
      %4999 = vmatpush1.msra.mxu0 %v4740
      %5000 = vmatprep.subr.mxu0 0.0
      %5001 = vmatpush1.msra.mxu0 %v4739
      %5002 = vmatprep.subr.mxu0 0.0
      %5003 = vmatpush1.msra.mxu0 %v4738
      %5004 = vmatprep.subr.mxu0 0.0
      %5005 = vmatpush1.msra.mxu0 %v4737
      %5006 = vmatprep.subr.mxu0 0.0
      %5007 = vmatpush1.msra.mxu0 %v4736
      %5008 = vmatprep.subr.mxu0 0.0
      %5009 = vmatpush1.msra.mxu0 %v4735
      %5010 = vmatprep.subr.mxu0 0.0
      %5011 = vmatpush1.msra.mxu0 %v4734
      %5012 = vmatprep.subr.mxu0 0.0
      %5013 = vmatpush1.msra.mxu0 %v4733
      %5014 = vmatprep.subr.mxu0 0.0
      %5015 = vmatpush1.msra.mxu0 %v4732
      %5016 = vmatprep.subr.mxu0 0.0
      %5017 = vmatpush1.msra.mxu0 %v4731
      %5018 = vmatprep.subr.mxu0 0.0
      %5019 = vmatpush1.msra.mxu0 %v4730
      %5020 = vmatprep.subr.mxu0 0.0
      %5021 = vmatpush1.msra.mxu0 %v4729
      %5022 = vmatprep.subr.mxu0 0.0
      %5023 = vmatpush1.msra.mxu0 %v4728
      %5024 = vmatprep.subr.mxu0 0.0
      %5025 = vmatpush1.msra.mxu0 %v4727
      %5026 = vmatprep.subr.mxu0 0.0
      %5027 = vmatpush1.msra.mxu0 %v4726
      %5028 = vmatprep.subr.mxu0 0.0
      %5029 = vmatpush2.msra.mxu0 %v4757
      %5030 = vmatprep.subr.mxu0 0.0
      %5031 = vmatpush2.msra.mxu0 %v4756
      %5032 = vmatprep.subr.mxu0 0.0
      %5033 = vmatpush2.msra.mxu0 %v4755
      %5034 = vmatprep.subr.mxu0 0.0
      %5035 = vmatpush2.msra.mxu0 %v4754
      %5036 = vmatprep.subr.mxu0 0.0
      %5037 = vmatpush2.msra.mxu0 %v4753
      %5038 = vmatprep.subr.mxu0 0.0
      %5039 = vmatpush2.msra.mxu0 %v4752
      %5040 = vmatprep.subr.mxu0 0.0
      %5041 = vmatpush2.msra.mxu0 %v4751
      %5042 = vmatprep.subr.mxu0 0.0
      %5043 = vmatpush2.msra.mxu0 %v4750
      %5044 = vmatprep.subr.mxu0 0.0
      %5045 = vmatpush2.msra.mxu0 %v4749
      %5046 = vmatprep.subr.mxu0 0.0
      %5047 = vmatpush2.msra.mxu0 %v4748
      %5048 = vmatprep.subr.mxu0 0.0
      %5049 = vmatpush2.msra.mxu0 %v4747
      %5050 = vmatprep.subr.mxu0 0.0
      %5051 = vmatpush2.msra.mxu0 %v4746
      %5052 = vmatprep.subr.mxu0 0.0
      %5053 = vmatpush2.msra.mxu0 %v4745
      %5054 = vmatprep.subr.mxu0 0.0
      %5055 = vmatpush2.msra.mxu0 %v4744
      %5056 = vmatprep.subr.mxu0 0.0
      %5057 = vmatpush2.msra.mxu0 %v4743
      %5058 = vmatprep.subr.mxu0 0.0
      %5059 = vmatpush2.msra.mxu0 %v4742
      %5060 = vmatprep.mubr.f32.mxu0 %v4493
      %5061 = vmatmul.mubr.f32.gmra.mxu0 %v4492
      %v5062 = vpop.f32.mrf.mxu0
      %v5063 = vadd.f32 0.0, %v5062
      %v5064 = vpop.f32.mrf.mxu0
      %5065 = vmatprep.mubr.f32.mxu0 %v4496
      %5066 = vmatmul.mubr.f32.gmra.mxu0 %v4495
      %v5067 = vpop.f32.mrf.mxu0
      %v5068 = vadd.f32 0.0, %v5067
      %v5069 = vpop.f32.mrf.mxu0
      %5070 = vmatprep.mubr.f32.mxu0 %v4499
      %5071 = vmatmul.mubr.f32.gmra.mxu0 %v4498
      %v5072 = vpop.f32.mrf.mxu0
      %v5073 = vadd.f32 0.0, %v5072
      %v5074 = vpop.f32.mrf.mxu0
      %5075 = vmatprep.mubr.f32.mxu0 %v4502
      %5076 = vmatmul.mubr.f32.gmra.mxu0 %v4501
      %v5077 = vpop.f32.mrf.mxu0
      %v5078 = vadd.f32 0.0, %v5077
      %v5079 = vpop.f32.mrf.mxu0
      %5080 = vmatprep.mubr.f32.mxu0 %v4505
      %5081 = vmatmul.mubr.f32.gmra.mxu0 %v4504
      %v5082 = vpop.f32.mrf.mxu0
      %v5083 = vadd.f32 0.0, %v5082
      %v5084 = vpop.f32.mrf.mxu0
      %5085 = vmatprep.mubr.f32.mxu0 %v4508
      %5086 = vmatmul.mubr.f32.gmra.mxu0 %v4507
      %v5087 = vpop.f32.mrf.mxu0
      %v5088 = vadd.f32 0.0, %v5087
      %v5089 = vpop.f32.mrf.mxu0
      %5090 = vmatprep.mubr.f32.mxu0 %v4511
      %5091 = vmatmul.mubr.f32.gmra.mxu0 %v4510
      %v5092 = vpop.f32.mrf.mxu0
      %v5093 = vadd.f32 0.0, %v5092
      %v5094 = vpop.f32.mrf.mxu0
      %5095 = vmatprep.mubr.f32.mxu0 %v4514
      %5096 = vmatmul.mubr.f32.gmra.mxu0 %v4513
      %v5097 = vpop.f32.mrf.mxu0
      %v5098 = vadd.f32 0.0, %v5097
      %v5099 = vpop.f32.mrf.mxu0
      %5100 = vmatprep.mubr.f32.mxu0 %v4517
      %5101 = vmatmul.mubr.f32.gmra.mxu0 %v4516
      %v5102 = vpop.f32.mrf.mxu0
      %v5103 = vadd.f32 0.0, %v5102
      %v5104 = vpop.f32.mrf.mxu0
      %5105 = vmatprep.mubr.f32.mxu0 %v4520
      %5106 = vmatmul.mubr.f32.gmra.mxu0 %v4519
      %v5107 = vpop.f32.mrf.mxu0
      %v5108 = vadd.f32 0.0, %v5107
      %v5109 = vpop.f32.mrf.mxu0
      %5110 = vmatprep.mubr.f32.mxu0 %v4523
      %5111 = vmatmul.mubr.f32.gmra.mxu0 %v4522
      %v5112 = vpop.f32.mrf.mxu0
      %v5113 = vadd.f32 0.0, %v5112
      %v5114 = vpop.f32.mrf.mxu0
      %5115 = vmatprep.mubr.f32.mxu0 %v4526
      %5116 = vmatmul.mubr.f32.gmra.mxu0 %v4525
      %v5117 = vpop.f32.mrf.mxu0
      %v5118 = vadd.f32 0.0, %v5117
      %v5119 = vpop.f32.mrf.mxu0
      %5120 = vmatprep.mubr.f32.mxu0 %v4529
      %5121 = vmatmul.mubr.f32.gmra.mxu0 %v4528
      %v5122 = vpop.f32.mrf.mxu0
      %v5123 = vadd.f32 0.0, %v5122
      %v5124 = vpop.f32.mrf.mxu0
      %5125 = vmatprep.mubr.f32.mxu0 %v4532
      %5126 = vmatmul.mubr.f32.gmra.mxu0 %v4531
      %v5127 = vpop.f32.mrf.mxu0
      %v5128 = vadd.f32 0.0, %v5127
      %v5129 = vpop.f32.mrf.mxu0
      %5130 = vmatprep.mubr.f32.mxu0 %v4535
      %5131 = vmatmul.mubr.f32.gmra.mxu0 %v4534
      %v5132 = vpop.f32.mrf.mxu0
      %v5133 = vadd.f32 0.0, %v5132
      %v5134 = vpop.f32.mrf.mxu0
      %5135 = vmatprep.mubr.f32.mxu0 %v4538
      %5136 = vmatmul.mubr.f32.gmra.mxu0 %v4537
      %v5137 = vpop.f32.mrf.mxu0
      %v5138 = vadd.f32 0.0, %v5137
      %v5139 = vpop.f32.mrf.mxu0
      %5140 = vmatprep.mubr.f32.mxu0 %v4541
      %5141 = vmatmul.mubr.f32.gmra.mxu0 %v4540
      %v5142 = vpop.f32.mrf.mxu0
      %v5143 = vadd.f32 0.0, %v5142
      %v5144 = vpop.f32.mrf.mxu0
      %5145 = vmatprep.mubr.f32.mxu0 %v4544
      %5146 = vmatmul.mubr.f32.gmra.mxu0 %v4543
      %v5147 = vpop.f32.mrf.mxu0
      %v5148 = vadd.f32 0.0, %v5147
      %v5149 = vpop.f32.mrf.mxu0
      %5150 = vmatprep.mubr.f32.mxu0 %v4547
      %5151 = vmatmul.mubr.f32.gmra.mxu0 %v4546
      %v5152 = vpop.f32.mrf.mxu0
      %v5153 = vadd.f32 0.0, %v5152
      %v5154 = vpop.f32.mrf.mxu0
      %5155 = vmatprep.mubr.f32.mxu0 %v4550
      %5156 = vmatmul.mubr.f32.gmra.mxu0 %v4549
      %v5157 = vpop.f32.mrf.mxu0
      %v5158 = vadd.f32 0.0, %v5157
      %v5159 = vpop.f32.mrf.mxu0
      %5160 = vmatprep.mubr.f32.mxu0 %v4553
      %5161 = vmatmul.mubr.f32.gmra.mxu0 %v4552
      %v5162 = vpop.f32.mrf.mxu0
      %v5163 = vadd.f32 0.0, %v5162
      %v5164 = vpop.f32.mrf.mxu0
      %5165 = vmatprep.mubr.f32.mxu0 %v4556
      %5166 = vmatmul.mubr.f32.gmra.mxu0 %v4555
      %v5167 = vpop.f32.mrf.mxu0
      %v5168 = vadd.f32 0.0, %v5167
      %v5169 = vpop.f32.mrf.mxu0
      %5170 = vmatprep.mubr.f32.mxu0 %v4559
      %5171 = vmatmul.mubr.f32.gmra.mxu0 %v4558
      %v5172 = vpop.f32.mrf.mxu0
      %v5173 = vadd.f32 0.0, %v5172
      %v5174 = vpop.f32.mrf.mxu0
      %5175 = vmatprep.mubr.f32.mxu0 %v4562
      %5176 = vmatmul.mubr.f32.gmra.mxu0 %v4561
      %v5177 = vpop.f32.mrf.mxu0
      %v5178 = vadd.f32 0.0, %v5177
      %v5179 = vpop.f32.mrf.mxu0
      %5180 = vmatprep.mubr.f32.mxu0 %v4565
      %5181 = vmatmul.mubr.f32.gmra.mxu0 %v4564
      %v5182 = vpop.f32.mrf.mxu0
      %v5183 = vadd.f32 0.0, %v5182
      %v5184 = vpop.f32.mrf.mxu0
      %5185 = vmatprep.mubr.f32.mxu0 %v4568
      %5186 = vmatmul.mubr.f32.gmra.mxu0 %v4567
      %v5187 = vpop.f32.mrf.mxu0
      %v5188 = vadd.f32 0.0, %v5187
      %v5189 = vpop.f32.mrf.mxu0
      %5190 = vmatprep.mubr.f32.mxu0 %v4571
      %5191 = vmatmul.mubr.f32.gmra.mxu0 %v4570
      %v5192 = vpop.f32.mrf.mxu0
      %v5193 = vadd.f32 0.0, %v5192
      %v5194 = vpop.f32.mrf.mxu0
      %5195 = vmatprep.mubr.f32.mxu0 %v4574
      %5196 = vmatmul.mubr.f32.gmra.mxu0 %v4573
      %v5197 = vpop.f32.mrf.mxu0
      %v5198 = vadd.f32 0.0, %v5197
      %v5199 = vpop.f32.mrf.mxu0
      %5200 = vmatprep.mubr.f32.mxu0 %v4577
      %5201 = vmatmul.mubr.f32.gmra.mxu0 %v4576
      %v5202 = vpop.f32.mrf.mxu0
      %v5203 = vadd.f32 0.0, %v5202
      %v5204 = vpop.f32.mrf.mxu0
      %5205 = vmatprep.mubr.f32.mxu0 %v4580
      %5206 = vmatmul.mubr.f32.gmra.mxu0 %v4579
      %v5207 = vpop.f32.mrf.mxu0
      %v5208 = vadd.f32 0.0, %v5207
      %v5209 = vpop.f32.mrf.mxu0
      %5210 = vmatprep.mubr.f32.mxu0 %v4583
      %5211 = vmatmul.mubr.f32.gmra.mxu0 %v4582
      %v5212 = vpop.f32.mrf.mxu0
      %v5213 = vadd.f32 0.0, %v5212
      %v5214 = vpop.f32.mrf.mxu0
      %5215 = vmatprep.mubr.f32.mxu0 %v4586
      %5216 = vmatmul.mubr.f32.gmra.mxu0 %v4585
      %v5217 = vpop.f32.mrf.mxu0
      %v5218 = vadd.f32 0.0, %v5217
      %v5219 = vpop.f32.mrf.mxu0
      %5220 = vmatprep.mubr.f32.mxu0 %v4589
      %5221 = vmatmul.mubr.f32.gmra.mxu0 %v4588
      %v5222 = vpop.f32.mrf.mxu0
      %v5223 = vadd.f32 0.0, %v5222
      %v5224 = vpop.f32.mrf.mxu0
      %5225 = vmatprep.mubr.f32.mxu0 %v4592
      %5226 = vmatmul.mubr.f32.gmra.mxu0 %v4591
      %v5227 = vpop.f32.mrf.mxu0
      %v5228 = vadd.f32 0.0, %v5227
      %v5229 = vpop.f32.mrf.mxu0
      %5230 = vmatprep.mubr.f32.mxu0 %v4595
      %5231 = vmatmul.mubr.f32.gmra.mxu0 %v4594
      %v5232 = vpop.f32.mrf.mxu0
      %v5233 = vadd.f32 0.0, %v5232
      %v5234 = vpop.f32.mrf.mxu0
      %5235 = vmatprep.mubr.f32.mxu0 %v4598
      %5236 = vmatmul.mubr.f32.gmra.mxu0 %v4597
      %v5237 = vpop.f32.mrf.mxu0
      %v5238 = vadd.f32 0.0, %v5237
      %v5239 = vpop.f32.mrf.mxu0
      %5240 = vmatprep.mubr.f32.mxu0 %v4601
      %5241 = vmatmul.mubr.f32.gmra.mxu0 %v4600
      %v5242 = vpop.f32.mrf.mxu0
      %v5243 = vadd.f32 0.0, %v5242
      %v5244 = vpop.f32.mrf.mxu0
      %5245 = vmatprep.mubr.f32.mxu0 %v4604
      %5246 = vmatmul.mubr.f32.gmra.mxu0 %v4603
      %v5247 = vpop.f32.mrf.mxu0
      %v5248 = vadd.f32 0.0, %v5247
      %v5249 = vpop.f32.mrf.mxu0
      %5250 = vmatprep.mubr.f32.mxu0 %v4607
      %5251 = vmatmul.mubr.f32.gmra.mxu0 %v4606
      %v5252 = vpop.f32.mrf.mxu0
      %v5253 = vadd.f32 0.0, %v5252
      %v5254 = vpop.f32.mrf.mxu0
      %5255 = vmatprep.mubr.f32.mxu0 %v4610
      %5256 = vmatmul.mubr.f32.gmra.mxu0 %v4609
      %v5257 = vpop.f32.mrf.mxu0
      %v5258 = vadd.f32 0.0, %v5257
      %v5259 = vpop.f32.mrf.mxu0
      %5260 = vmatprep.mubr.f32.mxu0 %v4613
      %5261 = vmatmul.mubr.f32.gmra.mxu0 %v4612
      %v5262 = vpop.f32.mrf.mxu0
      %v5263 = vadd.f32 0.0, %v5262
      %v5264 = vpop.f32.mrf.mxu0
      %5265 = vmatprep.mubr.f32.mxu0 %v4616
      %5266 = vmatmul.mubr.f32.gmra.mxu0 %v4615
      %v5267 = vpop.f32.mrf.mxu0
      %v5268 = vadd.f32 0.0, %v5267
      %v5269 = vpop.f32.mrf.mxu0
      %5270 = vmatprep.mubr.f32.mxu0 %v4619
      %5271 = vmatmul.mubr.f32.gmra.mxu0 %v4618
      %v5272 = vpop.f32.mrf.mxu0
      %v5273 = vadd.f32 0.0, %v5272
      %v5274 = vpop.f32.mrf.mxu0
      %5275 = vmatprep.mubr.f32.mxu0 %v4622
      %5276 = vmatmul.mubr.f32.gmra.mxu0 %v4621
      %v5277 = vpop.f32.mrf.mxu0
      %v5278 = vadd.f32 0.0, %v5277
      %v5279 = vpop.f32.mrf.mxu0
      %5280 = vmatprep.mubr.f32.mxu0 %v4625
      %5281 = vmatmul.mubr.f32.gmra.mxu0 %v4624
      %v5282 = vpop.f32.mrf.mxu0
      %v5283 = vadd.f32 0.0, %v5282
      %v5284 = vpop.f32.mrf.mxu0
      %5285 = vmatprep.mubr.f32.mxu0 %v4628
      %5286 = vmatmul.mubr.f32.gmra.mxu0 %v4627
      %v5287 = vpop.f32.mrf.mxu0
      %v5288 = vadd.f32 0.0, %v5287
      %v5289 = vpop.f32.mrf.mxu0
      %5290 = vmatprep.mubr.f32.mxu0 %v4631
      %5291 = vmatmul.mubr.f32.gmra.mxu0 %v4630
      %v5292 = vpop.f32.mrf.mxu0
      %v5293 = vadd.f32 0.0, %v5292
      %v5294 = vpop.f32.mrf.mxu0
      %5295 = vmatprep.mubr.f32.mxu0 %v4634
      %5296 = vmatmul.mubr.f32.gmra.mxu0 %v4633
      %v5297 = vpop.f32.mrf.mxu0
      %v5298 = vadd.f32 0.0, %v5297
      %v5299 = vpop.f32.mrf.mxu0
      %5300 = vmatprep.mubr.f32.mxu0 %v4637
      %5301 = vmatmul.mubr.f32.gmra.mxu0 %v4636
      %v5302 = vpop.f32.mrf.mxu0
      %v5303 = vadd.f32 0.0, %v5302
      %v5304 = vpop.f32.mrf.mxu0
      %5305 = vmatprep.mubr.f32.mxu0 %v4640
      %5306 = vmatmul.mubr.f32.gmra.mxu0 %v4639
      %v5307 = vpop.f32.mrf.mxu0
      %v5308 = vadd.f32 0.0, %v5307
      %v5309 = vpop.f32.mrf.mxu0
      %5310 = vmatprep.mubr.f32.mxu0 %v4643
      %5311 = vmatmul.mubr.f32.gmra.mxu0 %v4642
      %v5312 = vpop.f32.mrf.mxu0
      %v5313 = vadd.f32 0.0, %v5312
      %v5314 = vpop.f32.mrf.mxu0
      %5315 = vmatprep.mubr.f32.mxu0 %v4646
      %5316 = vmatmul.mubr.f32.gmra.mxu0 %v4645
      %v5317 = vpop.f32.mrf.mxu0
      %v5318 = vadd.f32 0.0, %v5317
      %v5319 = vpop.f32.mrf.mxu0
      %5320 = vmatprep.mubr.f32.mxu0 %v4649
      %5321 = vmatmul.mubr.f32.gmra.mxu0 %v4648
      %v5322 = vpop.f32.mrf.mxu0
      %v5323 = vadd.f32 0.0, %v5322
      %v5324 = vpop.f32.mrf.mxu0
      %5325 = vmatprep.mubr.f32.mxu0 %v4652
      %5326 = vmatmul.mubr.f32.gmra.mxu0 %v4651
      %v5327 = vpop.f32.mrf.mxu0
      %v5328 = vadd.f32 0.0, %v5327
      %v5329 = vpop.f32.mrf.mxu0
      %5330 = vmatprep.mubr.f32.mxu0 %v4655
      %5331 = vmatmul.mubr.f32.gmra.mxu0 %v4654
      %v5332 = vpop.f32.mrf.mxu0
      %v5333 = vadd.f32 0.0, %v5332
      %v5334 = vpop.f32.mrf.mxu0
      %5335 = vmatprep.mubr.f32.mxu0 %v4658
      %5336 = vmatmul.mubr.f32.gmra.mxu0 %v4657
      %v5337 = vpop.f32.mrf.mxu0
      %v5338 = vadd.f32 0.0, %v5337
      %v5339 = vpop.f32.mrf.mxu0
      %5340 = vmatprep.mubr.f32.mxu0 %v4661
      %5341 = vmatmul.mubr.f32.gmra.mxu0 %v4660
      %v5342 = vpop.f32.mrf.mxu0
      %v5343 = vadd.f32 0.0, %v5342
      %v5344 = vpop.f32.mrf.mxu0
      %5345 = vmatprep.mubr.f32.mxu0 %v4664
      %5346 = vmatmul.mubr.f32.gmra.mxu0 %v4663
      %v5347 = vpop.f32.mrf.mxu0
      %v5348 = vadd.f32 0.0, %v5347
      %v5349 = vpop.f32.mrf.mxu0
      %5350 = vmatprep.mubr.f32.mxu0 %v4667
      %5351 = vmatmul.mubr.f32.gmra.mxu0 %v4666
      %v5352 = vpop.f32.mrf.mxu0
      %v5353 = vadd.f32 0.0, %v5352
      %v5354 = vpop.f32.mrf.mxu0
      %5355 = vmatprep.mubr.f32.mxu0 %v4670
      %5356 = vmatmul.mubr.f32.gmra.mxu0 %v4669
      %v5357 = vpop.f32.mrf.mxu0
      %v5358 = vadd.f32 0.0, %v5357
      %v5359 = vpop.f32.mrf.mxu0
      %5360 = vmatprep.mubr.f32.mxu0 %v4673
      %5361 = vmatmul.mubr.f32.gmra.mxu0 %v4672
      %v5362 = vpop.f32.mrf.mxu0
      %v5363 = vadd.f32 0.0, %v5362
      %v5364 = vpop.f32.mrf.mxu0
      %5365 = vmatprep.mubr.f32.mxu0 %v4676
      %5366 = vmatmul.mubr.f32.gmra.mxu0 %v4675
      %v5367 = vpop.f32.mrf.mxu0
      %v5368 = vadd.f32 0.0, %v5367
      %v5369 = vpop.f32.mrf.mxu0
      %5370 = vmatprep.mubr.f32.mxu0 %v4679
      %5371 = vmatmul.mubr.f32.gmra.mxu0 %v4678
      %v5372 = vpop.f32.mrf.mxu0
      %v5373 = vadd.f32 0.0, %v5372
      %v5374 = vpop.f32.mrf.mxu0
      %5375 = vmatprep.mubr.f32.mxu0 %v4682
      %5376 = vmatmul.mubr.f32.gmra.mxu0 %v4681
      %v5377 = vpop.f32.mrf.mxu0
      %v5378 = vadd.f32 0.0, %v5377
      %v5379 = vpop.f32.mrf.mxu0
      %5380 = vmatprep.mubr.f32.mxu0 %v4685
      %5381 = vmatmul.mubr.f32.gmra.mxu0 %v4684
      %v5382 = vpop.f32.mrf.mxu0
      %v5383 = vadd.f32 0.0, %v5382
      %v5384 = vpop.f32.mrf.mxu0
      %5385 = vmatprep.mubr.f32.mxu0 %v4688
      %5386 = vmatmul.mubr.f32.gmra.mxu0 %v4687
      %v5387 = vpop.f32.mrf.mxu0
      %v5388 = vadd.f32 0.0, %v5387
      %v5389 = vpop.f32.mrf.mxu0
      %5390 = vmatprep.mubr.f32.mxu0 %v4691
      %5391 = vmatmul.mubr.f32.gmra.mxu0 %v4690
      %v5392 = vpop.f32.mrf.mxu0
      %v5393 = vadd.f32 0.0, %v5392
      %v5394 = vpop.f32.mrf.mxu0
      %5395 = vmatprep.mubr.f32.mxu0 %v4694
      %5396 = vmatmul.mubr.f32.gmra.mxu0 %v4693
      %v5397 = vpop.f32.mrf.mxu0
      %v5398 = vadd.f32 0.0, %v5397
      %v5399 = vpop.f32.mrf.mxu0
      %5400 = vmatprep.mubr.f32.mxu0 %v4697
      %5401 = vmatmul.mubr.f32.gmra.mxu0 %v4696
      %v5402 = vpop.f32.mrf.mxu0
      %v5403 = vadd.f32 0.0, %v5402
      %v5404 = vpop.f32.mrf.mxu0
      %5405 = vmatprep.mubr.f32.mxu0 %v4700
      %5406 = vmatmul.mubr.f32.gmra.mxu0 %v4699
      %v5407 = vpop.f32.mrf.mxu0
      %v5408 = vadd.f32 0.0, %v5407
      %v5409 = vpop.f32.mrf.mxu0
      %5410 = vmatprep.mubr.f32.mxu0 %v4703
      %5411 = vmatmul.mubr.f32.gmra.mxu0 %v4702
      %v5412 = vpop.f32.mrf.mxu0
      %v5413 = vadd.f32 0.0, %v5412
      %v5414 = vpop.f32.mrf.mxu0
      %5415 = vmatprep.mubr.f32.mxu0 %v4706
      %5416 = vmatmul.mubr.f32.gmra.mxu0 %v4705
      %v5417 = vpop.f32.mrf.mxu0
      %v5418 = vadd.f32 0.0, %v5417
      %v5419 = vpop.f32.mrf.mxu0
      %5420 = vmatprep.mubr.f32.mxu0 %v4709
      %5421 = vmatmul.mubr.f32.gmra.mxu0 %v4708
      %v5422 = vpop.f32.mrf.mxu0
      %v5423 = vadd.f32 0.0, %v5422
      %v5424 = vpop.f32.mrf.mxu0
      %5425 = vmatprep.mubr.f32.mxu0 %v4712
      %5426 = vmatmul.mubr.f32.gmra.mxu0 %v4711
      %v5427 = vpop.f32.mrf.mxu0
      %v5428 = vadd.f32 0.0, %v5427
      %v5429 = vpop.f32.mrf.mxu0
      %5430 = vmatprep.mubr.f32.mxu0 %v4715
      %5431 = vmatmul.mubr.f32.gmra.mxu0 %v4714
      %v5432 = vpop.f32.mrf.mxu0
      %v5433 = vadd.f32 0.0, %v5432
      %v5434 = vpop.f32.mrf.mxu0
      %5435 = vmatprep.mubr.f32.mxu0 %v4718
      %5436 = vmatmul.mubr.f32.gmra.mxu0 %v4717
      %v5437 = vpop.f32.mrf.mxu0
      %v5438 = vadd.f32 0.0, %v5437
      %v5439 = vpop.f32.mrf.mxu0
      %5440 = vmatprep.mubr.f32.mxu0 %v4721
      %5441 = vmatmul.mubr.f32.gmra.mxu0 %v4720
      %v5442 = vpop.f32.mrf.mxu0
      %v5443 = vadd.f32 0.0, %v5442
      %v5444 = vpop.f32.mrf.mxu0
      %5445 = vmatprep.mubr.f32.mxu0 %v4724
      %5446 = vmatmul.mubr.f32.gmra.mxu0 %v4723
      %v5447 = vpop.f32.mrf.mxu0
      %v5448 = vadd.f32 0.0, %v5447
      %v5449 = vpop.f32.mrf.mxu0
      %5450 = vdwg.mxu0
      %5451 = vmatprep.subr.mxu0 0.0
      %5452 = vmatpush1.msra.mxu0 0.0
      %5453 = vmatprep.subr.mxu0 0.0
      %5454 = vmatpush1.msra.mxu0 0.0
      %5455 = vmatprep.subr.mxu0 0.0
      %5456 = vmatpush1.msra.mxu0 0.0
      %5457 = vmatprep.subr.mxu0 0.0
      %5458 = vmatpush1.msra.mxu0 0.0
      %5459 = vmatprep.subr.mxu0 0.0
      %5460 = vmatpush1.msra.mxu0 0.0
      %5461 = vmatprep.subr.mxu0 0.0
      %5462 = vmatpush1.msra.mxu0 0.0
      %5463 = vmatprep.subr.mxu0 0.0
      %5464 = vmatpush1.msra.mxu0 0.0
      %5465 = vmatprep.subr.mxu0 0.0
      %5466 = vmatpush1.msra.mxu0 0.0
      %5467 = vmatprep.subr.mxu0 0.0
      %5468 = vmatpush1.msra.mxu0 0.0
      %5469 = vmatprep.subr.mxu0 0.0
      %5470 = vmatpush1.msra.mxu0 0.0
      %5471 = vmatprep.subr.mxu0 0.0
      %5472 = vmatpush1.msra.mxu0 0.0
      %5473 = vmatprep.subr.mxu0 0.0
      %5474 = vmatpush1.msra.mxu0 0.0
      %5475 = vmatprep.subr.mxu0 0.0
      %5476 = vmatpush1.msra.mxu0 %v4761
      %5477 = vmatprep.subr.mxu0 0.0
      %5478 = vmatpush1.msra.mxu0 %v4760
      %5479 = vmatprep.subr.mxu0 0.0
      %5480 = vmatpush1.msra.mxu0 %v4759
      %5481 = vmatprep.subr.mxu0 0.0
      %5482 = vmatpush1.msra.mxu0 %v4758
      %5483 = vmatprep.subr.mxu0 0.0
      %5484 = vmatpush2.msra.mxu0 0.0
      %5485 = vmatprep.subr.mxu0 0.0
      %5486 = vmatpush2.msra.mxu0 0.0
      %5487 = vmatprep.subr.mxu0 0.0
      %5488 = vmatpush2.msra.mxu0 0.0
      %5489 = vmatprep.subr.mxu0 0.0
      %5490 = vmatpush2.msra.mxu0 0.0
      %5491 = vmatprep.subr.mxu0 0.0
      %5492 = vmatpush2.msra.mxu0 0.0
      %5493 = vmatprep.subr.mxu0 0.0
      %5494 = vmatpush2.msra.mxu0 0.0
      %5495 = vmatprep.subr.mxu0 0.0
      %5496 = vmatpush2.msra.mxu0 0.0
      %5497 = vmatprep.subr.mxu0 0.0
      %5498 = vmatpush2.msra.mxu0 0.0
      %5499 = vmatprep.subr.mxu0 0.0
      %5500 = vmatpush2.msra.mxu0 0.0
      %5501 = vmatprep.subr.mxu0 0.0
      %5502 = vmatpush2.msra.mxu0 0.0
      %5503 = vmatprep.subr.mxu0 0.0
      %5504 = vmatpush2.msra.mxu0 0.0
      %5505 = vmatprep.subr.mxu0 0.0
      %5506 = vmatpush2.msra.mxu0 0.0
      %5507 = vmatprep.subr.mxu0 0.0
      %5508 = vmatpush2.msra.mxu0 0.0
      %5509 = vmatprep.subr.mxu0 0.0
      %5510 = vmatpush2.msra.mxu0 0.0
      %5511 = vmatprep.subr.mxu0 0.0
      %5512 = vmatpush2.msra.mxu0 0.0
      %5513 = vmatprep.subr.mxu0 0.0
      %5514 = vmatpush2.msra.mxu0 0.0
      %5515 = vmatprep.mubr.f32.mxu0 0.0
      %5516 = vmatmul.mubr.f32.gmra.mxu0 %v4763
      %v5517 = vpop.f32.mrf.mxu0
      %v5518 = vadd.f32 %v5063, %v5517
      %v5519 = vpop.f32.mrf.mxu0
      %5520 = vmatprep.mubr.f32.mxu0 0.0
      %5521 = vmatmul.mubr.f32.gmra.mxu0 %v4766
      %v5522 = vpop.f32.mrf.mxu0
      %v5523 = vadd.f32 %v5068, %v5522
      %v5524 = vpop.f32.mrf.mxu0
      %5525 = vmatprep.mubr.f32.mxu0 0.0
      %5526 = vmatmul.mubr.f32.gmra.mxu0 %v4769
      %v5527 = vpop.f32.mrf.mxu0
      %v5528 = vadd.f32 %v5073, %v5527
      %v5529 = vpop.f32.mrf.mxu0
      %5530 = vmatprep.mubr.f32.mxu0 0.0
      %5531 = vmatmul.mubr.f32.gmra.mxu0 %v4772
      %v5532 = vpop.f32.mrf.mxu0
      %v5533 = vadd.f32 %v5078, %v5532
      %v5534 = vpop.f32.mrf.mxu0
      %5535 = vmatprep.mubr.f32.mxu0 0.0
      %5536 = vmatmul.mubr.f32.gmra.mxu0 %v4775
      %v5537 = vpop.f32.mrf.mxu0
      %v5538 = vadd.f32 %v5083, %v5537
      %v5539 = vpop.f32.mrf.mxu0
      %5540 = vmatprep.mubr.f32.mxu0 0.0
      %5541 = vmatmul.mubr.f32.gmra.mxu0 %v4778
      %v5542 = vpop.f32.mrf.mxu0
      %v5543 = vadd.f32 %v5088, %v5542
      %v5544 = vpop.f32.mrf.mxu0
      %5545 = vmatprep.mubr.f32.mxu0 0.0
      %5546 = vmatmul.mubr.f32.gmra.mxu0 %v4781
      %v5547 = vpop.f32.mrf.mxu0
      %v5548 = vadd.f32 %v5093, %v5547
      %v5549 = vpop.f32.mrf.mxu0
      %5550 = vmatprep.mubr.f32.mxu0 0.0
      %5551 = vmatmul.mubr.f32.gmra.mxu0 %v4784
      %v5552 = vpop.f32.mrf.mxu0
      %v5553 = vadd.f32 %v5098, %v5552
      %v5554 = vpop.f32.mrf.mxu0
      %5555 = vmatprep.mubr.f32.mxu0 0.0
      %5556 = vmatmul.mubr.f32.gmra.mxu0 %v4787
      %v5557 = vpop.f32.mrf.mxu0
      %v5558 = vadd.f32 %v5103, %v5557
      %v5559 = vpop.f32.mrf.mxu0
      %5560 = vmatprep.mubr.f32.mxu0 0.0
      %5561 = vmatmul.mubr.f32.gmra.mxu0 %v4790
      %v5562 = vpop.f32.mrf.mxu0
      %v5563 = vadd.f32 %v5108, %v5562
      %v5564 = vpop.f32.mrf.mxu0
      %5565 = vmatprep.mubr.f32.mxu0 0.0
      %5566 = vmatmul.mubr.f32.gmra.mxu0 %v4793
      %v5567 = vpop.f32.mrf.mxu0
      %v5568 = vadd.f32 %v5113, %v5567
      %v5569 = vpop.f32.mrf.mxu0
      %5570 = vmatprep.mubr.f32.mxu0 0.0
      %5571 = vmatmul.mubr.f32.gmra.mxu0 %v4796
      %v5572 = vpop.f32.mrf.mxu0
      %v5573 = vadd.f32 %v5118, %v5572
      %v5574 = vpop.f32.mrf.mxu0
      %5575 = vmatprep.mubr.f32.mxu0 0.0
      %5576 = vmatmul.mubr.f32.gmra.mxu0 %v4799
      %v5577 = vpop.f32.mrf.mxu0
      %v5578 = vadd.f32 %v5123, %v5577
      %v5579 = vpop.f32.mrf.mxu0
      %5580 = vmatprep.mubr.f32.mxu0 0.0
      %5581 = vmatmul.mubr.f32.gmra.mxu0 %v4802
      %v5582 = vpop.f32.mrf.mxu0
      %v5583 = vadd.f32 %v5128, %v5582
      %v5584 = vpop.f32.mrf.mxu0
      %5585 = vmatprep.mubr.f32.mxu0 0.0
      %5586 = vmatmul.mubr.f32.gmra.mxu0 %v4805
      %v5587 = vpop.f32.mrf.mxu0
      %v5588 = vadd.f32 %v5133, %v5587
      %v5589 = vpop.f32.mrf.mxu0
      %5590 = vmatprep.mubr.f32.mxu0 0.0
      %5591 = vmatmul.mubr.f32.gmra.mxu0 %v4808
      %v5592 = vpop.f32.mrf.mxu0
      %v5593 = vadd.f32 %v5138, %v5592
      %v5594 = vpop.f32.mrf.mxu0
      %5595 = vmatprep.mubr.f32.mxu0 0.0
      %5596 = vmatmul.mubr.f32.gmra.mxu0 %v4811
      %v5597 = vpop.f32.mrf.mxu0
      %v5598 = vadd.f32 %v5143, %v5597
      %v5599 = vpop.f32.mrf.mxu0
      %5600 = vmatprep.mubr.f32.mxu0 0.0
      %5601 = vmatmul.mubr.f32.gmra.mxu0 %v4814
      %v5602 = vpop.f32.mrf.mxu0
      %v5603 = vadd.f32 %v5148, %v5602
      %v5604 = vpop.f32.mrf.mxu0
      %5605 = vmatprep.mubr.f32.mxu0 0.0
      %5606 = vmatmul.mubr.f32.gmra.mxu0 %v4817
      %v5607 = vpop.f32.mrf.mxu0
      %v5608 = vadd.f32 %v5153, %v5607
      %v5609 = vpop.f32.mrf.mxu0
      %5610 = vmatprep.mubr.f32.mxu0 0.0
      %5611 = vmatmul.mubr.f32.gmra.mxu0 %v4820
      %v5612 = vpop.f32.mrf.mxu0
      %v5613 = vadd.f32 %v5158, %v5612
      %v5614 = vpop.f32.mrf.mxu0
      %5615 = vmatprep.mubr.f32.mxu0 0.0
      %5616 = vmatmul.mubr.f32.gmra.mxu0 %v4823
      %v5617 = vpop.f32.mrf.mxu0
      %v5618 = vadd.f32 %v5163, %v5617
      %v5619 = vpop.f32.mrf.mxu0
      %5620 = vmatprep.mubr.f32.mxu0 0.0
      %5621 = vmatmul.mubr.f32.gmra.mxu0 %v4826
      %v5622 = vpop.f32.mrf.mxu0
      %v5623 = vadd.f32 %v5168, %v5622
      %v5624 = vpop.f32.mrf.mxu0
      %5625 = vmatprep.mubr.f32.mxu0 0.0
      %5626 = vmatmul.mubr.f32.gmra.mxu0 %v4829
      %v5627 = vpop.f32.mrf.mxu0
      %v5628 = vadd.f32 %v5173, %v5627
      %v5629 = vpop.f32.mrf.mxu0
      %5630 = vmatprep.mubr.f32.mxu0 0.0
      %5631 = vmatmul.mubr.f32.gmra.mxu0 %v4832
      %v5632 = vpop.f32.mrf.mxu0
      %v5633 = vadd.f32 %v5178, %v5632
      %v5634 = vpop.f32.mrf.mxu0
      %5635 = vmatprep.mubr.f32.mxu0 0.0
      %5636 = vmatmul.mubr.f32.gmra.mxu0 %v4835
      %v5637 = vpop.f32.mrf.mxu0
      %v5638 = vadd.f32 %v5183, %v5637
      %v5639 = vpop.f32.mrf.mxu0
      %5640 = vmatprep.mubr.f32.mxu0 0.0
      %5641 = vmatmul.mubr.f32.gmra.mxu0 %v4838
      %v5642 = vpop.f32.mrf.mxu0
      %v5643 = vadd.f32 %v5188, %v5642
      %v5644 = vpop.f32.mrf.mxu0
      %5645 = vmatprep.mubr.f32.mxu0 0.0
      %5646 = vmatmul.mubr.f32.gmra.mxu0 %v4841
      %v5647 = vpop.f32.mrf.mxu0
      %v5648 = vadd.f32 %v5193, %v5647
      %v5649 = vpop.f32.mrf.mxu0
      %5650 = vmatprep.mubr.f32.mxu0 0.0
      %5651 = vmatmul.mubr.f32.gmra.mxu0 %v4844
      %v5652 = vpop.f32.mrf.mxu0
      %v5653 = vadd.f32 %v5198, %v5652
      %v5654 = vpop.f32.mrf.mxu0
      %5655 = vmatprep.mubr.f32.mxu0 0.0
      %5656 = vmatmul.mubr.f32.gmra.mxu0 %v4847
      %v5657 = vpop.f32.mrf.mxu0
      %v5658 = vadd.f32 %v5203, %v5657
      %v5659 = vpop.f32.mrf.mxu0
      %5660 = vmatprep.mubr.f32.mxu0 0.0
      %5661 = vmatmul.mubr.f32.gmra.mxu0 %v4850
      %v5662 = vpop.f32.mrf.mxu0
      %v5663 = vadd.f32 %v5208, %v5662
      %v5664 = vpop.f32.mrf.mxu0
      %5665 = vmatprep.mubr.f32.mxu0 0.0
      %5666 = vmatmul.mubr.f32.gmra.mxu0 %v4853
      %v5667 = vpop.f32.mrf.mxu0
      %v5668 = vadd.f32 %v5213, %v5667
      %v5669 = vpop.f32.mrf.mxu0
      %5670 = vmatprep.mubr.f32.mxu0 0.0
      %5671 = vmatmul.mubr.f32.gmra.mxu0 %v4856
      %v5672 = vpop.f32.mrf.mxu0
      %v5673 = vadd.f32 %v5218, %v5672
      %v5674 = vpop.f32.mrf.mxu0
      %5675 = vmatprep.mubr.f32.mxu0 0.0
      %5676 = vmatmul.mubr.f32.gmra.mxu0 %v4859
      %v5677 = vpop.f32.mrf.mxu0
      %v5678 = vadd.f32 %v5223, %v5677
      %v5679 = vpop.f32.mrf.mxu0
      %5680 = vmatprep.mubr.f32.mxu0 0.0
      %5681 = vmatmul.mubr.f32.gmra.mxu0 %v4862
      %v5682 = vpop.f32.mrf.mxu0
      %v5683 = vadd.f32 %v5228, %v5682
      %v5684 = vpop.f32.mrf.mxu0
      %5685 = vmatprep.mubr.f32.mxu0 0.0
      %5686 = vmatmul.mubr.f32.gmra.mxu0 %v4865
      %v5687 = vpop.f32.mrf.mxu0
      %v5688 = vadd.f32 %v5233, %v5687
      %v5689 = vpop.f32.mrf.mxu0
      %5690 = vmatprep.mubr.f32.mxu0 0.0
      %5691 = vmatmul.mubr.f32.gmra.mxu0 %v4868
      %v5692 = vpop.f32.mrf.mxu0
      %v5693 = vadd.f32 %v5238, %v5692
      %v5694 = vpop.f32.mrf.mxu0
      %5695 = vmatprep.mubr.f32.mxu0 0.0
      %5696 = vmatmul.mubr.f32.gmra.mxu0 %v4871
      %v5697 = vpop.f32.mrf.mxu0
      %v5698 = vadd.f32 %v5243, %v5697
      %v5699 = vpop.f32.mrf.mxu0
      %5700 = vmatprep.mubr.f32.mxu0 0.0
      %5701 = vmatmul.mubr.f32.gmra.mxu0 %v4874
      %v5702 = vpop.f32.mrf.mxu0
      %v5703 = vadd.f32 %v5248, %v5702
      %v5704 = vpop.f32.mrf.mxu0
      %5705 = vmatprep.mubr.f32.mxu0 0.0
      %5706 = vmatmul.mubr.f32.gmra.mxu0 %v4877
      %v5707 = vpop.f32.mrf.mxu0
      %v5708 = vadd.f32 %v5253, %v5707
      %v5709 = vpop.f32.mrf.mxu0
      %5710 = vmatprep.mubr.f32.mxu0 0.0
      %5711 = vmatmul.mubr.f32.gmra.mxu0 %v4880
      %v5712 = vpop.f32.mrf.mxu0
      %v5713 = vadd.f32 %v5258, %v5712
      %v5714 = vpop.f32.mrf.mxu0
      %5715 = vmatprep.mubr.f32.mxu0 0.0
      %5716 = vmatmul.mubr.f32.gmra.mxu0 %v4883
      %v5717 = vpop.f32.mrf.mxu0
      %v5718 = vadd.f32 %v5263, %v5717
      %v5719 = vpop.f32.mrf.mxu0
      %5720 = vmatprep.mubr.f32.mxu0 0.0
      %5721 = vmatmul.mubr.f32.gmra.mxu0 %v4886
      %v5722 = vpop.f32.mrf.mxu0
      %v5723 = vadd.f32 %v5268, %v5722
      %v5724 = vpop.f32.mrf.mxu0
      %5725 = vmatprep.mubr.f32.mxu0 0.0
      %5726 = vmatmul.mubr.f32.gmra.mxu0 %v4889
      %v5727 = vpop.f32.mrf.mxu0
      %v5728 = vadd.f32 %v5273, %v5727
      %v5729 = vpop.f32.mrf.mxu0
      %5730 = vmatprep.mubr.f32.mxu0 0.0
      %5731 = vmatmul.mubr.f32.gmra.mxu0 %v4892
      %v5732 = vpop.f32.mrf.mxu0
      %v5733 = vadd.f32 %v5278, %v5732
      %v5734 = vpop.f32.mrf.mxu0
      %5735 = vmatprep.mubr.f32.mxu0 0.0
      %5736 = vmatmul.mubr.f32.gmra.mxu0 %v4895
      %v5737 = vpop.f32.mrf.mxu0
      %v5738 = vadd.f32 %v5283, %v5737
      %v5739 = vpop.f32.mrf.mxu0
      %5740 = vmatprep.mubr.f32.mxu0 0.0
      %5741 = vmatmul.mubr.f32.gmra.mxu0 %v4898
      %v5742 = vpop.f32.mrf.mxu0
      %v5743 = vadd.f32 %v5288, %v5742
      %v5744 = vpop.f32.mrf.mxu0
      %5745 = vmatprep.mubr.f32.mxu0 0.0
      %5746 = vmatmul.mubr.f32.gmra.mxu0 %v4901
      %v5747 = vpop.f32.mrf.mxu0
      %v5748 = vadd.f32 %v5293, %v5747
      %v5749 = vpop.f32.mrf.mxu0
      %5750 = vmatprep.mubr.f32.mxu0 0.0
      %5751 = vmatmul.mubr.f32.gmra.mxu0 %v4904
      %v5752 = vpop.f32.mrf.mxu0
      %v5753 = vadd.f32 %v5298, %v5752
      %v5754 = vpop.f32.mrf.mxu0
      %5755 = vmatprep.mubr.f32.mxu0 0.0
      %5756 = vmatmul.mubr.f32.gmra.mxu0 %v4907
      %v5757 = vpop.f32.mrf.mxu0
      %v5758 = vadd.f32 %v5303, %v5757
      %v5759 = vpop.f32.mrf.mxu0
      %5760 = vmatprep.mubr.f32.mxu0 0.0
      %5761 = vmatmul.mubr.f32.gmra.mxu0 %v4910
      %v5762 = vpop.f32.mrf.mxu0
      %v5763 = vadd.f32 %v5308, %v5762
      %v5764 = vpop.f32.mrf.mxu0
      %5765 = vmatprep.mubr.f32.mxu0 0.0
      %5766 = vmatmul.mubr.f32.gmra.mxu0 %v4913
      %v5767 = vpop.f32.mrf.mxu0
      %v5768 = vadd.f32 %v5313, %v5767
      %v5769 = vpop.f32.mrf.mxu0
      %5770 = vmatprep.mubr.f32.mxu0 0.0
      %5771 = vmatmul.mubr.f32.gmra.mxu0 %v4916
      %v5772 = vpop.f32.mrf.mxu0
      %v5773 = vadd.f32 %v5318, %v5772
      %v5774 = vpop.f32.mrf.mxu0
      %5775 = vmatprep.mubr.f32.mxu0 0.0
      %5776 = vmatmul.mubr.f32.gmra.mxu0 %v4919
      %v5777 = vpop.f32.mrf.mxu0
      %v5778 = vadd.f32 %v5323, %v5777
      %v5779 = vpop.f32.mrf.mxu0
      %5780 = vmatprep.mubr.f32.mxu0 0.0
      %5781 = vmatmul.mubr.f32.gmra.mxu0 %v4922
      %v5782 = vpop.f32.mrf.mxu0
      %v5783 = vadd.f32 %v5328, %v5782
      %v5784 = vpop.f32.mrf.mxu0
      %5785 = vmatprep.mubr.f32.mxu0 0.0
      %5786 = vmatmul.mubr.f32.gmra.mxu0 %v4925
      %v5787 = vpop.f32.mrf.mxu0
      %v5788 = vadd.f32 %v5333, %v5787
      %v5789 = vpop.f32.mrf.mxu0
      %5790 = vmatprep.mubr.f32.mxu0 0.0
      %5791 = vmatmul.mubr.f32.gmra.mxu0 %v4928
      %v5792 = vpop.f32.mrf.mxu0
      %v5793 = vadd.f32 %v5338, %v5792
      %v5794 = vpop.f32.mrf.mxu0
      %5795 = vmatprep.mubr.f32.mxu0 0.0
      %5796 = vmatmul.mubr.f32.gmra.mxu0 %v4931
      %v5797 = vpop.f32.mrf.mxu0
      %v5798 = vadd.f32 %v5343, %v5797
      %v5799 = vpop.f32.mrf.mxu0
      %5800 = vmatprep.mubr.f32.mxu0 0.0
      %5801 = vmatmul.mubr.f32.gmra.mxu0 %v4934
      %v5802 = vpop.f32.mrf.mxu0
      %v5803 = vadd.f32 %v5348, %v5802
      %v5804 = vpop.f32.mrf.mxu0
      %5805 = vmatprep.mubr.f32.mxu0 0.0
      %5806 = vmatmul.mubr.f32.gmra.mxu0 %v4937
      %v5807 = vpop.f32.mrf.mxu0
      %v5808 = vadd.f32 %v5353, %v5807
      %v5809 = vpop.f32.mrf.mxu0
      %5810 = vmatprep.mubr.f32.mxu0 0.0
      %5811 = vmatmul.mubr.f32.gmra.mxu0 %v4940
      %v5812 = vpop.f32.mrf.mxu0
      %v5813 = vadd.f32 %v5358, %v5812
      %v5814 = vpop.f32.mrf.mxu0
      %5815 = vmatprep.mubr.f32.mxu0 0.0
      %5816 = vmatmul.mubr.f32.gmra.mxu0 %v4943
      %v5817 = vpop.f32.mrf.mxu0
      %v5818 = vadd.f32 %v5363, %v5817
      %v5819 = vpop.f32.mrf.mxu0
      %5820 = vmatprep.mubr.f32.mxu0 0.0
      %5821 = vmatmul.mubr.f32.gmra.mxu0 %v4946
      %v5822 = vpop.f32.mrf.mxu0
      %v5823 = vadd.f32 %v5368, %v5822
      %v5824 = vpop.f32.mrf.mxu0
      %5825 = vmatprep.mubr.f32.mxu0 0.0
      %5826 = vmatmul.mubr.f32.gmra.mxu0 %v4949
      %v5827 = vpop.f32.mrf.mxu0
      %v5828 = vadd.f32 %v5373, %v5827
      %v5829 = vpop.f32.mrf.mxu0
      %5830 = vmatprep.mubr.f32.mxu0 0.0
      %5831 = vmatmul.mubr.f32.gmra.mxu0 %v4952
      %v5832 = vpop.f32.mrf.mxu0
      %v5833 = vadd.f32 %v5378, %v5832
      %v5834 = vpop.f32.mrf.mxu0
      %5835 = vmatprep.mubr.f32.mxu0 0.0
      %5836 = vmatmul.mubr.f32.gmra.mxu0 %v4955
      %v5837 = vpop.f32.mrf.mxu0
      %v5838 = vadd.f32 %v5383, %v5837
      %v5839 = vpop.f32.mrf.mxu0
      %5840 = vmatprep.mubr.f32.mxu0 0.0
      %5841 = vmatmul.mubr.f32.gmra.mxu0 %v4958
      %v5842 = vpop.f32.mrf.mxu0
      %v5843 = vadd.f32 %v5388, %v5842
      %v5844 = vpop.f32.mrf.mxu0
      %5845 = vmatprep.mubr.f32.mxu0 0.0
      %5846 = vmatmul.mubr.f32.gmra.mxu0 %v4961
      %v5847 = vpop.f32.mrf.mxu0
      %v5848 = vadd.f32 %v5393, %v5847
      %v5849 = vpop.f32.mrf.mxu0
      %5850 = vmatprep.mubr.f32.mxu0 0.0
      %5851 = vmatmul.mubr.f32.gmra.mxu0 %v4964
      %v5852 = vpop.f32.mrf.mxu0
      %v5853 = vadd.f32 %v5398, %v5852
      %v5854 = vpop.f32.mrf.mxu0
      %5855 = vmatprep.mubr.f32.mxu0 0.0
      %5856 = vmatmul.mubr.f32.gmra.mxu0 %v4967
      %v5857 = vpop.f32.mrf.mxu0
      %v5858 = vadd.f32 %v5403, %v5857
      %v5859 = vpop.f32.mrf.mxu0
      %5860 = vmatprep.mubr.f32.mxu0 0.0
      %5861 = vmatmul.mubr.f32.gmra.mxu0 %v4970
      %v5862 = vpop.f32.mrf.mxu0
      %v5863 = vadd.f32 %v5408, %v5862
      %v5864 = vpop.f32.mrf.mxu0
      %5865 = vmatprep.mubr.f32.mxu0 0.0
      %5866 = vmatmul.mubr.f32.gmra.mxu0 %v4973
      %v5867 = vpop.f32.mrf.mxu0
      %v5868 = vadd.f32 %v5413, %v5867
      %v5869 = vpop.f32.mrf.mxu0
      %5870 = vmatprep.mubr.f32.mxu0 0.0
      %5871 = vmatmul.mubr.f32.gmra.mxu0 %v4976
      %v5872 = vpop.f32.mrf.mxu0
      %v5873 = vadd.f32 %v5418, %v5872
      %v5874 = vpop.f32.mrf.mxu0
      %5875 = vmatprep.mubr.f32.mxu0 0.0
      %5876 = vmatmul.mubr.f32.gmra.mxu0 %v4979
      %v5877 = vpop.f32.mrf.mxu0
      %v5878 = vadd.f32 %v5423, %v5877
      %v5879 = vpop.f32.mrf.mxu0
      %5880 = vmatprep.mubr.f32.mxu0 0.0
      %5881 = vmatmul.mubr.f32.gmra.mxu0 %v4982
      %v5882 = vpop.f32.mrf.mxu0
      %v5883 = vadd.f32 %v5428, %v5882
      %v5884 = vpop.f32.mrf.mxu0
      %5885 = vmatprep.mubr.f32.mxu0 0.0
      %5886 = vmatmul.mubr.f32.gmra.mxu0 %v4985
      %v5887 = vpop.f32.mrf.mxu0
      %v5888 = vadd.f32 %v5433, %v5887
      %v5889 = vpop.f32.mrf.mxu0
      %5890 = vmatprep.mubr.f32.mxu0 0.0
      %5891 = vmatmul.mubr.f32.gmra.mxu0 %v4988
      %v5892 = vpop.f32.mrf.mxu0
      %v5893 = vadd.f32 %v5438, %v5892
      %v5894 = vpop.f32.mrf.mxu0
      %5895 = vmatprep.mubr.f32.mxu0 0.0
      %5896 = vmatmul.mubr.f32.gmra.mxu0 %v4991
      %v5897 = vpop.f32.mrf.mxu0
      %v5898 = vadd.f32 %v5443, %v5897
      %v5899 = vpop.f32.mrf.mxu0
      %5900 = vmatprep.mubr.f32.mxu0 0.0
      %5901 = vmatmul.mubr.f32.gmra.mxu0 %v4994
      %v5902 = vpop.f32.mrf.mxu0
      %v5903 = vadd.f32 %v5448, %v5902
      %v5904 = vpop.f32.mrf.mxu0
      %5905 = vdwg.mxu0
      %v5981 = vrot.slane %v5518, 1
      %v5982 = vrot.slane %v5523, 1
      %v5983 = vsel %vm1339, %v5981, %v5982
      %v5984 = vrot.slane %v5528, 1
      %v5985 = vsel %vm1339, %v5982, %v5984
      %v5986 = vrot.slane %v5533, 1
      %v5987 = vsel %vm1339, %v5984, %v5986
      %v5988 = vrot.slane %v5538, 1
      %v5989 = vsel %vm1339, %v5986, %v5988
      %v5990 = vrot.slane %v5543, 1
      %v5991 = vsel %vm1339, %v5988, %v5990
      %v5992 = vrot.slane %v5548, 1
      %v5993 = vsel %vm1339, %v5990, %v5992
      %v5994 = vrot.slane %v5553, 1
      %v5995 = vsel %vm1339, %v5992, %v5994
      %v5996 = vrot.slane %v5558, 1
      %v5997 = vsel %vm1339, %v5994, %v5996
      %v5998 = vrot.slane %v5563, 1
      %v5999 = vsel %vm1339, %v5996, %v5998
      %v6000 = vrot.slane %v5568, 1
      %v6001 = vsel %vm1339, %v5998, %v6000
      %v6002 = vrot.slane %v5573, 1
      %v6003 = vsel %vm1339, %v6000, %v6002
      %v6004 = vrot.slane %v5578, 1
      %v6005 = vsel %vm1339, %v6002, %v6004
      %v6006 = vrot.slane %v5583, 1
      %v6007 = vsel %vm1339, %v6004, %v6006
      %v6008 = vrot.slane %v5588, 1
      %v6009 = vsel %vm1339, %v6006, %v6008
      %v6010 = vrot.slane %v5593, 1
      %v6011 = vsel %vm1339, %v6008, %v6010
      %v6012 = vrot.slane %v5598, 1
      %v6013 = vsel %vm1339, %v6010, %v6012
      %v6014 = vrot.slane %v5603, 1
      %v6015 = vsel %vm1339, %v6012, %v6014
      %v6016 = vrot.slane %v5608, 1
      %v6017 = vsel %vm1339, %v6014, %v6016
      %v6018 = vrot.slane %v5613, 1
      %v6019 = vsel %vm1339, %v6016, %v6018
      %v6020 = vrot.slane %v5618, 1
      %v6021 = vsel %vm1339, %v6018, %v6020
      %v6022 = vrot.slane %v5623, 1
      %v6023 = vsel %vm1339, %v6020, %v6022
      %v6024 = vrot.slane %v5628, 1
      %v6025 = vsel %vm1339, %v6022, %v6024
      %v6026 = vrot.slane %v5633, 1
      %v6027 = vsel %vm1339, %v6024, %v6026
      %v6028 = vrot.slane %v5638, 1
      %v6029 = vsel %vm1339, %v6026, %v6028
      %v6030 = vrot.slane %v5643, 1
      %v6031 = vsel %vm1339, %v6028, %v6030
      %v6032 = vrot.slane %v5648, 1
      %v6033 = vsel %vm1339, %v6030, %v6032
      %v6034 = vrot.slane %v5653, 1
      %v6035 = vsel %vm1339, %v6032, %v6034
      %v6036 = vrot.slane %v5658, 1
      %v6037 = vsel %vm1339, %v6034, %v6036
      %v6038 = vrot.slane %v5663, 1
      %v6039 = vsel %vm1339, %v6036, %v6038
      %v6040 = vrot.slane %v5668, 1
      %v6041 = vsel %vm1339, %v6038, %v6040
      %v6042 = vrot.slane %v5673, 1
      %v6043 = vsel %vm1339, %v6040, %v6042
      %v6044 = vrot.slane %v5678, 1
      %v6045 = vsel %vm1339, %v6042, %v6044
      %v6046 = vrot.slane %v5683, 1
      %v6047 = vsel %vm1339, %v6044, %v6046
      %v6048 = vrot.slane %v5688, 1
      %v6049 = vsel %vm1339, %v6046, %v6048
      %v6050 = vrot.slane %v5693, 1
      %v6051 = vsel %vm1339, %v6048, %v6050
      %v6052 = vrot.slane %v5698, 1
      %v6053 = vsel %vm1339, %v6050, %v6052
      %v6054 = vrot.slane %v5703, 1
      %v6055 = vsel %vm1339, %v6052, %v6054
      %v6056 = vrot.slane %v5708, 1
      %v6057 = vsel %vm1339, %v6054, %v6056
      %v6058 = vrot.slane %v5713, 1
      %v6059 = vsel %vm1339, %v6056, %v6058
      %v6060 = vrot.slane %v5718, 1
      %v6061 = vsel %vm1339, %v6058, %v6060
      %v6062 = vrot.slane %v5723, 1
      %v6063 = vsel %vm1339, %v6060, %v6062
      %v6064 = vrot.slane %v5728, 1
      %v6065 = vsel %vm1339, %v6062, %v6064
      %v6066 = vrot.slane %v5733, 1
      %v6067 = vsel %vm1339, %v6064, %v6066
      %v6068 = vrot.slane %v5738, 1
      %v6069 = vsel %vm1339, %v6066, %v6068
      %v6070 = vrot.slane %v5743, 1
      %v6071 = vsel %vm1339, %v6068, %v6070
      %v6072 = vrot.slane %v5748, 1
      %v6073 = vsel %vm1339, %v6070, %v6072
      %v6074 = vrot.slane %v5753, 1
      %v6075 = vsel %vm1339, %v6072, %v6074
      %v6076 = vrot.slane %v5758, 1
      %v6077 = vsel %vm1339, %v6074, %v6076
      %v6078 = vrot.slane %v5763, 1
      %v6079 = vsel %vm1339, %v6076, %v6078
      %v6080 = vrot.slane %v5768, 1
      %v6081 = vsel %vm1339, %v6078, %v6080
      %v6082 = vrot.slane %v5773, 1
      %v6083 = vsel %vm1339, %v6080, %v6082
      %v6084 = vrot.slane %v5778, 1
      %v6085 = vsel %vm1339, %v6082, %v6084
      %v6086 = vrot.slane %v5783, 1
      %v6087 = vsel %vm1339, %v6084, %v6086
      %v6088 = vrot.slane %v5788, 1
      %v6089 = vsel %vm1339, %v6086, %v6088
      %v6090 = vrot.slane %v5793, 1
      %v6091 = vsel %vm1339, %v6088, %v6090
      %v6092 = vrot.slane %v5798, 1
      %v6093 = vsel %vm1339, %v6090, %v6092
      %v6094 = vrot.slane %v5803, 1
      %v6095 = vsel %vm1339, %v6092, %v6094
      %v6096 = vrot.slane %v5808, 1
      %v6097 = vsel %vm1339, %v6094, %v6096
      %v6098 = vrot.slane %v5813, 1
      %v6099 = vsel %vm1339, %v6096, %v6098
      %v6100 = vrot.slane %v5818, 1
      %v6101 = vsel %vm1339, %v6098, %v6100
      %v6102 = vrot.slane %v5823, 1
      %v6103 = vsel %vm1339, %v6100, %v6102
      %v6104 = vrot.slane %v5828, 1
      %v6105 = vsel %vm1339, %v6102, %v6104
      %v6106 = vrot.slane %v5833, 1
      %v6107 = vsel %vm1339, %v6104, %v6106
      %v6108 = vrot.slane %v5838, 1
      %v6109 = vsel %vm1339, %v6106, %v6108
      %v6110 = vrot.slane %v5843, 1
      %v6111 = vsel %vm1339, %v6108, %v6110
      %v6112 = vrot.slane %v5848, 1
      %v6113 = vsel %vm1339, %v6110, %v6112
      %v6114 = vrot.slane %v5853, 1
      %v6115 = vsel %vm1339, %v6112, %v6114
      %v6116 = vrot.slane %v5858, 1
      %v6117 = vsel %vm1339, %v6114, %v6116
      %v6118 = vrot.slane %v5863, 1
      %v6119 = vsel %vm1339, %v6116, %v6118
      %v6120 = vrot.slane %v5868, 1
      %v6121 = vsel %vm1339, %v6118, %v6120
      %v6122 = vrot.slane %v5873, 1
      %v6123 = vsel %vm1339, %v6120, %v6122
      %v6124 = vrot.slane %v5878, 1
      %v6125 = vsel %vm1339, %v6122, %v6124
      %v6126 = vrot.slane %v5883, 1
      %v6127 = vsel %vm1339, %v6124, %v6126
      %v6128 = vrot.slane %v5888, 1
      %v6129 = vsel %vm1339, %v6126, %v6128
      %v6205 = vmax.f32 %v5518, %v5983
      %v6206 = vmax.f32 %v5523, %v5985
      %v6207 = vmax.f32 %v5528, %v5987
      %v6208 = vmax.f32 %v5533, %v5989
      %v6209 = vmax.f32 %v5538, %v5991
      %v6210 = vmax.f32 %v5543, %v5993
      %v6211 = vmax.f32 %v5548, %v5995
      %v6212 = vmax.f32 %v5553, %v5997
      %v6213 = vmax.f32 %v5558, %v5999
      %v6214 = vmax.f32 %v5563, %v6001
      %v6215 = vmax.f32 %v5568, %v6003
      %v6216 = vmax.f32 %v5573, %v6005
      %v6217 = vmax.f32 %v5578, %v6007
      %v6218 = vmax.f32 %v5583, %v6009
      %v6219 = vmax.f32 %v5588, %v6011
      %v6220 = vmax.f32 %v5593, %v6013
      %v6221 = vmax.f32 %v5598, %v6015
      %v6222 = vmax.f32 %v5603, %v6017
      %v6223 = vmax.f32 %v5608, %v6019
      %v6224 = vmax.f32 %v5613, %v6021
      %v6225 = vmax.f32 %v5618, %v6023
      %v6226 = vmax.f32 %v5623, %v6025
      %v6227 = vmax.f32 %v5628, %v6027
      %v6228 = vmax.f32 %v5633, %v6029
      %v6229 = vmax.f32 %v5638, %v6031
      %v6230 = vmax.f32 %v5643, %v6033
      %v6231 = vmax.f32 %v5648, %v6035
      %v6232 = vmax.f32 %v5653, %v6037
      %v6233 = vmax.f32 %v5658, %v6039
      %v6234 = vmax.f32 %v5663, %v6041
      %v6235 = vmax.f32 %v5668, %v6043
      %v6236 = vmax.f32 %v5673, %v6045
      %v6237 = vmax.f32 %v5678, %v6047
      %v6238 = vmax.f32 %v5683, %v6049
      %v6239 = vmax.f32 %v5688, %v6051
      %v6240 = vmax.f32 %v5693, %v6053
      %v6241 = vmax.f32 %v5698, %v6055
      %v6242 = vmax.f32 %v5703, %v6057
      %v6243 = vmax.f32 %v5708, %v6059
      %v6244 = vmax.f32 %v5713, %v6061
      %v6245 = vmax.f32 %v5718, %v6063
      %v6246 = vmax.f32 %v5723, %v6065
      %v6247 = vmax.f32 %v5728, %v6067
      %v6248 = vmax.f32 %v5733, %v6069
      %v6249 = vmax.f32 %v5738, %v6071
      %v6250 = vmax.f32 %v5743, %v6073
      %v6251 = vmax.f32 %v5748, %v6075
      %v6252 = vmax.f32 %v5753, %v6077
      %v6253 = vmax.f32 %v5758, %v6079
      %v6254 = vmax.f32 %v5763, %v6081
      %v6255 = vmax.f32 %v5768, %v6083
      %v6256 = vmax.f32 %v5773, %v6085
      %v6257 = vmax.f32 %v5778, %v6087
      %v6258 = vmax.f32 %v5783, %v6089
      %v6259 = vmax.f32 %v5788, %v6091
      %v6260 = vmax.f32 %v5793, %v6093
      %v6261 = vmax.f32 %v5798, %v6095
      %v6262 = vmax.f32 %v5803, %v6097
      %v6263 = vmax.f32 %v5808, %v6099
      %v6264 = vmax.f32 %v5813, %v6101
      %v6265 = vmax.f32 %v5818, %v6103
      %v6266 = vmax.f32 %v5823, %v6105
      %v6267 = vmax.f32 %v5828, %v6107
      %v6268 = vmax.f32 %v5833, %v6109
      %v6269 = vmax.f32 %v5838, %v6111
      %v6270 = vmax.f32 %v5843, %v6113
      %v6271 = vmax.f32 %v5848, %v6115
      %v6272 = vmax.f32 %v5853, %v6117
      %v6273 = vmax.f32 %v5858, %v6119
      %v6274 = vmax.f32 %v5863, %v6121
      %v6275 = vmax.f32 %v5868, %v6123
      %v6276 = vmax.f32 %v5873, %v6125
      %v6277 = vmax.f32 %v5878, %v6127
      %v6278 = vmax.f32 %v5883, %v6129
      %v6279 = vmax.f32 %v5888, %v6128
      %v6283 = vrot.slane %v5893, 1
      %v6284 = vsel %vm1339, %v6128, %v6283
      %v6285 = vrot.slane %v5898, 1
      %v6286 = vsel %vm1339, %v6283, %v6285
      %v6287 = vrot.slane %v5903, 1
      %v6288 = vsel %vm1339, %v6285, %v6287
      %v6293 = vmax.f32 %v5888, %v6284
      %v6294 = vmax.f32 %v5893, %v6286
      %v6295 = vmax.f32 %v5898, %v6288
      %v6296 = vmax.f32 %v5903, %v6287
      %v6372 = vrot.slane %v6208, 2
      %v6373 = vrot.slane %v6209, 2
      %v6374 = vsel %vm1809, %v6372, %v6373
      %v6375 = vrot.slane %v6210, 2
      %v6376 = vsel %vm1809, %v6373, %v6375
      %v6377 = vrot.slane %v6211, 2
      %v6378 = vsel %vm1809, %v6375, %v6377
      %v6379 = vrot.slane %v6212, 2
      %v6380 = vsel %vm1809, %v6377, %v6379
      %v6381 = vrot.slane %v6213, 2
      %v6382 = vsel %vm1809, %v6379, %v6381
      %v6383 = vrot.slane %v6214, 2
      %v6384 = vsel %vm1809, %v6381, %v6383
      %v6385 = vrot.slane %v6215, 2
      %v6386 = vsel %vm1809, %v6383, %v6385
      %v6387 = vrot.slane %v6216, 2
      %v6388 = vsel %vm1809, %v6385, %v6387
      %v6389 = vrot.slane %v6217, 2
      %v6390 = vsel %vm1809, %v6387, %v6389
      %v6391 = vrot.slane %v6218, 2
      %v6392 = vsel %vm1809, %v6389, %v6391
      %v6393 = vrot.slane %v6219, 2
      %v6394 = vsel %vm1809, %v6391, %v6393
      %v6395 = vrot.slane %v6220, 2
      %v6396 = vsel %vm1809, %v6393, %v6395
      %v6397 = vrot.slane %v6221, 2
      %v6398 = vsel %vm1809, %v6395, %v6397
      %v6399 = vrot.slane %v6222, 2
      %v6400 = vsel %vm1809, %v6397, %v6399
      %v6401 = vrot.slane %v6223, 2
      %v6402 = vsel %vm1809, %v6399, %v6401
      %v6403 = vrot.slane %v6224, 2
      %v6404 = vsel %vm1809, %v6401, %v6403
      %v6405 = vrot.slane %v6225, 2
      %v6406 = vsel %vm1809, %v6403, %v6405
      %v6407 = vrot.slane %v6226, 2
      %v6408 = vsel %vm1809, %v6405, %v6407
      %v6409 = vrot.slane %v6227, 2
      %v6410 = vsel %vm1809, %v6407, %v6409
      %v6411 = vrot.slane %v6228, 2
      %v6412 = vsel %vm1809, %v6409, %v6411
      %v6413 = vrot.slane %v6229, 2
      %v6414 = vsel %vm1809, %v6411, %v6413
      %v6415 = vrot.slane %v6230, 2
      %v6416 = vsel %vm1809, %v6413, %v6415
      %v6417 = vrot.slane %v6231, 2
      %v6418 = vsel %vm1809, %v6415, %v6417
      %v6419 = vrot.slane %v6232, 2
      %v6420 = vsel %vm1809, %v6417, %v6419
      %v6421 = vrot.slane %v6233, 2
      %v6422 = vsel %vm1809, %v6419, %v6421
      %v6423 = vrot.slane %v6234, 2
      %v6424 = vsel %vm1809, %v6421, %v6423
      %v6425 = vrot.slane %v6235, 2
      %v6426 = vsel %vm1809, %v6423, %v6425
      %v6427 = vrot.slane %v6236, 2
      %v6428 = vsel %vm1809, %v6425, %v6427
      %v6429 = vrot.slane %v6237, 2
      %v6430 = vsel %vm1809, %v6427, %v6429
      %v6431 = vrot.slane %v6238, 2
      %v6432 = vsel %vm1809, %v6429, %v6431
      %v6433 = vrot.slane %v6239, 2
      %v6434 = vsel %vm1809, %v6431, %v6433
      %v6435 = vrot.slane %v6240, 2
      %v6436 = vsel %vm1809, %v6433, %v6435
      %v6437 = vrot.slane %v6241, 2
      %v6438 = vsel %vm1809, %v6435, %v6437
      %v6439 = vrot.slane %v6242, 2
      %v6440 = vsel %vm1809, %v6437, %v6439
      %v6441 = vrot.slane %v6243, 2
      %v6442 = vsel %vm1809, %v6439, %v6441
      %v6443 = vrot.slane %v6244, 2
      %v6444 = vsel %vm1809, %v6441, %v6443
      %v6445 = vrot.slane %v6245, 2
      %v6446 = vsel %vm1809, %v6443, %v6445
      %v6447 = vrot.slane %v6246, 2
      %v6448 = vsel %vm1809, %v6445, %v6447
      %v6449 = vrot.slane %v6247, 2
      %v6450 = vsel %vm1809, %v6447, %v6449
      %v6451 = vrot.slane %v6248, 2
      %v6452 = vsel %vm1809, %v6449, %v6451
      %v6453 = vrot.slane %v6249, 2
      %v6454 = vsel %vm1809, %v6451, %v6453
      %v6455 = vrot.slane %v6250, 2
      %v6456 = vsel %vm1809, %v6453, %v6455
      %v6457 = vrot.slane %v6251, 2
      %v6458 = vsel %vm1809, %v6455, %v6457
      %v6459 = vrot.slane %v6252, 2
      %v6460 = vsel %vm1809, %v6457, %v6459
      %v6461 = vrot.slane %v6253, 2
      %v6462 = vsel %vm1809, %v6459, %v6461
      %v6463 = vrot.slane %v6254, 2
      %v6464 = vsel %vm1809, %v6461, %v6463
      %v6465 = vrot.slane %v6255, 2
      %v6466 = vsel %vm1809, %v6463, %v6465
      %v6467 = vrot.slane %v6256, 2
      %v6468 = vsel %vm1809, %v6465, %v6467
      %v6469 = vrot.slane %v6257, 2
      %v6470 = vsel %vm1809, %v6467, %v6469
      %v6471 = vrot.slane %v6258, 2
      %v6472 = vsel %vm1809, %v6469, %v6471
      %v6473 = vrot.slane %v6259, 2
      %v6474 = vsel %vm1809, %v6471, %v6473
      %v6475 = vrot.slane %v6260, 2
      %v6476 = vsel %vm1809, %v6473, %v6475
      %v6477 = vrot.slane %v6261, 2
      %v6478 = vsel %vm1809, %v6475, %v6477
      %v6479 = vrot.slane %v6262, 2
      %v6480 = vsel %vm1809, %v6477, %v6479
      %v6481 = vrot.slane %v6263, 2
      %v6482 = vsel %vm1809, %v6479, %v6481
      %v6483 = vrot.slane %v6264, 2
      %v6484 = vsel %vm1809, %v6481, %v6483
      %v6485 = vrot.slane %v6265, 2
      %v6486 = vsel %vm1809, %v6483, %v6485
      %v6487 = vrot.slane %v6266, 2
      %v6488 = vsel %vm1809, %v6485, %v6487
      %v6489 = vrot.slane %v6267, 2
      %v6490 = vsel %vm1809, %v6487, %v6489
      %v6491 = vrot.slane %v6268, 2
      %v6492 = vsel %vm1809, %v6489, %v6491
      %v6493 = vrot.slane %v6269, 2
      %v6494 = vsel %vm1809, %v6491, %v6493
      %v6495 = vrot.slane %v6270, 2
      %v6496 = vsel %vm1809, %v6493, %v6495
      %v6497 = vrot.slane %v6271, 2
      %v6498 = vsel %vm1809, %v6495, %v6497
      %v6499 = vrot.slane %v6272, 2
      %v6500 = vsel %vm1809, %v6497, %v6499
      %v6501 = vrot.slane %v6273, 2
      %v6502 = vsel %vm1809, %v6499, %v6501
      %v6503 = vrot.slane %v6274, 2
      %v6504 = vsel %vm1809, %v6501, %v6503
      %v6505 = vrot.slane %v6275, 2
      %v6506 = vsel %vm1809, %v6503, %v6505
      %v6507 = vrot.slane %v6276, 2
      %v6508 = vsel %vm1809, %v6505, %v6507
      %v6509 = vrot.slane %v6277, 2
      %v6510 = vsel %vm1809, %v6507, %v6509
      %v6511 = vrot.slane %v6278, 2
      %v6512 = vsel %vm1809, %v6509, %v6511
      %v6513 = vrot.slane %v6293, 2
      %v6514 = vsel %vm1809, %v6511, %v6513
      %v6515 = vrot.slane %v6294, 2
      %v6516 = vsel %vm1809, %v6513, %v6515
      %v6517 = vrot.slane %v6295, 2
      %v6518 = vsel %vm1809, %v6515, %v6517
      %v6519 = vrot.slane %v6296, 2
      %v6520 = vsel %vm1809, %v6517, %v6519
      %v6596 = vmax.f32 %v6205, %v6374
      %v6597 = vmax.f32 %v6206, %v6376
      %v6598 = vmax.f32 %v6207, %v6378
      %v6599 = vmax.f32 %v6208, %v6380
      %v6600 = vmax.f32 %v6209, %v6382
      %v6601 = vmax.f32 %v6210, %v6384
      %v6602 = vmax.f32 %v6211, %v6386
      %v6603 = vmax.f32 %v6212, %v6388
      %v6604 = vmax.f32 %v6213, %v6390
      %v6605 = vmax.f32 %v6214, %v6392
      %v6606 = vmax.f32 %v6215, %v6394
      %v6607 = vmax.f32 %v6216, %v6396
      %v6608 = vmax.f32 %v6217, %v6398
      %v6609 = vmax.f32 %v6218, %v6400
      %v6610 = vmax.f32 %v6219, %v6402
      %v6611 = vmax.f32 %v6220, %v6404
      %v6612 = vmax.f32 %v6221, %v6406
      %v6613 = vmax.f32 %v6222, %v6408
      %v6614 = vmax.f32 %v6223, %v6410
      %v6615 = vmax.f32 %v6224, %v6412
      %v6616 = vmax.f32 %v6225, %v6414
      %v6617 = vmax.f32 %v6226, %v6416
      %v6618 = vmax.f32 %v6227, %v6418
      %v6619 = vmax.f32 %v6228, %v6420
      %v6620 = vmax.f32 %v6229, %v6422
      %v6621 = vmax.f32 %v6230, %v6424
      %v6622 = vmax.f32 %v6231, %v6426
      %v6623 = vmax.f32 %v6232, %v6428
      %v6624 = vmax.f32 %v6233, %v6430
      %v6625 = vmax.f32 %v6234, %v6432
      %v6626 = vmax.f32 %v6235, %v6434
      %v6627 = vmax.f32 %v6236, %v6436
      %v6628 = vmax.f32 %v6237, %v6438
      %v6629 = vmax.f32 %v6238, %v6440
      %v6630 = vmax.f32 %v6239, %v6442
      %v6631 = vmax.f32 %v6240, %v6444
      %v6632 = vmax.f32 %v6241, %v6446
      %v6633 = vmax.f32 %v6242, %v6448
      %v6634 = vmax.f32 %v6243, %v6450
      %v6635 = vmax.f32 %v6244, %v6452
      %v6636 = vmax.f32 %v6245, %v6454
      %v6637 = vmax.f32 %v6246, %v6456
      %v6638 = vmax.f32 %v6247, %v6458
      %v6639 = vmax.f32 %v6248, %v6460
      %v6640 = vmax.f32 %v6249, %v6462
      %v6641 = vmax.f32 %v6250, %v6464
      %v6642 = vmax.f32 %v6251, %v6466
      %v6643 = vmax.f32 %v6252, %v6468
      %v6644 = vmax.f32 %v6253, %v6470
      %v6645 = vmax.f32 %v6254, %v6472
      %v6646 = vmax.f32 %v6255, %v6474
      %v6647 = vmax.f32 %v6256, %v6476
      %v6648 = vmax.f32 %v6257, %v6478
      %v6649 = vmax.f32 %v6258, %v6480
      %v6650 = vmax.f32 %v6259, %v6482
      %v6651 = vmax.f32 %v6260, %v6484
      %v6652 = vmax.f32 %v6261, %v6486
      %v6653 = vmax.f32 %v6262, %v6488
      %v6654 = vmax.f32 %v6263, %v6490
      %v6655 = vmax.f32 %v6264, %v6492
      %v6656 = vmax.f32 %v6265, %v6494
      %v6657 = vmax.f32 %v6266, %v6496
      %v6658 = vmax.f32 %v6267, %v6498
      %v6659 = vmax.f32 %v6268, %v6500
      %v6660 = vmax.f32 %v6269, %v6502
      %v6661 = vmax.f32 %v6270, %v6504
      %v6662 = vmax.f32 %v6271, %v6506
      %v6663 = vmax.f32 %v6272, %v6508
      %v6664 = vmax.f32 %v6273, %v6510
      %v6665 = vmax.f32 %v6274, %v6512
      %v6666 = vmax.f32 %v6275, %v6514
      %v6667 = vmax.f32 %v6276, %v6516
      %v6668 = vmax.f32 %v6277, %v6518
      %v6669 = vmax.f32 %v6278, %v6520
      %v6670 = vmax.f32 %v6279, %v6519
      %v6671 = vld [vmem:[%s5] sm:$0xff]
      %v6672 = vld [vmem:[%s5 + $0x8] sm:$0xff]
      %v6673 = vld [vmem:[%s5 + $0x10] sm:$0xff]
      %v6674 = vld [vmem:[%s5 + $0x18] sm:$0xff]
      %v6675 = vld [vmem:[%s5 + $0x20] sm:$0xff]
      %v6676 = vld [vmem:[%s5 + $0x28] sm:$0xff]
      %v6677 = vld [vmem:[%s5 + $0x30] sm:$0xff]
      %v6678 = vld [vmem:[%s5 + $0x38] sm:$0xff]
      %v6679 = vld [vmem:[%s5 + $0x40] sm:$0xff]
      %v6680 = vld [vmem:[%s5 + $0x48] sm:$0xff]
      %v6681 = vld [vmem:[%s5 + $0x50] sm:$0xff]
      %v6682 = vld [vmem:[%s5 + $0x58] sm:$0xff]
      %v6683 = vld [vmem:[%s5 + $0x60] sm:$0xff]
      %v6684 = vld [vmem:[%s5 + $0x68] sm:$0xff]
      %v6685 = vld [vmem:[%s5 + $0x70] sm:$0xff]
      %v6686 = vld [vmem:[%s5 + $0x78] sm:$0xff]
      %v6687 = vld [vmem:[%s5 + $0x80] sm:$0xff]
      %v6688 = vld [vmem:[%s5 + $0x88] sm:$0xff]
      %v6689 = vld [vmem:[%s5 + $0x90] sm:$0xff]
      %v6690 = vld [vmem:[%s5 + $0x98] sm:$0xff]
      %v6691 = vld [vmem:[%s5 + $0xa0] sm:$0xff]
      %v6692 = vld [vmem:[%s5 + $0xa8] sm:$0xff]
      %v6693 = vld [vmem:[%s5 + $0xb0] sm:$0xff]
      %v6694 = vld [vmem:[%s5 + $0xb8] sm:$0xff]
      %v6695 = vld [vmem:[%s5 + $0xc0] sm:$0xff]
      %v6696 = vld [vmem:[%s5 + $0xc8] sm:$0xff]
      %v6697 = vld [vmem:[%s5 + $0xd0] sm:$0xff]
      %v6698 = vld [vmem:[%s5 + $0xd8] sm:$0xff]
      %v6699 = vld [vmem:[%s5 + $0xe0] sm:$0xff]
      %v6700 = vld [vmem:[%s5 + $0xe8] sm:$0xff]
      %v6701 = vld [vmem:[%s5 + $0xf0] sm:$0xff]
      %v6702 = vld [vmem:[%s5 + $0xf8] sm:$0xff]
      %v6703 = vld [vmem:[%s5 + $0x100] sm:$0xff]
      %v6704 = vld [vmem:[%s5 + $0x108] sm:$0xff]
      %v6705 = vld [vmem:[%s5 + $0x110] sm:$0xff]
      %v6706 = vld [vmem:[%s5 + $0x118] sm:$0xff]
      %v6707 = vld [vmem:[%s5 + $0x120] sm:$0xff]
      %v6708 = vld [vmem:[%s5 + $0x128] sm:$0xff]
      %v6709 = vld [vmem:[%s5 + $0x130] sm:$0xff]
      %v6710 = vld [vmem:[%s5 + $0x138] sm:$0xff]
      %v6711 = vld [vmem:[%s5 + $0x140] sm:$0xff]
      %v6712 = vld [vmem:[%s5 + $0x148] sm:$0xff]
      %v6713 = vld [vmem:[%s5 + $0x150] sm:$0xff]
      %v6714 = vld [vmem:[%s5 + $0x158] sm:$0xff]
      %v6715 = vld [vmem:[%s5 + $0x160] sm:$0xff]
      %v6716 = vld [vmem:[%s5 + $0x168] sm:$0xff]
      %v6717 = vld [vmem:[%s5 + $0x170] sm:$0xff]
      %v6718 = vld [vmem:[%s5 + $0x178] sm:$0xff]
      %v6719 = vld [vmem:[%s5 + $0x180] sm:$0xff]
      %v6720 = vld [vmem:[%s5 + $0x188] sm:$0xff]
      %v6721 = vld [vmem:[%s5 + $0x190] sm:$0xff]
      %v6722 = vld [vmem:[%s5 + $0x198] sm:$0xff]
      %v6723 = vld [vmem:[%s5 + $0x1a0] sm:$0xff]
      %v6724 = vld [vmem:[%s5 + $0x1a8] sm:$0xff]
      %v6725 = vld [vmem:[%s5 + $0x1b0] sm:$0xff]
      %v6726 = vld [vmem:[%s5 + $0x1b8] sm:$0xff]
      %v6727 = vld [vmem:[%s5 + $0x1c0] sm:$0xff]
      %v6728 = vld [vmem:[%s5 + $0x1c8] sm:$0xff]
      %v6729 = vld [vmem:[%s5 + $0x1d0] sm:$0xff]
      %v6730 = vld [vmem:[%s5 + $0x1d8] sm:$0xff]
      %v6731 = vld [vmem:[%s5 + $0x1e0] sm:$0xff]
      %v6732 = vld [vmem:[%s5 + $0x1e8] sm:$0xff]
      %v6733 = vld [vmem:[%s5 + $0x1f0] sm:$0xff]
      %v6734 = vld [vmem:[%s5 + $0x1f8] sm:$0xff]
      %v6735 = vld [vmem:[%s5 + $0x200] sm:$0xff]
      %v6736 = vld [vmem:[%s5 + $0x208] sm:$0xff]
      %v6737 = vld [vmem:[%s5 + $0x210] sm:$0xff]
      %v6738 = vld [vmem:[%s5 + $0x218] sm:$0xff]
      %v6739 = vld [vmem:[%s5 + $0x220] sm:$0xff]
      %v6740 = vld [vmem:[%s5 + $0x228] sm:$0xff]
      %v6741 = vld [vmem:[%s5 + $0x230] sm:$0xff]
      %v6742 = vld [vmem:[%s5 + $0x238] sm:$0xff]
      %v6743 = vld [vmem:[%s5 + $0x240] sm:$0xff]
      %v6744 = vld [vmem:[%s5 + $0x248] sm:$0xff]
      %v6745 = vld [vmem:[%s5 + $0x250] sm:$0xff]
      %v6746 = vld [vmem:[%s5 + $0x258] sm:$0xff]
      %v6747 = vld [vmem:[%s5 + $0x260] sm:$0xff]
      %v6748 = vld [vmem:[%s5 + $0x268] sm:$0xff]
      %v6749 = vld [vmem:[%s5 + $0x270] sm:$0xff]
      %v6750 = vld [vmem:[%s5 + $0x278] sm:$0xff]
      %v6751 = vld [vmem:[%s5 + $0x280] sm:$0xff]
      %v6752 = vld [vmem:[%s5 + $0x288] sm:$0xff]
      %v6753 = vld [vmem:[%s5 + $0x290] sm:$0xff]
      %v6754 = vld [vmem:[%s5 + $0x298] sm:$0xff]
      %v6755 = vld [vmem:[%s5 + $0x2a0] sm:$0xff]
      %v6756 = vld [vmem:[%s5 + $0x2a8] sm:$0xff]
      %v6757 = vld [vmem:[%s5 + $0x2b0] sm:$0xff]
      %v6758 = vld [vmem:[%s5 + $0x2b8] sm:$0xff]
      %v6759 = vld [vmem:[%s5 + $0x2c0] sm:$0xff]
      %v6760 = vld [vmem:[%s5 + $0x2c8] sm:$0xff]
      %v6761 = vld [vmem:[%s4] sm:$0x1]
      %v6763 = vlaneseq
      %v6764 = vshrl.u32 %v6763, 7
      %v6765 = vsub.s32 0, %v6764
      %v6766 = vrot.slane %v6761, %v6765
      %vm6768 = vcmask 678912
      %v6770 = vsel %vm6768, %v6675, 0
      %v6773 = vsel %vm6768, %v6680, 0
      %v6776 = vsel %vm6768, %v6685, 0
      %v6779 = vsel %vm6768, %v6690, 0
      %v6782 = vsel %vm6768, %v6695, 0
      %v6785 = vsel %vm6768, %v6700, 0
      %v6788 = vsel %vm6768, %v6705, 0
      %v6791 = vsel %vm6768, %v6710, 0
      %v6794 = vsel %vm6768, %v6715, 0
      %v6797 = vsel %vm6768, %v6720, 0
      %v6800 = vsel %vm6768, %v6725, 0
      %v6803 = vsel %vm6768, %v6730, 0
      %v6806 = vsel %vm6768, %v6735, 0
      %v6809 = vsel %vm6768, %v6740, 0
      %v6812 = vsel %vm6768, %v6745, 0
      %v6815 = vsel %vm6768, %v6750, 0
      %v6818 = vsel %vm6768, %v6755, 0
      %v6821 = vsel %vm6768, %v6760, 0
      %v6824 = vsel %vm3708, %v6670, 0
      %6826 = vmatprep.subr.mxu0 0.0
      %6827 = vmatpush1.msra.mxu0 %v6611
      %6828 = vmatprep.subr.mxu0 0.0
      %6829 = vmatpush1.msra.mxu0 %v6610
      %6830 = vmatprep.subr.mxu0 0.0
      %6831 = vmatpush1.msra.mxu0 %v6609
      %6832 = vmatprep.subr.mxu0 0.0
      %6833 = vmatpush1.msra.mxu0 %v6608
      %6834 = vmatprep.subr.mxu0 0.0
      %6835 = vmatpush1.msra.mxu0 %v6607
      %6836 = vmatprep.subr.mxu0 0.0
      %6837 = vmatpush1.msra.mxu0 %v6606
      %6838 = vmatprep.subr.mxu0 0.0
      %6839 = vmatpush1.msra.mxu0 %v6605
      %6840 = vmatprep.subr.mxu0 0.0
      %6841 = vmatpush1.msra.mxu0 %v6604
      %6842 = vmatprep.subr.mxu0 0.0
      %6843 = vmatpush1.msra.mxu0 %v6603
      %6844 = vmatprep.subr.mxu0 0.0
      %6845 = vmatpush1.msra.mxu0 %v6602
      %6846 = vmatprep.subr.mxu0 0.0
      %6847 = vmatpush1.msra.mxu0 %v6601
      %6848 = vmatprep.subr.mxu0 0.0
      %6849 = vmatpush1.msra.mxu0 %v6600
      %6850 = vmatprep.subr.mxu0 0.0
      %6851 = vmatpush1.msra.mxu0 %v6599
      %6852 = vmatprep.subr.mxu0 0.0
      %6853 = vmatpush1.msra.mxu0 %v6598
      %6854 = vmatprep.subr.mxu0 0.0
      %6855 = vmatpush1.msra.mxu0 %v6597
      %6856 = vmatprep.subr.mxu0 0.0
      %6857 = vmatpush1.msra.mxu0 %v6596
      %6858 = vmatprep.subr.mxu0 0.0
      %6859 = vmatpush2.msra.mxu0 %v6627
      %6860 = vmatprep.subr.mxu0 0.0
      %6861 = vmatpush2.msra.mxu0 %v6626
      %6862 = vmatprep.subr.mxu0 0.0
      %6863 = vmatpush2.msra.mxu0 %v6625
      %6864 = vmatprep.subr.mxu0 0.0
      %6865 = vmatpush2.msra.mxu0 %v6624
      %6866 = vmatprep.subr.mxu0 0.0
      %6867 = vmatpush2.msra.mxu0 %v6623
      %6868 = vmatprep.subr.mxu0 0.0
      %6869 = vmatpush2.msra.mxu0 %v6622
      %6870 = vmatprep.subr.mxu0 0.0
      %6871 = vmatpush2.msra.mxu0 %v6621
      %6872 = vmatprep.subr.mxu0 0.0
      %6873 = vmatpush2.msra.mxu0 %v6620
      %6874 = vmatprep.subr.mxu0 0.0
      %6875 = vmatpush2.msra.mxu0 %v6619
      %6876 = vmatprep.subr.mxu0 0.0
      %6877 = vmatpush2.msra.mxu0 %v6618
      %6878 = vmatprep.subr.mxu0 0.0
      %6879 = vmatpush2.msra.mxu0 %v6617
      %6880 = vmatprep.subr.mxu0 0.0
      %6881 = vmatpush2.msra.mxu0 %v6616
      %6882 = vmatprep.subr.mxu0 0.0
      %6883 = vmatpush2.msra.mxu0 %v6615
      %6884 = vmatprep.subr.mxu0 0.0
      %6885 = vmatpush2.msra.mxu0 %v6614
      %6886 = vmatprep.subr.mxu0 0.0
      %6887 = vmatpush2.msra.mxu0 %v6613
      %6888 = vmatprep.subr.mxu0 0.0
      %6889 = vmatpush2.msra.mxu0 %v6612
      %6890 = vmatprep.mubr.f32.mxu0 %v6672
      %6891 = vmatmul.mubr.f32.gmra.mxu0 %v6671
      %v6892 = vpop.f32.mrf.mxu0
      %v6893 = vadd.f32 %v6766, %v6892
      %v6894 = vpop.f32.mrf.mxu0
      %6895 = vmatprep.mubr.f32.mxu0 %v6677
      %6896 = vmatmul.mubr.f32.gmra.mxu0 %v6676
      %v6897 = vpop.f32.mrf.mxu0
      %v6898 = vadd.f32 %v6766, %v6897
      %v6899 = vpop.f32.mrf.mxu0
      %6900 = vmatprep.mubr.f32.mxu0 %v6682
      %6901 = vmatmul.mubr.f32.gmra.mxu0 %v6681
      %v6902 = vpop.f32.mrf.mxu0
      %v6903 = vadd.f32 %v6766, %v6902
      %v6904 = vpop.f32.mrf.mxu0
      %6905 = vmatprep.mubr.f32.mxu0 %v6687
      %6906 = vmatmul.mubr.f32.gmra.mxu0 %v6686
      %v6907 = vpop.f32.mrf.mxu0
      %v6908 = vadd.f32 %v6766, %v6907
      %v6909 = vpop.f32.mrf.mxu0
      %6910 = vmatprep.mubr.f32.mxu0 %v6692
      %6911 = vmatmul.mubr.f32.gmra.mxu0 %v6691
      %v6912 = vpop.f32.mrf.mxu0
      %v6913 = vadd.f32 %v6766, %v6912
      %v6914 = vpop.f32.mrf.mxu0
      %6915 = vmatprep.mubr.f32.mxu0 %v6697
      %6916 = vmatmul.mubr.f32.gmra.mxu0 %v6696
      %v6917 = vpop.f32.mrf.mxu0
      %v6918 = vadd.f32 %v6766, %v6917
      %v6919 = vpop.f32.mrf.mxu0
      %6920 = vmatprep.mubr.f32.mxu0 %v6702
      %6921 = vmatmul.mubr.f32.gmra.mxu0 %v6701
      %v6922 = vpop.f32.mrf.mxu0
      %v6923 = vadd.f32 %v6766, %v6922
      %v6924 = vpop.f32.mrf.mxu0
      %6925 = vmatprep.mubr.f32.mxu0 %v6707
      %6926 = vmatmul.mubr.f32.gmra.mxu0 %v6706
      %v6927 = vpop.f32.mrf.mxu0
      %v6928 = vadd.f32 %v6766, %v6927
      %v6929 = vpop.f32.mrf.mxu0
      %6930 = vmatprep.mubr.f32.mxu0 %v6712
      %6931 = vmatmul.mubr.f32.gmra.mxu0 %v6711
      %v6932 = vpop.f32.mrf.mxu0
      %v6933 = vadd.f32 %v6766, %v6932
      %v6934 = vpop.f32.mrf.mxu0
      %6935 = vmatprep.mubr.f32.mxu0 %v6717
      %6936 = vmatmul.mubr.f32.gmra.mxu0 %v6716
      %v6937 = vpop.f32.mrf.mxu0
      %v6938 = vadd.f32 %v6766, %v6937
      %v6939 = vpop.f32.mrf.mxu0
      %6940 = vmatprep.mubr.f32.mxu0 %v6722
      %6941 = vmatmul.mubr.f32.gmra.mxu0 %v6721
      %v6942 = vpop.f32.mrf.mxu0
      %v6943 = vadd.f32 %v6766, %v6942
      %v6944 = vpop.f32.mrf.mxu0
      %6945 = vmatprep.mubr.f32.mxu0 %v6727
      %6946 = vmatmul.mubr.f32.gmra.mxu0 %v6726
      %v6947 = vpop.f32.mrf.mxu0
      %v6948 = vadd.f32 %v6766, %v6947
      %v6949 = vpop.f32.mrf.mxu0
      %6950 = vmatprep.mubr.f32.mxu0 %v6732
      %6951 = vmatmul.mubr.f32.gmra.mxu0 %v6731
      %v6952 = vpop.f32.mrf.mxu0
      %v6953 = vadd.f32 %v6766, %v6952
      %v6954 = vpop.f32.mrf.mxu0
      %6955 = vmatprep.mubr.f32.mxu0 %v6737
      %6956 = vmatmul.mubr.f32.gmra.mxu0 %v6736
      %v6957 = vpop.f32.mrf.mxu0
      %v6958 = vadd.f32 %v6766, %v6957
      %v6959 = vpop.f32.mrf.mxu0
      %6960 = vmatprep.mubr.f32.mxu0 %v6742
      %6961 = vmatmul.mubr.f32.gmra.mxu0 %v6741
      %v6962 = vpop.f32.mrf.mxu0
      %v6963 = vadd.f32 %v6766, %v6962
      %v6964 = vpop.f32.mrf.mxu0
      %6965 = vmatprep.mubr.f32.mxu0 %v6747
      %6966 = vmatmul.mubr.f32.gmra.mxu0 %v6746
      %v6967 = vpop.f32.mrf.mxu0
      %v6968 = vadd.f32 %v6766, %v6967
      %v6969 = vpop.f32.mrf.mxu0
      %6970 = vmatprep.mubr.f32.mxu0 %v6752
      %6971 = vmatmul.mubr.f32.gmra.mxu0 %v6751
      %v6972 = vpop.f32.mrf.mxu0
      %v6973 = vadd.f32 %v6766, %v6972
      %v6974 = vpop.f32.mrf.mxu0
      %6975 = vmatprep.mubr.f32.mxu0 %v6757
      %6976 = vmatmul.mubr.f32.gmra.mxu0 %v6756
      %v6977 = vpop.f32.mrf.mxu0
      %v6978 = vadd.f32 %v6766, %v6977
      %v6979 = vpop.f32.mrf.mxu0
      %6980 = vdwg.mxu0
      %6981 = vmatprep.subr.mxu0 0.0
      %6982 = vmatpush1.msra.mxu0 %v6643
      %6983 = vmatprep.subr.mxu0 0.0
      %6984 = vmatpush1.msra.mxu0 %v6642
      %6985 = vmatprep.subr.mxu0 0.0
      %6986 = vmatpush1.msra.mxu0 %v6641
      %6987 = vmatprep.subr.mxu0 0.0
      %6988 = vmatpush1.msra.mxu0 %v6640
      %6989 = vmatprep.subr.mxu0 0.0
      %6990 = vmatpush1.msra.mxu0 %v6639
      %6991 = vmatprep.subr.mxu0 0.0
      %6992 = vmatpush1.msra.mxu0 %v6638
      %6993 = vmatprep.subr.mxu0 0.0
      %6994 = vmatpush1.msra.mxu0 %v6637
      %6995 = vmatprep.subr.mxu0 0.0
      %6996 = vmatpush1.msra.mxu0 %v6636
      %6997 = vmatprep.subr.mxu0 0.0
      %6998 = vmatpush1.msra.mxu0 %v6635
      %6999 = vmatprep.subr.mxu0 0.0
      %7000 = vmatpush1.msra.mxu0 %v6634
      %7001 = vmatprep.subr.mxu0 0.0
      %7002 = vmatpush1.msra.mxu0 %v6633
      %7003 = vmatprep.subr.mxu0 0.0
      %7004 = vmatpush1.msra.mxu0 %v6632
      %7005 = vmatprep.subr.mxu0 0.0
      %7006 = vmatpush1.msra.mxu0 %v6631
      %7007 = vmatprep.subr.mxu0 0.0
      %7008 = vmatpush1.msra.mxu0 %v6630
      %7009 = vmatprep.subr.mxu0 0.0
      %7010 = vmatpush1.msra.mxu0 %v6629
      %7011 = vmatprep.subr.mxu0 0.0
      %7012 = vmatpush1.msra.mxu0 %v6628
      %7013 = vmatprep.subr.mxu0 0.0
      %7014 = vmatpush2.msra.mxu0 %v6659
      %7015 = vmatprep.subr.mxu0 0.0
      %7016 = vmatpush2.msra.mxu0 %v6658
      %7017 = vmatprep.subr.mxu0 0.0
      %7018 = vmatpush2.msra.mxu0 %v6657
      %7019 = vmatprep.subr.mxu0 0.0
      %7020 = vmatpush2.msra.mxu0 %v6656
      %7021 = vmatprep.subr.mxu0 0.0
      %7022 = vmatpush2.msra.mxu0 %v6655
      %7023 = vmatprep.subr.mxu0 0.0
      %7024 = vmatpush2.msra.mxu0 %v6654
      %7025 = vmatprep.subr.mxu0 0.0
      %7026 = vmatpush2.msra.mxu0 %v6653
      %7027 = vmatprep.subr.mxu0 0.0
      %7028 = vmatpush2.msra.mxu0 %v6652
      %7029 = vmatprep.subr.mxu0 0.0
      %7030 = vmatpush2.msra.mxu0 %v6651
      %7031 = vmatprep.subr.mxu0 0.0
      %7032 = vmatpush2.msra.mxu0 %v6650
      %7033 = vmatprep.subr.mxu0 0.0
      %7034 = vmatpush2.msra.mxu0 %v6649
      %7035 = vmatprep.subr.mxu0 0.0
      %7036 = vmatpush2.msra.mxu0 %v6648
      %7037 = vmatprep.subr.mxu0 0.0
      %7038 = vmatpush2.msra.mxu0 %v6647
      %7039 = vmatprep.subr.mxu0 0.0
      %7040 = vmatpush2.msra.mxu0 %v6646
      %7041 = vmatprep.subr.mxu0 0.0
      %7042 = vmatpush2.msra.mxu0 %v6645
      %7043 = vmatprep.subr.mxu0 0.0
      %7044 = vmatpush2.msra.mxu0 %v6644
      %7045 = vmatprep.mubr.f32.mxu0 %v6674
      %7046 = vmatmul.mubr.f32.gmra.mxu0 %v6673
      %v7047 = vpop.f32.mrf.mxu0
      %v7048 = vadd.f32 %v6893, %v7047
      %v7049 = vpop.f32.mrf.mxu0
      %7050 = vmatprep.mubr.f32.mxu0 %v6679
      %7051 = vmatmul.mubr.f32.gmra.mxu0 %v6678
      %v7052 = vpop.f32.mrf.mxu0
      %v7053 = vadd.f32 %v6898, %v7052
      %v7054 = vpop.f32.mrf.mxu0
      %7055 = vmatprep.mubr.f32.mxu0 %v6684
      %7056 = vmatmul.mubr.f32.gmra.mxu0 %v6683
      %v7057 = vpop.f32.mrf.mxu0
      %v7058 = vadd.f32 %v6903, %v7057
      %v7059 = vpop.f32.mrf.mxu0
      %7060 = vmatprep.mubr.f32.mxu0 %v6689
      %7061 = vmatmul.mubr.f32.gmra.mxu0 %v6688
      %v7062 = vpop.f32.mrf.mxu0
      %v7063 = vadd.f32 %v6908, %v7062
      %v7064 = vpop.f32.mrf.mxu0
      %7065 = vmatprep.mubr.f32.mxu0 %v6694
      %7066 = vmatmul.mubr.f32.gmra.mxu0 %v6693
      %v7067 = vpop.f32.mrf.mxu0
      %v7068 = vadd.f32 %v6913, %v7067
      %v7069 = vpop.f32.mrf.mxu0
      %7070 = vmatprep.mubr.f32.mxu0 %v6699
      %7071 = vmatmul.mubr.f32.gmra.mxu0 %v6698
      %v7072 = vpop.f32.mrf.mxu0
      %v7073 = vadd.f32 %v6918, %v7072
      %v7074 = vpop.f32.mrf.mxu0
      %7075 = vmatprep.mubr.f32.mxu0 %v6704
      %7076 = vmatmul.mubr.f32.gmra.mxu0 %v6703
      %v7077 = vpop.f32.mrf.mxu0
      %v7078 = vadd.f32 %v6923, %v7077
      %v7079 = vpop.f32.mrf.mxu0
      %7080 = vmatprep.mubr.f32.mxu0 %v6709
      %7081 = vmatmul.mubr.f32.gmra.mxu0 %v6708
      %v7082 = vpop.f32.mrf.mxu0
      %v7083 = vadd.f32 %v6928, %v7082
      %v7084 = vpop.f32.mrf.mxu0
      %7085 = vmatprep.mubr.f32.mxu0 %v6714
      %7086 = vmatmul.mubr.f32.gmra.mxu0 %v6713
      %v7087 = vpop.f32.mrf.mxu0
      %v7088 = vadd.f32 %v6933, %v7087
      %v7089 = vpop.f32.mrf.mxu0
      %7090 = vmatprep.mubr.f32.mxu0 %v6719
      %7091 = vmatmul.mubr.f32.gmra.mxu0 %v6718
      %v7092 = vpop.f32.mrf.mxu0
      %v7093 = vadd.f32 %v6938, %v7092
      %v7094 = vpop.f32.mrf.mxu0
      %7095 = vmatprep.mubr.f32.mxu0 %v6724
      %7096 = vmatmul.mubr.f32.gmra.mxu0 %v6723
      %v7097 = vpop.f32.mrf.mxu0
      %v7098 = vadd.f32 %v6943, %v7097
      %v7099 = vpop.f32.mrf.mxu0
      %7100 = vmatprep.mubr.f32.mxu0 %v6729
      %7101 = vmatmul.mubr.f32.gmra.mxu0 %v6728
      %v7102 = vpop.f32.mrf.mxu0
      %v7103 = vadd.f32 %v6948, %v7102
      %v7104 = vpop.f32.mrf.mxu0
      %7105 = vmatprep.mubr.f32.mxu0 %v6734
      %7106 = vmatmul.mubr.f32.gmra.mxu0 %v6733
      %v7107 = vpop.f32.mrf.mxu0
      %v7108 = vadd.f32 %v6953, %v7107
      %v7109 = vpop.f32.mrf.mxu0
      %7110 = vmatprep.mubr.f32.mxu0 %v6739
      %7111 = vmatmul.mubr.f32.gmra.mxu0 %v6738
      %v7112 = vpop.f32.mrf.mxu0
      %v7113 = vadd.f32 %v6958, %v7112
      %v7114 = vpop.f32.mrf.mxu0
      %7115 = vmatprep.mubr.f32.mxu0 %v6744
      %7116 = vmatmul.mubr.f32.gmra.mxu0 %v6743
      %v7117 = vpop.f32.mrf.mxu0
      %v7118 = vadd.f32 %v6963, %v7117
      %v7119 = vpop.f32.mrf.mxu0
      %7120 = vmatprep.mubr.f32.mxu0 %v6749
      %7121 = vmatmul.mubr.f32.gmra.mxu0 %v6748
      %v7122 = vpop.f32.mrf.mxu0
      %v7123 = vadd.f32 %v6968, %v7122
      %v7124 = vpop.f32.mrf.mxu0
      %7125 = vmatprep.mubr.f32.mxu0 %v6754
      %7126 = vmatmul.mubr.f32.gmra.mxu0 %v6753
      %v7127 = vpop.f32.mrf.mxu0
      %v7128 = vadd.f32 %v6973, %v7127
      %v7129 = vpop.f32.mrf.mxu0
      %7130 = vmatprep.mubr.f32.mxu0 %v6759
      %7131 = vmatmul.mubr.f32.gmra.mxu0 %v6758
      %v7132 = vpop.f32.mrf.mxu0
      %v7133 = vadd.f32 %v6978, %v7132
      %v7134 = vpop.f32.mrf.mxu0
      %7135 = vdwg.mxu0
      %7136 = vmatprep.subr.mxu0 0.0
      %7137 = vmatpush1.msra.mxu0 0.0
      %7138 = vmatprep.subr.mxu0 0.0
      %7139 = vmatpush1.msra.mxu0 0.0
      %7140 = vmatprep.subr.mxu0 0.0
      %7141 = vmatpush1.msra.mxu0 0.0
      %7142 = vmatprep.subr.mxu0 0.0
      %7143 = vmatpush1.msra.mxu0 0.0
      %7144 = vmatprep.subr.mxu0 0.0
      %7145 = vmatpush1.msra.mxu0 0.0
      %7146 = vmatprep.subr.mxu0 0.0
      %7147 = vmatpush1.msra.mxu0 %v6824
      %7148 = vmatprep.subr.mxu0 0.0
      %7149 = vmatpush1.msra.mxu0 %v6669
      %7150 = vmatprep.subr.mxu0 0.0
      %7151 = vmatpush1.msra.mxu0 %v6668
      %7152 = vmatprep.subr.mxu0 0.0
      %7153 = vmatpush1.msra.mxu0 %v6667
      %7154 = vmatprep.subr.mxu0 0.0
      %7155 = vmatpush1.msra.mxu0 %v6666
      %7156 = vmatprep.subr.mxu0 0.0
      %7157 = vmatpush1.msra.mxu0 %v6665
      %7158 = vmatprep.subr.mxu0 0.0
      %7159 = vmatpush1.msra.mxu0 %v6664
      %7160 = vmatprep.subr.mxu0 0.0
      %7161 = vmatpush1.msra.mxu0 %v6663
      %7162 = vmatprep.subr.mxu0 0.0
      %7163 = vmatpush1.msra.mxu0 %v6662
      %7164 = vmatprep.subr.mxu0 0.0
      %7165 = vmatpush1.msra.mxu0 %v6661
      %7166 = vmatprep.subr.mxu0 0.0
      %7167 = vmatpush1.msra.mxu0 %v6660
      %7168 = vmatprep.subr.mxu0 0.0
      %7169 = vmatpush2.msra.mxu0 0.0
      %7170 = vmatprep.subr.mxu0 0.0
      %7171 = vmatpush2.msra.mxu0 0.0
      %7172 = vmatprep.subr.mxu0 0.0
      %7173 = vmatpush2.msra.mxu0 0.0
      %7174 = vmatprep.subr.mxu0 0.0
      %7175 = vmatpush2.msra.mxu0 0.0
      %7176 = vmatprep.subr.mxu0 0.0
      %7177 = vmatpush2.msra.mxu0 0.0
      %7178 = vmatprep.subr.mxu0 0.0
      %7179 = vmatpush2.msra.mxu0 0.0
      %7180 = vmatprep.subr.mxu0 0.0
      %7181 = vmatpush2.msra.mxu0 0.0
      %7182 = vmatprep.subr.mxu0 0.0
      %7183 = vmatpush2.msra.mxu0 0.0
      %7184 = vmatprep.subr.mxu0 0.0
      %7185 = vmatpush2.msra.mxu0 0.0
      %7186 = vmatprep.subr.mxu0 0.0
      %7187 = vmatpush2.msra.mxu0 0.0
      %7188 = vmatprep.subr.mxu0 0.0
      %7189 = vmatpush2.msra.mxu0 0.0
      %7190 = vmatprep.subr.mxu0 0.0
      %7191 = vmatpush2.msra.mxu0 0.0
      %7192 = vmatprep.subr.mxu0 0.0
      %7193 = vmatpush2.msra.mxu0 0.0
      %7194 = vmatprep.subr.mxu0 0.0
      %7195 = vmatpush2.msra.mxu0 0.0
      %7196 = vmatprep.subr.mxu0 0.0
      %7197 = vmatpush2.msra.mxu0 0.0
      %7198 = vmatprep.subr.mxu0 0.0
      %7199 = vmatpush2.msra.mxu0 0.0
      %7200 = vmatprep.mubr.f32.mxu0 0.0
      %7201 = vmatmul.mubr.f32.gmra.mxu0 %v6770
      %v7202 = vpop.f32.mrf.mxu0
      %v7203 = vadd.f32 %v7048, %v7202
      %v7204 = vpop.f32.mrf.mxu0
      %7205 = vmatprep.mubr.f32.mxu0 0.0
      %7206 = vmatmul.mubr.f32.gmra.mxu0 %v6773
      %v7207 = vpop.f32.mrf.mxu0
      %v7208 = vadd.f32 %v7053, %v7207
      %v7209 = vpop.f32.mrf.mxu0
      %7210 = vmatprep.mubr.f32.mxu0 0.0
      %7211 = vmatmul.mubr.f32.gmra.mxu0 %v6776
      %v7212 = vpop.f32.mrf.mxu0
      %v7213 = vadd.f32 %v7058, %v7212
      %v7214 = vpop.f32.mrf.mxu0
      %7215 = vmatprep.mubr.f32.mxu0 0.0
      %7216 = vmatmul.mubr.f32.gmra.mxu0 %v6779
      %v7217 = vpop.f32.mrf.mxu0
      %v7218 = vadd.f32 %v7063, %v7217
      %v7219 = vpop.f32.mrf.mxu0
      %7220 = vmatprep.mubr.f32.mxu0 0.0
      %7221 = vmatmul.mubr.f32.gmra.mxu0 %v6782
      %v7222 = vpop.f32.mrf.mxu0
      %v7223 = vadd.f32 %v7068, %v7222
      %v7224 = vpop.f32.mrf.mxu0
      %7225 = vmatprep.mubr.f32.mxu0 0.0
      %7226 = vmatmul.mubr.f32.gmra.mxu0 %v6785
      %v7227 = vpop.f32.mrf.mxu0
      %v7228 = vadd.f32 %v7073, %v7227
      %v7229 = vpop.f32.mrf.mxu0
      %7230 = vmatprep.mubr.f32.mxu0 0.0
      %7231 = vmatmul.mubr.f32.gmra.mxu0 %v6788
      %v7232 = vpop.f32.mrf.mxu0
      %v7233 = vadd.f32 %v7078, %v7232
      %v7234 = vpop.f32.mrf.mxu0
      %7235 = vmatprep.mubr.f32.mxu0 0.0
      %7236 = vmatmul.mubr.f32.gmra.mxu0 %v6791
      %v7237 = vpop.f32.mrf.mxu0
      %v7238 = vadd.f32 %v7083, %v7237
      %v7239 = vpop.f32.mrf.mxu0
      %7240 = vmatprep.mubr.f32.mxu0 0.0
      %7241 = vmatmul.mubr.f32.gmra.mxu0 %v6794
      %v7242 = vpop.f32.mrf.mxu0
      %v7243 = vadd.f32 %v7088, %v7242
      %v7244 = vpop.f32.mrf.mxu0
      %7245 = vmatprep.mubr.f32.mxu0 0.0
      %7246 = vmatmul.mubr.f32.gmra.mxu0 %v6797
      %v7247 = vpop.f32.mrf.mxu0
      %v7248 = vadd.f32 %v7093, %v7247
      %v7249 = vpop.f32.mrf.mxu0
      %7250 = vmatprep.mubr.f32.mxu0 0.0
      %7251 = vmatmul.mubr.f32.gmra.mxu0 %v6800
      %v7252 = vpop.f32.mrf.mxu0
      %v7253 = vadd.f32 %v7098, %v7252
      %v7254 = vpop.f32.mrf.mxu0
      %7255 = vmatprep.mubr.f32.mxu0 0.0
      %7256 = vmatmul.mubr.f32.gmra.mxu0 %v6803
      %v7257 = vpop.f32.mrf.mxu0
      %v7258 = vadd.f32 %v7103, %v7257
      %v7259 = vpop.f32.mrf.mxu0
      %7260 = vmatprep.mubr.f32.mxu0 0.0
      %7261 = vmatmul.mubr.f32.gmra.mxu0 %v6806
      %v7262 = vpop.f32.mrf.mxu0
      %v7263 = vadd.f32 %v7108, %v7262
      %v7264 = vpop.f32.mrf.mxu0
      %7265 = vmatprep.mubr.f32.mxu0 0.0
      %7266 = vmatmul.mubr.f32.gmra.mxu0 %v6809
      %v7267 = vpop.f32.mrf.mxu0
      %v7268 = vadd.f32 %v7113, %v7267
      %v7269 = vpop.f32.mrf.mxu0
      %7270 = vmatprep.mubr.f32.mxu0 0.0
      %7271 = vmatmul.mubr.f32.gmra.mxu0 %v6812
      %v7272 = vpop.f32.mrf.mxu0
      %v7273 = vadd.f32 %v7118, %v7272
      %v7274 = vpop.f32.mrf.mxu0
      %7275 = vmatprep.mubr.f32.mxu0 0.0
      %7276 = vmatmul.mubr.f32.gmra.mxu0 %v6815
      %v7277 = vpop.f32.mrf.mxu0
      %v7278 = vadd.f32 %v7123, %v7277
      %v7279 = vpop.f32.mrf.mxu0
      %7280 = vmatprep.mubr.f32.mxu0 0.0
      %7281 = vmatmul.mubr.f32.gmra.mxu0 %v6818
      %v7282 = vpop.f32.mrf.mxu0
      %v7283 = vadd.f32 %v7128, %v7282
      %v7284 = vpop.f32.mrf.mxu0
      %7285 = vmatprep.mubr.f32.mxu0 0.0
      %7286 = vmatmul.mubr.f32.gmra.mxu0 %v6821
      %v7287 = vpop.f32.mrf.mxu0
      %v7288 = vadd.f32 %v7133, %v7287
      %v7289 = vpop.f32.mrf.mxu0
      %7290 = vdwg.mxu0
      %v7291 = vmax.f32 %v7203, 0.0
      %v7292 = vmax.f32 %v7208, 0.0
      %v7293 = vmax.f32 %v7213, 0.0
      %v7294 = vmax.f32 %v7218, 0.0
      %v7295 = vmax.f32 %v7223, 0.0
      %v7296 = vmax.f32 %v7228, 0.0
      %v7297 = vmax.f32 %v7233, 0.0
      %v7298 = vmax.f32 %v7238, 0.0
      %v7299 = vmax.f32 %v7243, 0.0
      %v7300 = vmax.f32 %v7248, 0.0
      %v7301 = vmax.f32 %v7253, 0.0
      %v7302 = vmax.f32 %v7258, 0.0
      %v7303 = vmax.f32 %v7263, 0.0
      %v7304 = vmax.f32 %v7268, 0.0
      %v7305 = vmax.f32 %v7273, 0.0
      %v7306 = vmax.f32 %v7278, 0.0
      %v7307 = vmax.f32 %v7283, 0.0
      %v7308 = vmax.f32 %v7288, 0.0
      %v7309 = vpack.c.bf16 %v7292, %v7291
      %v7310 = vpack.c.bf16 %v7294, %v7293
      %v7311 = vpack.c.bf16 %v7296, %v7295
      %v7312 = vpack.c.bf16 %v7298, %v7297
      %v7313 = vpack.c.bf16 %v7299, %v7299
      %v7319 = vunpack.c.l.b16 %v7309
      %v7320 = vunpack.c.h.b16 %v7309
      %v7321 = vunpack.c.l.b16 %v7310
      %v7322 = vunpack.c.h.b16 %v7310
      %v7323 = vunpack.c.l.b16 %v7311
      %v7324 = vunpack.c.h.b16 %v7311
      %v7325 = vunpack.c.l.b16 %v7312
      %v7326 = vunpack.c.h.b16 %v7312
      %v7327 = vunpack.c.l.b16 %v7313
      %v7328 = vpack.c.b16 %v7319, %v7319
      %v7329 = vpack.c.b16 %v7320, %v7320
      %v7330 = vpack.c.b16 %v7321, %v7321
      %v7331 = vpack.c.b16 %v7322, %v7322
      %v7332 = vpack.c.b16 %v7323, %v7323
      %v7333 = vpack.c.b16 %v7324, %v7324
      %v7334 = vpack.c.b16 %v7325, %v7325
      %v7335 = vpack.c.b16 %v7326, %v7326
      %v7336 = vpack.c.b16 %v7327, %v7327
      %vm7346 = vcmask 519168
      %7347 = vst.msk [vmem:[%s251] sm:$0xf] %vm7346, %v7328
      %7348 = vst.msk [vmem:[%s251 + $0x4] sm:$0xf] %vm7346, %v7329
      %7349 = vst.msk [vmem:[%s251 + $0x8] sm:$0xf] %vm7346, %v7330
      %7350 = vst.msk [vmem:[%s251 + $0xc] sm:$0xf] %vm7346, %v7331
      %7351 = vst.msk [vmem:[%s251 + $0x10] sm:$0xf] %vm7346, %v7332
      %7352 = vst.msk [vmem:[%s251 + $0x14] sm:$0xf] %vm7346, %v7333
      %7353 = vst.msk [vmem:[%s251 + $0x18] sm:$0xf] %vm7346, %v7334
      %7354 = vst.msk [vmem:[%s251 + $0x1c] sm:$0xf] %vm7346, %v7335
      %7355 = vst.msk [vmem:[%s251 + $0x20] sm:$0xf] %vm7346, %v7336
      %v7356 = vpack.c.bf16 %v7301, %v7300
      %v7357 = vpack.c.bf16 %v7303, %v7302
      %v7358 = vpack.c.bf16 %v7305, %v7304
      %v7359 = vpack.c.bf16 %v7307, %v7306
      %v7360 = vpack.c.bf16 %v7308, %v7308
      %v7366 = vunpack.c.l.b16 %v7356
      %v7367 = vunpack.c.h.b16 %v7356
      %v7368 = vunpack.c.l.b16 %v7357
      %v7369 = vunpack.c.h.b16 %v7357
      %v7370 = vunpack.c.l.b16 %v7358
      %v7371 = vunpack.c.h.b16 %v7358
      %v7372 = vunpack.c.l.b16 %v7359
      %v7373 = vunpack.c.h.b16 %v7359
      %v7374 = vunpack.c.l.b16 %v7360
      %v7375 = vpack.c.b16 %v7366, %v7366
      %v7376 = vpack.c.b16 %v7367, %v7367
      %v7377 = vpack.c.b16 %v7368, %v7368
      %v7378 = vpack.c.b16 %v7369, %v7369
      %v7379 = vpack.c.b16 %v7370, %v7370
      %v7380 = vpack.c.b16 %v7371, %v7371
      %v7381 = vpack.c.b16 %v7372, %v7372
      %v7382 = vpack.c.b16 %v7373, %v7373
      %v7383 = vpack.c.b16 %v7374, %v7374
      %7384 = vrot.lane.b32.xlu0 %v7375, 64
      %v7385 = vpop.permute.xlu0 %7384
      %7386 = vrot.lane.b32.xlu0 %v7376, 64
      %v7387 = vpop.permute.xlu0 %7386
      %7388 = vrot.lane.b32.xlu0 %v7377, 64
      %v7389 = vpop.permute.xlu0 %7388
      %7390 = vrot.lane.b32.xlu0 %v7378, 64
      %v7391 = vpop.permute.xlu0 %7390
      %7392 = vrot.lane.b32.xlu0 %v7379, 64
      %v7393 = vpop.permute.xlu0 %7392
      %7394 = vrot.lane.b32.xlu0 %v7380, 64
      %v7395 = vpop.permute.xlu0 %7394
      %7396 = vrot.lane.b32.xlu0 %v7381, 64
      %v7397 = vpop.permute.xlu0 %7396
      %7398 = vrot.lane.b32.xlu0 %v7382, 64
      %v7399 = vpop.permute.xlu0 %7398
      %7400 = vrot.lane.b32.xlu0 %v7383, 64
      %v7401 = vpop.permute.xlu0 %7400
      %vm7411 = vcmask 1043968
      %7412 = vst.msk [vmem:[%s251] sm:$0xf] %vm7411, %v7385
      %7413 = vst.msk [vmem:[%s251 + $0x4] sm:$0xf] %vm7411, %v7387
      %7414 = vst.msk [vmem:[%s251 + $0x8] sm:$0xf] %vm7411, %v7389
      %7415 = vst.msk [vmem:[%s251 + $0xc] sm:$0xf] %vm7411, %v7391
      %7416 = vst.msk [vmem:[%s251 + $0x10] sm:$0xf] %vm7411, %v7393
      %7417 = vst.msk [vmem:[%s251 + $0x14] sm:$0xf] %vm7411, %v7395
      %7418 = vst.msk [vmem:[%s251 + $0x18] sm:$0xf] %vm7411, %v7397
      %7419 = vst.msk [vmem:[%s251 + $0x1c] sm:$0xf] %vm7411, %v7399
      %7420 = vst.msk [vmem:[%s251 + $0x20] sm:$0xf] %vm7411, %v7401
      %p7421 = scmp.lt.s32.totalorder %s17, 1
      %s7422 = scalar_select %p7421, %s17, 1
      %s7423 = smul.addr %s7422, 9
      %s7424 = smul.addr %s7423, 4
      %s7425 = scalar_lea.vmem %s6, %s7424
      // Predicated region
      $region45: #{net_forward.2} parent=43 // pred_check
        %p7426 = pneg %p166
      $region46: #{net_forward.2} parent=43 // pred_check_branch
        %7428 = sbr.rel (%p7426) target = $region48
      $region47: #{net_forward.2} parent=43 // pred_region
        _
      $region48: #{net_forward.2} parent=43 // pred_fallthru
        _
    $region44: #{net_forward.2} parent=5 // pred_fallthru
      _
    %p7429 = scmp.le.s32.totalorder 2, %s12
    // Predicated region
    $region49: #{net_forward.2} parent=5 // pred_check
      %p7430 = pneg %p7429
    $region50: #{net_forward.2} parent=5 // pred_check_branch
      %7432 = sbr.rel (%p7430) target = $region52
    $region51: #{net_forward.2} parent=5 // pred_region
      %s7433 = ssub.s32 %s12, 2
      // Predicated region
      $region53: #{net_forward.2} parent=51 // pred_check
        %p7434 = pneg %p172
      $region54: #{net_forward.2} parent=51 // pred_check_branch
        %7436 = sbr.rel (%p7434) target = $region56
      $region55: #{net_forward.2} parent=51 // pred_region
        %p7437 = scmp.lt.s32.totalorder %s18, 1
        %s7438 = scalar_select %p7437, %s18, 1
        %s7439 = smul.addr %s7438, 9
        %s7440 = smul.addr %s7439, 4
        %s7441 = scalar_lea.vmem %s6, %s7440
      $region56: #{net_forward.2} parent=51 // pred_fallthru
        _
    $region52: #{net_forward.2} parent=5 // pred_fallthru
      _
  $region6: #{net_forward.2} parent=0 // loop_footer
    %s16 = sadd.s32 1, %s12
  $region7: #{net_forward.2} parent=0 // loop_footer_branch
    %11 = sbr.rel target = $region3
  $region8: #{net_forward.2} parent=0 // loop_exit
    _

</llo_original>
